<compile_context>
chip_gen: v5e
topology: v5e:2x2
jax: 0.10.0
libtpu: 0.0.40
codegen_flags: <defaults>
</compile_context>

<pallas_src>
import jax
import jax.numpy as jnp
from jax.experimental import pallas as pl
from jax.experimental.pallas import tpu as pltpu

IMG_FEATS = 28 * 28   # 784
PAD_FEATS = 896       # 7 * 128 -> lane-dense padding of the 784-wide output


def _round_up(x, m):
    return (x + m - 1) // m * m


def _leaky_relu(x, slope=0.01):
    return jnp.where(x > 0, x, slope * x)


def angri_kernel(
    t_ref, img_ref,
    w11_ref, b11_ref, w12_ref, b12_ref, w13_ref, b13_ref,
    w21_ref, b21_ref, w22_ref, b22_ref, w23_ref, b23_ref,
    w4t_ref, w4im_ref, b4_ref, w5_ref, b5_ref, w6_ref, b6_ref,
    out_ref,
):
    f32 = jnp.float32
    bf16 = jnp.bfloat16

    def dense(x, w_ref, b_ref):
        # bf16 x bf16 on the MXU, f32 accumulation; bias add in f32.
        return jnp.dot(x.astype(bf16), w_ref[...],
                       preferred_element_type=f32) + b_ref[...]

    # ---- t branch: 10 -> 128 -> 256 -> 512, leaky_relu each ----
    t = t_ref[...].astype(f32)
    t = _leaky_relu(dense(t, w11_ref, b11_ref))
    t = _leaky_relu(dense(t, w12_ref, b12_ref))
    t = _leaky_relu(dense(t, w13_ref, b13_ref))

    # ---- img branch: 784 -> 128 (relu) -> 256 -> 512 ----
    im = img_ref[...].astype(f32)
    im = jnp.maximum(dense(im, w21_ref, b21_ref), 0.0)
    im = _leaky_relu(dense(im, w22_ref, b22_ref))
    im = _leaky_relu(dense(im, w23_ref, b23_ref))

    # ---- fused head ----
    # cat([t, im], dim=1) @ W4  ==  t @ W4[:512] + im @ W4[512:]
    # (W4 pre-split in the wrapper -> no in-kernel slice / concatenate)
    s = (jnp.dot(t.astype(bf16), w4t_ref[...], preferred_element_type=f32)
         + jnp.dot(im.astype(bf16), w4im_ref[...], preferred_element_type=f32)
         + b4_ref[...])
    s = _leaky_relu(s)
    s = _leaky_relu(dense(s, w5_ref, b5_ref))
    out = jnp.tanh(dense(s, w6_ref, b6_ref))
    out_ref[...] = out.astype(out_ref.dtype)


def init_params(key):
    """Deterministic init; weights bf16 (in, out), biases fp32 (1, out).

    fc4 is pre-split into the t-half and img-half of its input rows.
    fc6 output columns (and bias) are zero-padded 784 -> 896 so the kernel's
    output store is lane-dense; padding contributes exactly zero.
    """
    dims = {
        "fc11": (10, 128), "fc12": (128, 256), "fc13": (256, 512),
        "fc21": (IMG_FEATS, 128), "fc22": (128, 256), "fc23": (256, 512),
        "fc4": (1024, 1024), "fc5": (1024, 512), "fc6": (512, IMG_FEATS),
    }
    params = {}
    keys = jax.random.split(key, len(dims))
    for k, (name, (fin, fout)) in zip(keys, dims.items()):
        kw, kb = jax.random.split(k)
        bound = 1.0 / (fin ** 0.5)  # nn.Linear default U(-1/sqrt(fin), 1/sqrt(fin))
        w = jax.random.uniform(kw, (fin, fout), jnp.float32, -bound, bound)
        b = jax.random.uniform(kb, (1, fout), jnp.float32, -bound, bound)
        if name == "fc6":    # pad output cols 784 -> 896 with zeros
            w = jnp.pad(w, ((0, 0), (0, PAD_FEATS - IMG_FEATS)))
            b = jnp.pad(b, ((0, 0), (0, PAD_FEATS - IMG_FEATS)))
        w = w.astype(jnp.bfloat16)   # bf16 weights: halve HBM/VMEM bytes
        if name == "fc4":            # split into t-half / img-half rows
            params["fc4t_w"] = w[:512]
            params["fc4im_w"] = w[512:]
            params["fc4_b"] = b
        else:
            params[name + "_w"] = w
            params[name + "_b"] = b
    return params


def _resident_spec(shape):
    """Weight/bias spec: same block every grid step, single-buffered."""
    try:
        return pl.BlockSpec(shape, lambda i: (0, 0),
                            pipeline_mode=pl.Buffered(1))
    except TypeError:  # older jax without pipeline_mode kwarg
        return pl.BlockSpec(shape, lambda i: (0, 0))


@jax.jit
def angri_forward(t, img, params):
    B = t.shape[0]
    t = t.astype(jnp.float32)
    img_flat = img.reshape(B, -1).astype(jnp.float32)          # (B, 784)

    # Batch tiling: at least 2 tiles once B >= 16 (feeds both v7x TCs),
    # capped at TM=512; tiny batches round up to the 8-row sublane granule.
    if B < 16:
        TM = _round_up(B, 8)
    else:
        TM = min(512, _round_up((B + 1) // 2, 8))
    B_pad = _round_up(B, TM)
    if B_pad != B:
        t = jnp.pad(t, ((0, B_pad - B), (0, 0)))
        img_flat = jnp.pad(img_flat, ((0, B_pad - B), (0, 0)))

    grid = (B_pad // TM,)

    def act_spec(feat):
        return pl.BlockSpec((TM, feat), lambda i: (i, 0))

    weight_args = [
        params["fc11_w"], params["fc11_b"],
        params["fc12_w"], params["fc12_b"],
        params["fc13_w"], params["fc13_b"],
        params["fc21_w"], params["fc21_b"],
        params["fc22_w"], params["fc22_b"],
        params["fc23_w"], params["fc23_b"],
        params["fc4t_w"], params["fc4im_w"], params["fc4_b"],
        params["fc5_w"], params["fc5_b"],
        params["fc6_w"], params["fc6_b"],
    ]
    in_specs = ([act_spec(10), act_spec(IMG_FEATS)]
                + [_resident_spec(a.shape) for a in weight_args])

    # Advisory cost estimate for XLA's scheduler.
    flops_per_row = 2 * (10 * 128 + 128 * 256 + 256 * 512
                         + IMG_FEATS * 128 + 128 * 256 + 256 * 512
                         + 1024 * 1024 + 1024 * 512 + 512 * PAD_FEATS)
    param_bytes = sum(int(a.size) * a.dtype.itemsize for a in weight_args)
    cost = pl.CostEstimate(
        flops=flops_per_row * B_pad,
        transcendentals=B_pad * PAD_FEATS,           # tanh
        bytes_accessed=(param_bytes
                        + 4 * B_pad * (10 + IMG_FEATS)   # inputs (f32)
                        + 4 * B_pad * PAD_FEATS))        # output (f32)

    out_padded = pl.pallas_call(
        angri_kernel,
        grid=grid,
        out_shape=jax.ShapeDtypeStruct((B_pad, PAD_FEATS), jnp.float32),
        in_specs=in_specs,
        out_specs=pl.BlockSpec((TM, PAD_FEATS), lambda i: (i, 0)),
        compiler_params=pltpu.CompilerParams(
            dimension_semantics=(
                ("parallel",) if grid[0] > 1 else ("arbitrary",)),
            vmem_limit_bytes=48 << 20),   # fits v7x's 64 MiB physical VMEM
        cost_estimate=cost,
    )(t, img_flat, *weight_args)

    return out_padded[:B, :IMG_FEATS].reshape(B, 1, 28, 28)


def _reference_forward(t, img, params):
    """Pure-JAX reference using the same bf16-weight / bf16-activation dots
    with f32 accumulation, so it matches the kernel's numerics."""
    f32, bf16 = jnp.float32, jnp.bfloat16
    lrelu = lambda x: jnp.where(x > 0, x, 0.01 * x)

    def dense(x, w, b):
        return jnp.dot(x.astype(bf16), w, preferred_element_type=f32) + b

    tt = t.astype(f32)
    tt = lrelu(dense(tt, params["fc11_w"], params["fc11_b"]))
    tt = lrelu(dense(tt, params["fc12_w"], params["fc12_b"]))
    tt = lrelu(dense(tt, params["fc13_w"], params["fc13_b"]))

    im = img.reshape(img.shape[0], -1).astype(f32)
    im = jnp.maximum(dense(im, params["fc21_w"], params["fc21_b"]), 0.0)
    im = lrelu(dense(im, params["fc22_w"], params["fc22_b"]))
    im = lrelu(dense(im, params["fc23_w"], params["fc23_b"]))

    s = (jnp.dot(tt.astype(bf16), params["fc4t_w"], preferred_element_type=f32)
         + jnp.dot(im.astype(bf16), params["fc4im_w"], preferred_element_type=f32)
         + params["fc4_b"])
    s = lrelu(s)
    s = lrelu(dense(s, params["fc5_w"], params["fc5_b"]))
    out = jnp.tanh(dense(s, params["fc6_w"], params["fc6_b"]))
    return out[:, :IMG_FEATS].reshape(-1, 1, 28, 28)


if __name__ == "__main__":
    key = jax.random.PRNGKey(0)
    k_params, k_t, k_img = jax.random.split(key, 3)

    B = 2
    params = init_params(k_params)
    t_in = jax.random.normal(k_t, (B, 10), jnp.float32)
    img_in = jax.random.normal(k_img, (B, 1, 28, 28), jnp.float32)

    out = angri_forward(t_in, img_in, params)
    out = jax.block_until_ready(out)

    ref = _reference_forward(t_in, img_in, params)
    assert out.shape == (B, 1, 28, 28), out.shape
    err = float(jnp.max(jnp.abs(out - ref)))
    assert err < 2e-3, err

    print("KERNEL_OK")
</pallas_src>

<mosaic_0001>
module attributes {stable_mosaic.version = 11 : i64} {
  func.func @angri_kernel(%arg0: i32, %arg1: memref<8x10xf32, #tpu.memory_space<vmem>>, %arg2: memref<8x784xf32, #tpu.memory_space<vmem>>, %arg3: memref<10x128xbf16, #tpu.memory_space<vmem>>, %arg4: memref<1x128xf32, #tpu.memory_space<vmem>>, %arg5: memref<128x256xbf16, #tpu.memory_space<vmem>>, %arg6: memref<1x256xf32, #tpu.memory_space<vmem>>, %arg7: memref<256x512xbf16, #tpu.memory_space<vmem>>, %arg8: memref<1x512xf32, #tpu.memory_space<vmem>>, %arg9: memref<784x128xbf16, #tpu.memory_space<vmem>>, %arg10: memref<1x128xf32, #tpu.memory_space<vmem>>, %arg11: memref<128x256xbf16, #tpu.memory_space<vmem>>, %arg12: memref<1x256xf32, #tpu.memory_space<vmem>>, %arg13: memref<256x512xbf16, #tpu.memory_space<vmem>>, %arg14: memref<1x512xf32, #tpu.memory_space<vmem>>, %arg15: memref<512x1024xbf16, #tpu.memory_space<vmem>>, %arg16: memref<512x1024xbf16, #tpu.memory_space<vmem>>, %arg17: memref<1x1024xf32, #tpu.memory_space<vmem>>, %arg18: memref<1024x512xbf16, #tpu.memory_space<vmem>>, %arg19: memref<1x512xf32, #tpu.memory_space<vmem>>, %arg20: memref<512x896xbf16, #tpu.memory_space<vmem>>, %arg21: memref<1x896xf32, #tpu.memory_space<vmem>>, %arg22: memref<8x896xf32, #tpu.memory_space<vmem>>) attributes {dimension_semantics = [#tpu.dimension_semantics<arbitrary>], iteration_bounds = array<i64: 1>, scalar_prefetch = 0 : i64, scratch_operands = 0 : i64, tpu.core_type = #tpu.core_type<tc>, window_params = [{transform_indices = @transform_0, window_bounds = array<i64: 8, 10>}, {transform_indices = @transform_1, window_bounds = array<i64: 8, 784>}, {pipeline_mode = #tpu.pipeline_mode<synchronous>, transform_indices = @transform_2, window_bounds = array<i64: 10, 128>}, {pipeline_mode = #tpu.pipeline_mode<synchronous>, transform_indices = @transform_3, window_bounds = array<i64: 1, 128>}, {pipeline_mode = #tpu.pipeline_mode<synchronous>, transform_indices = @transform_4, window_bounds = array<i64: 128, 256>}, {pipeline_mode = #tpu.pipeline_mode<synchronous>, transform_indices = @transform_5, window_bounds = array<i64: 1, 256>}, {pipeline_mode = #tpu.pipeline_mode<synchronous>, transform_indices = @transform_6, window_bounds = array<i64: 256, 512>}, {pipeline_mode = #tpu.pipeline_mode<synchronous>, transform_indices = @transform_7, window_bounds = array<i64: 1, 512>}, {pipeline_mode = #tpu.pipeline_mode<synchronous>, transform_indices = @transform_8, window_bounds = array<i64: 784, 128>}, {pipeline_mode = #tpu.pipeline_mode<synchronous>, transform_indices = @transform_9, window_bounds = array<i64: 1, 128>}, {pipeline_mode = #tpu.pipeline_mode<synchronous>, transform_indices = @transform_10, window_bounds = array<i64: 128, 256>}, {pipeline_mode = #tpu.pipeline_mode<synchronous>, transform_indices = @transform_11, window_bounds = array<i64: 1, 256>}, {pipeline_mode = #tpu.pipeline_mode<synchronous>, transform_indices = @transform_12, window_bounds = array<i64: 256, 512>}, {pipeline_mode = #tpu.pipeline_mode<synchronous>, transform_indices = @transform_13, window_bounds = array<i64: 1, 512>}, {pipeline_mode = #tpu.pipeline_mode<synchronous>, transform_indices = @transform_14, window_bounds = array<i64: 512, 1024>}, {pipeline_mode = #tpu.pipeline_mode<synchronous>, transform_indices = @transform_15, window_bounds = array<i64: 512, 1024>}, {pipeline_mode = #tpu.pipeline_mode<synchronous>, transform_indices = @transform_16, window_bounds = array<i64: 1, 1024>}, {pipeline_mode = #tpu.pipeline_mode<synchronous>, transform_indices = @transform_17, window_bounds = array<i64: 1024, 512>}, {pipeline_mode = #tpu.pipeline_mode<synchronous>, transform_indices = @transform_18, window_bounds = array<i64: 1, 512>}, {pipeline_mode = #tpu.pipeline_mode<synchronous>, transform_indices = @transform_19, window_bounds = array<i64: 512, 896>}, {pipeline_mode = #tpu.pipeline_mode<synchronous>, transform_indices = @transform_20, window_bounds = array<i64: 1, 896>}, {transform_indices = @transform_21, window_bounds = array<i64: 8, 896>}]} {
    %c0 = arith.constant 0 : index
    %c0_0 = arith.constant 0 : index
    %0 = vector.load %arg1[%c0, %c0_0] : memref<8x10xf32, #tpu.memory_space<vmem>>, vector<8x10xf32>
    %1 = arith.truncf %0 : vector<8x10xf32> to vector<8x10xbf16>
    %c0_1 = arith.constant 0 : index
    %c0_2 = arith.constant 0 : index
    %2 = vector.load %arg3[%c0_1, %c0_2] : memref<10x128xbf16, #tpu.memory_space<vmem>>, vector<10x128xbf16>
    %cst = arith.constant dense<0.000000e+00> : vector<8x128xf32>
    %3 = tpu.matmul %1, %2, %cst {dimension_numbers = #tpu.dot_dimension_numbers<[1], [0], [0], [1], [0, 0, 1, 1], [], []>} : vector<8x10xbf16>, vector<10x128xbf16>, vector<8x128xf32> -> vector<8x128xf32>
    %c0_3 = arith.constant 0 : index
    %c0_4 = arith.constant 0 : index
    %4 = vector.load %arg4[%c0_3, %c0_4] : memref<1x128xf32, #tpu.memory_space<vmem>>, vector<1x128xf32>
    %5 = vector.broadcast %4 : vector<1x128xf32> to vector<8x128xf32>
    %6 = arith.addf %3, %5 : vector<8x128xf32>
    %cst_5 = arith.constant 0.000000e+00 : f32
    %7 = vector.broadcast %cst_5 : f32 to vector<8x128xf32>
    %8 = arith.cmpf ogt, %6, %7 : vector<8x128xf32>
    %cst_6 = arith.constant 0.00999999977 : f32
    %9 = vector.broadcast %cst_6 : f32 to vector<8x128xf32>
    %10 = arith.mulf %9, %6 : vector<8x128xf32>
    %11 = arith.select %8, %6, %10 : vector<8x128xi1>, vector<8x128xf32>
    %12 = arith.truncf %11 : vector<8x128xf32> to vector<8x128xbf16>
    %c0_7 = arith.constant 0 : index
    %c0_8 = arith.constant 0 : index
    %13 = vector.load %arg5[%c0_7, %c0_8] : memref<128x256xbf16, #tpu.memory_space<vmem>>, vector<128x256xbf16>
    %cst_9 = arith.constant dense<0.000000e+00> : vector<8x256xf32>
    %14 = tpu.matmul %12, %13, %cst_9 {dimension_numbers = #tpu.dot_dimension_numbers<[1], [0], [0], [1], [0, 0, 1, 1], [], []>} : vector<8x128xbf16>, vector<128x256xbf16>, vector<8x256xf32> -> vector<8x256xf32>
    %c0_10 = arith.constant 0 : index
    %c0_11 = arith.constant 0 : index
    %15 = vector.load %arg6[%c0_10, %c0_11] : memref<1x256xf32, #tpu.memory_space<vmem>>, vector<1x256xf32>
    %16 = vector.broadcast %15 : vector<1x256xf32> to vector<8x256xf32>
    %17 = arith.addf %14, %16 : vector<8x256xf32>
    %cst_12 = arith.constant 0.000000e+00 : f32
    %18 = vector.broadcast %cst_12 : f32 to vector<8x256xf32>
    %19 = arith.cmpf ogt, %17, %18 : vector<8x256xf32>
    %cst_13 = arith.constant 0.00999999977 : f32
    %20 = vector.broadcast %cst_13 : f32 to vector<8x256xf32>
    %21 = arith.mulf %20, %17 : vector<8x256xf32>
    %22 = arith.select %19, %17, %21 : vector<8x256xi1>, vector<8x256xf32>
    %23 = arith.truncf %22 : vector<8x256xf32> to vector<8x256xbf16>
    %c0_14 = arith.constant 0 : index
    %c0_15 = arith.constant 0 : index
    %24 = vector.load %arg7[%c0_14, %c0_15] : memref<256x512xbf16, #tpu.memory_space<vmem>>, vector<256x512xbf16>
    %cst_16 = arith.constant dense<0.000000e+00> : vector<8x512xf32>
    %25 = tpu.matmul %23, %24, %cst_16 {dimension_numbers = #tpu.dot_dimension_numbers<[1], [0], [0], [1], [0, 0, 1, 1], [], []>} : vector<8x256xbf16>, vector<256x512xbf16>, vector<8x512xf32> -> vector<8x512xf32>
    %c0_17 = arith.constant 0 : index
    %c0_18 = arith.constant 0 : index
    %26 = vector.load %arg8[%c0_17, %c0_18] : memref<1x512xf32, #tpu.memory_space<vmem>>, vector<1x512xf32>
    %27 = vector.broadcast %26 : vector<1x512xf32> to vector<8x512xf32>
    %28 = arith.addf %25, %27 : vector<8x512xf32>
    %cst_19 = arith.constant 0.000000e+00 : f32
    %29 = vector.broadcast %cst_19 : f32 to vector<8x512xf32>
    %30 = arith.cmpf ogt, %28, %29 : vector<8x512xf32>
    %cst_20 = arith.constant 0.00999999977 : f32
    %31 = vector.broadcast %cst_20 : f32 to vector<8x512xf32>
    %32 = arith.mulf %31, %28 : vector<8x512xf32>
    %33 = arith.select %30, %28, %32 : vector<8x512xi1>, vector<8x512xf32>
    %c0_21 = arith.constant 0 : index
    %c0_22 = arith.constant 0 : index
    %34 = vector.load %arg2[%c0_21, %c0_22] : memref<8x784xf32, #tpu.memory_space<vmem>>, vector<8x784xf32>
    %35 = arith.truncf %34 : vector<8x784xf32> to vector<8x784xbf16>
    %c0_23 = arith.constant 0 : index
    %c0_24 = arith.constant 0 : index
    %36 = vector.load %arg9[%c0_23, %c0_24] : memref<784x128xbf16, #tpu.memory_space<vmem>>, vector<784x128xbf16>
    %cst_25 = arith.constant dense<0.000000e+00> : vector<8x128xf32>
    %37 = tpu.matmul %35, %36, %cst_25 {dimension_numbers = #tpu.dot_dimension_numbers<[1], [0], [0], [1], [0, 0, 1, 1], [], []>} : vector<8x784xbf16>, vector<784x128xbf16>, vector<8x128xf32> -> vector<8x128xf32>
    %c0_26 = arith.constant 0 : index
    %c0_27 = arith.constant 0 : index
    %38 = vector.load %arg10[%c0_26, %c0_27] : memref<1x128xf32, #tpu.memory_space<vmem>>, vector<1x128xf32>
    %39 = vector.broadcast %38 : vector<1x128xf32> to vector<8x128xf32>
    %40 = arith.addf %37, %39 : vector<8x128xf32>
    %cst_28 = arith.constant 0.000000e+00 : f32
    %41 = vector.broadcast %cst_28 : f32 to vector<8x128xf32>
    %42 = arith.maximumf %40, %41 : vector<8x128xf32>
    %43 = arith.truncf %42 : vector<8x128xf32> to vector<8x128xbf16>
    %c0_29 = arith.constant 0 : index
    %c0_30 = arith.constant 0 : index
    %44 = vector.load %arg11[%c0_29, %c0_30] : memref<128x256xbf16, #tpu.memory_space<vmem>>, vector<128x256xbf16>
    %cst_31 = arith.constant dense<0.000000e+00> : vector<8x256xf32>
    %45 = tpu.matmul %43, %44, %cst_31 {dimension_numbers = #tpu.dot_dimension_numbers<[1], [0], [0], [1], [0, 0, 1, 1], [], []>} : vector<8x128xbf16>, vector<128x256xbf16>, vector<8x256xf32> -> vector<8x256xf32>
    %c0_32 = arith.constant 0 : index
    %c0_33 = arith.constant 0 : index
    %46 = vector.load %arg12[%c0_32, %c0_33] : memref<1x256xf32, #tpu.memory_space<vmem>>, vector<1x256xf32>
    %47 = vector.broadcast %46 : vector<1x256xf32> to vector<8x256xf32>
    %48 = arith.addf %45, %47 : vector<8x256xf32>
    %cst_34 = arith.constant 0.000000e+00 : f32
    %49 = vector.broadcast %cst_34 : f32 to vector<8x256xf32>
    %50 = arith.cmpf ogt, %48, %49 : vector<8x256xf32>
    %cst_35 = arith.constant 0.00999999977 : f32
    %51 = vector.broadcast %cst_35 : f32 to vector<8x256xf32>
    %52 = arith.mulf %51, %48 : vector<8x256xf32>
    %53 = arith.select %50, %48, %52 : vector<8x256xi1>, vector<8x256xf32>
    %54 = arith.truncf %53 : vector<8x256xf32> to vector<8x256xbf16>
    %c0_36 = arith.constant 0 : index
    %c0_37 = arith.constant 0 : index
    %55 = vector.load %arg13[%c0_36, %c0_37] : memref<256x512xbf16, #tpu.memory_space<vmem>>, vector<256x512xbf16>
    %cst_38 = arith.constant dense<0.000000e+00> : vector<8x512xf32>
    %56 = tpu.matmul %54, %55, %cst_38 {dimension_numbers = #tpu.dot_dimension_numbers<[1], [0], [0], [1], [0, 0, 1, 1], [], []>} : vector<8x256xbf16>, vector<256x512xbf16>, vector<8x512xf32> -> vector<8x512xf32>
    %c0_39 = arith.constant 0 : index
    %c0_40 = arith.constant 0 : index
    %57 = vector.load %arg14[%c0_39, %c0_40] : memref<1x512xf32, #tpu.memory_space<vmem>>, vector<1x512xf32>
    %58 = vector.broadcast %57 : vector<1x512xf32> to vector<8x512xf32>
    %59 = arith.addf %56, %58 : vector<8x512xf32>
    %cst_41 = arith.constant 0.000000e+00 : f32
    %60 = vector.broadcast %cst_41 : f32 to vector<8x512xf32>
    %61 = arith.cmpf ogt, %59, %60 : vector<8x512xf32>
    %cst_42 = arith.constant 0.00999999977 : f32
    %62 = vector.broadcast %cst_42 : f32 to vector<8x512xf32>
    %63 = arith.mulf %62, %59 : vector<8x512xf32>
    %64 = arith.select %61, %59, %63 : vector<8x512xi1>, vector<8x512xf32>
    %65 = arith.truncf %33 : vector<8x512xf32> to vector<8x512xbf16>
    %c0_43 = arith.constant 0 : index
    %c0_44 = arith.constant 0 : index
    %66 = vector.load %arg15[%c0_43, %c0_44] : memref<512x1024xbf16, #tpu.memory_space<vmem>>, vector<512x1024xbf16>
    %cst_45 = arith.constant dense<0.000000e+00> : vector<8x1024xf32>
    %67 = tpu.matmul %65, %66, %cst_45 {dimension_numbers = #tpu.dot_dimension_numbers<[1], [0], [0], [1], [0, 0, 1, 1], [], []>} : vector<8x512xbf16>, vector<512x1024xbf16>, vector<8x1024xf32> -> vector<8x1024xf32>
    %68 = arith.truncf %64 : vector<8x512xf32> to vector<8x512xbf16>
    %c0_46 = arith.constant 0 : index
    %c0_47 = arith.constant 0 : index
    %69 = vector.load %arg16[%c0_46, %c0_47] : memref<512x1024xbf16, #tpu.memory_space<vmem>>, vector<512x1024xbf16>
    %cst_48 = arith.constant dense<0.000000e+00> : vector<8x1024xf32>
    %70 = tpu.matmul %68, %69, %cst_48 {dimension_numbers = #tpu.dot_dimension_numbers<[1], [0], [0], [1], [0, 0, 1, 1], [], []>} : vector<8x512xbf16>, vector<512x1024xbf16>, vector<8x1024xf32> -> vector<8x1024xf32>
    %71 = arith.addf %67, %70 : vector<8x1024xf32>
    %c0_49 = arith.constant 0 : index
    %c0_50 = arith.constant 0 : index
    %72 = vector.load %arg17[%c0_49, %c0_50] : memref<1x1024xf32, #tpu.memory_space<vmem>>, vector<1x1024xf32>
    %73 = vector.broadcast %72 : vector<1x1024xf32> to vector<8x1024xf32>
    %74 = arith.addf %71, %73 : vector<8x1024xf32>
    %cst_51 = arith.constant 0.000000e+00 : f32
    %75 = vector.broadcast %cst_51 : f32 to vector<8x1024xf32>
    %76 = arith.cmpf ogt, %74, %75 : vector<8x1024xf32>
    %cst_52 = arith.constant 0.00999999977 : f32
    %77 = vector.broadcast %cst_52 : f32 to vector<8x1024xf32>
    %78 = arith.mulf %77, %74 : vector<8x1024xf32>
    %79 = arith.select %76, %74, %78 : vector<8x1024xi1>, vector<8x1024xf32>
    %80 = arith.truncf %79 : vector<8x1024xf32> to vector<8x1024xbf16>
    %c0_53 = arith.constant 0 : index
    %c0_54 = arith.constant 0 : index
    %81 = vector.load %arg18[%c0_53, %c0_54] : memref<1024x512xbf16, #tpu.memory_space<vmem>>, vector<1024x512xbf16>
    %cst_55 = arith.constant dense<0.000000e+00> : vector<8x512xf32>
    %82 = tpu.matmul %80, %81, %cst_55 {dimension_numbers = #tpu.dot_dimension_numbers<[1], [0], [0], [1], [0, 0, 1, 1], [], []>} : vector<8x1024xbf16>, vector<1024x512xbf16>, vector<8x512xf32> -> vector<8x512xf32>
    %c0_56 = arith.constant 0 : index
    %c0_57 = arith.constant 0 : index
    %83 = vector.load %arg19[%c0_56, %c0_57] : memref<1x512xf32, #tpu.memory_space<vmem>>, vector<1x512xf32>
    %84 = vector.broadcast %83 : vector<1x512xf32> to vector<8x512xf32>
    %85 = arith.addf %82, %84 : vector<8x512xf32>
    %cst_58 = arith.constant 0.000000e+00 : f32
    %86 = vector.broadcast %cst_58 : f32 to vector<8x512xf32>
    %87 = arith.cmpf ogt, %85, %86 : vector<8x512xf32>
    %cst_59 = arith.constant 0.00999999977 : f32
    %88 = vector.broadcast %cst_59 : f32 to vector<8x512xf32>
    %89 = arith.mulf %88, %85 : vector<8x512xf32>
    %90 = arith.select %87, %85, %89 : vector<8x512xi1>, vector<8x512xf32>
    %91 = arith.truncf %90 : vector<8x512xf32> to vector<8x512xbf16>
    %c0_60 = arith.constant 0 : index
    %c0_61 = arith.constant 0 : index
    %92 = vector.load %arg20[%c0_60, %c0_61] : memref<512x896xbf16, #tpu.memory_space<vmem>>, vector<512x896xbf16>
    %cst_62 = arith.constant dense<0.000000e+00> : vector<8x896xf32>
    %93 = tpu.matmul %91, %92, %cst_62 {dimension_numbers = #tpu.dot_dimension_numbers<[1], [0], [0], [1], [0, 0, 1, 1], [], []>} : vector<8x512xbf16>, vector<512x896xbf16>, vector<8x896xf32> -> vector<8x896xf32>
    %c0_63 = arith.constant 0 : index
    %c0_64 = arith.constant 0 : index
    %94 = vector.load %arg21[%c0_63, %c0_64] : memref<1x896xf32, #tpu.memory_space<vmem>>, vector<1x896xf32>
    %95 = vector.broadcast %94 : vector<1x896xf32> to vector<8x896xf32>
    %96 = arith.addf %93, %95 : vector<8x896xf32>
    %97 = math.tanh %96 : vector<8x896xf32>
    %c0_65 = arith.constant 0 : index
    %c0_66 = arith.constant 0 : index
    %98 = vector.load %arg22[%c0_65, %c0_66] : memref<8x896xf32, #tpu.memory_space<vmem>>, vector<8x896xf32>
    tpu.vector_store %arg22[%c0_65, %c0_66], %97 {strides = array<i32>} : memref<8x896xf32, #tpu.memory_space<vmem>>, vector<8x896xf32>,
    return
  }
  func.func @transform_0(%arg0: i32) -> (i32, i32) {
    %c0_i32 = arith.constant 0 : i32
    %c0_i32_0 = arith.constant 0 : i32
    return %arg0, %c0_i32 : i32, i32
  }
  func.func @transform_1(%arg0: i32) -> (i32, i32) {
    %c0_i32 = arith.constant 0 : i32
    %c0_i32_0 = arith.constant 0 : i32
    return %arg0, %c0_i32 : i32, i32
  }
  func.func @transform_2(%arg0: i32) -> (i32, i32) {
    %c0_i32 = arith.constant 0 : i32
    %c0_i32_0 = arith.constant 0 : i32
    %c0_i32_1 = arith.constant 0 : i32
    return %c0_i32, %c0_i32_0 : i32, i32
  }
  func.func @transform_3(%arg0: i32) -> (i32, i32) {
    %c0_i32 = arith.constant 0 : i32
    %c0_i32_0 = arith.constant 0 : i32
    %c0_i32_1 = arith.constant 0 : i32
    return %c0_i32, %c0_i32_0 : i32, i32
  }
  func.func @transform_4(%arg0: i32) -> (i32, i32) {
    %c0_i32 = arith.constant 0 : i32
    %c0_i32_0 = arith.constant 0 : i32
    %c0_i32_1 = arith.constant 0 : i32
    return %c0_i32, %c0_i32_0 : i32, i32
  }
  func.func @transform_5(%arg0: i32) -> (i32, i32) {
    %c0_i32 = arith.constant 0 : i32
    %c0_i32_0 = arith.constant 0 : i32
    %c0_i32_1 = arith.constant 0 : i32
    return %c0_i32, %c0_i32_0 : i32, i32
  }
  func.func @transform_6(%arg0: i32) -> (i32, i32) {
    %c0_i32 = arith.constant 0 : i32
    %c0_i32_0 = arith.constant 0 : i32
    %c0_i32_1 = arith.constant 0 : i32
    return %c0_i32, %c0_i32_0 : i32, i32
  }
  func.func @transform_7(%arg0: i32) -> (i32, i32) {
    %c0_i32 = arith.constant 0 : i32
    %c0_i32_0 = arith.constant 0 : i32
    %c0_i32_1 = arith.constant 0 : i32
    return %c0_i32, %c0_i32_0 : i32, i32
  }
  func.func @transform_8(%arg0: i32) -> (i32, i32) {
    %c0_i32 = arith.constant 0 : i32
    %c0_i32_0 = arith.constant 0 : i32
    %c0_i32_1 = arith.constant 0 : i32
    return %c0_i32, %c0_i32_0 : i32, i32
  }
  func.func @transform_9(%arg0: i32) -> (i32, i32) {
    %c0_i32 = arith.constant 0 : i32
    %c0_i32_0 = arith.constant 0 : i32
    %c0_i32_1 = arith.constant 0 : i32
    return %c0_i32, %c0_i32_0 : i32, i32
  }
  func.func @transform_10(%arg0: i32) -> (i32, i32) {
    %c0_i32 = arith.constant 0 : i32
    %c0_i32_0 = arith.constant 0 : i32
    %c0_i32_1 = arith.constant 0 : i32
    return %c0_i32, %c0_i32_0 : i32, i32
  }
  func.func @transform_11(%arg0: i32) -> (i32, i32) {
    %c0_i32 = arith.constant 0 : i32
    %c0_i32_0 = arith.constant 0 : i32
    %c0_i32_1 = arith.constant 0 : i32
    return %c0_i32, %c0_i32_0 : i32, i32
  }
  func.func @transform_12(%arg0: i32) -> (i32, i32) {
    %c0_i32 = arith.constant 0 : i32
    %c0_i32_0 = arith.constant 0 : i32
    %c0_i32_1 = arith.constant 0 : i32
    return %c0_i32, %c0_i32_0 : i32, i32
  }
  func.func @transform_13(%arg0: i32) -> (i32, i32) {
    %c0_i32 = arith.constant 0 : i32
    %c0_i32_0 = arith.constant 0 : i32
    %c0_i32_1 = arith.constant 0 : i32
    return %c0_i32, %c0_i32_0 : i32, i32
  }
  func.func @transform_14(%arg0: i32) -> (i32, i32) {
    %c0_i32 = arith.constant 0 : i32
    %c0_i32_0 = arith.constant 0 : i32
    %c0_i32_1 = arith.constant 0 : i32
    return %c0_i32, %c0_i32_0 : i32, i32
  }
  func.func @transform_15(%arg0: i32) -> (i32, i32) {
    %c0_i32 = arith.constant 0 : i32
    %c0_i32_0 = arith.constant 0 : i32
    %c0_i32_1 = arith.constant 0 : i32
    return %c0_i32, %c0_i32_0 : i32, i32
  }
  func.func @transform_16(%arg0: i32) -> (i32, i32) {
    %c0_i32 = arith.constant 0 : i32
    %c0_i32_0 = arith.constant 0 : i32
    %c0_i32_1 = arith.constant 0 : i32
    return %c0_i32, %c0_i32_0 : i32, i32
  }
  func.func @transform_17(%arg0: i32) -> (i32, i32) {
    %c0_i32 = arith.constant 0 : i32
    %c0_i32_0 = arith.constant 0 : i32
    %c0_i32_1 = arith.constant 0 : i32
    return %c0_i32, %c0_i32_0 : i32, i32
  }
  func.func @transform_18(%arg0: i32) -> (i32, i32) {
    %c0_i32 = arith.constant 0 : i32
    %c0_i32_0 = arith.constant 0 : i32
    %c0_i32_1 = arith.constant 0 : i32
    return %c0_i32, %c0_i32_0 : i32, i32
  }
  func.func @transform_19(%arg0: i32) -> (i32, i32) {
    %c0_i32 = arith.constant 0 : i32
    %c0_i32_0 = arith.constant 0 : i32
    %c0_i32_1 = arith.constant 0 : i32
    return %c0_i32, %c0_i32_0 : i32, i32
  }
  func.func @transform_20(%arg0: i32) -> (i32, i32) {
    %c0_i32 = arith.constant 0 : i32
    %c0_i32_0 = arith.constant 0 : i32
    %c0_i32_1 = arith.constant 0 : i32
    return %c0_i32, %c0_i32_0 : i32, i32
  }
  func.func @transform_21(%arg0: i32) -> (i32, i32) {
    %c0_i32 = arith.constant 0 : i32
    %c0_i32_0 = arith.constant 0 : i32
    return %arg0, %c0_i32 : i32, i32
  }
}

</mosaic_0001>

<llo_original>
// kernel: angri_forward.1
$region0: #{angri_forward.1}
  #allocation0 [shape = 'u32[]', space=smem, size = 0x4, offset = 0x4, fixed_abs, tag = 'smem constant byte address 0x4 - core index']
  #allocation1 [shape = 'u32[72,128]{1,0:T(1,128)}', space=vmem, size = 0x9000, scoped, tag = 'internal scratch']
  %s0 = inlined_call_operand.vmem [shape: f32[8,10], index: 0, kind: input, shape index: {}]
  %s1 = inlined_call_operand.vmem [shape: f32[8,784], index: 1, kind: input, shape index: {}]
  %s2 = inlined_call_operand.vmem [shape: bf16[10,128], index: 2, kind: input, shape index: {}]
  %s3 = inlined_call_operand.hbm [shape: f32[1,128], index: 3, kind: input, shape index: {}]
  %s4 = inlined_call_operand.vmem [shape: bf16[128,256], index: 4, kind: input, shape index: {}]
  %s5 = inlined_call_operand.hbm [shape: f32[1,256], index: 5, kind: input, shape index: {}]
  %s6 = inlined_call_operand.hbm [shape: bf16[256,512], index: 6, kind: input, shape index: {}]
  %s7 = inlined_call_operand.vmem [shape: f32[1,512], index: 7, kind: input, shape index: {}]
  %s8 = inlined_call_operand.hbm [shape: bf16[784,128], index: 8, kind: input, shape index: {}]
  %s9 = inlined_call_operand.vmem [shape: f32[1,128], index: 9, kind: input, shape index: {}]
  %s10 = inlined_call_operand.vmem [shape: bf16[128,256], index: 10, kind: input, shape index: {}]
  %s11 = inlined_call_operand.hbm [shape: f32[1,256], index: 11, kind: input, shape index: {}]
  %s12 = inlined_call_operand.hbm [shape: bf16[256,512], index: 12, kind: input, shape index: {}]
  %s13 = inlined_call_operand.vmem [shape: f32[1,512], index: 13, kind: input, shape index: {}]
  %s14 = inlined_call_operand.hbm [shape: bf16[512,1024], index: 14, kind: input, shape index: {}]
  %s15 = inlined_call_operand.hbm [shape: bf16[512,1024], index: 15, kind: input, shape index: {}]
  %s16 = inlined_call_operand.vmem [shape: f32[1,1024], index: 16, kind: input, shape index: {}]
  %s17 = inlined_call_operand.hbm [shape: bf16[1024,512], index: 17, kind: input, shape index: {}]
  %s18 = inlined_call_operand.vmem [shape: f32[1,512], index: 18, kind: input, shape index: {}]
  %s19 = inlined_call_operand.hbm [shape: bf16[512,896], index: 19, kind: input, shape index: {}]
  %s20 = inlined_call_operand.vmem [shape: f32[1,896], index: 20, kind: input, shape index: {}]
  %s21 = inlined_call_operand.vmem [shape: f32[8,896], index: 21, kind: output, shape index: {}]
  %s22 = sld [smem:[#allocation0]]
  $region134: #{angri_forward.1} parent=0
    _
  %s24 = ssub.s32 1, %s22
  %s25 = scalar_select 0, %s24, %s22
  $region1: #{angri_forward.1} parent=0
    #allocation2 [shape = 'u8[512]{0}', space=vmem, size = 0x400, scoped, tag = 'input window, operand 3, single buffered']
    #allocation3 [shape = 's32[1]{0}', space=sflag, size = 0x4, scoped, tag = 'scoped memory for angri_forward.1']
    #allocation4 [shape = 'u8[1024]{0}', space=vmem, size = 0x400, scoped, tag = 'input window, operand 5, single buffered']
    #allocation5 [shape = 's32[1]{0}', space=sflag, size = 0x4, scoped, tag = 'scoped memory for angri_forward.1']
    #allocation6 [shape = 'u8[262144]{0}', space=vmem, size = 0x40000, scoped, tag = 'input window, operand 6, single buffered']
    #allocation7 [shape = 'u8[200704]{0}', space=vmem, size = 0x31000, scoped, tag = 'input window, operand 8, single buffered']
    #allocation8 [shape = 's32[1]{0}', space=sflag, size = 0x4, scoped, tag = 'scoped memory for angri_forward.1']
    #allocation9 [shape = 'u8[1024]{0}', space=vmem, size = 0x400, scoped, tag = 'input window, operand 11, single buffered']
    #allocation10 [shape = 'u8[262144]{0}', space=vmem, size = 0x40000, scoped, tag = 'input window, operand 12, single buffered']
    #allocation11 [shape = 's32[1]{0}', space=sflag, size = 0x4, scoped, tag = 'scoped memory for angri_forward.1']
    #allocation12 [shape = 'u8[1048576]{0}', space=vmem, size = 0x100000, scoped, tag = 'input window, operand 14, single buffered']
    #allocation13 [shape = 'u8[1048576]{0}', space=vmem, size = 0x100000, scoped, tag = 'input window, operand 15, single buffered']
    #allocation14 [shape = 's32[1]{0}', space=sflag, size = 0x4, scoped, tag = 'scoped memory for angri_forward.1']
    #allocation15 [shape = 'u8[1048576]{0}', space=vmem, size = 0x100000, scoped, tag = 'input window, operand 17, single buffered']
    #allocation16 [shape = 'u8[917504]{0}', space=vmem, size = 0xe0000, scoped, tag = 'input window, operand 19, single buffered']
    #allocation17 [shape = 's32[1]{0}', space=sflag, size = 0x4, scoped, tag = 'scoped memory for angri_forward.1']
    %26 = vsyncpa [#allocation3], 0
    %27 = vsyncpa [#allocation5], 0
    %28 = vsyncpa [#allocation8], 0
    %29 = vsyncpa [#allocation11], 0
    %30 = vsyncpa [#allocation14], 0
    %31 = vsyncpa [#allocation17], 0
    // Predicated region
    $region2: #{angri_forward.1} parent=1 // pred_check
      _
    $region3: #{angri_forward.1} parent=1 // pred_check_branch
      %33 = sbr.rel (0) target = $region5
    $region4: #{angri_forward.1} parent=1 // pred_region
      _
    $region5: #{angri_forward.1} parent=1 // pred_fallthru
      _
    // Predicated region
    $region6: #{angri_forward.1} parent=1 // pred_check
      _
    $region7: #{angri_forward.1} parent=1 // pred_check_branch
      %35 = sbr.rel (0) target = $region9
    $region8: #{angri_forward.1} parent=1 // pred_region
      _
    $region9: #{angri_forward.1} parent=1 // pred_fallthru
      _
    // Predicated region
    $region10: #{angri_forward.1} parent=1 // pred_check
      _
    $region11: #{angri_forward.1} parent=1 // pred_check_branch
      %37 = sbr.rel (0) target = $region13
    $region12: #{angri_forward.1} parent=1 // pred_region
      _
    $region13: #{angri_forward.1} parent=1 // pred_fallthru
      _
    // Predicated region
    $region14: #{angri_forward.1} parent=1 // pred_check
      _
    $region15: #{angri_forward.1} parent=1 // pred_check_branch
      %39 = sbr.rel (0) target = $region17
    $region16: #{angri_forward.1} parent=1 // pred_region
      %41 = vsyncadd [#allocation3], 0
      %s43 = sshll.u32 %s3, 4
      %s44 = int_to_ptr.hbm [resolvable:$true] %s43
      %s45 = sshll.u32 [#allocation2], 4
      %s46 = int_to_ptr.vmem [resolvable:$true] %s45
      %48 = dma.hbm_to_vmem [thread:$0]  %s44, 16, %s46, [#allocation3]
    $region17: #{angri_forward.1} parent=1 // pred_fallthru
      _
    // Predicated region
    $region18: #{angri_forward.1} parent=1 // pred_check
      _
    $region19: #{angri_forward.1} parent=1 // pred_check_branch
      %50 = sbr.rel (0) target = $region21
    $region20: #{angri_forward.1} parent=1 // pred_region
      _
    $region21: #{angri_forward.1} parent=1 // pred_fallthru
      _
    // Predicated region
    $region22: #{angri_forward.1} parent=1 // pred_check
      _
    $region23: #{angri_forward.1} parent=1 // pred_check_branch
      %52 = sbr.rel (0) target = $region25
    $region24: #{angri_forward.1} parent=1 // pred_region
      %54 = vsyncadd [#allocation5], 0
      %s56 = sshll.u32 %s5, 4
      %s57 = int_to_ptr.hbm [resolvable:$true] %s56
      %s58 = sshll.u32 [#allocation4], 4
      %s59 = int_to_ptr.vmem [resolvable:$true] %s58
      %61 = dma.hbm_to_vmem [thread:$0]  %s57, 32, %s59, [#allocation5]
    $region25: #{angri_forward.1} parent=1 // pred_fallthru
      _
    // Predicated region
    $region26: #{angri_forward.1} parent=1 // pred_check
      _
    $region27: #{angri_forward.1} parent=1 // pred_check_branch
      %63 = sbr.rel (0) target = $region29
    $region28: #{angri_forward.1} parent=1 // pred_region
      %65 = vsyncadd [#allocation5], 0
      %s66 = sshll.u32 %s6, 4
      %s67 = int_to_ptr.hbm [resolvable:$true] %s66
      %s68 = sshll.u32 [#allocation6], 4
      %s69 = int_to_ptr.vmem [resolvable:$true] %s68
      %74 = dma.hbm_to_vmem [thread:$0]  %s67, 8192, %s69, [#allocation5], 256, 256, 16
    $region29: #{angri_forward.1} parent=1 // pred_fallthru
      _
    // Predicated region
    $region30: #{angri_forward.1} parent=1 // pred_check
      _
    $region31: #{angri_forward.1} parent=1 // pred_check_branch
      %76 = sbr.rel (0) target = $region33
    $region32: #{angri_forward.1} parent=1 // pred_region
      _
    $region33: #{angri_forward.1} parent=1 // pred_fallthru
      _
    // Predicated region
    $region34: #{angri_forward.1} parent=1 // pred_check
      _
    $region35: #{angri_forward.1} parent=1 // pred_check_branch
      %78 = sbr.rel (0) target = $region37
    $region36: #{angri_forward.1} parent=1 // pred_region
      %80 = vsyncadd [#allocation8], 0
      %s81 = sshll.u32 %s8, 4
      %s82 = int_to_ptr.hbm [resolvable:$true] %s81
      %s83 = sshll.u32 [#allocation7], 4
      %s84 = int_to_ptr.vmem [resolvable:$true] %s83
      %89 = dma.hbm_to_vmem [thread:$0]  %s82, 6272, %s84, [#allocation8], 64, 64, 4
    $region37: #{angri_forward.1} parent=1 // pred_fallthru
      _
    // Predicated region
    $region38: #{angri_forward.1} parent=1 // pred_check
      _
    $region39: #{angri_forward.1} parent=1 // pred_check_branch
      %91 = sbr.rel (0) target = $region41
    $region40: #{angri_forward.1} parent=1 // pred_region
      _
    $region41: #{angri_forward.1} parent=1 // pred_fallthru
      _
    // Predicated region
    $region42: #{angri_forward.1} parent=1 // pred_check
      _
    $region43: #{angri_forward.1} parent=1 // pred_check_branch
      %93 = sbr.rel (0) target = $region45
    $region44: #{angri_forward.1} parent=1 // pred_region
      _
    $region45: #{angri_forward.1} parent=1 // pred_fallthru
      _
    // Predicated region
    $region46: #{angri_forward.1} parent=1 // pred_check
      _
    $region47: #{angri_forward.1} parent=1 // pred_check_branch
      %95 = sbr.rel (0) target = $region49
    $region48: #{angri_forward.1} parent=1 // pred_region
      %97 = vsyncadd [#allocation8], 0
      %s99 = sshll.u32 %s11, 4
      %s100 = int_to_ptr.hbm [resolvable:$true] %s99
      %s101 = sshll.u32 [#allocation9], 4
      %s102 = int_to_ptr.vmem [resolvable:$true] %s101
      %104 = dma.hbm_to_vmem [thread:$0]  %s100, 32, %s102, [#allocation8]
    $region49: #{angri_forward.1} parent=1 // pred_fallthru
      _
    // Predicated region
    $region50: #{angri_forward.1} parent=1 // pred_check
      _
    $region51: #{angri_forward.1} parent=1 // pred_check_branch
      %106 = sbr.rel (0) target = $region53
    $region52: #{angri_forward.1} parent=1 // pred_region
      %108 = vsyncadd [#allocation11], 0
      %s109 = sshll.u32 %s12, 4
      %s110 = int_to_ptr.hbm [resolvable:$true] %s109
      %s111 = sshll.u32 [#allocation10], 4
      %s112 = int_to_ptr.vmem [resolvable:$true] %s111
      %117 = dma.hbm_to_vmem [thread:$0]  %s110, 8192, %s112, [#allocation11], 256, 256, 16
    $region53: #{angri_forward.1} parent=1 // pred_fallthru
      _
    // Predicated region
    $region54: #{angri_forward.1} parent=1 // pred_check
      _
    $region55: #{angri_forward.1} parent=1 // pred_check_branch
      %119 = sbr.rel (0) target = $region57
    $region56: #{angri_forward.1} parent=1 // pred_region
      _
    $region57: #{angri_forward.1} parent=1 // pred_fallthru
      _
    // Predicated region
    $region58: #{angri_forward.1} parent=1 // pred_check
      _
    $region59: #{angri_forward.1} parent=1 // pred_check_branch
      %121 = sbr.rel (0) target = $region61
    $region60: #{angri_forward.1} parent=1 // pred_region
      %123 = vsyncadd [#allocation11], 0
      %s124 = sshll.u32 %s14, 4
      %s125 = int_to_ptr.hbm [resolvable:$true] %s124
      %s126 = sshll.u32 [#allocation12], 4
      %s127 = int_to_ptr.vmem [resolvable:$true] %s126
      %132 = dma.hbm_to_vmem [thread:$0]  %s125, 32768, %s127, [#allocation11], 512, 512, 32
    $region61: #{angri_forward.1} parent=1 // pred_fallthru
      _
    // Predicated region
    $region62: #{angri_forward.1} parent=1 // pred_check
      _
    $region63: #{angri_forward.1} parent=1 // pred_check_branch
      %134 = sbr.rel (0) target = $region65
    $region64: #{angri_forward.1} parent=1 // pred_region
      %136 = vsyncadd [#allocation14], 0
      %s137 = sshll.u32 %s15, 4
      %s138 = int_to_ptr.hbm [resolvable:$true] %s137
      %s139 = sshll.u32 [#allocation13], 4
      %s140 = int_to_ptr.vmem [resolvable:$true] %s139
      %145 = dma.hbm_to_vmem [thread:$0]  %s138, 32768, %s140, [#allocation14], 512, 512, 32
    $region65: #{angri_forward.1} parent=1 // pred_fallthru
      _
    // Predicated region
    $region66: #{angri_forward.1} parent=1 // pred_check
      _
    $region67: #{angri_forward.1} parent=1 // pred_check_branch
      %147 = sbr.rel (0) target = $region69
    $region68: #{angri_forward.1} parent=1 // pred_region
      _
    $region69: #{angri_forward.1} parent=1 // pred_fallthru
      _
    // Predicated region
    $region70: #{angri_forward.1} parent=1 // pred_check
      _
    $region71: #{angri_forward.1} parent=1 // pred_check_branch
      %149 = sbr.rel (0) target = $region73
    $region72: #{angri_forward.1} parent=1 // pred_region
      %151 = vsyncadd [#allocation14], 0
      %s152 = sshll.u32 %s17, 4
      %s153 = int_to_ptr.hbm [resolvable:$true] %s152
      %s154 = sshll.u32 [#allocation15], 4
      %s155 = int_to_ptr.vmem [resolvable:$true] %s154
      %160 = dma.hbm_to_vmem [thread:$0]  %s153, 32768, %s155, [#allocation14], 256, 256, 16
    $region73: #{angri_forward.1} parent=1 // pred_fallthru
      _
    // Predicated region
    $region74: #{angri_forward.1} parent=1 // pred_check
      _
    $region75: #{angri_forward.1} parent=1 // pred_check_branch
      %162 = sbr.rel (0) target = $region77
    $region76: #{angri_forward.1} parent=1 // pred_region
      _
    $region77: #{angri_forward.1} parent=1 // pred_fallthru
      _
    // Predicated region
    $region78: #{angri_forward.1} parent=1 // pred_check
      _
    $region79: #{angri_forward.1} parent=1 // pred_check_branch
      %164 = sbr.rel (0) target = $region81
    $region80: #{angri_forward.1} parent=1 // pred_region
      %166 = vsyncadd [#allocation17], 0
      %s167 = sshll.u32 %s19, 4
      %s168 = int_to_ptr.hbm [resolvable:$true] %s167
      %s169 = sshll.u32 [#allocation16], 4
      %s170 = int_to_ptr.vmem [resolvable:$true] %s169
      %175 = dma.hbm_to_vmem [thread:$0]  %s168, 28672, %s170, [#allocation17], 448, 448, 28
    $region81: #{angri_forward.1} parent=1 // pred_fallthru
      _
    // Predicated region
    $region82: #{angri_forward.1} parent=1 // pred_check
      _
    $region83: #{angri_forward.1} parent=1 // pred_check_branch
      %177 = sbr.rel (0) target = $region85
    $region84: #{angri_forward.1} parent=1 // pred_region
      _
    $region85: #{angri_forward.1} parent=1 // pred_fallthru
      _
    // Predicated region
    $region86: #{angri_forward.1} parent=1 // pred_check
      _
    $region87: #{angri_forward.1} parent=1 // pred_check_branch
      %179 = sbr.rel (0) target = $region89
    $region88: #{angri_forward.1} parent=1 // pred_region
      %181 = dma.done [#allocation3], 16
    $region89: #{angri_forward.1} parent=1 // pred_fallthru
      _
    // Predicated region
    $region90: #{angri_forward.1} parent=1 // pred_check
      _
    $region91: #{angri_forward.1} parent=1 // pred_check_branch
      %183 = sbr.rel (0) target = $region93
    $region92: #{angri_forward.1} parent=1 // pred_region
      %185 = dma.done [#allocation5], 32
    $region93: #{angri_forward.1} parent=1 // pred_fallthru
      _
    // Predicated region
    $region94: #{angri_forward.1} parent=1 // pred_check
      _
    $region95: #{angri_forward.1} parent=1 // pred_check_branch
      %187 = sbr.rel (0) target = $region97
    $region96: #{angri_forward.1} parent=1 // pred_region
      %189 = dma.done [#allocation5], 8192
    $region97: #{angri_forward.1} parent=1 // pred_fallthru
      _
    // Predicated region
    $region98: #{angri_forward.1} parent=1 // pred_check
      _
    $region99: #{angri_forward.1} parent=1 // pred_check_branch
      %191 = sbr.rel (0) target = $region101
    $region100: #{angri_forward.1} parent=1 // pred_region
      %193 = dma.done [#allocation8], 6272
    $region101: #{angri_forward.1} parent=1 // pred_fallthru
      _
    // Predicated region
    $region102: #{angri_forward.1} parent=1 // pred_check
      _
    $region103: #{angri_forward.1} parent=1 // pred_check_branch
      %195 = sbr.rel (0) target = $region105
    $region104: #{angri_forward.1} parent=1 // pred_region
      %197 = dma.done [#allocation8], 32
    $region105: #{angri_forward.1} parent=1 // pred_fallthru
      _
    // Predicated region
    $region106: #{angri_forward.1} parent=1 // pred_check
      _
    $region107: #{angri_forward.1} parent=1 // pred_check_branch
      %199 = sbr.rel (0) target = $region109
    $region108: #{angri_forward.1} parent=1 // pred_region
      %201 = dma.done [#allocation11], 8192
    $region109: #{angri_forward.1} parent=1 // pred_fallthru
      _
    // Predicated region
    $region110: #{angri_forward.1} parent=1 // pred_check
      _
    $region111: #{angri_forward.1} parent=1 // pred_check_branch
      %203 = sbr.rel (0) target = $region113
    $region112: #{angri_forward.1} parent=1 // pred_region
      %205 = dma.done [#allocation11], 32768
    $region113: #{angri_forward.1} parent=1 // pred_fallthru
      _
    // Predicated region
    $region114: #{angri_forward.1} parent=1 // pred_check
      _
    $region115: #{angri_forward.1} parent=1 // pred_check_branch
      %207 = sbr.rel (0) target = $region117
    $region116: #{angri_forward.1} parent=1 // pred_region
      %209 = dma.done [#allocation14], 32768
    $region117: #{angri_forward.1} parent=1 // pred_fallthru
      _
    // Predicated region
    $region118: #{angri_forward.1} parent=1 // pred_check
      _
    $region119: #{angri_forward.1} parent=1 // pred_check_branch
      %211 = sbr.rel (0) target = $region121
    $region120: #{angri_forward.1} parent=1 // pred_region
      %213 = dma.done [#allocation14], 32768
    $region121: #{angri_forward.1} parent=1 // pred_fallthru
      _
    // Predicated region
    $region122: #{angri_forward.1} parent=1 // pred_check
      _
    $region123: #{angri_forward.1} parent=1 // pred_check_branch
      %215 = sbr.rel (0) target = $region125
    $region124: #{angri_forward.1} parent=1 // pred_region
      %217 = dma.done [#allocation17], 28672
    $region125: #{angri_forward.1} parent=1 // pred_fallthru
      _
    %v219 = vld [vmem:[%s0] sm:$0xff]
    %v220 = vpack.c.bf16 %v219, %v219
    %v221 = vld [vmem:[%s2] sm:$0xf]
    %v222 = vld [vmem:[%s2 + $0x4] sm:$0x1]
    %v223 = vld [vmem:[#allocation2] sm:$0x1]
    %v225 = vperm.slane %v223, 0
    %v229 = vunpack.c.l.b16 %v221
    %v230 = vunpack.c.l.b16 %v222
    %v231 = vpack.c.b16 %v230, %v229
    %vm232 = vcmask 80896
    %v234 = vsel %vm232, %v220, 0
    %vm236 = vcmask 1044480
    %v238 = vsel %vm236, %v231, 0
    %240 = vmatpush.bf16.msra.mxu0 0
    %241 = vmatpush.bf16.msra.mxu0 0
    %242 = vmatpush.bf16.msra.mxu0 0
    %243 = vmatpush.bf16.msra.mxu0 0
    %244 = vmatpush.bf16.msra.mxu0 0
    %245 = vmatpush.bf16.msra.mxu0 0
    %246 = vmatpush.bf16.msra.mxu0 0
    %247 = vmatpush.bf16.msra.mxu0 %v238
    %248 = vmatmul.bf16.gmra.mxu0 %v234
    %v249 = vpop.f32.mrf.mxu0
    %v250 = vadd.f32 %v225, %v249
    %v251 = vpop.f32.mrf.mxu0
    %252 = vdwg.mxu0
    %vm253 = vcmp.gt.f32.partialorder %v250, 0.0
    %v254 = vmul.f32 %v250, 0.01
    %v255 = vsel %vm253, %v250, %v254
    %v256 = vpack.c.bf16 %v255, %v255
    %v257 = vld [vmem:[%s4] sm:$0xff]
    %v258 = vld [vmem:[%s4 + $0x8] sm:$0xff]
    %v259 = vld [vmem:[%s4 + $0x10] sm:$0xff]
    %v260 = vld [vmem:[%s4 + $0x18] sm:$0xff]
    %v261 = vld [vmem:[%s4 + $0x20] sm:$0xff]
    %v262 = vld [vmem:[%s4 + $0x28] sm:$0xff]
    %v263 = vld [vmem:[%s4 + $0x30] sm:$0xff]
    %v264 = vld [vmem:[%s4 + $0x38] sm:$0xff]
    %v265 = vld [vmem:[%s4 + $0x40] sm:$0xff]
    %v266 = vld [vmem:[%s4 + $0x48] sm:$0xff]
    %v267 = vld [vmem:[%s4 + $0x50] sm:$0xff]
    %v268 = vld [vmem:[%s4 + $0x58] sm:$0xff]
    %v269 = vld [vmem:[%s4 + $0x60] sm:$0xff]
    %v270 = vld [vmem:[%s4 + $0x68] sm:$0xff]
    %v271 = vld [vmem:[%s4 + $0x70] sm:$0xff]
    %v272 = vld [vmem:[%s4 + $0x78] sm:$0xff]
    %v273 = vld [vmem:[#allocation4] sm:$0x3]
    %v275 = vperm.slane %v273, 0
    %v276 = vperm.slane %v273, 1
    %v295 = vunpack.c.l.b16 %v257
    %v296 = vunpack.c.h.b16 %v257
    %v297 = vunpack.c.l.b16 %v258
    %v298 = vunpack.c.h.b16 %v258
    %v299 = vunpack.c.l.b16 %v259
    %v300 = vunpack.c.h.b16 %v259
    %v301 = vunpack.c.l.b16 %v260
    %v302 = vunpack.c.h.b16 %v260
    %v303 = vunpack.c.l.b16 %v261
    %v304 = vunpack.c.h.b16 %v261
    %v305 = vunpack.c.l.b16 %v262
    %v306 = vunpack.c.h.b16 %v262
    %v307 = vunpack.c.l.b16 %v263
    %v308 = vunpack.c.h.b16 %v263
    %v309 = vunpack.c.l.b16 %v264
    %v310 = vunpack.c.h.b16 %v264
    %v311 = vunpack.c.l.b16 %v265
    %v312 = vunpack.c.h.b16 %v265
    %v313 = vunpack.c.l.b16 %v266
    %v314 = vunpack.c.h.b16 %v266
    %v315 = vunpack.c.l.b16 %v267
    %v316 = vunpack.c.h.b16 %v267
    %v317 = vunpack.c.l.b16 %v268
    %v318 = vunpack.c.h.b16 %v268
    %v319 = vunpack.c.l.b16 %v269
    %v320 = vunpack.c.h.b16 %v269
    %v321 = vunpack.c.l.b16 %v270
    %v322 = vunpack.c.h.b16 %v270
    %v323 = vunpack.c.l.b16 %v271
    %v324 = vunpack.c.h.b16 %v271
    %v325 = vunpack.c.l.b16 %v272
    %v326 = vunpack.c.h.b16 %v272
    %v327 = vpack.c.b16 %v297, %v295
    %v328 = vpack.c.b16 %v298, %v296
    %v329 = vpack.c.b16 %v301, %v299
    %v330 = vpack.c.b16 %v302, %v300
    %v331 = vpack.c.b16 %v305, %v303
    %v332 = vpack.c.b16 %v306, %v304
    %v333 = vpack.c.b16 %v309, %v307
    %v334 = vpack.c.b16 %v310, %v308
    %v335 = vpack.c.b16 %v313, %v311
    %v336 = vpack.c.b16 %v314, %v312
    %v337 = vpack.c.b16 %v317, %v315
    %v338 = vpack.c.b16 %v318, %v316
    %v339 = vpack.c.b16 %v321, %v319
    %v340 = vpack.c.b16 %v322, %v320
    %v341 = vpack.c.b16 %v325, %v323
    %v342 = vpack.c.b16 %v326, %v324
    %359 = vmatpush.bf16.msra.mxu0 %v341
    %360 = vmatpush.bf16.msra.mxu0 %v339
    %361 = vmatpush.bf16.msra.mxu0 %v337
    %362 = vmatpush.bf16.msra.mxu0 %v335
    %363 = vmatpush.bf16.msra.mxu0 %v333
    %364 = vmatpush.bf16.msra.mxu0 %v331
    %365 = vmatpush.bf16.msra.mxu0 %v329
    %366 = vmatpush.bf16.msra.mxu0 %v327
    %367 = vmatmul.bf16.gmra.mxu0 %v256
    %v368 = vpop.f32.mrf.mxu0
    %v369 = vadd.f32 %v275, %v368
    %v370 = vpop.f32.mrf.mxu0
    %371 = vdwg.mxu0
    %372 = vmatpush.bf16.msra.mxu0 %v342
    %373 = vmatpush.bf16.msra.mxu0 %v340
    %374 = vmatpush.bf16.msra.mxu0 %v338
    %375 = vmatpush.bf16.msra.mxu0 %v336
    %376 = vmatpush.bf16.msra.mxu0 %v334
    %377 = vmatpush.bf16.msra.mxu0 %v332
    %378 = vmatpush.bf16.msra.mxu0 %v330
    %379 = vmatpush.bf16.msra.mxu0 %v328
    %380 = vmatmul.bf16.gmra.mxu0 %v256
    %v381 = vpop.f32.mrf.mxu0
    %v382 = vadd.f32 %v276, %v381
    %v383 = vpop.f32.mrf.mxu0
    %384 = vdwg.mxu0
    %vm385 = vcmp.gt.f32.partialorder %v369, 0.0
    %vm386 = vcmp.gt.f32.partialorder %v382, 0.0
    %v387 = vmul.f32 %v369, 0.01
    %v388 = vmul.f32 %v382, 0.01
    %v389 = vsel %vm385, %v369, %v387
    %v390 = vsel %vm386, %v382, %v388
    %v391 = vpack.c.bf16 %v389, %v389
    %v392 = vpack.c.bf16 %v390, %v390
    %v393 = vld [vmem:[#allocation6] sm:$0xff]
    %v394 = vld [vmem:[#allocation6 + $0x8] sm:$0xff]
    %v395 = vld [vmem:[#allocation6 + $0x10] sm:$0xff]
    %v396 = vld [vmem:[#allocation6 + $0x18] sm:$0xff]
    %v397 = vld [vmem:[#allocation6 + $0x20] sm:$0xff]
    %v398 = vld [vmem:[#allocation6 + $0x28] sm:$0xff]
    %v399 = vld [vmem:[#allocation6 + $0x30] sm:$0xff]
    %v400 = vld [vmem:[#allocation6 + $0x38] sm:$0xff]
    %v401 = vld [vmem:[#allocation6 + $0x40] sm:$0xff]
    %v402 = vld [vmem:[#allocation6 + $0x48] sm:$0xff]
    %v403 = vld [vmem:[#allocation6 + $0x50] sm:$0xff]
    %v404 = vld [vmem:[#allocation6 + $0x58] sm:$0xff]
    %v405 = vld [vmem:[#allocation6 + $0x60] sm:$0xff]
    %v406 = vld [vmem:[#allocation6 + $0x68] sm:$0xff]
    %v407 = vld [vmem:[#allocation6 + $0x70] sm:$0xff]
    %v408 = vld [vmem:[#allocation6 + $0x78] sm:$0xff]
    %v409 = vld [vmem:[#allocation6 + $0x80] sm:$0xff]
    %v410 = vld [vmem:[#allocation6 + $0x88] sm:$0xff]
    %v411 = vld [vmem:[#allocation6 + $0x90] sm:$0xff]
    %v412 = vld [vmem:[#allocation6 + $0x98] sm:$0xff]
    %v413 = vld [vmem:[#allocation6 + $0xa0] sm:$0xff]
    %v414 = vld [vmem:[#allocation6 + $0xa8] sm:$0xff]
    %v415 = vld [vmem:[#allocation6 + $0xb0] sm:$0xff]
    %v416 = vld [vmem:[#allocation6 + $0xb8] sm:$0xff]
    %v417 = vld [vmem:[#allocation6 + $0xc0] sm:$0xff]
    %v418 = vld [vmem:[#allocation6 + $0xc8] sm:$0xff]
    %v419 = vld [vmem:[#allocation6 + $0xd0] sm:$0xff]
    %v420 = vld [vmem:[#allocation6 + $0xd8] sm:$0xff]
    %v421 = vld [vmem:[#allocation6 + $0xe0] sm:$0xff]
    %v422 = vld [vmem:[#allocation6 + $0xe8] sm:$0xff]
    %v423 = vld [vmem:[#allocation6 + $0xf0] sm:$0xff]
    %v424 = vld [vmem:[#allocation6 + $0xf8] sm:$0xff]
    %v425 = vld [vmem:[#allocation6 + $0x100] sm:$0xff]
    %v426 = vld [vmem:[#allocation6 + $0x108] sm:$0xff]
    %v427 = vld [vmem:[#allocation6 + $0x110] sm:$0xff]
    %v428 = vld [vmem:[#allocation6 + $0x118] sm:$0xff]
    %v429 = vld [vmem:[#allocation6 + $0x120] sm:$0xff]
    %v430 = vld [vmem:[#allocation6 + $0x128] sm:$0xff]
    %v431 = vld [vmem:[#allocation6 + $0x130] sm:$0xff]
    %v432 = vld [vmem:[#allocation6 + $0x138] sm:$0xff]
    %v433 = vld [vmem:[#allocation6 + $0x140] sm:$0xff]
    %v434 = vld [vmem:[#allocation6 + $0x148] sm:$0xff]
    %v435 = vld [vmem:[#allocation6 + $0x150] sm:$0xff]
    %v436 = vld [vmem:[#allocation6 + $0x158] sm:$0xff]
    %v437 = vld [vmem:[#allocation6 + $0x160] sm:$0xff]
    %v438 = vld [vmem:[#allocation6 + $0x168] sm:$0xff]
    %v439 = vld [vmem:[#allocation6 + $0x170] sm:$0xff]
    %v440 = vld [vmem:[#allocation6 + $0x178] sm:$0xff]
    %v441 = vld [vmem:[#allocation6 + $0x180] sm:$0xff]
    %v442 = vld [vmem:[#allocation6 + $0x188] sm:$0xff]
    %v443 = vld [vmem:[#allocation6 + $0x190] sm:$0xff]
    %v444 = vld [vmem:[#allocation6 + $0x198] sm:$0xff]
    %v445 = vld [vmem:[#allocation6 + $0x1a0] sm:$0xff]
    %v446 = vld [vmem:[#allocation6 + $0x1a8] sm:$0xff]
    %v447 = vld [vmem:[#allocation6 + $0x1b0] sm:$0xff]
    %v448 = vld [vmem:[#allocation6 + $0x1b8] sm:$0xff]
    %v449 = vld [vmem:[#allocation6 + $0x1c0] sm:$0xff]
    %v450 = vld [vmem:[#allocation6 + $0x1c8] sm:$0xff]
    %v451 = vld [vmem:[#allocation6 + $0x1d0] sm:$0xff]
    %v452 = vld [vmem:[#allocation6 + $0x1d8] sm:$0xff]
    %v453 = vld [vmem:[#allocation6 + $0x1e0] sm:$0xff]
    %v454 = vld [vmem:[#allocation6 + $0x1e8] sm:$0xff]
    %v455 = vld [vmem:[#allocation6 + $0x1f0] sm:$0xff]
    %v456 = vld [vmem:[#allocation6 + $0x1f8] sm:$0xff]
    %v457 = vld [vmem:[%s7] sm:$0xf]
    %v459 = vperm.slane %v457, 0
    %v460 = vperm.slane %v457, 1
    %v461 = vperm.slane %v457, 2
    %v462 = vperm.slane %v457, 3
    %v531 = vunpack.c.l.b16 %v393
    %v532 = vunpack.c.h.b16 %v393
    %v533 = vunpack.c.l.b16 %v394
    %v534 = vunpack.c.h.b16 %v394
    %v535 = vunpack.c.l.b16 %v395
    %v536 = vunpack.c.h.b16 %v395
    %v537 = vunpack.c.l.b16 %v396
    %v538 = vunpack.c.h.b16 %v396
    %v539 = vunpack.c.l.b16 %v397
    %v540 = vunpack.c.h.b16 %v397
    %v541 = vunpack.c.l.b16 %v398
    %v542 = vunpack.c.h.b16 %v398
    %v543 = vunpack.c.l.b16 %v399
    %v544 = vunpack.c.h.b16 %v399
    %v545 = vunpack.c.l.b16 %v400
    %v546 = vunpack.c.h.b16 %v400
    %v547 = vunpack.c.l.b16 %v401
    %v548 = vunpack.c.h.b16 %v401
    %v549 = vunpack.c.l.b16 %v402
    %v550 = vunpack.c.h.b16 %v402
    %v551 = vunpack.c.l.b16 %v403
    %v552 = vunpack.c.h.b16 %v403
    %v553 = vunpack.c.l.b16 %v404
    %v554 = vunpack.c.h.b16 %v404
    %v555 = vunpack.c.l.b16 %v405
    %v556 = vunpack.c.h.b16 %v405
    %v557 = vunpack.c.l.b16 %v406
    %v558 = vunpack.c.h.b16 %v406
    %v559 = vunpack.c.l.b16 %v407
    %v560 = vunpack.c.h.b16 %v407
    %v561 = vunpack.c.l.b16 %v408
    %v562 = vunpack.c.h.b16 %v408
    %v563 = vunpack.c.l.b16 %v409
    %v564 = vunpack.c.h.b16 %v409
    %v565 = vunpack.c.l.b16 %v410
    %v566 = vunpack.c.h.b16 %v410
    %v567 = vunpack.c.l.b16 %v411
    %v568 = vunpack.c.h.b16 %v411
    %v569 = vunpack.c.l.b16 %v412
    %v570 = vunpack.c.h.b16 %v412
    %v571 = vunpack.c.l.b16 %v413
    %v572 = vunpack.c.h.b16 %v413
    %v573 = vunpack.c.l.b16 %v414
    %v574 = vunpack.c.h.b16 %v414
    %v575 = vunpack.c.l.b16 %v415
    %v576 = vunpack.c.h.b16 %v415
    %v577 = vunpack.c.l.b16 %v416
    %v578 = vunpack.c.h.b16 %v416
    %v579 = vunpack.c.l.b16 %v417
    %v580 = vunpack.c.h.b16 %v417
    %v581 = vunpack.c.l.b16 %v418
    %v582 = vunpack.c.h.b16 %v418
    %v583 = vunpack.c.l.b16 %v419
    %v584 = vunpack.c.h.b16 %v419
    %v585 = vunpack.c.l.b16 %v420
    %v586 = vunpack.c.h.b16 %v420
    %v587 = vunpack.c.l.b16 %v421
    %v588 = vunpack.c.h.b16 %v421
    %v589 = vunpack.c.l.b16 %v422
    %v590 = vunpack.c.h.b16 %v422
    %v591 = vunpack.c.l.b16 %v423
    %v592 = vunpack.c.h.b16 %v423
    %v593 = vunpack.c.l.b16 %v424
    %v594 = vunpack.c.h.b16 %v424
    %v595 = vunpack.c.l.b16 %v425
    %v596 = vunpack.c.h.b16 %v425
    %v597 = vunpack.c.l.b16 %v426
    %v598 = vunpack.c.h.b16 %v426
    %v599 = vunpack.c.l.b16 %v427
    %v600 = vunpack.c.h.b16 %v427
    %v601 = vunpack.c.l.b16 %v428
    %v602 = vunpack.c.h.b16 %v428
    %v603 = vunpack.c.l.b16 %v429
    %v604 = vunpack.c.h.b16 %v429
    %v605 = vunpack.c.l.b16 %v430
    %v606 = vunpack.c.h.b16 %v430
    %v607 = vunpack.c.l.b16 %v431
    %v608 = vunpack.c.h.b16 %v431
    %v609 = vunpack.c.l.b16 %v432
    %v610 = vunpack.c.h.b16 %v432
    %v611 = vunpack.c.l.b16 %v433
    %v612 = vunpack.c.h.b16 %v433
    %v613 = vunpack.c.l.b16 %v434
    %v614 = vunpack.c.h.b16 %v434
    %v615 = vunpack.c.l.b16 %v435
    %v616 = vunpack.c.h.b16 %v435
    %v617 = vunpack.c.l.b16 %v436
    %v618 = vunpack.c.h.b16 %v436
    %v619 = vunpack.c.l.b16 %v437
    %v620 = vunpack.c.h.b16 %v437
    %v621 = vunpack.c.l.b16 %v438
    %v622 = vunpack.c.h.b16 %v438
    %v623 = vunpack.c.l.b16 %v439
    %v624 = vunpack.c.h.b16 %v439
    %v625 = vunpack.c.l.b16 %v440
    %v626 = vunpack.c.h.b16 %v440
    %v627 = vunpack.c.l.b16 %v441
    %v628 = vunpack.c.h.b16 %v441
    %v629 = vunpack.c.l.b16 %v442
    %v630 = vunpack.c.h.b16 %v442
    %v631 = vunpack.c.l.b16 %v443
    %v632 = vunpack.c.h.b16 %v443
    %v633 = vunpack.c.l.b16 %v444
    %v634 = vunpack.c.h.b16 %v444
    %v635 = vunpack.c.l.b16 %v445
    %v636 = vunpack.c.h.b16 %v445
    %v637 = vunpack.c.l.b16 %v446
    %v638 = vunpack.c.h.b16 %v446
    %v639 = vunpack.c.l.b16 %v447
    %v640 = vunpack.c.h.b16 %v447
    %v641 = vunpack.c.l.b16 %v448
    %v642 = vunpack.c.h.b16 %v448
    %v643 = vunpack.c.l.b16 %v449
    %v644 = vunpack.c.h.b16 %v449
    %v645 = vunpack.c.l.b16 %v450
    %v646 = vunpack.c.h.b16 %v450
    %v647 = vunpack.c.l.b16 %v451
    %v648 = vunpack.c.h.b16 %v451
    %v649 = vunpack.c.l.b16 %v452
    %v650 = vunpack.c.h.b16 %v452
    %v651 = vunpack.c.l.b16 %v453
    %v652 = vunpack.c.h.b16 %v453
    %v653 = vunpack.c.l.b16 %v454
    %v654 = vunpack.c.h.b16 %v454
    %v655 = vunpack.c.l.b16 %v455
    %v656 = vunpack.c.h.b16 %v455
    %v657 = vunpack.c.l.b16 %v456
    %v658 = vunpack.c.h.b16 %v456
    %v659 = vpack.c.b16 %v535, %v531
    %v660 = vpack.c.b16 %v536, %v532
    %v661 = vpack.c.b16 %v537, %v533
    %v662 = vpack.c.b16 %v538, %v534
    %v663 = vpack.c.b16 %v543, %v539
    %v664 = vpack.c.b16 %v544, %v540
    %v665 = vpack.c.b16 %v545, %v541
    %v666 = vpack.c.b16 %v546, %v542
    %v667 = vpack.c.b16 %v551, %v547
    %v668 = vpack.c.b16 %v552, %v548
    %v669 = vpack.c.b16 %v553, %v549
    %v670 = vpack.c.b16 %v554, %v550
    %v671 = vpack.c.b16 %v559, %v555
    %v672 = vpack.c.b16 %v560, %v556
    %v673 = vpack.c.b16 %v561, %v557
    %v674 = vpack.c.b16 %v562, %v558
    %v675 = vpack.c.b16 %v567, %v563
    %v676 = vpack.c.b16 %v568, %v564
    %v677 = vpack.c.b16 %v569, %v565
    %v678 = vpack.c.b16 %v570, %v566
    %v679 = vpack.c.b16 %v575, %v571
    %v680 = vpack.c.b16 %v576, %v572
    %v681 = vpack.c.b16 %v577, %v573
    %v682 = vpack.c.b16 %v578, %v574
    %v683 = vpack.c.b16 %v583, %v579
    %v684 = vpack.c.b16 %v584, %v580
    %v685 = vpack.c.b16 %v585, %v581
    %v686 = vpack.c.b16 %v586, %v582
    %v687 = vpack.c.b16 %v591, %v587
    %v688 = vpack.c.b16 %v592, %v588
    %v689 = vpack.c.b16 %v593, %v589
    %v690 = vpack.c.b16 %v594, %v590
    %v691 = vpack.c.b16 %v599, %v595
    %v692 = vpack.c.b16 %v600, %v596
    %v693 = vpack.c.b16 %v601, %v597
    %v694 = vpack.c.b16 %v602, %v598
    %v695 = vpack.c.b16 %v607, %v603
    %v696 = vpack.c.b16 %v608, %v604
    %v697 = vpack.c.b16 %v609, %v605
    %v698 = vpack.c.b16 %v610, %v606
    %v699 = vpack.c.b16 %v615, %v611
    %v700 = vpack.c.b16 %v616, %v612
    %v701 = vpack.c.b16 %v617, %v613
    %v702 = vpack.c.b16 %v618, %v614
    %v703 = vpack.c.b16 %v623, %v619
    %v704 = vpack.c.b16 %v624, %v620
    %v705 = vpack.c.b16 %v625, %v621
    %v706 = vpack.c.b16 %v626, %v622
    %v707 = vpack.c.b16 %v631, %v627
    %v708 = vpack.c.b16 %v632, %v628
    %v709 = vpack.c.b16 %v633, %v629
    %v710 = vpack.c.b16 %v634, %v630
    %v711 = vpack.c.b16 %v639, %v635
    %v712 = vpack.c.b16 %v640, %v636
    %v713 = vpack.c.b16 %v641, %v637
    %v714 = vpack.c.b16 %v642, %v638
    %v715 = vpack.c.b16 %v647, %v643
    %v716 = vpack.c.b16 %v648, %v644
    %v717 = vpack.c.b16 %v649, %v645
    %v718 = vpack.c.b16 %v650, %v646
    %v719 = vpack.c.b16 %v655, %v651
    %v720 = vpack.c.b16 %v656, %v652
    %v721 = vpack.c.b16 %v657, %v653
    %v722 = vpack.c.b16 %v658, %v654
    %787 = vmatpush.bf16.msra.mxu0 %v687
    %788 = vmatpush.bf16.msra.mxu0 %v683
    %789 = vmatpush.bf16.msra.mxu0 %v679
    %790 = vmatpush.bf16.msra.mxu0 %v675
    %791 = vmatpush.bf16.msra.mxu0 %v671
    %792 = vmatpush.bf16.msra.mxu0 %v667
    %793 = vmatpush.bf16.msra.mxu0 %v663
    %794 = vmatpush.bf16.msra.mxu0 %v659
    %795 = vmatmul.bf16.gmra.mxu0 %v391
    %v796 = vpop.f32.mrf.mxu0
    %v797 = vadd.f32 %v459, %v796
    %v798 = vpop.f32.mrf.mxu0
    %799 = vdwg.mxu0
    %800 = vmatpush.bf16.msra.mxu0 %v719
    %801 = vmatpush.bf16.msra.mxu0 %v715
    %802 = vmatpush.bf16.msra.mxu0 %v711
    %803 = vmatpush.bf16.msra.mxu0 %v707
    %804 = vmatpush.bf16.msra.mxu0 %v703
    %805 = vmatpush.bf16.msra.mxu0 %v699
    %806 = vmatpush.bf16.msra.mxu0 %v695
    %807 = vmatpush.bf16.msra.mxu0 %v691
    %808 = vmatmul.bf16.gmra.mxu0 %v392
    %v809 = vpop.f32.mrf.mxu0
    %v810 = vadd.f32 %v797, %v809
    %v811 = vpop.f32.mrf.mxu0
    %812 = vdwg.mxu0
    %813 = vmatpush.bf16.msra.mxu0 %v688
    %814 = vmatpush.bf16.msra.mxu0 %v684
    %815 = vmatpush.bf16.msra.mxu0 %v680
    %816 = vmatpush.bf16.msra.mxu0 %v676
    %817 = vmatpush.bf16.msra.mxu0 %v672
    %818 = vmatpush.bf16.msra.mxu0 %v668
    %819 = vmatpush.bf16.msra.mxu0 %v664
    %820 = vmatpush.bf16.msra.mxu0 %v660
    %821 = vmatmul.bf16.gmra.mxu0 %v391
    %v822 = vpop.f32.mrf.mxu0
    %v823 = vadd.f32 %v460, %v822
    %v824 = vpop.f32.mrf.mxu0
    %825 = vdwg.mxu0
    %826 = vmatpush.bf16.msra.mxu0 %v720
    %827 = vmatpush.bf16.msra.mxu0 %v716
    %828 = vmatpush.bf16.msra.mxu0 %v712
    %829 = vmatpush.bf16.msra.mxu0 %v708
    %830 = vmatpush.bf16.msra.mxu0 %v704
    %831 = vmatpush.bf16.msra.mxu0 %v700
    %832 = vmatpush.bf16.msra.mxu0 %v696
    %833 = vmatpush.bf16.msra.mxu0 %v692
    %834 = vmatmul.bf16.gmra.mxu0 %v392
    %v835 = vpop.f32.mrf.mxu0
    %v836 = vadd.f32 %v823, %v835
    %v837 = vpop.f32.mrf.mxu0
    %838 = vdwg.mxu0
    %839 = vmatpush.bf16.msra.mxu0 %v689
    %840 = vmatpush.bf16.msra.mxu0 %v685
    %841 = vmatpush.bf16.msra.mxu0 %v681
    %842 = vmatpush.bf16.msra.mxu0 %v677
    %843 = vmatpush.bf16.msra.mxu0 %v673
    %844 = vmatpush.bf16.msra.mxu0 %v669
    %845 = vmatpush.bf16.msra.mxu0 %v665
    %846 = vmatpush.bf16.msra.mxu0 %v661
    %847 = vmatmul.bf16.gmra.mxu0 %v391
    %v848 = vpop.f32.mrf.mxu0
    %v849 = vadd.f32 %v461, %v848
    %v850 = vpop.f32.mrf.mxu0
    %851 = vdwg.mxu0
    %852 = vmatpush.bf16.msra.mxu0 %v721
    %853 = vmatpush.bf16.msra.mxu0 %v717
    %854 = vmatpush.bf16.msra.mxu0 %v713
    %855 = vmatpush.bf16.msra.mxu0 %v709
    %856 = vmatpush.bf16.msra.mxu0 %v705
    %857 = vmatpush.bf16.msra.mxu0 %v701
    %858 = vmatpush.bf16.msra.mxu0 %v697
    %859 = vmatpush.bf16.msra.mxu0 %v693
    %860 = vmatmul.bf16.gmra.mxu0 %v392
    %v861 = vpop.f32.mrf.mxu0
    %v862 = vadd.f32 %v849, %v861
    %v863 = vpop.f32.mrf.mxu0
    %864 = vdwg.mxu0
    %865 = vmatpush.bf16.msra.mxu0 %v690
    %866 = vmatpush.bf16.msra.mxu0 %v686
    %867 = vmatpush.bf16.msra.mxu0 %v682
    %868 = vmatpush.bf16.msra.mxu0 %v678
    %869 = vmatpush.bf16.msra.mxu0 %v674
    %870 = vmatpush.bf16.msra.mxu0 %v670
    %871 = vmatpush.bf16.msra.mxu0 %v666
    %872 = vmatpush.bf16.msra.mxu0 %v662
    %873 = vmatmul.bf16.gmra.mxu0 %v391
    %v874 = vpop.f32.mrf.mxu0
    %v875 = vadd.f32 %v462, %v874
    %v876 = vpop.f32.mrf.mxu0
    %877 = vdwg.mxu0
    %878 = vmatpush.bf16.msra.mxu0 %v722
    %879 = vmatpush.bf16.msra.mxu0 %v718
    %880 = vmatpush.bf16.msra.mxu0 %v714
    %881 = vmatpush.bf16.msra.mxu0 %v710
    %882 = vmatpush.bf16.msra.mxu0 %v706
    %883 = vmatpush.bf16.msra.mxu0 %v702
    %884 = vmatpush.bf16.msra.mxu0 %v698
    %885 = vmatpush.bf16.msra.mxu0 %v694
    %886 = vmatmul.bf16.gmra.mxu0 %v392
    %v887 = vpop.f32.mrf.mxu0
    %v888 = vadd.f32 %v875, %v887
    %v889 = vpop.f32.mrf.mxu0
    %890 = vdwg.mxu0
    %vm891 = vcmp.gt.f32.partialorder %v810, 0.0
    %vm892 = vcmp.gt.f32.partialorder %v836, 0.0
    %vm893 = vcmp.gt.f32.partialorder %v862, 0.0
    %vm894 = vcmp.gt.f32.partialorder %v888, 0.0
    %v895 = vmul.f32 %v810, 0.01
    %v896 = vmul.f32 %v836, 0.01
    %v897 = vmul.f32 %v862, 0.01
    %v898 = vmul.f32 %v888, 0.01
    %v899 = vsel %vm891, %v810, %v895
    %v900 = vsel %vm892, %v836, %v896
    %v901 = vsel %vm893, %v862, %v897
    %v902 = vsel %vm894, %v888, %v898
    %v903 = vld [vmem:[%s1] sm:$0xff]
    %v904 = vld [vmem:[%s1 + $0x8] sm:$0xff]
    %v905 = vld [vmem:[%s1 + $0x10] sm:$0xff]
    %v906 = vld [vmem:[%s1 + $0x18] sm:$0xff]
    %v907 = vld [vmem:[%s1 + $0x20] sm:$0xff]
    %v908 = vld [vmem:[%s1 + $0x28] sm:$0xff]
    %v909 = vld [vmem:[%s1 + $0x30] sm:$0xff]
    %v910 = vpack.c.bf16 %v903, %v903
    %v911 = vpack.c.bf16 %v904, %v904
    %v912 = vpack.c.bf16 %v905, %v905
    %v913 = vpack.c.bf16 %v906, %v906
    %v914 = vpack.c.bf16 %v907, %v907
    %v915 = vpack.c.bf16 %v908, %v908
    %v916 = vpack.c.bf16 %v909, %v909
    %v917 = vld [vmem:[#allocation7] sm:$0xf]
    %v918 = vld [vmem:[#allocation7 + $0x4] sm:$0xf]
    %v919 = vld [vmem:[#allocation7 + $0x8] sm:$0xf]
    %v920 = vld [vmem:[#allocation7 + $0xc] sm:$0xf]
    %v921 = vld [vmem:[#allocation7 + $0x10] sm:$0xf]
    %v922 = vld [vmem:[#allocation7 + $0x14] sm:$0xf]
    %v923 = vld [vmem:[#allocation7 + $0x18] sm:$0xf]
    %v924 = vld [vmem:[#allocation7 + $0x1c] sm:$0xf]
    %v925 = vld [vmem:[#allocation7 + $0x20] sm:$0xf]
    %v926 = vld [vmem:[#allocation7 + $0x24] sm:$0xf]
    %v927 = vld [vmem:[#allocation7 + $0x28] sm:$0xf]
    %v928 = vld [vmem:[#allocation7 + $0x2c] sm:$0xf]
    %v929 = vld [vmem:[#allocation7 + $0x30] sm:$0xf]
    %v930 = vld [vmem:[#allocation7 + $0x34] sm:$0xf]
    %v931 = vld [vmem:[#allocation7 + $0x38] sm:$0xf]
    %v932 = vld [vmem:[#allocation7 + $0x3c] sm:$0xf]
    %v933 = vld [vmem:[#allocation7 + $0x40] sm:$0xf]
    %v934 = vld [vmem:[#allocation7 + $0x44] sm:$0xf]
    %v935 = vld [vmem:[#allocation7 + $0x48] sm:$0xf]
    %v936 = vld [vmem:[#allocation7 + $0x4c] sm:$0xf]
    %v937 = vld [vmem:[#allocation7 + $0x50] sm:$0xf]
    %v938 = vld [vmem:[#allocation7 + $0x54] sm:$0xf]
    %v939 = vld [vmem:[#allocation7 + $0x58] sm:$0xf]
    %v940 = vld [vmem:[#allocation7 + $0x5c] sm:$0xf]
    %v941 = vld [vmem:[#allocation7 + $0x60] sm:$0xf]
    %v942 = vld [vmem:[#allocation7 + $0x64] sm:$0xf]
    %v943 = vld [vmem:[#allocation7 + $0x68] sm:$0xf]
    %v944 = vld [vmem:[#allocation7 + $0x6c] sm:$0xf]
    %v945 = vld [vmem:[#allocation7 + $0x70] sm:$0xf]
    %v946 = vld [vmem:[#allocation7 + $0x74] sm:$0xf]
    %v947 = vld [vmem:[#allocation7 + $0x78] sm:$0xf]
    %v948 = vld [vmem:[#allocation7 + $0x7c] sm:$0xf]
    %v949 = vld [vmem:[#allocation7 + $0x80] sm:$0xf]
    %v950 = vld [vmem:[#allocation7 + $0x84] sm:$0xf]
    %v951 = vld [vmem:[#allocation7 + $0x88] sm:$0xf]
    %v952 = vld [vmem:[#allocation7 + $0x8c] sm:$0xf]
    %v953 = vld [vmem:[#allocation7 + $0x90] sm:$0xf]
    %v954 = vld [vmem:[#allocation7 + $0x94] sm:$0xf]
    %v955 = vld [vmem:[#allocation7 + $0x98] sm:$0xf]
    %v956 = vld [vmem:[#allocation7 + $0x9c] sm:$0xf]
    %v957 = vld [vmem:[#allocation7 + $0xa0] sm:$0xf]
    %v958 = vld [vmem:[#allocation7 + $0xa4] sm:$0xf]
    %v959 = vld [vmem:[#allocation7 + $0xa8] sm:$0xf]
    %v960 = vld [vmem:[#allocation7 + $0xac] sm:$0xf]
    %v961 = vld [vmem:[#allocation7 + $0xb0] sm:$0xf]
    %v962 = vld [vmem:[#allocation7 + $0xb4] sm:$0xf]
    %v963 = vld [vmem:[#allocation7 + $0xb8] sm:$0xf]
    %v964 = vld [vmem:[#allocation7 + $0xbc] sm:$0xf]
    %v965 = vld [vmem:[#allocation7 + $0xc0] sm:$0xf]
    %v966 = vld [vmem:[#allocation7 + $0xc4] sm:$0xf]
    %v967 = vld [vmem:[#allocation7 + $0xc8] sm:$0xf]
    %v968 = vld [vmem:[#allocation7 + $0xcc] sm:$0xf]
    %v969 = vld [vmem:[#allocation7 + $0xd0] sm:$0xf]
    %v970 = vld [vmem:[#allocation7 + $0xd4] sm:$0xf]
    %v971 = vld [vmem:[#allocation7 + $0xd8] sm:$0xf]
    %v972 = vld [vmem:[#allocation7 + $0xdc] sm:$0xf]
    %v973 = vld [vmem:[#allocation7 + $0xe0] sm:$0xf]
    %v974 = vld [vmem:[#allocation7 + $0xe4] sm:$0xf]
    %v975 = vld [vmem:[#allocation7 + $0xe8] sm:$0xf]
    %v976 = vld [vmem:[#allocation7 + $0xec] sm:$0xf]
    %v977 = vld [vmem:[#allocation7 + $0xf0] sm:$0xf]
    %v978 = vld [vmem:[#allocation7 + $0xf4] sm:$0xf]
    %v979 = vld [vmem:[#allocation7 + $0xf8] sm:$0xf]
    %v980 = vld [vmem:[#allocation7 + $0xfc] sm:$0xf]
    %v981 = vld [vmem:[#allocation7 + $0x100] sm:$0xf]
    %v982 = vld [vmem:[#allocation7 + $0x104] sm:$0xf]
    %v983 = vld [vmem:[#allocation7 + $0x108] sm:$0xf]
    %v984 = vld [vmem:[#allocation7 + $0x10c] sm:$0xf]
    %v985 = vld [vmem:[#allocation7 + $0x110] sm:$0xf]
    %v986 = vld [vmem:[#allocation7 + $0x114] sm:$0xf]
    %v987 = vld [vmem:[#allocation7 + $0x118] sm:$0xf]
    %v988 = vld [vmem:[#allocation7 + $0x11c] sm:$0xf]
    %v989 = vld [vmem:[#allocation7 + $0x120] sm:$0xf]
    %v990 = vld [vmem:[#allocation7 + $0x124] sm:$0xf]
    %v991 = vld [vmem:[#allocation7 + $0x128] sm:$0xf]
    %v992 = vld [vmem:[#allocation7 + $0x12c] sm:$0xf]
    %v993 = vld [vmem:[#allocation7 + $0x130] sm:$0xf]
    %v994 = vld [vmem:[#allocation7 + $0x134] sm:$0xf]
    %v995 = vld [vmem:[#allocation7 + $0x138] sm:$0xf]
    %v996 = vld [vmem:[#allocation7 + $0x13c] sm:$0xf]
    %v997 = vld [vmem:[#allocation7 + $0x140] sm:$0xf]
    %v998 = vld [vmem:[#allocation7 + $0x144] sm:$0xf]
    %v999 = vld [vmem:[#allocation7 + $0x148] sm:$0xf]
    %v1000 = vld [vmem:[#allocation7 + $0x14c] sm:$0xf]
    %v1001 = vld [vmem:[#allocation7 + $0x150] sm:$0xf]
    %v1002 = vld [vmem:[#allocation7 + $0x154] sm:$0xf]
    %v1003 = vld [vmem:[#allocation7 + $0x158] sm:$0xf]
    %v1004 = vld [vmem:[#allocation7 + $0x15c] sm:$0xf]
    %v1005 = vld [vmem:[#allocation7 + $0x160] sm:$0xf]
    %v1006 = vld [vmem:[#allocation7 + $0x164] sm:$0xf]
    %v1007 = vld [vmem:[#allocation7 + $0x168] sm:$0xf]
    %v1008 = vld [vmem:[#allocation7 + $0x16c] sm:$0xf]
    %v1009 = vld [vmem:[#allocation7 + $0x170] sm:$0xf]
    %v1010 = vld [vmem:[#allocation7 + $0x174] sm:$0xf]
    %v1011 = vld [vmem:[#allocation7 + $0x178] sm:$0xf]
    %v1012 = vld [vmem:[#allocation7 + $0x17c] sm:$0xf]
    %v1013 = vld [vmem:[#allocation7 + $0x180] sm:$0xf]
    %v1014 = vld [vmem:[#allocation7 + $0x184] sm:$0xf]
    %v1015 = vld [vmem:[%s9] sm:$0x1]
    %v1017 = vperm.slane %v1015, 0
    %v1117 = vunpack.c.l.b16 %v917
    %v1118 = vunpack.c.l.b16 %v918
    %v1119 = vunpack.c.l.b16 %v919
    %v1120 = vunpack.c.l.b16 %v920
    %v1121 = vunpack.c.l.b16 %v921
    %v1122 = vunpack.c.l.b16 %v922
    %v1123 = vunpack.c.l.b16 %v923
    %v1124 = vunpack.c.l.b16 %v924
    %v1125 = vunpack.c.l.b16 %v925
    %v1126 = vunpack.c.l.b16 %v926
    %v1127 = vunpack.c.l.b16 %v927
    %v1128 = vunpack.c.l.b16 %v928
    %v1129 = vunpack.c.l.b16 %v929
    %v1130 = vunpack.c.l.b16 %v930
    %v1131 = vunpack.c.l.b16 %v931
    %v1132 = vunpack.c.l.b16 %v932
    %v1133 = vunpack.c.l.b16 %v933
    %v1134 = vunpack.c.l.b16 %v934
    %v1135 = vunpack.c.l.b16 %v935
    %v1136 = vunpack.c.l.b16 %v936
    %v1137 = vunpack.c.l.b16 %v937
    %v1138 = vunpack.c.l.b16 %v938
    %v1139 = vunpack.c.l.b16 %v939
    %v1140 = vunpack.c.l.b16 %v940
    %v1141 = vunpack.c.l.b16 %v941
    %v1142 = vunpack.c.l.b16 %v942
    %v1143 = vunpack.c.l.b16 %v943
    %v1144 = vunpack.c.l.b16 %v944
    %v1145 = vunpack.c.l.b16 %v945
    %v1146 = vunpack.c.l.b16 %v946
    %v1147 = vunpack.c.l.b16 %v947
    %v1148 = vunpack.c.l.b16 %v948
    %v1149 = vunpack.c.l.b16 %v949
    %v1150 = vunpack.c.l.b16 %v950
    %v1151 = vunpack.c.l.b16 %v951
    %v1152 = vunpack.c.l.b16 %v952
    %v1153 = vunpack.c.l.b16 %v953
    %v1154 = vunpack.c.l.b16 %v954
    %v1155 = vunpack.c.l.b16 %v955
    %v1156 = vunpack.c.l.b16 %v956
    %v1157 = vunpack.c.l.b16 %v957
    %v1158 = vunpack.c.l.b16 %v958
    %v1159 = vunpack.c.l.b16 %v959
    %v1160 = vunpack.c.l.b16 %v960
    %v1161 = vunpack.c.l.b16 %v961
    %v1162 = vunpack.c.l.b16 %v962
    %v1163 = vunpack.c.l.b16 %v963
    %v1164 = vunpack.c.l.b16 %v964
    %v1165 = vunpack.c.l.b16 %v965
    %v1166 = vunpack.c.l.b16 %v966
    %v1167 = vunpack.c.l.b16 %v967
    %v1168 = vunpack.c.l.b16 %v968
    %v1169 = vunpack.c.l.b16 %v969
    %v1170 = vunpack.c.l.b16 %v970
    %v1171 = vunpack.c.l.b16 %v971
    %v1172 = vunpack.c.l.b16 %v972
    %v1173 = vunpack.c.l.b16 %v973
    %v1174 = vunpack.c.l.b16 %v974
    %v1175 = vunpack.c.l.b16 %v975
    %v1176 = vunpack.c.l.b16 %v976
    %v1177 = vunpack.c.l.b16 %v977
    %v1178 = vunpack.c.l.b16 %v978
    %v1179 = vunpack.c.l.b16 %v979
    %v1180 = vunpack.c.l.b16 %v980
    %v1181 = vunpack.c.l.b16 %v981
    %v1182 = vunpack.c.l.b16 %v982
    %v1183 = vunpack.c.l.b16 %v983
    %v1184 = vunpack.c.l.b16 %v984
    %v1185 = vunpack.c.l.b16 %v985
    %v1186 = vunpack.c.l.b16 %v986
    %v1187 = vunpack.c.l.b16 %v987
    %v1188 = vunpack.c.l.b16 %v988
    %v1189 = vunpack.c.l.b16 %v989
    %v1190 = vunpack.c.l.b16 %v990
    %v1191 = vunpack.c.l.b16 %v991
    %v1192 = vunpack.c.l.b16 %v992
    %v1193 = vunpack.c.l.b16 %v993
    %v1194 = vunpack.c.l.b16 %v994
    %v1195 = vunpack.c.l.b16 %v995
    %v1196 = vunpack.c.l.b16 %v996
    %v1197 = vunpack.c.l.b16 %v997
    %v1198 = vunpack.c.l.b16 %v998
    %v1199 = vunpack.c.l.b16 %v999
    %v1200 = vunpack.c.l.b16 %v1000
    %v1201 = vunpack.c.l.b16 %v1001
    %v1202 = vunpack.c.l.b16 %v1002
    %v1203 = vunpack.c.l.b16 %v1003
    %v1204 = vunpack.c.l.b16 %v1004
    %v1205 = vunpack.c.l.b16 %v1005
    %v1206 = vunpack.c.l.b16 %v1006
    %v1207 = vunpack.c.l.b16 %v1007
    %v1208 = vunpack.c.l.b16 %v1008
    %v1209 = vunpack.c.l.b16 %v1009
    %v1210 = vunpack.c.l.b16 %v1010
    %v1211 = vunpack.c.l.b16 %v1011
    %v1212 = vunpack.c.l.b16 %v1012
    %v1213 = vunpack.c.l.b16 %v1013
    %v1214 = vunpack.c.l.b16 %v1014
    %v1215 = vpack.c.b16 %v1118, %v1117
    %v1216 = vpack.c.b16 %v1120, %v1119
    %v1217 = vpack.c.b16 %v1122, %v1121
    %v1218 = vpack.c.b16 %v1124, %v1123
    %v1219 = vpack.c.b16 %v1126, %v1125
    %v1220 = vpack.c.b16 %v1128, %v1127
    %v1221 = vpack.c.b16 %v1130, %v1129
    %v1222 = vpack.c.b16 %v1132, %v1131
    %v1223 = vpack.c.b16 %v1134, %v1133
    %v1224 = vpack.c.b16 %v1136, %v1135
    %v1225 = vpack.c.b16 %v1138, %v1137
    %v1226 = vpack.c.b16 %v1140, %v1139
    %v1227 = vpack.c.b16 %v1142, %v1141
    %v1228 = vpack.c.b16 %v1144, %v1143
    %v1229 = vpack.c.b16 %v1146, %v1145
    %v1230 = vpack.c.b16 %v1148, %v1147
    %v1231 = vpack.c.b16 %v1150, %v1149
    %v1232 = vpack.c.b16 %v1152, %v1151
    %v1233 = vpack.c.b16 %v1154, %v1153
    %v1234 = vpack.c.b16 %v1156, %v1155
    %v1235 = vpack.c.b16 %v1158, %v1157
    %v1236 = vpack.c.b16 %v1160, %v1159
    %v1237 = vpack.c.b16 %v1162, %v1161
    %v1238 = vpack.c.b16 %v1164, %v1163
    %v1239 = vpack.c.b16 %v1166, %v1165
    %v1240 = vpack.c.b16 %v1168, %v1167
    %v1241 = vpack.c.b16 %v1170, %v1169
    %v1242 = vpack.c.b16 %v1172, %v1171
    %v1243 = vpack.c.b16 %v1174, %v1173
    %v1244 = vpack.c.b16 %v1176, %v1175
    %v1245 = vpack.c.b16 %v1178, %v1177
    %v1246 = vpack.c.b16 %v1180, %v1179
    %v1247 = vpack.c.b16 %v1182, %v1181
    %v1248 = vpack.c.b16 %v1184, %v1183
    %v1249 = vpack.c.b16 %v1186, %v1185
    %v1250 = vpack.c.b16 %v1188, %v1187
    %v1251 = vpack.c.b16 %v1190, %v1189
    %v1252 = vpack.c.b16 %v1192, %v1191
    %v1253 = vpack.c.b16 %v1194, %v1193
    %v1254 = vpack.c.b16 %v1196, %v1195
    %v1255 = vpack.c.b16 %v1198, %v1197
    %v1256 = vpack.c.b16 %v1200, %v1199
    %v1257 = vpack.c.b16 %v1202, %v1201
    %v1258 = vpack.c.b16 %v1204, %v1203
    %v1259 = vpack.c.b16 %v1206, %v1205
    %v1260 = vpack.c.b16 %v1208, %v1207
    %v1261 = vpack.c.b16 %v1210, %v1209
    %v1262 = vpack.c.b16 %v1212, %v1211
    %v1263 = vpack.c.b16 %v1214, %v1213
    %vm1313 = vcmask 130048
    %v1315 = vsel %vm1313, %v916, 0
    %1317 = vmatpush.bf16.msra.mxu0 %v1222
    %1318 = vmatpush.bf16.msra.mxu0 %v1221
    %1319 = vmatpush.bf16.msra.mxu0 %v1220
    %1320 = vmatpush.bf16.msra.mxu0 %v1219
    %1321 = vmatpush.bf16.msra.mxu0 %v1218
    %1322 = vmatpush.bf16.msra.mxu0 %v1217
    %1323 = vmatpush.bf16.msra.mxu0 %v1216
    %1324 = vmatpush.bf16.msra.mxu0 %v1215
    %1325 = vmatmul.bf16.gmra.mxu0 %v910
    %v1326 = vpop.f32.mrf.mxu0
    %v1327 = vadd.f32 %v1017, %v1326
    %v1328 = vpop.f32.mrf.mxu0
    %1329 = vdwg.mxu0
    %1330 = vmatpush.bf16.msra.mxu0 %v1230
    %1331 = vmatpush.bf16.msra.mxu0 %v1229
    %1332 = vmatpush.bf16.msra.mxu0 %v1228
    %1333 = vmatpush.bf16.msra.mxu0 %v1227
    %1334 = vmatpush.bf16.msra.mxu0 %v1226
    %1335 = vmatpush.bf16.msra.mxu0 %v1225
    %1336 = vmatpush.bf16.msra.mxu0 %v1224
    %1337 = vmatpush.bf16.msra.mxu0 %v1223
    %1338 = vmatmul.bf16.gmra.mxu0 %v911
    %v1339 = vpop.f32.mrf.mxu0
    %v1340 = vadd.f32 %v1327, %v1339
    %v1341 = vpop.f32.mrf.mxu0
    %1342 = vdwg.mxu0
    %1343 = vmatpush.bf16.msra.mxu0 %v1238
    %1344 = vmatpush.bf16.msra.mxu0 %v1237
    %1345 = vmatpush.bf16.msra.mxu0 %v1236
    %1346 = vmatpush.bf16.msra.mxu0 %v1235
    %1347 = vmatpush.bf16.msra.mxu0 %v1234
    %1348 = vmatpush.bf16.msra.mxu0 %v1233
    %1349 = vmatpush.bf16.msra.mxu0 %v1232
    %1350 = vmatpush.bf16.msra.mxu0 %v1231
    %1351 = vmatmul.bf16.gmra.mxu0 %v912
    %v1352 = vpop.f32.mrf.mxu0
    %v1353 = vadd.f32 %v1340, %v1352
    %v1354 = vpop.f32.mrf.mxu0
    %1355 = vdwg.mxu0
    %1356 = vmatpush.bf16.msra.mxu0 %v1246
    %1357 = vmatpush.bf16.msra.mxu0 %v1245
    %1358 = vmatpush.bf16.msra.mxu0 %v1244
    %1359 = vmatpush.bf16.msra.mxu0 %v1243
    %1360 = vmatpush.bf16.msra.mxu0 %v1242
    %1361 = vmatpush.bf16.msra.mxu0 %v1241
    %1362 = vmatpush.bf16.msra.mxu0 %v1240
    %1363 = vmatpush.bf16.msra.mxu0 %v1239
    %1364 = vmatmul.bf16.gmra.mxu0 %v913
    %v1365 = vpop.f32.mrf.mxu0
    %v1366 = vadd.f32 %v1353, %v1365
    %v1367 = vpop.f32.mrf.mxu0
    %1368 = vdwg.mxu0
    %1369 = vmatpush.bf16.msra.mxu0 %v1254
    %1370 = vmatpush.bf16.msra.mxu0 %v1253
    %1371 = vmatpush.bf16.msra.mxu0 %v1252
    %1372 = vmatpush.bf16.msra.mxu0 %v1251
    %1373 = vmatpush.bf16.msra.mxu0 %v1250
    %1374 = vmatpush.bf16.msra.mxu0 %v1249
    %1375 = vmatpush.bf16.msra.mxu0 %v1248
    %1376 = vmatpush.bf16.msra.mxu0 %v1247
    %1377 = vmatmul.bf16.gmra.mxu0 %v914
    %v1378 = vpop.f32.mrf.mxu0
    %v1379 = vadd.f32 %v1366, %v1378
    %v1380 = vpop.f32.mrf.mxu0
    %1381 = vdwg.mxu0
    %1382 = vmatpush.bf16.msra.mxu0 %v1262
    %1383 = vmatpush.bf16.msra.mxu0 %v1261
    %1384 = vmatpush.bf16.msra.mxu0 %v1260
    %1385 = vmatpush.bf16.msra.mxu0 %v1259
    %1386 = vmatpush.bf16.msra.mxu0 %v1258
    %1387 = vmatpush.bf16.msra.mxu0 %v1257
    %1388 = vmatpush.bf16.msra.mxu0 %v1256
    %1389 = vmatpush.bf16.msra.mxu0 %v1255
    %1390 = vmatmul.bf16.gmra.mxu0 %v915
    %v1391 = vpop.f32.mrf.mxu0
    %v1392 = vadd.f32 %v1379, %v1391
    %v1393 = vpop.f32.mrf.mxu0
    %1394 = vdwg.mxu0
    %1395 = vmatpush.bf16.msra.mxu0 0
    %1396 = vmatpush.bf16.msra.mxu0 0
    %1397 = vmatpush.bf16.msra.mxu0 0
    %1398 = vmatpush.bf16.msra.mxu0 0
    %1399 = vmatpush.bf16.msra.mxu0 0
    %1400 = vmatpush.bf16.msra.mxu0 0
    %1401 = vmatpush.bf16.msra.mxu0 0
    %1402 = vmatpush.bf16.msra.mxu0 %v1263
    %1403 = vmatmul.bf16.gmra.mxu0 %v1315
    %v1404 = vpop.f32.mrf.mxu0
    %v1405 = vadd.f32 %v1392, %v1404
    %v1406 = vpop.f32.mrf.mxu0
    %1407 = vdwg.mxu0
    %v1408 = vmax.f32 %v1405, 0.0
    %v1409 = vpack.c.bf16 %v1408, %v1408
    %v1410 = vld [vmem:[%s10] sm:$0xff]
    %v1411 = vld [vmem:[%s10 + $0x8] sm:$0xff]
    %v1412 = vld [vmem:[%s10 + $0x10] sm:$0xff]
    %v1413 = vld [vmem:[%s10 + $0x18] sm:$0xff]
    %v1414 = vld [vmem:[%s10 + $0x20] sm:$0xff]
    %v1415 = vld [vmem:[%s10 + $0x28] sm:$0xff]
    %v1416 = vld [vmem:[%s10 + $0x30] sm:$0xff]
    %v1417 = vld [vmem:[%s10 + $0x38] sm:$0xff]
    %v1418 = vld [vmem:[%s10 + $0x40] sm:$0xff]
    %v1419 = vld [vmem:[%s10 + $0x48] sm:$0xff]
    %v1420 = vld [vmem:[%s10 + $0x50] sm:$0xff]
    %v1421 = vld [vmem:[%s10 + $0x58] sm:$0xff]
    %v1422 = vld [vmem:[%s10 + $0x60] sm:$0xff]
    %v1423 = vld [vmem:[%s10 + $0x68] sm:$0xff]
    %v1424 = vld [vmem:[%s10 + $0x70] sm:$0xff]
    %v1425 = vld [vmem:[%s10 + $0x78] sm:$0xff]
    %v1426 = vld [vmem:[#allocation9] sm:$0x3]
    %v1428 = vperm.slane %v1426, 0
    %v1429 = vperm.slane %v1426, 1
    %v1448 = vunpack.c.l.b16 %v1410
    %v1449 = vunpack.c.h.b16 %v1410
    %v1450 = vunpack.c.l.b16 %v1411
    %v1451 = vunpack.c.h.b16 %v1411
    %v1452 = vunpack.c.l.b16 %v1412
    %v1453 = vunpack.c.h.b16 %v1412
    %v1454 = vunpack.c.l.b16 %v1413
    %v1455 = vunpack.c.h.b16 %v1413
    %v1456 = vunpack.c.l.b16 %v1414
    %v1457 = vunpack.c.h.b16 %v1414
    %v1458 = vunpack.c.l.b16 %v1415
    %v1459 = vunpack.c.h.b16 %v1415
    %v1460 = vunpack.c.l.b16 %v1416
    %v1461 = vunpack.c.h.b16 %v1416
    %v1462 = vunpack.c.l.b16 %v1417
    %v1463 = vunpack.c.h.b16 %v1417
    %v1464 = vunpack.c.l.b16 %v1418
    %v1465 = vunpack.c.h.b16 %v1418
    %v1466 = vunpack.c.l.b16 %v1419
    %v1467 = vunpack.c.h.b16 %v1419
    %v1468 = vunpack.c.l.b16 %v1420
    %v1469 = vunpack.c.h.b16 %v1420
    %v1470 = vunpack.c.l.b16 %v1421
    %v1471 = vunpack.c.h.b16 %v1421
    %v1472 = vunpack.c.l.b16 %v1422
    %v1473 = vunpack.c.h.b16 %v1422
    %v1474 = vunpack.c.l.b16 %v1423
    %v1475 = vunpack.c.h.b16 %v1423
    %v1476 = vunpack.c.l.b16 %v1424
    %v1477 = vunpack.c.h.b16 %v1424
    %v1478 = vunpack.c.l.b16 %v1425
    %v1479 = vunpack.c.h.b16 %v1425
    %v1480 = vpack.c.b16 %v1450, %v1448
    %v1481 = vpack.c.b16 %v1451, %v1449
    %v1482 = vpack.c.b16 %v1454, %v1452
    %v1483 = vpack.c.b16 %v1455, %v1453
    %v1484 = vpack.c.b16 %v1458, %v1456
    %v1485 = vpack.c.b16 %v1459, %v1457
    %v1486 = vpack.c.b16 %v1462, %v1460
    %v1487 = vpack.c.b16 %v1463, %v1461
    %v1488 = vpack.c.b16 %v1466, %v1464
    %v1489 = vpack.c.b16 %v1467, %v1465
    %v1490 = vpack.c.b16 %v1470, %v1468
    %v1491 = vpack.c.b16 %v1471, %v1469
    %v1492 = vpack.c.b16 %v1474, %v1472
    %v1493 = vpack.c.b16 %v1475, %v1473
    %v1494 = vpack.c.b16 %v1478, %v1476
    %v1495 = vpack.c.b16 %v1479, %v1477
    %1512 = vmatpush.bf16.msra.mxu0 %v1494
    %1513 = vmatpush.bf16.msra.mxu0 %v1492
    %1514 = vmatpush.bf16.msra.mxu0 %v1490
    %1515 = vmatpush.bf16.msra.mxu0 %v1488
    %1516 = vmatpush.bf16.msra.mxu0 %v1486
    %1517 = vmatpush.bf16.msra.mxu0 %v1484
    %1518 = vmatpush.bf16.msra.mxu0 %v1482
    %1519 = vmatpush.bf16.msra.mxu0 %v1480
    %1520 = vmatmul.bf16.gmra.mxu0 %v1409
    %v1521 = vpop.f32.mrf.mxu0
    %v1522 = vadd.f32 %v1428, %v1521
    %v1523 = vpop.f32.mrf.mxu0
    %1524 = vdwg.mxu0
    %1525 = vmatpush.bf16.msra.mxu0 %v1495
    %1526 = vmatpush.bf16.msra.mxu0 %v1493
    %1527 = vmatpush.bf16.msra.mxu0 %v1491
    %1528 = vmatpush.bf16.msra.mxu0 %v1489
    %1529 = vmatpush.bf16.msra.mxu0 %v1487
    %1530 = vmatpush.bf16.msra.mxu0 %v1485
    %1531 = vmatpush.bf16.msra.mxu0 %v1483
    %1532 = vmatpush.bf16.msra.mxu0 %v1481
    %1533 = vmatmul.bf16.gmra.mxu0 %v1409
    %v1534 = vpop.f32.mrf.mxu0
    %v1535 = vadd.f32 %v1429, %v1534
    %v1536 = vpop.f32.mrf.mxu0
    %1537 = vdwg.mxu0
    %vm1538 = vcmp.gt.f32.partialorder %v1522, 0.0
    %vm1539 = vcmp.gt.f32.partialorder %v1535, 0.0
    %v1540 = vmul.f32 %v1522, 0.01
    %v1541 = vmul.f32 %v1535, 0.01
    %v1542 = vsel %vm1538, %v1522, %v1540
    %v1543 = vsel %vm1539, %v1535, %v1541
    %v1544 = vpack.c.bf16 %v1542, %v1542
    %v1545 = vpack.c.bf16 %v1543, %v1543
    %v1546 = vld [vmem:[#allocation10] sm:$0xff]
    %v1547 = vld [vmem:[#allocation10 + $0x8] sm:$0xff]
    %v1548 = vld [vmem:[#allocation10 + $0x10] sm:$0xff]
    %v1549 = vld [vmem:[#allocation10 + $0x18] sm:$0xff]
    %v1550 = vld [vmem:[#allocation10 + $0x20] sm:$0xff]
    %v1551 = vld [vmem:[#allocation10 + $0x28] sm:$0xff]
    %v1552 = vld [vmem:[#allocation10 + $0x30] sm:$0xff]
    %v1553 = vld [vmem:[#allocation10 + $0x38] sm:$0xff]
    %v1554 = vld [vmem:[#allocation10 + $0x40] sm:$0xff]
    %v1555 = vld [vmem:[#allocation10 + $0x48] sm:$0xff]
    %v1556 = vld [vmem:[#allocation10 + $0x50] sm:$0xff]
    %v1557 = vld [vmem:[#allocation10 + $0x58] sm:$0xff]
    %v1558 = vld [vmem:[#allocation10 + $0x60] sm:$0xff]
    %v1559 = vld [vmem:[#allocation10 + $0x68] sm:$0xff]
    %v1560 = vld [vmem:[#allocation10 + $0x70] sm:$0xff]
    %v1561 = vld [vmem:[#allocation10 + $0x78] sm:$0xff]
    %v1562 = vld [vmem:[#allocation10 + $0x80] sm:$0xff]
    %v1563 = vld [vmem:[#allocation10 + $0x88] sm:$0xff]
    %v1564 = vld [vmem:[#allocation10 + $0x90] sm:$0xff]
    %v1565 = vld [vmem:[#allocation10 + $0x98] sm:$0xff]
    %v1566 = vld [vmem:[#allocation10 + $0xa0] sm:$0xff]
    %v1567 = vld [vmem:[#allocation10 + $0xa8] sm:$0xff]
    %v1568 = vld [vmem:[#allocation10 + $0xb0] sm:$0xff]
    %v1569 = vld [vmem:[#allocation10 + $0xb8] sm:$0xff]
    %v1570 = vld [vmem:[#allocation10 + $0xc0] sm:$0xff]
    %v1571 = vld [vmem:[#allocation10 + $0xc8] sm:$0xff]
    %v1572 = vld [vmem:[#allocation10 + $0xd0] sm:$0xff]
    %v1573 = vld [vmem:[#allocation10 + $0xd8] sm:$0xff]
    %v1574 = vld [vmem:[#allocation10 + $0xe0] sm:$0xff]
    %v1575 = vld [vmem:[#allocation10 + $0xe8] sm:$0xff]
    %v1576 = vld [vmem:[#allocation10 + $0xf0] sm:$0xff]
    %v1577 = vld [vmem:[#allocation10 + $0xf8] sm:$0xff]
    %v1578 = vld [vmem:[#allocation10 + $0x100] sm:$0xff]
    %v1579 = vld [vmem:[#allocation10 + $0x108] sm:$0xff]
    %v1580 = vld [vmem:[#allocation10 + $0x110] sm:$0xff]
    %v1581 = vld [vmem:[#allocation10 + $0x118] sm:$0xff]
    %v1582 = vld [vmem:[#allocation10 + $0x120] sm:$0xff]
    %v1583 = vld [vmem:[#allocation10 + $0x128] sm:$0xff]
    %v1584 = vld [vmem:[#allocation10 + $0x130] sm:$0xff]
    %v1585 = vld [vmem:[#allocation10 + $0x138] sm:$0xff]
    %v1586 = vld [vmem:[#allocation10 + $0x140] sm:$0xff]
    %v1587 = vld [vmem:[#allocation10 + $0x148] sm:$0xff]
    %v1588 = vld [vmem:[#allocation10 + $0x150] sm:$0xff]
    %v1589 = vld [vmem:[#allocation10 + $0x158] sm:$0xff]
    %v1590 = vld [vmem:[#allocation10 + $0x160] sm:$0xff]
    %v1591 = vld [vmem:[#allocation10 + $0x168] sm:$0xff]
    %v1592 = vld [vmem:[#allocation10 + $0x170] sm:$0xff]
    %v1593 = vld [vmem:[#allocation10 + $0x178] sm:$0xff]
    %v1594 = vld [vmem:[#allocation10 + $0x180] sm:$0xff]
    %v1595 = vld [vmem:[#allocation10 + $0x188] sm:$0xff]
    %v1596 = vld [vmem:[#allocation10 + $0x190] sm:$0xff]
    %v1597 = vld [vmem:[#allocation10 + $0x198] sm:$0xff]
    %v1598 = vld [vmem:[#allocation10 + $0x1a0] sm:$0xff]
    %v1599 = vld [vmem:[#allocation10 + $0x1a8] sm:$0xff]
    %v1600 = vld [vmem:[#allocation10 + $0x1b0] sm:$0xff]
    %v1601 = vld [vmem:[#allocation10 + $0x1b8] sm:$0xff]
    %v1602 = vld [vmem:[#allocation10 + $0x1c0] sm:$0xff]
    %v1603 = vld [vmem:[#allocation10 + $0x1c8] sm:$0xff]
    %v1604 = vld [vmem:[#allocation10 + $0x1d0] sm:$0xff]
    %v1605 = vld [vmem:[#allocation10 + $0x1d8] sm:$0xff]
    %v1606 = vld [vmem:[#allocation10 + $0x1e0] sm:$0xff]
    %v1607 = vld [vmem:[#allocation10 + $0x1e8] sm:$0xff]
    %v1608 = vld [vmem:[#allocation10 + $0x1f0] sm:$0xff]
    %v1609 = vld [vmem:[#allocation10 + $0x1f8] sm:$0xff]
    %v1610 = vld [vmem:[%s13] sm:$0xf]
    %v1612 = vperm.slane %v1610, 0
    %v1613 = vperm.slane %v1610, 1
    %v1614 = vperm.slane %v1610, 2
    %v1615 = vperm.slane %v1610, 3
    %v1684 = vunpack.c.l.b16 %v1546
    %v1685 = vunpack.c.h.b16 %v1546
    %v1686 = vunpack.c.l.b16 %v1547
    %v1687 = vunpack.c.h.b16 %v1547
    %v1688 = vunpack.c.l.b16 %v1548
    %v1689 = vunpack.c.h.b16 %v1548
    %v1690 = vunpack.c.l.b16 %v1549
    %v1691 = vunpack.c.h.b16 %v1549
    %v1692 = vunpack.c.l.b16 %v1550
    %v1693 = vunpack.c.h.b16 %v1550
    %v1694 = vunpack.c.l.b16 %v1551
    %v1695 = vunpack.c.h.b16 %v1551
    %v1696 = vunpack.c.l.b16 %v1552
    %v1697 = vunpack.c.h.b16 %v1552
    %v1698 = vunpack.c.l.b16 %v1553
    %v1699 = vunpack.c.h.b16 %v1553
    %v1700 = vunpack.c.l.b16 %v1554
    %v1701 = vunpack.c.h.b16 %v1554
    %v1702 = vunpack.c.l.b16 %v1555
    %v1703 = vunpack.c.h.b16 %v1555
    %v1704 = vunpack.c.l.b16 %v1556
    %v1705 = vunpack.c.h.b16 %v1556
    %v1706 = vunpack.c.l.b16 %v1557
    %v1707 = vunpack.c.h.b16 %v1557
    %v1708 = vunpack.c.l.b16 %v1558
    %v1709 = vunpack.c.h.b16 %v1558
    %v1710 = vunpack.c.l.b16 %v1559
    %v1711 = vunpack.c.h.b16 %v1559
    %v1712 = vunpack.c.l.b16 %v1560
    %v1713 = vunpack.c.h.b16 %v1560
    %v1714 = vunpack.c.l.b16 %v1561
    %v1715 = vunpack.c.h.b16 %v1561
    %v1716 = vunpack.c.l.b16 %v1562
    %v1717 = vunpack.c.h.b16 %v1562
    %v1718 = vunpack.c.l.b16 %v1563
    %v1719 = vunpack.c.h.b16 %v1563
    %v1720 = vunpack.c.l.b16 %v1564
    %v1721 = vunpack.c.h.b16 %v1564
    %v1722 = vunpack.c.l.b16 %v1565
    %v1723 = vunpack.c.h.b16 %v1565
    %v1724 = vunpack.c.l.b16 %v1566
    %v1725 = vunpack.c.h.b16 %v1566
    %v1726 = vunpack.c.l.b16 %v1567
    %v1727 = vunpack.c.h.b16 %v1567
    %v1728 = vunpack.c.l.b16 %v1568
    %v1729 = vunpack.c.h.b16 %v1568
    %v1730 = vunpack.c.l.b16 %v1569
    %v1731 = vunpack.c.h.b16 %v1569
    %v1732 = vunpack.c.l.b16 %v1570
    %v1733 = vunpack.c.h.b16 %v1570
    %v1734 = vunpack.c.l.b16 %v1571
    %v1735 = vunpack.c.h.b16 %v1571
    %v1736 = vunpack.c.l.b16 %v1572
    %v1737 = vunpack.c.h.b16 %v1572
    %v1738 = vunpack.c.l.b16 %v1573
    %v1739 = vunpack.c.h.b16 %v1573
    %v1740 = vunpack.c.l.b16 %v1574
    %v1741 = vunpack.c.h.b16 %v1574
    %v1742 = vunpack.c.l.b16 %v1575
    %v1743 = vunpack.c.h.b16 %v1575
    %v1744 = vunpack.c.l.b16 %v1576
    %v1745 = vunpack.c.h.b16 %v1576
    %v1746 = vunpack.c.l.b16 %v1577
    %v1747 = vunpack.c.h.b16 %v1577
    %v1748 = vunpack.c.l.b16 %v1578
    %v1749 = vunpack.c.h.b16 %v1578
    %v1750 = vunpack.c.l.b16 %v1579
    %v1751 = vunpack.c.h.b16 %v1579
    %v1752 = vunpack.c.l.b16 %v1580
    %v1753 = vunpack.c.h.b16 %v1580
    %v1754 = vunpack.c.l.b16 %v1581
    %v1755 = vunpack.c.h.b16 %v1581
    %v1756 = vunpack.c.l.b16 %v1582
    %v1757 = vunpack.c.h.b16 %v1582
    %v1758 = vunpack.c.l.b16 %v1583
    %v1759 = vunpack.c.h.b16 %v1583
    %v1760 = vunpack.c.l.b16 %v1584
    %v1761 = vunpack.c.h.b16 %v1584
    %v1762 = vunpack.c.l.b16 %v1585
    %v1763 = vunpack.c.h.b16 %v1585
    %v1764 = vunpack.c.l.b16 %v1586
    %v1765 = vunpack.c.h.b16 %v1586
    %v1766 = vunpack.c.l.b16 %v1587
    %v1767 = vunpack.c.h.b16 %v1587
    %v1768 = vunpack.c.l.b16 %v1588
    %v1769 = vunpack.c.h.b16 %v1588
    %v1770 = vunpack.c.l.b16 %v1589
    %v1771 = vunpack.c.h.b16 %v1589
    %v1772 = vunpack.c.l.b16 %v1590
    %v1773 = vunpack.c.h.b16 %v1590
    %v1774 = vunpack.c.l.b16 %v1591
    %v1775 = vunpack.c.h.b16 %v1591
    %v1776 = vunpack.c.l.b16 %v1592
    %v1777 = vunpack.c.h.b16 %v1592
    %v1778 = vunpack.c.l.b16 %v1593
    %v1779 = vunpack.c.h.b16 %v1593
    %v1780 = vunpack.c.l.b16 %v1594
    %v1781 = vunpack.c.h.b16 %v1594
    %v1782 = vunpack.c.l.b16 %v1595
    %v1783 = vunpack.c.h.b16 %v1595
    %v1784 = vunpack.c.l.b16 %v1596
    %v1785 = vunpack.c.h.b16 %v1596
    %v1786 = vunpack.c.l.b16 %v1597
    %v1787 = vunpack.c.h.b16 %v1597
    %v1788 = vunpack.c.l.b16 %v1598
    %v1789 = vunpack.c.h.b16 %v1598
    %v1790 = vunpack.c.l.b16 %v1599
    %v1791 = vunpack.c.h.b16 %v1599
    %v1792 = vunpack.c.l.b16 %v1600
    %v1793 = vunpack.c.h.b16 %v1600
    %v1794 = vunpack.c.l.b16 %v1601
    %v1795 = vunpack.c.h.b16 %v1601
    %v1796 = vunpack.c.l.b16 %v1602
    %v1797 = vunpack.c.h.b16 %v1602
    %v1798 = vunpack.c.l.b16 %v1603
    %v1799 = vunpack.c.h.b16 %v1603
    %v1800 = vunpack.c.l.b16 %v1604
    %v1801 = vunpack.c.h.b16 %v1604
    %v1802 = vunpack.c.l.b16 %v1605
    %v1803 = vunpack.c.h.b16 %v1605
    %v1804 = vunpack.c.l.b16 %v1606
    %v1805 = vunpack.c.h.b16 %v1606
    %v1806 = vunpack.c.l.b16 %v1607
    %v1807 = vunpack.c.h.b16 %v1607
    %v1808 = vunpack.c.l.b16 %v1608
    %v1809 = vunpack.c.h.b16 %v1608
    %v1810 = vunpack.c.l.b16 %v1609
    %v1811 = vunpack.c.h.b16 %v1609
    %v1812 = vpack.c.b16 %v1688, %v1684
    %v1813 = vpack.c.b16 %v1689, %v1685
    %v1814 = vpack.c.b16 %v1690, %v1686
    %v1815 = vpack.c.b16 %v1691, %v1687
    %v1816 = vpack.c.b16 %v1696, %v1692
    %v1817 = vpack.c.b16 %v1697, %v1693
    %v1818 = vpack.c.b16 %v1698, %v1694
    %v1819 = vpack.c.b16 %v1699, %v1695
    %v1820 = vpack.c.b16 %v1704, %v1700
    %v1821 = vpack.c.b16 %v1705, %v1701
    %v1822 = vpack.c.b16 %v1706, %v1702
    %v1823 = vpack.c.b16 %v1707, %v1703
    %v1824 = vpack.c.b16 %v1712, %v1708
    %v1825 = vpack.c.b16 %v1713, %v1709
    %v1826 = vpack.c.b16 %v1714, %v1710
    %v1827 = vpack.c.b16 %v1715, %v1711
    %v1828 = vpack.c.b16 %v1720, %v1716
    %v1829 = vpack.c.b16 %v1721, %v1717
    %v1830 = vpack.c.b16 %v1722, %v1718
    %v1831 = vpack.c.b16 %v1723, %v1719
    %v1832 = vpack.c.b16 %v1728, %v1724
    %v1833 = vpack.c.b16 %v1729, %v1725
    %v1834 = vpack.c.b16 %v1730, %v1726
    %v1835 = vpack.c.b16 %v1731, %v1727
    %v1836 = vpack.c.b16 %v1736, %v1732
    %v1837 = vpack.c.b16 %v1737, %v1733
    %v1838 = vpack.c.b16 %v1738, %v1734
    %v1839 = vpack.c.b16 %v1739, %v1735
    %v1840 = vpack.c.b16 %v1744, %v1740
    %v1841 = vpack.c.b16 %v1745, %v1741
    %v1842 = vpack.c.b16 %v1746, %v1742
    %v1843 = vpack.c.b16 %v1747, %v1743
    %v1844 = vpack.c.b16 %v1752, %v1748
    %v1845 = vpack.c.b16 %v1753, %v1749
    %v1846 = vpack.c.b16 %v1754, %v1750
    %v1847 = vpack.c.b16 %v1755, %v1751
    %v1848 = vpack.c.b16 %v1760, %v1756
    %v1849 = vpack.c.b16 %v1761, %v1757
    %v1850 = vpack.c.b16 %v1762, %v1758
    %v1851 = vpack.c.b16 %v1763, %v1759
    %v1852 = vpack.c.b16 %v1768, %v1764
    %v1853 = vpack.c.b16 %v1769, %v1765
    %v1854 = vpack.c.b16 %v1770, %v1766
    %v1855 = vpack.c.b16 %v1771, %v1767
    %v1856 = vpack.c.b16 %v1776, %v1772
    %v1857 = vpack.c.b16 %v1777, %v1773
    %v1858 = vpack.c.b16 %v1778, %v1774
    %v1859 = vpack.c.b16 %v1779, %v1775
    %v1860 = vpack.c.b16 %v1784, %v1780
    %v1861 = vpack.c.b16 %v1785, %v1781
    %v1862 = vpack.c.b16 %v1786, %v1782
    %v1863 = vpack.c.b16 %v1787, %v1783
    %v1864 = vpack.c.b16 %v1792, %v1788
    %v1865 = vpack.c.b16 %v1793, %v1789
    %v1866 = vpack.c.b16 %v1794, %v1790
    %v1867 = vpack.c.b16 %v1795, %v1791
    %v1868 = vpack.c.b16 %v1800, %v1796
    %v1869 = vpack.c.b16 %v1801, %v1797
    %v1870 = vpack.c.b16 %v1802, %v1798
    %v1871 = vpack.c.b16 %v1803, %v1799
    %v1872 = vpack.c.b16 %v1808, %v1804
    %v1873 = vpack.c.b16 %v1809, %v1805
    %v1874 = vpack.c.b16 %v1810, %v1806
    %v1875 = vpack.c.b16 %v1811, %v1807
    %1940 = vmatpush.bf16.msra.mxu0 %v1840
    %1941 = vmatpush.bf16.msra.mxu0 %v1836
    %1942 = vmatpush.bf16.msra.mxu0 %v1832
    %1943 = vmatpush.bf16.msra.mxu0 %v1828
    %1944 = vmatpush.bf16.msra.mxu0 %v1824
    %1945 = vmatpush.bf16.msra.mxu0 %v1820
    %1946 = vmatpush.bf16.msra.mxu0 %v1816
    %1947 = vmatpush.bf16.msra.mxu0 %v1812
    %1948 = vmatmul.bf16.gmra.mxu0 %v1544
    %v1949 = vpop.f32.mrf.mxu0
    %v1950 = vadd.f32 %v1612, %v1949
    %v1951 = vpop.f32.mrf.mxu0
    %1952 = vdwg.mxu0
    %1953 = vmatpush.bf16.msra.mxu0 %v1872
    %1954 = vmatpush.bf16.msra.mxu0 %v1868
    %1955 = vmatpush.bf16.msra.mxu0 %v1864
    %1956 = vmatpush.bf16.msra.mxu0 %v1860
    %1957 = vmatpush.bf16.msra.mxu0 %v1856
    %1958 = vmatpush.bf16.msra.mxu0 %v1852
    %1959 = vmatpush.bf16.msra.mxu0 %v1848
    %1960 = vmatpush.bf16.msra.mxu0 %v1844
    %1961 = vmatmul.bf16.gmra.mxu0 %v1545
    %v1962 = vpop.f32.mrf.mxu0
    %v1963 = vadd.f32 %v1950, %v1962
    %v1964 = vpop.f32.mrf.mxu0
    %1965 = vdwg.mxu0
    %1966 = vmatpush.bf16.msra.mxu0 %v1841
    %1967 = vmatpush.bf16.msra.mxu0 %v1837
    %1968 = vmatpush.bf16.msra.mxu0 %v1833
    %1969 = vmatpush.bf16.msra.mxu0 %v1829
    %1970 = vmatpush.bf16.msra.mxu0 %v1825
    %1971 = vmatpush.bf16.msra.mxu0 %v1821
    %1972 = vmatpush.bf16.msra.mxu0 %v1817
    %1973 = vmatpush.bf16.msra.mxu0 %v1813
    %1974 = vmatmul.bf16.gmra.mxu0 %v1544
    %v1975 = vpop.f32.mrf.mxu0
    %v1976 = vadd.f32 %v1613, %v1975
    %v1977 = vpop.f32.mrf.mxu0
    %1978 = vdwg.mxu0
    %1979 = vmatpush.bf16.msra.mxu0 %v1873
    %1980 = vmatpush.bf16.msra.mxu0 %v1869
    %1981 = vmatpush.bf16.msra.mxu0 %v1865
    %1982 = vmatpush.bf16.msra.mxu0 %v1861
    %1983 = vmatpush.bf16.msra.mxu0 %v1857
    %1984 = vmatpush.bf16.msra.mxu0 %v1853
    %1985 = vmatpush.bf16.msra.mxu0 %v1849
    %1986 = vmatpush.bf16.msra.mxu0 %v1845
    %1987 = vmatmul.bf16.gmra.mxu0 %v1545
    %v1988 = vpop.f32.mrf.mxu0
    %v1989 = vadd.f32 %v1976, %v1988
    %v1990 = vpop.f32.mrf.mxu0
    %1991 = vdwg.mxu0
    %1992 = vmatpush.bf16.msra.mxu0 %v1842
    %1993 = vmatpush.bf16.msra.mxu0 %v1838
    %1994 = vmatpush.bf16.msra.mxu0 %v1834
    %1995 = vmatpush.bf16.msra.mxu0 %v1830
    %1996 = vmatpush.bf16.msra.mxu0 %v1826
    %1997 = vmatpush.bf16.msra.mxu0 %v1822
    %1998 = vmatpush.bf16.msra.mxu0 %v1818
    %1999 = vmatpush.bf16.msra.mxu0 %v1814
    %2000 = vmatmul.bf16.gmra.mxu0 %v1544
    %v2001 = vpop.f32.mrf.mxu0
    %v2002 = vadd.f32 %v1614, %v2001
    %v2003 = vpop.f32.mrf.mxu0
    %2004 = vdwg.mxu0
    %2005 = vmatpush.bf16.msra.mxu0 %v1874
    %2006 = vmatpush.bf16.msra.mxu0 %v1870
    %2007 = vmatpush.bf16.msra.mxu0 %v1866
    %2008 = vmatpush.bf16.msra.mxu0 %v1862
    %2009 = vmatpush.bf16.msra.mxu0 %v1858
    %2010 = vmatpush.bf16.msra.mxu0 %v1854
    %2011 = vmatpush.bf16.msra.mxu0 %v1850
    %2012 = vmatpush.bf16.msra.mxu0 %v1846
    %2013 = vmatmul.bf16.gmra.mxu0 %v1545
    %v2014 = vpop.f32.mrf.mxu0
    %v2015 = vadd.f32 %v2002, %v2014
    %v2016 = vpop.f32.mrf.mxu0
    %2017 = vdwg.mxu0
    %2018 = vmatpush.bf16.msra.mxu0 %v1843
    %2019 = vmatpush.bf16.msra.mxu0 %v1839
    %2020 = vmatpush.bf16.msra.mxu0 %v1835
    %2021 = vmatpush.bf16.msra.mxu0 %v1831
    %2022 = vmatpush.bf16.msra.mxu0 %v1827
    %2023 = vmatpush.bf16.msra.mxu0 %v1823
    %2024 = vmatpush.bf16.msra.mxu0 %v1819
    %2025 = vmatpush.bf16.msra.mxu0 %v1815
    %2026 = vmatmul.bf16.gmra.mxu0 %v1544
    %v2027 = vpop.f32.mrf.mxu0
    %v2028 = vadd.f32 %v1615, %v2027
    %v2029 = vpop.f32.mrf.mxu0
    %2030 = vdwg.mxu0
    %2031 = vmatpush.bf16.msra.mxu0 %v1875
    %2032 = vmatpush.bf16.msra.mxu0 %v1871
    %2033 = vmatpush.bf16.msra.mxu0 %v1867
    %2034 = vmatpush.bf16.msra.mxu0 %v1863
    %2035 = vmatpush.bf16.msra.mxu0 %v1859
    %2036 = vmatpush.bf16.msra.mxu0 %v1855
    %2037 = vmatpush.bf16.msra.mxu0 %v1851
    %2038 = vmatpush.bf16.msra.mxu0 %v1847
    %2039 = vmatmul.bf16.gmra.mxu0 %v1545
    %v2040 = vpop.f32.mrf.mxu0
    %v2041 = vadd.f32 %v2028, %v2040
    %v2042 = vpop.f32.mrf.mxu0
    %2043 = vdwg.mxu0
    %vm2044 = vcmp.gt.f32.partialorder %v1963, 0.0
    %vm2045 = vcmp.gt.f32.partialorder %v1989, 0.0
    %vm2046 = vcmp.gt.f32.partialorder %v2015, 0.0
    %vm2047 = vcmp.gt.f32.partialorder %v2041, 0.0
    %v2048 = vmul.f32 %v1963, 0.01
    %v2049 = vmul.f32 %v1989, 0.01
    %v2050 = vmul.f32 %v2015, 0.01
    %v2051 = vmul.f32 %v2041, 0.01
    %v2052 = vsel %vm2044, %v1963, %v2048
    %v2053 = vsel %vm2045, %v1989, %v2049
    %v2054 = vsel %vm2046, %v2015, %v2050
    %v2055 = vsel %vm2047, %v2041, %v2051
    %v2056 = vpack.c.bf16 %v899, %v899
    %v2057 = vpack.c.bf16 %v900, %v900
    %v2058 = vpack.c.bf16 %v901, %v901
    %v2059 = vpack.c.bf16 %v902, %v902
    %v2060 = vld [vmem:[#allocation12] sm:$0xff]
    %v2061 = vld [vmem:[#allocation12 + $0x8] sm:$0xff]
    %v2062 = vld [vmem:[#allocation12 + $0x10] sm:$0xff]
    %v2063 = vld [vmem:[#allocation12 + $0x18] sm:$0xff]
    %v2064 = vld [vmem:[#allocation12 + $0x20] sm:$0xff]
    %v2065 = vld [vmem:[#allocation12 + $0x28] sm:$0xff]
    %v2066 = vld [vmem:[#allocation12 + $0x30] sm:$0xff]
    %v2067 = vld [vmem:[#allocation12 + $0x38] sm:$0xff]
    %v2068 = vld [vmem:[#allocation12 + $0x40] sm:$0xff]
    %v2069 = vld [vmem:[#allocation12 + $0x48] sm:$0xff]
    %v2070 = vld [vmem:[#allocation12 + $0x50] sm:$0xff]
    %v2071 = vld [vmem:[#allocation12 + $0x58] sm:$0xff]
    %v2072 = vld [vmem:[#allocation12 + $0x60] sm:$0xff]
    %v2073 = vld [vmem:[#allocation12 + $0x68] sm:$0xff]
    %v2074 = vld [vmem:[#allocation12 + $0x70] sm:$0xff]
    %v2075 = vld [vmem:[#allocation12 + $0x78] sm:$0xff]
    %v2076 = vld [vmem:[#allocation12 + $0x80] sm:$0xff]
    %v2077 = vld [vmem:[#allocation12 + $0x88] sm:$0xff]
    %v2078 = vld [vmem:[#allocation12 + $0x90] sm:$0xff]
    %v2079 = vld [vmem:[#allocation12 + $0x98] sm:$0xff]
    %v2080 = vld [vmem:[#allocation12 + $0xa0] sm:$0xff]
    %v2081 = vld [vmem:[#allocation12 + $0xa8] sm:$0xff]
    %v2082 = vld [vmem:[#allocation12 + $0xb0] sm:$0xff]
    %v2083 = vld [vmem:[#allocation12 + $0xb8] sm:$0xff]
    %v2084 = vld [vmem:[#allocation12 + $0xc0] sm:$0xff]
    %v2085 = vld [vmem:[#allocation12 + $0xc8] sm:$0xff]
    %v2086 = vld [vmem:[#allocation12 + $0xd0] sm:$0xff]
    %v2087 = vld [vmem:[#allocation12 + $0xd8] sm:$0xff]
    %v2088 = vld [vmem:[#allocation12 + $0xe0] sm:$0xff]
    %v2089 = vld [vmem:[#allocation12 + $0xe8] sm:$0xff]
    %v2090 = vld [vmem:[#allocation12 + $0xf0] sm:$0xff]
    %v2091 = vld [vmem:[#allocation12 + $0xf8] sm:$0xff]
    %v2092 = vld [vmem:[#allocation12 + $0x100] sm:$0xff]
    %v2093 = vld [vmem:[#allocation12 + $0x108] sm:$0xff]
    %v2094 = vld [vmem:[#allocation12 + $0x110] sm:$0xff]
    %v2095 = vld [vmem:[#allocation12 + $0x118] sm:$0xff]
    %v2096 = vld [vmem:[#allocation12 + $0x120] sm:$0xff]
    %v2097 = vld [vmem:[#allocation12 + $0x128] sm:$0xff]
    %v2098 = vld [vmem:[#allocation12 + $0x130] sm:$0xff]
    %v2099 = vld [vmem:[#allocation12 + $0x138] sm:$0xff]
    %v2100 = vld [vmem:[#allocation12 + $0x140] sm:$0xff]
    %v2101 = vld [vmem:[#allocation12 + $0x148] sm:$0xff]
    %v2102 = vld [vmem:[#allocation12 + $0x150] sm:$0xff]
    %v2103 = vld [vmem:[#allocation12 + $0x158] sm:$0xff]
    %v2104 = vld [vmem:[#allocation12 + $0x160] sm:$0xff]
    %v2105 = vld [vmem:[#allocation12 + $0x168] sm:$0xff]
    %v2106 = vld [vmem:[#allocation12 + $0x170] sm:$0xff]
    %v2107 = vld [vmem:[#allocation12 + $0x178] sm:$0xff]
    %v2108 = vld [vmem:[#allocation12 + $0x180] sm:$0xff]
    %v2109 = vld [vmem:[#allocation12 + $0x188] sm:$0xff]
    %v2110 = vld [vmem:[#allocation12 + $0x190] sm:$0xff]
    %v2111 = vld [vmem:[#allocation12 + $0x198] sm:$0xff]
    %v2112 = vld [vmem:[#allocation12 + $0x1a0] sm:$0xff]
    %v2113 = vld [vmem:[#allocation12 + $0x1a8] sm:$0xff]
    %v2114 = vld [vmem:[#allocation12 + $0x1b0] sm:$0xff]
    %v2115 = vld [vmem:[#allocation12 + $0x1b8] sm:$0xff]
    %v2116 = vld [vmem:[#allocation12 + $0x1c0] sm:$0xff]
    %v2117 = vld [vmem:[#allocation12 + $0x1c8] sm:$0xff]
    %v2118 = vld [vmem:[#allocation12 + $0x1d0] sm:$0xff]
    %v2119 = vld [vmem:[#allocation12 + $0x1d8] sm:$0xff]
    %v2120 = vld [vmem:[#allocation12 + $0x1e0] sm:$0xff]
    %v2121 = vld [vmem:[#allocation12 + $0x1e8] sm:$0xff]
    %v2122 = vld [vmem:[#allocation12 + $0x1f0] sm:$0xff]
    %v2123 = vld [vmem:[#allocation12 + $0x1f8] sm:$0xff]
    %v2124 = vld [vmem:[#allocation12 + $0x200] sm:$0xff]
    %v2125 = vld [vmem:[#allocation12 + $0x208] sm:$0xff]
    %v2126 = vld [vmem:[#allocation12 + $0x210] sm:$0xff]
    %v2127 = vld [vmem:[#allocation12 + $0x218] sm:$0xff]
    %v2128 = vld [vmem:[#allocation12 + $0x220] sm:$0xff]
    %v2129 = vld [vmem:[#allocation12 + $0x228] sm:$0xff]
    %v2130 = vld [vmem:[#allocation12 + $0x230] sm:$0xff]
    %v2131 = vld [vmem:[#allocation12 + $0x238] sm:$0xff]
    %v2132 = vld [vmem:[#allocation12 + $0x240] sm:$0xff]
    %v2133 = vld [vmem:[#allocation12 + $0x248] sm:$0xff]
    %v2134 = vld [vmem:[#allocation12 + $0x250] sm:$0xff]
    %v2135 = vld [vmem:[#allocation12 + $0x258] sm:$0xff]
    %v2136 = vld [vmem:[#allocation12 + $0x260] sm:$0xff]
    %v2137 = vld [vmem:[#allocation12 + $0x268] sm:$0xff]
    %v2138 = vld [vmem:[#allocation12 + $0x270] sm:$0xff]
    %v2139 = vld [vmem:[#allocation12 + $0x278] sm:$0xff]
    %v2140 = vld [vmem:[#allocation12 + $0x280] sm:$0xff]
    %v2141 = vld [vmem:[#allocation12 + $0x288] sm:$0xff]
    %v2142 = vld [vmem:[#allocation12 + $0x290] sm:$0xff]
    %v2143 = vld [vmem:[#allocation12 + $0x298] sm:$0xff]
    %v2144 = vld [vmem:[#allocation12 + $0x2a0] sm:$0xff]
    %v2145 = vld [vmem:[#allocation12 + $0x2a8] sm:$0xff]
    %v2146 = vld [vmem:[#allocation12 + $0x2b0] sm:$0xff]
    %v2147 = vld [vmem:[#allocation12 + $0x2b8] sm:$0xff]
    %v2148 = vld [vmem:[#allocation12 + $0x2c0] sm:$0xff]
    %v2149 = vld [vmem:[#allocation12 + $0x2c8] sm:$0xff]
    %v2150 = vld [vmem:[#allocation12 + $0x2d0] sm:$0xff]
    %v2151 = vld [vmem:[#allocation12 + $0x2d8] sm:$0xff]
    %v2152 = vld [vmem:[#allocation12 + $0x2e0] sm:$0xff]
    %v2153 = vld [vmem:[#allocation12 + $0x2e8] sm:$0xff]
    %v2154 = vld [vmem:[#allocation12 + $0x2f0] sm:$0xff]
    %v2155 = vld [vmem:[#allocation12 + $0x2f8] sm:$0xff]
    %v2156 = vld [vmem:[#allocation12 + $0x300] sm:$0xff]
    %v2157 = vld [vmem:[#allocation12 + $0x308] sm:$0xff]
    %v2158 = vld [vmem:[#allocation12 + $0x310] sm:$0xff]
    %v2159 = vld [vmem:[#allocation12 + $0x318] sm:$0xff]
    %v2160 = vld [vmem:[#allocation12 + $0x320] sm:$0xff]
    %v2161 = vld [vmem:[#allocation12 + $0x328] sm:$0xff]
    %v2162 = vld [vmem:[#allocation12 + $0x330] sm:$0xff]
    %v2163 = vld [vmem:[#allocation12 + $0x338] sm:$0xff]
    %v2164 = vld [vmem:[#allocation12 + $0x340] sm:$0xff]
    %v2165 = vld [vmem:[#allocation12 + $0x348] sm:$0xff]
    %v2166 = vld [vmem:[#allocation12 + $0x350] sm:$0xff]
    %v2167 = vld [vmem:[#allocation12 + $0x358] sm:$0xff]
    %v2168 = vld [vmem:[#allocation12 + $0x360] sm:$0xff]
    %v2169 = vld [vmem:[#allocation12 + $0x368] sm:$0xff]
    %v2170 = vld [vmem:[#allocation12 + $0x370] sm:$0xff]
    %v2171 = vld [vmem:[#allocation12 + $0x378] sm:$0xff]
    %v2172 = vld [vmem:[#allocation12 + $0x380] sm:$0xff]
    %v2173 = vld [vmem:[#allocation12 + $0x388] sm:$0xff]
    %v2174 = vld [vmem:[#allocation12 + $0x390] sm:$0xff]
    %v2175 = vld [vmem:[#allocation12 + $0x398] sm:$0xff]
    %v2176 = vld [vmem:[#allocation12 + $0x3a0] sm:$0xff]
    %v2177 = vld [vmem:[#allocation12 + $0x3a8] sm:$0xff]
    %v2178 = vld [vmem:[#allocation12 + $0x3b0] sm:$0xff]
    %v2179 = vld [vmem:[#allocation12 + $0x3b8] sm:$0xff]
    %v2180 = vld [vmem:[#allocation12 + $0x3c0] sm:$0xff]
    %v2181 = vld [vmem:[#allocation12 + $0x3c8] sm:$0xff]
    %v2182 = vld [vmem:[#allocation12 + $0x3d0] sm:$0xff]
    %v2183 = vld [vmem:[#allocation12 + $0x3d8] sm:$0xff]
    %v2184 = vld [vmem:[#allocation12 + $0x3e0] sm:$0xff]
    %v2185 = vld [vmem:[#allocation12 + $0x3e8] sm:$0xff]
    %v2186 = vld [vmem:[#allocation12 + $0x3f0] sm:$0xff]
    %v2187 = vld [vmem:[#allocation12 + $0x3f8] sm:$0xff]
    %v2188 = vld [vmem:[#allocation12 + $0x400] sm:$0xff]
    %v2189 = vld [vmem:[#allocation12 + $0x408] sm:$0xff]
    %v2190 = vld [vmem:[#allocation12 + $0x410] sm:$0xff]
    %v2191 = vld [vmem:[#allocation12 + $0x418] sm:$0xff]
    %v2192 = vld [vmem:[#allocation12 + $0x420] sm:$0xff]
    %v2193 = vld [vmem:[#allocation12 + $0x428] sm:$0xff]
    %v2194 = vld [vmem:[#allocation12 + $0x430] sm:$0xff]
    %v2195 = vld [vmem:[#allocation12 + $0x438] sm:$0xff]
    %v2196 = vld [vmem:[#allocation12 + $0x440] sm:$0xff]
    %v2197 = vld [vmem:[#allocation12 + $0x448] sm:$0xff]
    %v2198 = vld [vmem:[#allocation12 + $0x450] sm:$0xff]
    %v2199 = vld [vmem:[#allocation12 + $0x458] sm:$0xff]
    %v2200 = vld [vmem:[#allocation12 + $0x460] sm:$0xff]
    %v2201 = vld [vmem:[#allocation12 + $0x468] sm:$0xff]
    %v2202 = vld [vmem:[#allocation12 + $0x470] sm:$0xff]
    %v2203 = vld [vmem:[#allocation12 + $0x478] sm:$0xff]
    %v2204 = vld [vmem:[#allocation12 + $0x480] sm:$0xff]
    %v2205 = vld [vmem:[#allocation12 + $0x488] sm:$0xff]
    %v2206 = vld [vmem:[#allocation12 + $0x490] sm:$0xff]
    %v2207 = vld [vmem:[#allocation12 + $0x498] sm:$0xff]
    %v2208 = vld [vmem:[#allocation12 + $0x4a0] sm:$0xff]
    %v2209 = vld [vmem:[#allocation12 + $0x4a8] sm:$0xff]
    %v2210 = vld [vmem:[#allocation12 + $0x4b0] sm:$0xff]
    %v2211 = vld [vmem:[#allocation12 + $0x4b8] sm:$0xff]
    %v2212 = vld [vmem:[#allocation12 + $0x4c0] sm:$0xff]
    %v2213 = vld [vmem:[#allocation12 + $0x4c8] sm:$0xff]
    %v2214 = vld [vmem:[#allocation12 + $0x4d0] sm:$0xff]
    %v2215 = vld [vmem:[#allocation12 + $0x4d8] sm:$0xff]
    %v2216 = vld [vmem:[#allocation12 + $0x4e0] sm:$0xff]
    %v2217 = vld [vmem:[#allocation12 + $0x4e8] sm:$0xff]
    %v2218 = vld [vmem:[#allocation12 + $0x4f0] sm:$0xff]
    %v2219 = vld [vmem:[#allocation12 + $0x4f8] sm:$0xff]
    %v2220 = vld [vmem:[#allocation12 + $0x500] sm:$0xff]
    %v2221 = vld [vmem:[#allocation12 + $0x508] sm:$0xff]
    %v2222 = vld [vmem:[#allocation12 + $0x510] sm:$0xff]
    %v2223 = vld [vmem:[#allocation12 + $0x518] sm:$0xff]
    %v2224 = vld [vmem:[#allocation12 + $0x520] sm:$0xff]
    %v2225 = vld [vmem:[#allocation12 + $0x528] sm:$0xff]
    %v2226 = vld [vmem:[#allocation12 + $0x530] sm:$0xff]
    %v2227 = vld [vmem:[#allocation12 + $0x538] sm:$0xff]
    %v2228 = vld [vmem:[#allocation12 + $0x540] sm:$0xff]
    %v2229 = vld [vmem:[#allocation12 + $0x548] sm:$0xff]
    %v2230 = vld [vmem:[#allocation12 + $0x550] sm:$0xff]
    %v2231 = vld [vmem:[#allocation12 + $0x558] sm:$0xff]
    %v2232 = vld [vmem:[#allocation12 + $0x560] sm:$0xff]
    %v2233 = vld [vmem:[#allocation12 + $0x568] sm:$0xff]
    %v2234 = vld [vmem:[#allocation12 + $0x570] sm:$0xff]
    %v2235 = vld [vmem:[#allocation12 + $0x578] sm:$0xff]
    %v2236 = vld [vmem:[#allocation12 + $0x580] sm:$0xff]
    %v2237 = vld [vmem:[#allocation12 + $0x588] sm:$0xff]
    %v2238 = vld [vmem:[#allocation12 + $0x590] sm:$0xff]
    %v2239 = vld [vmem:[#allocation12 + $0x598] sm:$0xff]
    %v2240 = vld [vmem:[#allocation12 + $0x5a0] sm:$0xff]
    %v2241 = vld [vmem:[#allocation12 + $0x5a8] sm:$0xff]
    %v2242 = vld [vmem:[#allocation12 + $0x5b0] sm:$0xff]
    %v2243 = vld [vmem:[#allocation12 + $0x5b8] sm:$0xff]
    %v2244 = vld [vmem:[#allocation12 + $0x5c0] sm:$0xff]
    %v2245 = vld [vmem:[#allocation12 + $0x5c8] sm:$0xff]
    %v2246 = vld [vmem:[#allocation12 + $0x5d0] sm:$0xff]
    %v2247 = vld [vmem:[#allocation12 + $0x5d8] sm:$0xff]
    %v2248 = vld [vmem:[#allocation12 + $0x5e0] sm:$0xff]
    %v2249 = vld [vmem:[#allocation12 + $0x5e8] sm:$0xff]
    %v2250 = vld [vmem:[#allocation12 + $0x5f0] sm:$0xff]
    %v2251 = vld [vmem:[#allocation12 + $0x5f8] sm:$0xff]
    %v2252 = vld [vmem:[#allocation12 + $0x600] sm:$0xff]
    %v2253 = vld [vmem:[#allocation12 + $0x608] sm:$0xff]
    %v2254 = vld [vmem:[#allocation12 + $0x610] sm:$0xff]
    %v2255 = vld [vmem:[#allocation12 + $0x618] sm:$0xff]
    %v2256 = vld [vmem:[#allocation12 + $0x620] sm:$0xff]
    %v2257 = vld [vmem:[#allocation12 + $0x628] sm:$0xff]
    %v2258 = vld [vmem:[#allocation12 + $0x630] sm:$0xff]
    %v2259 = vld [vmem:[#allocation12 + $0x638] sm:$0xff]
    %v2260 = vld [vmem:[#allocation12 + $0x640] sm:$0xff]
    %v2261 = vld [vmem:[#allocation12 + $0x648] sm:$0xff]
    %v2262 = vld [vmem:[#allocation12 + $0x650] sm:$0xff]
    %v2263 = vld [vmem:[#allocation12 + $0x658] sm:$0xff]
    %v2264 = vld [vmem:[#allocation12 + $0x660] sm:$0xff]
    %v2265 = vld [vmem:[#allocation12 + $0x668] sm:$0xff]
    %v2266 = vld [vmem:[#allocation12 + $0x670] sm:$0xff]
    %v2267 = vld [vmem:[#allocation12 + $0x678] sm:$0xff]
    %v2268 = vld [vmem:[#allocation12 + $0x680] sm:$0xff]
    %v2269 = vld [vmem:[#allocation12 + $0x688] sm:$0xff]
    %v2270 = vld [vmem:[#allocation12 + $0x690] sm:$0xff]
    %v2271 = vld [vmem:[#allocation12 + $0x698] sm:$0xff]
    %v2272 = vld [vmem:[#allocation12 + $0x6a0] sm:$0xff]
    %v2273 = vld [vmem:[#allocation12 + $0x6a8] sm:$0xff]
    %v2274 = vld [vmem:[#allocation12 + $0x6b0] sm:$0xff]
    %v2275 = vld [vmem:[#allocation12 + $0x6b8] sm:$0xff]
    %v2276 = vld [vmem:[#allocation12 + $0x6c0] sm:$0xff]
    %v2277 = vld [vmem:[#allocation12 + $0x6c8] sm:$0xff]
    %v2278 = vld [vmem:[#allocation12 + $0x6d0] sm:$0xff]
    %v2279 = vld [vmem:[#allocation12 + $0x6d8] sm:$0xff]
    %v2280 = vld [vmem:[#allocation12 + $0x6e0] sm:$0xff]
    %v2281 = vld [vmem:[#allocation12 + $0x6e8] sm:$0xff]
    %v2282 = vld [vmem:[#allocation12 + $0x6f0] sm:$0xff]
    %v2283 = vld [vmem:[#allocation12 + $0x6f8] sm:$0xff]
    %v2284 = vld [vmem:[#allocation12 + $0x700] sm:$0xff]
    %v2285 = vld [vmem:[#allocation12 + $0x708] sm:$0xff]
    %v2286 = vld [vmem:[#allocation12 + $0x710] sm:$0xff]
    %v2287 = vld [vmem:[#allocation12 + $0x718] sm:$0xff]
    %v2288 = vld [vmem:[#allocation12 + $0x720] sm:$0xff]
    %v2289 = vld [vmem:[#allocation12 + $0x728] sm:$0xff]
    %v2290 = vld [vmem:[#allocation12 + $0x730] sm:$0xff]
    %v2291 = vld [vmem:[#allocation12 + $0x738] sm:$0xff]
    %v2292 = vld [vmem:[#allocation12 + $0x740] sm:$0xff]
    %v2293 = vld [vmem:[#allocation12 + $0x748] sm:$0xff]
    %v2294 = vld [vmem:[#allocation12 + $0x750] sm:$0xff]
    %v2295 = vld [vmem:[#allocation12 + $0x758] sm:$0xff]
    %v2296 = vld [vmem:[#allocation12 + $0x760] sm:$0xff]
    %v2297 = vld [vmem:[#allocation12 + $0x768] sm:$0xff]
    %v2298 = vld [vmem:[#allocation12 + $0x770] sm:$0xff]
    %v2299 = vld [vmem:[#allocation12 + $0x778] sm:$0xff]
    %v2300 = vld [vmem:[#allocation12 + $0x780] sm:$0xff]
    %v2301 = vld [vmem:[#allocation12 + $0x788] sm:$0xff]
    %v2302 = vld [vmem:[#allocation12 + $0x790] sm:$0xff]
    %v2303 = vld [vmem:[#allocation12 + $0x798] sm:$0xff]
    %v2304 = vld [vmem:[#allocation12 + $0x7a0] sm:$0xff]
    %v2305 = vld [vmem:[#allocation12 + $0x7a8] sm:$0xff]
    %v2306 = vld [vmem:[#allocation12 + $0x7b0] sm:$0xff]
    %v2307 = vld [vmem:[#allocation12 + $0x7b8] sm:$0xff]
    %v2308 = vld [vmem:[#allocation12 + $0x7c0] sm:$0xff]
    %v2309 = vld [vmem:[#allocation12 + $0x7c8] sm:$0xff]
    %v2310 = vld [vmem:[#allocation12 + $0x7d0] sm:$0xff]
    %v2311 = vld [vmem:[#allocation12 + $0x7d8] sm:$0xff]
    %v2312 = vld [vmem:[#allocation12 + $0x7e0] sm:$0xff]
    %v2313 = vld [vmem:[#allocation12 + $0x7e8] sm:$0xff]
    %v2314 = vld [vmem:[#allocation12 + $0x7f0] sm:$0xff]
    %v2315 = vld [vmem:[#allocation12 + $0x7f8] sm:$0xff]
    %v2316 = vpack.c.bf16 %v2052, %v2052
    %v2317 = vpack.c.bf16 %v2053, %v2053
    %v2318 = vpack.c.bf16 %v2054, %v2054
    %v2319 = vpack.c.bf16 %v2055, %v2055
    %v2320 = vld [vmem:[#allocation13] sm:$0xff]
    %v2321 = vld [vmem:[#allocation13 + $0x8] sm:$0xff]
    %v2322 = vld [vmem:[#allocation13 + $0x10] sm:$0xff]
    %v2323 = vld [vmem:[#allocation13 + $0x18] sm:$0xff]
    %v2324 = vld [vmem:[#allocation13 + $0x20] sm:$0xff]
    %v2325 = vld [vmem:[#allocation13 + $0x28] sm:$0xff]
    %v2326 = vld [vmem:[#allocation13 + $0x30] sm:$0xff]
    %v2327 = vld [vmem:[#allocation13 + $0x38] sm:$0xff]
    %v2328 = vld [vmem:[#allocation13 + $0x40] sm:$0xff]
    %v2329 = vld [vmem:[#allocation13 + $0x48] sm:$0xff]
    %v2330 = vld [vmem:[#allocation13 + $0x50] sm:$0xff]
    %v2331 = vld [vmem:[#allocation13 + $0x58] sm:$0xff]
    %v2332 = vld [vmem:[#allocation13 + $0x60] sm:$0xff]
    %v2333 = vld [vmem:[#allocation13 + $0x68] sm:$0xff]
    %v2334 = vld [vmem:[#allocation13 + $0x70] sm:$0xff]
    %v2335 = vld [vmem:[#allocation13 + $0x78] sm:$0xff]
    %v2336 = vld [vmem:[#allocation13 + $0x80] sm:$0xff]
    %v2337 = vld [vmem:[#allocation13 + $0x88] sm:$0xff]
    %v2338 = vld [vmem:[#allocation13 + $0x90] sm:$0xff]
    %v2339 = vld [vmem:[#allocation13 + $0x98] sm:$0xff]
    %v2340 = vld [vmem:[#allocation13 + $0xa0] sm:$0xff]
    %v2341 = vld [vmem:[#allocation13 + $0xa8] sm:$0xff]
    %v2342 = vld [vmem:[#allocation13 + $0xb0] sm:$0xff]
    %v2343 = vld [vmem:[#allocation13 + $0xb8] sm:$0xff]
    %v2344 = vld [vmem:[#allocation13 + $0xc0] sm:$0xff]
    %v2345 = vld [vmem:[#allocation13 + $0xc8] sm:$0xff]
    %v2346 = vld [vmem:[#allocation13 + $0xd0] sm:$0xff]
    %v2347 = vld [vmem:[#allocation13 + $0xd8] sm:$0xff]
    %v2348 = vld [vmem:[#allocation13 + $0xe0] sm:$0xff]
    %v2349 = vld [vmem:[#allocation13 + $0xe8] sm:$0xff]
    %v2350 = vld [vmem:[#allocation13 + $0xf0] sm:$0xff]
    %v2351 = vld [vmem:[#allocation13 + $0xf8] sm:$0xff]
    %v2352 = vld [vmem:[#allocation13 + $0x100] sm:$0xff]
    %v2353 = vld [vmem:[#allocation13 + $0x108] sm:$0xff]
    %v2354 = vld [vmem:[#allocation13 + $0x110] sm:$0xff]
    %v2355 = vld [vmem:[#allocation13 + $0x118] sm:$0xff]
    %v2356 = vld [vmem:[#allocation13 + $0x120] sm:$0xff]
    %v2357 = vld [vmem:[#allocation13 + $0x128] sm:$0xff]
    %v2358 = vld [vmem:[#allocation13 + $0x130] sm:$0xff]
    %v2359 = vld [vmem:[#allocation13 + $0x138] sm:$0xff]
    %v2360 = vld [vmem:[#allocation13 + $0x140] sm:$0xff]
    %v2361 = vld [vmem:[#allocation13 + $0x148] sm:$0xff]
    %v2362 = vld [vmem:[#allocation13 + $0x150] sm:$0xff]
    %v2363 = vld [vmem:[#allocation13 + $0x158] sm:$0xff]
    %v2364 = vld [vmem:[#allocation13 + $0x160] sm:$0xff]
    %v2365 = vld [vmem:[#allocation13 + $0x168] sm:$0xff]
    %v2366 = vld [vmem:[#allocation13 + $0x170] sm:$0xff]
    %v2367 = vld [vmem:[#allocation13 + $0x178] sm:$0xff]
    %v2368 = vld [vmem:[#allocation13 + $0x180] sm:$0xff]
    %v2369 = vld [vmem:[#allocation13 + $0x188] sm:$0xff]
    %v2370 = vld [vmem:[#allocation13 + $0x190] sm:$0xff]
    %v2371 = vld [vmem:[#allocation13 + $0x198] sm:$0xff]
    %v2372 = vld [vmem:[#allocation13 + $0x1a0] sm:$0xff]
    %v2373 = vld [vmem:[#allocation13 + $0x1a8] sm:$0xff]
    %v2374 = vld [vmem:[#allocation13 + $0x1b0] sm:$0xff]
    %v2375 = vld [vmem:[#allocation13 + $0x1b8] sm:$0xff]
    %v2376 = vld [vmem:[#allocation13 + $0x1c0] sm:$0xff]
    %v2377 = vld [vmem:[#allocation13 + $0x1c8] sm:$0xff]
    %v2378 = vld [vmem:[#allocation13 + $0x1d0] sm:$0xff]
    %v2379 = vld [vmem:[#allocation13 + $0x1d8] sm:$0xff]
    %v2380 = vld [vmem:[#allocation13 + $0x1e0] sm:$0xff]
    %v2381 = vld [vmem:[#allocation13 + $0x1e8] sm:$0xff]
    %v2382 = vld [vmem:[#allocation13 + $0x1f0] sm:$0xff]
    %v2383 = vld [vmem:[#allocation13 + $0x1f8] sm:$0xff]
    %v2384 = vld [vmem:[#allocation13 + $0x200] sm:$0xff]
    %v2385 = vld [vmem:[#allocation13 + $0x208] sm:$0xff]
    %v2386 = vld [vmem:[#allocation13 + $0x210] sm:$0xff]
    %v2387 = vld [vmem:[#allocation13 + $0x218] sm:$0xff]
    %v2388 = vld [vmem:[#allocation13 + $0x220] sm:$0xff]
    %v2389 = vld [vmem:[#allocation13 + $0x228] sm:$0xff]
    %v2390 = vld [vmem:[#allocation13 + $0x230] sm:$0xff]
    %v2391 = vld [vmem:[#allocation13 + $0x238] sm:$0xff]
    %v2392 = vld [vmem:[#allocation13 + $0x240] sm:$0xff]
    %v2393 = vld [vmem:[#allocation13 + $0x248] sm:$0xff]
    %v2394 = vld [vmem:[#allocation13 + $0x250] sm:$0xff]
    %v2395 = vld [vmem:[#allocation13 + $0x258] sm:$0xff]
    %v2396 = vld [vmem:[#allocation13 + $0x260] sm:$0xff]
    %v2397 = vld [vmem:[#allocation13 + $0x268] sm:$0xff]
    %v2398 = vld [vmem:[#allocation13 + $0x270] sm:$0xff]
    %v2399 = vld [vmem:[#allocation13 + $0x278] sm:$0xff]
    %v2400 = vld [vmem:[#allocation13 + $0x280] sm:$0xff]
    %v2401 = vld [vmem:[#allocation13 + $0x288] sm:$0xff]
    %v2402 = vld [vmem:[#allocation13 + $0x290] sm:$0xff]
    %v2403 = vld [vmem:[#allocation13 + $0x298] sm:$0xff]
    %v2404 = vld [vmem:[#allocation13 + $0x2a0] sm:$0xff]
    %v2405 = vld [vmem:[#allocation13 + $0x2a8] sm:$0xff]
    %v2406 = vld [vmem:[#allocation13 + $0x2b0] sm:$0xff]
    %v2407 = vld [vmem:[#allocation13 + $0x2b8] sm:$0xff]
    %v2408 = vld [vmem:[#allocation13 + $0x2c0] sm:$0xff]
    %v2409 = vld [vmem:[#allocation13 + $0x2c8] sm:$0xff]
    %v2410 = vld [vmem:[#allocation13 + $0x2d0] sm:$0xff]
    %v2411 = vld [vmem:[#allocation13 + $0x2d8] sm:$0xff]
    %v2412 = vld [vmem:[#allocation13 + $0x2e0] sm:$0xff]
    %v2413 = vld [vmem:[#allocation13 + $0x2e8] sm:$0xff]
    %v2414 = vld [vmem:[#allocation13 + $0x2f0] sm:$0xff]
    %v2415 = vld [vmem:[#allocation13 + $0x2f8] sm:$0xff]
    %v2416 = vld [vmem:[#allocation13 + $0x300] sm:$0xff]
    %v2417 = vld [vmem:[#allocation13 + $0x308] sm:$0xff]
    %v2418 = vld [vmem:[#allocation13 + $0x310] sm:$0xff]
    %v2419 = vld [vmem:[#allocation13 + $0x318] sm:$0xff]
    %v2420 = vld [vmem:[#allocation13 + $0x320] sm:$0xff]
    %v2421 = vld [vmem:[#allocation13 + $0x328] sm:$0xff]
    %v2422 = vld [vmem:[#allocation13 + $0x330] sm:$0xff]
    %v2423 = vld [vmem:[#allocation13 + $0x338] sm:$0xff]
    %v2424 = vld [vmem:[#allocation13 + $0x340] sm:$0xff]
    %v2425 = vld [vmem:[#allocation13 + $0x348] sm:$0xff]
    %v2426 = vld [vmem:[#allocation13 + $0x350] sm:$0xff]
    %v2427 = vld [vmem:[#allocation13 + $0x358] sm:$0xff]
    %v2428 = vld [vmem:[#allocation13 + $0x360] sm:$0xff]
    %v2429 = vld [vmem:[#allocation13 + $0x368] sm:$0xff]
    %v2430 = vld [vmem:[#allocation13 + $0x370] sm:$0xff]
    %v2431 = vld [vmem:[#allocation13 + $0x378] sm:$0xff]
    %v2432 = vld [vmem:[#allocation13 + $0x380] sm:$0xff]
    %v2433 = vld [vmem:[#allocation13 + $0x388] sm:$0xff]
    %v2434 = vld [vmem:[#allocation13 + $0x390] sm:$0xff]
    %v2435 = vld [vmem:[#allocation13 + $0x398] sm:$0xff]
    %v2436 = vld [vmem:[#allocation13 + $0x3a0] sm:$0xff]
    %v2437 = vld [vmem:[#allocation13 + $0x3a8] sm:$0xff]
    %v2438 = vld [vmem:[#allocation13 + $0x3b0] sm:$0xff]
    %v2439 = vld [vmem:[#allocation13 + $0x3b8] sm:$0xff]
    %v2440 = vld [vmem:[#allocation13 + $0x3c0] sm:$0xff]
    %v2441 = vld [vmem:[#allocation13 + $0x3c8] sm:$0xff]
    %v2442 = vld [vmem:[#allocation13 + $0x3d0] sm:$0xff]
    %v2443 = vld [vmem:[#allocation13 + $0x3d8] sm:$0xff]
    %v2444 = vld [vmem:[#allocation13 + $0x3e0] sm:$0xff]
    %v2445 = vld [vmem:[#allocation13 + $0x3e8] sm:$0xff]
    %v2446 = vld [vmem:[#allocation13 + $0x3f0] sm:$0xff]
    %v2447 = vld [vmem:[#allocation13 + $0x3f8] sm:$0xff]
    %v2448 = vld [vmem:[#allocation13 + $0x400] sm:$0xff]
    %v2449 = vld [vmem:[#allocation13 + $0x408] sm:$0xff]
    %v2450 = vld [vmem:[#allocation13 + $0x410] sm:$0xff]
    %v2451 = vld [vmem:[#allocation13 + $0x418] sm:$0xff]
    %v2452 = vld [vmem:[#allocation13 + $0x420] sm:$0xff]
    %v2453 = vld [vmem:[#allocation13 + $0x428] sm:$0xff]
    %v2454 = vld [vmem:[#allocation13 + $0x430] sm:$0xff]
    %v2455 = vld [vmem:[#allocation13 + $0x438] sm:$0xff]
    %v2456 = vld [vmem:[#allocation13 + $0x440] sm:$0xff]
    %v2457 = vld [vmem:[#allocation13 + $0x448] sm:$0xff]
    %v2458 = vld [vmem:[#allocation13 + $0x450] sm:$0xff]
    %v2459 = vld [vmem:[#allocation13 + $0x458] sm:$0xff]
    %v2460 = vld [vmem:[#allocation13 + $0x460] sm:$0xff]
    %v2461 = vld [vmem:[#allocation13 + $0x468] sm:$0xff]
    %v2462 = vld [vmem:[#allocation13 + $0x470] sm:$0xff]
    %v2463 = vld [vmem:[#allocation13 + $0x478] sm:$0xff]
    %v2464 = vld [vmem:[#allocation13 + $0x480] sm:$0xff]
    %v2465 = vld [vmem:[#allocation13 + $0x488] sm:$0xff]
    %v2466 = vld [vmem:[#allocation13 + $0x490] sm:$0xff]
    %v2467 = vld [vmem:[#allocation13 + $0x498] sm:$0xff]
    %v2468 = vld [vmem:[#allocation13 + $0x4a0] sm:$0xff]
    %v2469 = vld [vmem:[#allocation13 + $0x4a8] sm:$0xff]
    %v2470 = vld [vmem:[#allocation13 + $0x4b0] sm:$0xff]
    %v2471 = vld [vmem:[#allocation13 + $0x4b8] sm:$0xff]
    %v2472 = vld [vmem:[#allocation13 + $0x4c0] sm:$0xff]
    %v2473 = vld [vmem:[#allocation13 + $0x4c8] sm:$0xff]
    %v2474 = vld [vmem:[#allocation13 + $0x4d0] sm:$0xff]
    %v2475 = vld [vmem:[#allocation13 + $0x4d8] sm:$0xff]
    %v2476 = vld [vmem:[#allocation13 + $0x4e0] sm:$0xff]
    %v2477 = vld [vmem:[#allocation13 + $0x4e8] sm:$0xff]
    %v2478 = vld [vmem:[#allocation13 + $0x4f0] sm:$0xff]
    %v2479 = vld [vmem:[#allocation13 + $0x4f8] sm:$0xff]
    %v2480 = vld [vmem:[#allocation13 + $0x500] sm:$0xff]
    %v2481 = vld [vmem:[#allocation13 + $0x508] sm:$0xff]
    %v2482 = vld [vmem:[#allocation13 + $0x510] sm:$0xff]
    %v2483 = vld [vmem:[#allocation13 + $0x518] sm:$0xff]
    %v2484 = vld [vmem:[#allocation13 + $0x520] sm:$0xff]
    %v2485 = vld [vmem:[#allocation13 + $0x528] sm:$0xff]
    %v2486 = vld [vmem:[#allocation13 + $0x530] sm:$0xff]
    %v2487 = vld [vmem:[#allocation13 + $0x538] sm:$0xff]
    %v2488 = vld [vmem:[#allocation13 + $0x540] sm:$0xff]
    %v2489 = vld [vmem:[#allocation13 + $0x548] sm:$0xff]
    %v2490 = vld [vmem:[#allocation13 + $0x550] sm:$0xff]
    %v2491 = vld [vmem:[#allocation13 + $0x558] sm:$0xff]
    %v2492 = vld [vmem:[#allocation13 + $0x560] sm:$0xff]
    %v2493 = vld [vmem:[#allocation13 + $0x568] sm:$0xff]
    %v2494 = vld [vmem:[#allocation13 + $0x570] sm:$0xff]
    %v2495 = vld [vmem:[#allocation13 + $0x578] sm:$0xff]
    %v2496 = vld [vmem:[#allocation13 + $0x580] sm:$0xff]
    %v2497 = vld [vmem:[#allocation13 + $0x588] sm:$0xff]
    %v2498 = vld [vmem:[#allocation13 + $0x590] sm:$0xff]
    %v2499 = vld [vmem:[#allocation13 + $0x598] sm:$0xff]
    %v2500 = vld [vmem:[#allocation13 + $0x5a0] sm:$0xff]
    %v2501 = vld [vmem:[#allocation13 + $0x5a8] sm:$0xff]
    %v2502 = vld [vmem:[#allocation13 + $0x5b0] sm:$0xff]
    %v2503 = vld [vmem:[#allocation13 + $0x5b8] sm:$0xff]
    %v2504 = vld [vmem:[#allocation13 + $0x5c0] sm:$0xff]
    %v2505 = vld [vmem:[#allocation13 + $0x5c8] sm:$0xff]
    %v2506 = vld [vmem:[#allocation13 + $0x5d0] sm:$0xff]
    %v2507 = vld [vmem:[#allocation13 + $0x5d8] sm:$0xff]
    %v2508 = vld [vmem:[#allocation13 + $0x5e0] sm:$0xff]
    %v2509 = vld [vmem:[#allocation13 + $0x5e8] sm:$0xff]
    %v2510 = vld [vmem:[#allocation13 + $0x5f0] sm:$0xff]
    %v2511 = vld [vmem:[#allocation13 + $0x5f8] sm:$0xff]
    %v2512 = vld [vmem:[#allocation13 + $0x600] sm:$0xff]
    %v2513 = vld [vmem:[#allocation13 + $0x608] sm:$0xff]
    %v2514 = vld [vmem:[#allocation13 + $0x610] sm:$0xff]
    %v2515 = vld [vmem:[#allocation13 + $0x618] sm:$0xff]
    %v2516 = vld [vmem:[#allocation13 + $0x620] sm:$0xff]
    %v2517 = vld [vmem:[#allocation13 + $0x628] sm:$0xff]
    %v2518 = vld [vmem:[#allocation13 + $0x630] sm:$0xff]
    %v2519 = vld [vmem:[#allocation13 + $0x638] sm:$0xff]
    %v2520 = vld [vmem:[#allocation13 + $0x640] sm:$0xff]
    %v2521 = vld [vmem:[#allocation13 + $0x648] sm:$0xff]
    %v2522 = vld [vmem:[#allocation13 + $0x650] sm:$0xff]
    %v2523 = vld [vmem:[#allocation13 + $0x658] sm:$0xff]
    %v2524 = vld [vmem:[#allocation13 + $0x660] sm:$0xff]
    %v2525 = vld [vmem:[#allocation13 + $0x668] sm:$0xff]
    %v2526 = vld [vmem:[#allocation13 + $0x670] sm:$0xff]
    %v2527 = vld [vmem:[#allocation13 + $0x678] sm:$0xff]
    %v2528 = vld [vmem:[#allocation13 + $0x680] sm:$0xff]
    %v2529 = vld [vmem:[#allocation13 + $0x688] sm:$0xff]
    %v2530 = vld [vmem:[#allocation13 + $0x690] sm:$0xff]
    %v2531 = vld [vmem:[#allocation13 + $0x698] sm:$0xff]
    %v2532 = vld [vmem:[#allocation13 + $0x6a0] sm:$0xff]
    %v2533 = vld [vmem:[#allocation13 + $0x6a8] sm:$0xff]
    %v2534 = vld [vmem:[#allocation13 + $0x6b0] sm:$0xff]
    %v2535 = vld [vmem:[#allocation13 + $0x6b8] sm:$0xff]
    %v2536 = vld [vmem:[#allocation13 + $0x6c0] sm:$0xff]
    %v2537 = vld [vmem:[#allocation13 + $0x6c8] sm:$0xff]
    %v2538 = vld [vmem:[#allocation13 + $0x6d0] sm:$0xff]
    %v2539 = vld [vmem:[#allocation13 + $0x6d8] sm:$0xff]
    %v2540 = vld [vmem:[#allocation13 + $0x6e0] sm:$0xff]
    %v2541 = vld [vmem:[#allocation13 + $0x6e8] sm:$0xff]
    %v2542 = vld [vmem:[#allocation13 + $0x6f0] sm:$0xff]
    %v2543 = vld [vmem:[#allocation13 + $0x6f8] sm:$0xff]
    %v2544 = vld [vmem:[#allocation13 + $0x700] sm:$0xff]
    %v2545 = vld [vmem:[#allocation13 + $0x708] sm:$0xff]
    %v2546 = vld [vmem:[#allocation13 + $0x710] sm:$0xff]
    %v2547 = vld [vmem:[#allocation13 + $0x718] sm:$0xff]
    %v2548 = vld [vmem:[#allocation13 + $0x720] sm:$0xff]
    %v2549 = vld [vmem:[#allocation13 + $0x728] sm:$0xff]
    %v2550 = vld [vmem:[#allocation13 + $0x730] sm:$0xff]
    %v2551 = vld [vmem:[#allocation13 + $0x738] sm:$0xff]
    %v2552 = vld [vmem:[#allocation13 + $0x740] sm:$0xff]
    %v2553 = vld [vmem:[#allocation13 + $0x748] sm:$0xff]
    %v2554 = vld [vmem:[#allocation13 + $0x750] sm:$0xff]
    %v2555 = vld [vmem:[#allocation13 + $0x758] sm:$0xff]
    %v2556 = vld [vmem:[#allocation13 + $0x760] sm:$0xff]
    %v2557 = vld [vmem:[#allocation13 + $0x768] sm:$0xff]
    %v2558 = vld [vmem:[#allocation13 + $0x770] sm:$0xff]
    %v2559 = vld [vmem:[#allocation13 + $0x778] sm:$0xff]
    %v2560 = vld [vmem:[#allocation13 + $0x780] sm:$0xff]
    %v2561 = vld [vmem:[#allocation13 + $0x788] sm:$0xff]
    %v2562 = vld [vmem:[#allocation13 + $0x790] sm:$0xff]
    %v2563 = vld [vmem:[#allocation13 + $0x798] sm:$0xff]
    %v2564 = vld [vmem:[#allocation13 + $0x7a0] sm:$0xff]
    %v2565 = vld [vmem:[#allocation13 + $0x7a8] sm:$0xff]
    %v2566 = vld [vmem:[#allocation13 + $0x7b0] sm:$0xff]
    %v2567 = vld [vmem:[#allocation13 + $0x7b8] sm:$0xff]
    %v2568 = vld [vmem:[#allocation13 + $0x7c0] sm:$0xff]
    %v2569 = vld [vmem:[#allocation13 + $0x7c8] sm:$0xff]
    %v2570 = vld [vmem:[#allocation13 + $0x7d0] sm:$0xff]
    %v2571 = vld [vmem:[#allocation13 + $0x7d8] sm:$0xff]
    %v2572 = vld [vmem:[#allocation13 + $0x7e0] sm:$0xff]
    %v2573 = vld [vmem:[#allocation13 + $0x7e8] sm:$0xff]
    %v2574 = vld [vmem:[#allocation13 + $0x7f0] sm:$0xff]
    %v2575 = vld [vmem:[#allocation13 + $0x7f8] sm:$0xff]
    %v2832 = vunpack.c.l.b16 %v2320
    %v2833 = vunpack.c.h.b16 %v2320
    %v2834 = vunpack.c.l.b16 %v2321
    %v2835 = vunpack.c.h.b16 %v2321
    %v2836 = vunpack.c.l.b16 %v2322
    %v2837 = vunpack.c.h.b16 %v2322
    %v2838 = vunpack.c.l.b16 %v2323
    %v2839 = vunpack.c.h.b16 %v2323
    %v2840 = vunpack.c.l.b16 %v2324
    %v2841 = vunpack.c.h.b16 %v2324
    %v2842 = vunpack.c.l.b16 %v2325
    %v2843 = vunpack.c.h.b16 %v2325
    %v2844 = vunpack.c.l.b16 %v2326
    %v2845 = vunpack.c.h.b16 %v2326
    %v2846 = vunpack.c.l.b16 %v2327
    %v2847 = vunpack.c.h.b16 %v2327
    %v2848 = vunpack.c.l.b16 %v2328
    %v2849 = vunpack.c.h.b16 %v2328
    %v2850 = vunpack.c.l.b16 %v2329
    %v2851 = vunpack.c.h.b16 %v2329
    %v2852 = vunpack.c.l.b16 %v2330
    %v2853 = vunpack.c.h.b16 %v2330
    %v2854 = vunpack.c.l.b16 %v2331
    %v2855 = vunpack.c.h.b16 %v2331
    %v2856 = vunpack.c.l.b16 %v2332
    %v2857 = vunpack.c.h.b16 %v2332
    %v2858 = vunpack.c.l.b16 %v2333
    %v2859 = vunpack.c.h.b16 %v2333
    %v2860 = vunpack.c.l.b16 %v2334
    %v2861 = vunpack.c.h.b16 %v2334
    %v2862 = vunpack.c.l.b16 %v2335
    %v2863 = vunpack.c.h.b16 %v2335
    %v2864 = vunpack.c.l.b16 %v2336
    %v2865 = vunpack.c.h.b16 %v2336
    %v2866 = vunpack.c.l.b16 %v2337
    %v2867 = vunpack.c.h.b16 %v2337
    %v2868 = vunpack.c.l.b16 %v2338
    %v2869 = vunpack.c.h.b16 %v2338
    %v2870 = vunpack.c.l.b16 %v2339
    %v2871 = vunpack.c.h.b16 %v2339
    %v2872 = vunpack.c.l.b16 %v2340
    %v2873 = vunpack.c.h.b16 %v2340
    %v2874 = vunpack.c.l.b16 %v2341
    %v2875 = vunpack.c.h.b16 %v2341
    %v2876 = vunpack.c.l.b16 %v2342
    %v2877 = vunpack.c.h.b16 %v2342
    %v2878 = vunpack.c.l.b16 %v2343
    %v2879 = vunpack.c.h.b16 %v2343
    %v2880 = vunpack.c.l.b16 %v2344
    %v2881 = vunpack.c.h.b16 %v2344
    %v2882 = vunpack.c.l.b16 %v2345
    %v2883 = vunpack.c.h.b16 %v2345
    %v2884 = vunpack.c.l.b16 %v2346
    %v2885 = vunpack.c.h.b16 %v2346
    %v2886 = vunpack.c.l.b16 %v2347
    %v2887 = vunpack.c.h.b16 %v2347
    %v2888 = vunpack.c.l.b16 %v2348
    %v2889 = vunpack.c.h.b16 %v2348
    %v2890 = vunpack.c.l.b16 %v2349
    %v2891 = vunpack.c.h.b16 %v2349
    %v2892 = vunpack.c.l.b16 %v2350
    %v2893 = vunpack.c.h.b16 %v2350
    %v2894 = vunpack.c.l.b16 %v2351
    %v2895 = vunpack.c.h.b16 %v2351
    %v2896 = vunpack.c.l.b16 %v2352
    %v2897 = vunpack.c.h.b16 %v2352
    %v2898 = vunpack.c.l.b16 %v2353
    %v2899 = vunpack.c.h.b16 %v2353
    %v2900 = vunpack.c.l.b16 %v2354
    %v2901 = vunpack.c.h.b16 %v2354
    %v2902 = vunpack.c.l.b16 %v2355
    %v2903 = vunpack.c.h.b16 %v2355
    %v2904 = vunpack.c.l.b16 %v2356
    %v2905 = vunpack.c.h.b16 %v2356
    %v2906 = vunpack.c.l.b16 %v2357
    %v2907 = vunpack.c.h.b16 %v2357
    %v2908 = vunpack.c.l.b16 %v2358
    %v2909 = vunpack.c.h.b16 %v2358
    %v2910 = vunpack.c.l.b16 %v2359
    %v2911 = vunpack.c.h.b16 %v2359
    %v2912 = vunpack.c.l.b16 %v2360
    %v2913 = vunpack.c.h.b16 %v2360
    %v2914 = vunpack.c.l.b16 %v2361
    %v2915 = vunpack.c.h.b16 %v2361
    %v2916 = vunpack.c.l.b16 %v2362
    %v2917 = vunpack.c.h.b16 %v2362
    %v2918 = vunpack.c.l.b16 %v2363
    %v2919 = vunpack.c.h.b16 %v2363
    %v2920 = vunpack.c.l.b16 %v2364
    %v2921 = vunpack.c.h.b16 %v2364
    %v2922 = vunpack.c.l.b16 %v2365
    %v2923 = vunpack.c.h.b16 %v2365
    %v2924 = vunpack.c.l.b16 %v2366
    %v2925 = vunpack.c.h.b16 %v2366
    %v2926 = vunpack.c.l.b16 %v2367
    %v2927 = vunpack.c.h.b16 %v2367
    %v2928 = vunpack.c.l.b16 %v2368
    %v2929 = vunpack.c.h.b16 %v2368
    %v2930 = vunpack.c.l.b16 %v2369
    %v2931 = vunpack.c.h.b16 %v2369
    %v2932 = vunpack.c.l.b16 %v2370
    %v2933 = vunpack.c.h.b16 %v2370
    %v2934 = vunpack.c.l.b16 %v2371
    %v2935 = vunpack.c.h.b16 %v2371
    %v2936 = vunpack.c.l.b16 %v2372
    %v2937 = vunpack.c.h.b16 %v2372
    %v2938 = vunpack.c.l.b16 %v2373
    %v2939 = vunpack.c.h.b16 %v2373
    %v2940 = vunpack.c.l.b16 %v2374
    %v2941 = vunpack.c.h.b16 %v2374
    %v2942 = vunpack.c.l.b16 %v2375
    %v2943 = vunpack.c.h.b16 %v2375
    %v2944 = vunpack.c.l.b16 %v2376
    %v2945 = vunpack.c.h.b16 %v2376
    %v2946 = vunpack.c.l.b16 %v2377
    %v2947 = vunpack.c.h.b16 %v2377
    %v2948 = vunpack.c.l.b16 %v2378
    %v2949 = vunpack.c.h.b16 %v2378
    %v2950 = vunpack.c.l.b16 %v2379
    %v2951 = vunpack.c.h.b16 %v2379
    %v2952 = vunpack.c.l.b16 %v2380
    %v2953 = vunpack.c.h.b16 %v2380
    %v2954 = vunpack.c.l.b16 %v2381
    %v2955 = vunpack.c.h.b16 %v2381
    %v2956 = vunpack.c.l.b16 %v2382
    %v2957 = vunpack.c.h.b16 %v2382
    %v2958 = vunpack.c.l.b16 %v2383
    %v2959 = vunpack.c.h.b16 %v2383
    %v2960 = vunpack.c.l.b16 %v2384
    %v2961 = vunpack.c.h.b16 %v2384
    %v2962 = vunpack.c.l.b16 %v2385
    %v2963 = vunpack.c.h.b16 %v2385
    %v2964 = vunpack.c.l.b16 %v2386
    %v2965 = vunpack.c.h.b16 %v2386
    %v2966 = vunpack.c.l.b16 %v2387
    %v2967 = vunpack.c.h.b16 %v2387
    %v2968 = vunpack.c.l.b16 %v2388
    %v2969 = vunpack.c.h.b16 %v2388
    %v2970 = vunpack.c.l.b16 %v2389
    %v2971 = vunpack.c.h.b16 %v2389
    %v2972 = vunpack.c.l.b16 %v2390
    %v2973 = vunpack.c.h.b16 %v2390
    %v2974 = vunpack.c.l.b16 %v2391
    %v2975 = vunpack.c.h.b16 %v2391
    %v2976 = vunpack.c.l.b16 %v2392
    %v2977 = vunpack.c.h.b16 %v2392
    %v2978 = vunpack.c.l.b16 %v2393
    %v2979 = vunpack.c.h.b16 %v2393
    %v2980 = vunpack.c.l.b16 %v2394
    %v2981 = vunpack.c.h.b16 %v2394
    %v2982 = vunpack.c.l.b16 %v2395
    %v2983 = vunpack.c.h.b16 %v2395
    %v2984 = vunpack.c.l.b16 %v2396
    %v2985 = vunpack.c.h.b16 %v2396
    %v2986 = vunpack.c.l.b16 %v2397
    %v2987 = vunpack.c.h.b16 %v2397
    %v2988 = vunpack.c.l.b16 %v2398
    %v2989 = vunpack.c.h.b16 %v2398
    %v2990 = vunpack.c.l.b16 %v2399
    %v2991 = vunpack.c.h.b16 %v2399
    %v2992 = vunpack.c.l.b16 %v2400
    %v2993 = vunpack.c.h.b16 %v2400
    %v2994 = vunpack.c.l.b16 %v2401
    %v2995 = vunpack.c.h.b16 %v2401
    %v2996 = vunpack.c.l.b16 %v2402
    %v2997 = vunpack.c.h.b16 %v2402
    %v2998 = vunpack.c.l.b16 %v2403
    %v2999 = vunpack.c.h.b16 %v2403
    %v3000 = vunpack.c.l.b16 %v2404
    %v3001 = vunpack.c.h.b16 %v2404
    %v3002 = vunpack.c.l.b16 %v2405
    %v3003 = vunpack.c.h.b16 %v2405
    %v3004 = vunpack.c.l.b16 %v2406
    %v3005 = vunpack.c.h.b16 %v2406
    %v3006 = vunpack.c.l.b16 %v2407
    %v3007 = vunpack.c.h.b16 %v2407
    %v3008 = vunpack.c.l.b16 %v2408
    %v3009 = vunpack.c.h.b16 %v2408
    %v3010 = vunpack.c.l.b16 %v2409
    %v3011 = vunpack.c.h.b16 %v2409
    %v3012 = vunpack.c.l.b16 %v2410
    %v3013 = vunpack.c.h.b16 %v2410
    %v3014 = vunpack.c.l.b16 %v2411
    %v3015 = vunpack.c.h.b16 %v2411
    %v3016 = vunpack.c.l.b16 %v2412
    %v3017 = vunpack.c.h.b16 %v2412
    %v3018 = vunpack.c.l.b16 %v2413
    %v3019 = vunpack.c.h.b16 %v2413
    %v3020 = vunpack.c.l.b16 %v2414
    %v3021 = vunpack.c.h.b16 %v2414
    %v3022 = vunpack.c.l.b16 %v2415
    %v3023 = vunpack.c.h.b16 %v2415
    %v3024 = vunpack.c.l.b16 %v2416
    %v3025 = vunpack.c.h.b16 %v2416
    %v3026 = vunpack.c.l.b16 %v2417
    %v3027 = vunpack.c.h.b16 %v2417
    %v3028 = vunpack.c.l.b16 %v2418
    %v3029 = vunpack.c.h.b16 %v2418
    %v3030 = vunpack.c.l.b16 %v2419
    %v3031 = vunpack.c.h.b16 %v2419
    %v3032 = vunpack.c.l.b16 %v2420
    %v3033 = vunpack.c.h.b16 %v2420
    %v3034 = vunpack.c.l.b16 %v2421
    %v3035 = vunpack.c.h.b16 %v2421
    %v3036 = vunpack.c.l.b16 %v2422
    %v3037 = vunpack.c.h.b16 %v2422
    %v3038 = vunpack.c.l.b16 %v2423
    %v3039 = vunpack.c.h.b16 %v2423
    %v3040 = vunpack.c.l.b16 %v2424
    %v3041 = vunpack.c.h.b16 %v2424
    %v3042 = vunpack.c.l.b16 %v2425
    %v3043 = vunpack.c.h.b16 %v2425
    %v3044 = vunpack.c.l.b16 %v2426
    %v3045 = vunpack.c.h.b16 %v2426
    %v3046 = vunpack.c.l.b16 %v2427
    %v3047 = vunpack.c.h.b16 %v2427
    %v3048 = vunpack.c.l.b16 %v2428
    %v3049 = vunpack.c.h.b16 %v2428
    %v3050 = vunpack.c.l.b16 %v2429
    %v3051 = vunpack.c.h.b16 %v2429
    %v3052 = vunpack.c.l.b16 %v2430
    %v3053 = vunpack.c.h.b16 %v2430
    %v3054 = vunpack.c.l.b16 %v2431
    %v3055 = vunpack.c.h.b16 %v2431
    %v3056 = vunpack.c.l.b16 %v2432
    %v3057 = vunpack.c.h.b16 %v2432
    %v3058 = vunpack.c.l.b16 %v2433
    %v3059 = vunpack.c.h.b16 %v2433
    %v3060 = vunpack.c.l.b16 %v2434
    %v3061 = vunpack.c.h.b16 %v2434
    %v3062 = vunpack.c.l.b16 %v2435
    %v3063 = vunpack.c.h.b16 %v2435
    %v3064 = vunpack.c.l.b16 %v2436
    %v3065 = vunpack.c.h.b16 %v2436
    %v3066 = vunpack.c.l.b16 %v2437
    %v3067 = vunpack.c.h.b16 %v2437
    %v3068 = vunpack.c.l.b16 %v2438
    %v3069 = vunpack.c.h.b16 %v2438
    %v3070 = vunpack.c.l.b16 %v2439
    %v3071 = vunpack.c.h.b16 %v2439
    %v3072 = vunpack.c.l.b16 %v2440
    %v3073 = vunpack.c.h.b16 %v2440
    %v3074 = vunpack.c.l.b16 %v2441
    %v3075 = vunpack.c.h.b16 %v2441
    %v3076 = vunpack.c.l.b16 %v2442
    %v3077 = vunpack.c.h.b16 %v2442
    %v3078 = vunpack.c.l.b16 %v2443
    %v3079 = vunpack.c.h.b16 %v2443
    %v3080 = vunpack.c.l.b16 %v2444
    %v3081 = vunpack.c.h.b16 %v2444
    %v3082 = vunpack.c.l.b16 %v2445
    %v3083 = vunpack.c.h.b16 %v2445
    %v3084 = vunpack.c.l.b16 %v2446
    %v3085 = vunpack.c.h.b16 %v2446
    %v3086 = vunpack.c.l.b16 %v2447
    %v3087 = vunpack.c.h.b16 %v2447
    %v3088 = vunpack.c.l.b16 %v2448
    %v3089 = vunpack.c.h.b16 %v2448
    %v3090 = vunpack.c.l.b16 %v2449
    %v3091 = vunpack.c.h.b16 %v2449
    %v3092 = vunpack.c.l.b16 %v2450
    %v3093 = vunpack.c.h.b16 %v2450
    %v3094 = vunpack.c.l.b16 %v2451
    %v3095 = vunpack.c.h.b16 %v2451
    %v3096 = vunpack.c.l.b16 %v2452
    %v3097 = vunpack.c.h.b16 %v2452
    %v3098 = vunpack.c.l.b16 %v2453
    %v3099 = vunpack.c.h.b16 %v2453
    %v3100 = vunpack.c.l.b16 %v2454
    %v3101 = vunpack.c.h.b16 %v2454
    %v3102 = vunpack.c.l.b16 %v2455
    %v3103 = vunpack.c.h.b16 %v2455
    %v3104 = vunpack.c.l.b16 %v2456
    %v3105 = vunpack.c.h.b16 %v2456
    %v3106 = vunpack.c.l.b16 %v2457
    %v3107 = vunpack.c.h.b16 %v2457
    %v3108 = vunpack.c.l.b16 %v2458
    %v3109 = vunpack.c.h.b16 %v2458
    %v3110 = vunpack.c.l.b16 %v2459
    %v3111 = vunpack.c.h.b16 %v2459
    %v3112 = vunpack.c.l.b16 %v2460
    %v3113 = vunpack.c.h.b16 %v2460
    %v3114 = vunpack.c.l.b16 %v2461
    %v3115 = vunpack.c.h.b16 %v2461
    %v3116 = vunpack.c.l.b16 %v2462
    %v3117 = vunpack.c.h.b16 %v2462
    %v3118 = vunpack.c.l.b16 %v2463
    %v3119 = vunpack.c.h.b16 %v2463
    %v3120 = vunpack.c.l.b16 %v2464
    %v3121 = vunpack.c.h.b16 %v2464
    %v3122 = vunpack.c.l.b16 %v2465
    %v3123 = vunpack.c.h.b16 %v2465
    %v3124 = vunpack.c.l.b16 %v2466
    %v3125 = vunpack.c.h.b16 %v2466
    %v3126 = vunpack.c.l.b16 %v2467
    %v3127 = vunpack.c.h.b16 %v2467
    %v3128 = vunpack.c.l.b16 %v2468
    %v3129 = vunpack.c.h.b16 %v2468
    %v3130 = vunpack.c.l.b16 %v2469
    %v3131 = vunpack.c.h.b16 %v2469
    %v3132 = vunpack.c.l.b16 %v2470
    %v3133 = vunpack.c.h.b16 %v2470
    %v3134 = vunpack.c.l.b16 %v2471
    %v3135 = vunpack.c.h.b16 %v2471
    %v3136 = vunpack.c.l.b16 %v2472
    %v3137 = vunpack.c.h.b16 %v2472
    %v3138 = vunpack.c.l.b16 %v2473
    %v3139 = vunpack.c.h.b16 %v2473
    %v3140 = vunpack.c.l.b16 %v2474
    %v3141 = vunpack.c.h.b16 %v2474
    %v3142 = vunpack.c.l.b16 %v2475
    %v3143 = vunpack.c.h.b16 %v2475
    %v3144 = vunpack.c.l.b16 %v2476
    %v3145 = vunpack.c.h.b16 %v2476
    %v3146 = vunpack.c.l.b16 %v2477
    %v3147 = vunpack.c.h.b16 %v2477
    %v3148 = vunpack.c.l.b16 %v2478
    %v3149 = vunpack.c.h.b16 %v2478
    %v3150 = vunpack.c.l.b16 %v2479
    %v3151 = vunpack.c.h.b16 %v2479
    %v3152 = vunpack.c.l.b16 %v2480
    %v3153 = vunpack.c.h.b16 %v2480
    %v3154 = vunpack.c.l.b16 %v2481
    %v3155 = vunpack.c.h.b16 %v2481
    %v3156 = vunpack.c.l.b16 %v2482
    %v3157 = vunpack.c.h.b16 %v2482
    %v3158 = vunpack.c.l.b16 %v2483
    %v3159 = vunpack.c.h.b16 %v2483
    %v3160 = vunpack.c.l.b16 %v2484
    %v3161 = vunpack.c.h.b16 %v2484
    %v3162 = vunpack.c.l.b16 %v2485
    %v3163 = vunpack.c.h.b16 %v2485
    %v3164 = vunpack.c.l.b16 %v2486
    %v3165 = vunpack.c.h.b16 %v2486
    %v3166 = vunpack.c.l.b16 %v2487
    %v3167 = vunpack.c.h.b16 %v2487
    %v3168 = vunpack.c.l.b16 %v2488
    %v3169 = vunpack.c.h.b16 %v2488
    %v3170 = vunpack.c.l.b16 %v2489
    %v3171 = vunpack.c.h.b16 %v2489
    %v3172 = vunpack.c.l.b16 %v2490
    %v3173 = vunpack.c.h.b16 %v2490
    %v3174 = vunpack.c.l.b16 %v2491
    %v3175 = vunpack.c.h.b16 %v2491
    %v3176 = vunpack.c.l.b16 %v2492
    %v3177 = vunpack.c.h.b16 %v2492
    %v3178 = vunpack.c.l.b16 %v2493
    %v3179 = vunpack.c.h.b16 %v2493
    %v3180 = vunpack.c.l.b16 %v2494
    %v3181 = vunpack.c.h.b16 %v2494
    %v3182 = vunpack.c.l.b16 %v2495
    %v3183 = vunpack.c.h.b16 %v2495
    %v3184 = vunpack.c.l.b16 %v2496
    %v3185 = vunpack.c.h.b16 %v2496
    %v3186 = vunpack.c.l.b16 %v2497
    %v3187 = vunpack.c.h.b16 %v2497
    %v3188 = vunpack.c.l.b16 %v2498
    %v3189 = vunpack.c.h.b16 %v2498
    %v3190 = vunpack.c.l.b16 %v2499
    %v3191 = vunpack.c.h.b16 %v2499
    %v3192 = vunpack.c.l.b16 %v2500
    %v3193 = vunpack.c.h.b16 %v2500
    %v3194 = vunpack.c.l.b16 %v2501
    %v3195 = vunpack.c.h.b16 %v2501
    %v3196 = vunpack.c.l.b16 %v2502
    %v3197 = vunpack.c.h.b16 %v2502
    %v3198 = vunpack.c.l.b16 %v2503
    %v3199 = vunpack.c.h.b16 %v2503
    %v3200 = vunpack.c.l.b16 %v2504
    %v3201 = vunpack.c.h.b16 %v2504
    %v3202 = vunpack.c.l.b16 %v2505
    %v3203 = vunpack.c.h.b16 %v2505
    %v3204 = vunpack.c.l.b16 %v2506
    %v3205 = vunpack.c.h.b16 %v2506
    %v3206 = vunpack.c.l.b16 %v2507
    %v3207 = vunpack.c.h.b16 %v2507
    %v3208 = vunpack.c.l.b16 %v2508
    %v3209 = vunpack.c.h.b16 %v2508
    %v3210 = vunpack.c.l.b16 %v2509
    %v3211 = vunpack.c.h.b16 %v2509
    %v3212 = vunpack.c.l.b16 %v2510
    %v3213 = vunpack.c.h.b16 %v2510
    %v3214 = vunpack.c.l.b16 %v2511
    %v3215 = vunpack.c.h.b16 %v2511
    %v3216 = vunpack.c.l.b16 %v2512
    %v3217 = vunpack.c.h.b16 %v2512
    %v3218 = vunpack.c.l.b16 %v2513
    %v3219 = vunpack.c.h.b16 %v2513
    %v3220 = vunpack.c.l.b16 %v2514
    %v3221 = vunpack.c.h.b16 %v2514
    %v3222 = vunpack.c.l.b16 %v2515
    %v3223 = vunpack.c.h.b16 %v2515
    %v3224 = vunpack.c.l.b16 %v2516
    %v3225 = vunpack.c.h.b16 %v2516
    %v3226 = vunpack.c.l.b16 %v2517
    %v3227 = vunpack.c.h.b16 %v2517
    %v3228 = vunpack.c.l.b16 %v2518
    %v3229 = vunpack.c.h.b16 %v2518
    %v3230 = vunpack.c.l.b16 %v2519
    %v3231 = vunpack.c.h.b16 %v2519
    %v3232 = vunpack.c.l.b16 %v2520
    %v3233 = vunpack.c.h.b16 %v2520
    %v3234 = vunpack.c.l.b16 %v2521
    %v3235 = vunpack.c.h.b16 %v2521
    %v3236 = vunpack.c.l.b16 %v2522
    %v3237 = vunpack.c.h.b16 %v2522
    %v3238 = vunpack.c.l.b16 %v2523
    %v3239 = vunpack.c.h.b16 %v2523
    %v3240 = vunpack.c.l.b16 %v2524
    %v3241 = vunpack.c.h.b16 %v2524
    %v3242 = vunpack.c.l.b16 %v2525
    %v3243 = vunpack.c.h.b16 %v2525
    %v3244 = vunpack.c.l.b16 %v2526
    %v3245 = vunpack.c.h.b16 %v2526
    %v3246 = vunpack.c.l.b16 %v2527
    %v3247 = vunpack.c.h.b16 %v2527
    %v3248 = vunpack.c.l.b16 %v2528
    %v3249 = vunpack.c.h.b16 %v2528
    %v3250 = vunpack.c.l.b16 %v2529
    %v3251 = vunpack.c.h.b16 %v2529
    %v3252 = vunpack.c.l.b16 %v2530
    %v3253 = vunpack.c.h.b16 %v2530
    %v3254 = vunpack.c.l.b16 %v2531
    %v3255 = vunpack.c.h.b16 %v2531
    %v3256 = vunpack.c.l.b16 %v2532
    %v3257 = vunpack.c.h.b16 %v2532
    %v3258 = vunpack.c.l.b16 %v2533
    %v3259 = vunpack.c.h.b16 %v2533
    %v3260 = vunpack.c.l.b16 %v2534
    %v3261 = vunpack.c.h.b16 %v2534
    %v3262 = vunpack.c.l.b16 %v2535
    %v3263 = vunpack.c.h.b16 %v2535
    %v3264 = vunpack.c.l.b16 %v2536
    %v3265 = vunpack.c.h.b16 %v2536
    %v3266 = vunpack.c.l.b16 %v2537
    %v3267 = vunpack.c.h.b16 %v2537
    %v3268 = vunpack.c.l.b16 %v2538
    %v3269 = vunpack.c.h.b16 %v2538
    %v3270 = vunpack.c.l.b16 %v2539
    %v3271 = vunpack.c.h.b16 %v2539
    %v3272 = vunpack.c.l.b16 %v2540
    %v3273 = vunpack.c.h.b16 %v2540
    %v3274 = vunpack.c.l.b16 %v2541
    %v3275 = vunpack.c.h.b16 %v2541
    %v3276 = vunpack.c.l.b16 %v2542
    %v3277 = vunpack.c.h.b16 %v2542
    %v3278 = vunpack.c.l.b16 %v2543
    %v3279 = vunpack.c.h.b16 %v2543
    %v3280 = vunpack.c.l.b16 %v2544
    %v3281 = vunpack.c.h.b16 %v2544
    %v3282 = vunpack.c.l.b16 %v2545
    %v3283 = vunpack.c.h.b16 %v2545
    %v3284 = vunpack.c.l.b16 %v2546
    %v3285 = vunpack.c.h.b16 %v2546
    %v3286 = vunpack.c.l.b16 %v2547
    %v3287 = vunpack.c.h.b16 %v2547
    %v3288 = vunpack.c.l.b16 %v2548
    %v3289 = vunpack.c.h.b16 %v2548
    %v3290 = vunpack.c.l.b16 %v2549
    %v3291 = vunpack.c.h.b16 %v2549
    %v3292 = vunpack.c.l.b16 %v2550
    %v3293 = vunpack.c.h.b16 %v2550
    %v3294 = vunpack.c.l.b16 %v2551
    %v3295 = vunpack.c.h.b16 %v2551
    %v3296 = vunpack.c.l.b16 %v2552
    %v3297 = vunpack.c.h.b16 %v2552
    %v3298 = vunpack.c.l.b16 %v2553
    %v3299 = vunpack.c.h.b16 %v2553
    %v3300 = vunpack.c.l.b16 %v2554
    %v3301 = vunpack.c.h.b16 %v2554
    %v3302 = vunpack.c.l.b16 %v2555
    %v3303 = vunpack.c.h.b16 %v2555
    %v3304 = vunpack.c.l.b16 %v2556
    %v3305 = vunpack.c.h.b16 %v2556
    %v3306 = vunpack.c.l.b16 %v2557
    %v3307 = vunpack.c.h.b16 %v2557
    %v3308 = vunpack.c.l.b16 %v2558
    %v3309 = vunpack.c.h.b16 %v2558
    %v3310 = vunpack.c.l.b16 %v2559
    %v3311 = vunpack.c.h.b16 %v2559
    %v3312 = vunpack.c.l.b16 %v2560
    %v3313 = vunpack.c.h.b16 %v2560
    %v3314 = vunpack.c.l.b16 %v2561
    %v3315 = vunpack.c.h.b16 %v2561
    %v3316 = vunpack.c.l.b16 %v2562
    %v3317 = vunpack.c.h.b16 %v2562
    %v3318 = vunpack.c.l.b16 %v2563
    %v3319 = vunpack.c.h.b16 %v2563
    %v3320 = vunpack.c.l.b16 %v2564
    %v3321 = vunpack.c.h.b16 %v2564
    %v3322 = vunpack.c.l.b16 %v2565
    %v3323 = vunpack.c.h.b16 %v2565
    %v3324 = vunpack.c.l.b16 %v2566
    %v3325 = vunpack.c.h.b16 %v2566
    %v3326 = vunpack.c.l.b16 %v2567
    %v3327 = vunpack.c.h.b16 %v2567
    %v3328 = vunpack.c.l.b16 %v2568
    %v3329 = vunpack.c.h.b16 %v2568
    %v3330 = vunpack.c.l.b16 %v2569
    %v3331 = vunpack.c.h.b16 %v2569
    %v3332 = vunpack.c.l.b16 %v2570
    %v3333 = vunpack.c.h.b16 %v2570
    %v3334 = vunpack.c.l.b16 %v2571
    %v3335 = vunpack.c.h.b16 %v2571
    %v3336 = vunpack.c.l.b16 %v2572
    %v3337 = vunpack.c.h.b16 %v2572
    %v3338 = vunpack.c.l.b16 %v2573
    %v3339 = vunpack.c.h.b16 %v2573
    %v3340 = vunpack.c.l.b16 %v2574
    %v3341 = vunpack.c.h.b16 %v2574
    %v3342 = vunpack.c.l.b16 %v2575
    %v3343 = vunpack.c.h.b16 %v2575
    %v3344 = vpack.c.b16 %v2840, %v2832
    %v3345 = vpack.c.b16 %v2841, %v2833
    %v3346 = vpack.c.b16 %v2842, %v2834
    %v3347 = vpack.c.b16 %v2843, %v2835
    %v3348 = vpack.c.b16 %v2844, %v2836
    %v3349 = vpack.c.b16 %v2845, %v2837
    %v3350 = vpack.c.b16 %v2846, %v2838
    %v3351 = vpack.c.b16 %v2847, %v2839
    %v3352 = vpack.c.b16 %v2856, %v2848
    %v3353 = vpack.c.b16 %v2857, %v2849
    %v3354 = vpack.c.b16 %v2858, %v2850
    %v3355 = vpack.c.b16 %v2859, %v2851
    %v3356 = vpack.c.b16 %v2860, %v2852
    %v3357 = vpack.c.b16 %v2861, %v2853
    %v3358 = vpack.c.b16 %v2862, %v2854
    %v3359 = vpack.c.b16 %v2863, %v2855
    %v3360 = vpack.c.b16 %v2872, %v2864
    %v3361 = vpack.c.b16 %v2873, %v2865
    %v3362 = vpack.c.b16 %v2874, %v2866
    %v3363 = vpack.c.b16 %v2875, %v2867
    %v3364 = vpack.c.b16 %v2876, %v2868
    %v3365 = vpack.c.b16 %v2877, %v2869
    %v3366 = vpack.c.b16 %v2878, %v2870
    %v3367 = vpack.c.b16 %v2879, %v2871
    %v3368 = vpack.c.b16 %v2888, %v2880
    %v3369 = vpack.c.b16 %v2889, %v2881
    %v3370 = vpack.c.b16 %v2890, %v2882
    %v3371 = vpack.c.b16 %v2891, %v2883
    %v3372 = vpack.c.b16 %v2892, %v2884
    %v3373 = vpack.c.b16 %v2893, %v2885
    %v3374 = vpack.c.b16 %v2894, %v2886
    %v3375 = vpack.c.b16 %v2895, %v2887
    %v3376 = vpack.c.b16 %v2904, %v2896
    %v3377 = vpack.c.b16 %v2905, %v2897
    %v3378 = vpack.c.b16 %v2906, %v2898
    %v3379 = vpack.c.b16 %v2907, %v2899
    %v3380 = vpack.c.b16 %v2908, %v2900
    %v3381 = vpack.c.b16 %v2909, %v2901
    %v3382 = vpack.c.b16 %v2910, %v2902
    %v3383 = vpack.c.b16 %v2911, %v2903
    %v3384 = vpack.c.b16 %v2920, %v2912
    %v3385 = vpack.c.b16 %v2921, %v2913
    %v3386 = vpack.c.b16 %v2922, %v2914
    %v3387 = vpack.c.b16 %v2923, %v2915
    %v3388 = vpack.c.b16 %v2924, %v2916
    %v3389 = vpack.c.b16 %v2925, %v2917
    %v3390 = vpack.c.b16 %v2926, %v2918
    %v3391 = vpack.c.b16 %v2927, %v2919
    %v3392 = vpack.c.b16 %v2936, %v2928
    %v3393 = vpack.c.b16 %v2937, %v2929
    %v3394 = vpack.c.b16 %v2938, %v2930
    %v3395 = vpack.c.b16 %v2939, %v2931
    %v3396 = vpack.c.b16 %v2940, %v2932
    %v3397 = vpack.c.b16 %v2941, %v2933
    %v3398 = vpack.c.b16 %v2942, %v2934
    %v3399 = vpack.c.b16 %v2943, %v2935
    %v3400 = vpack.c.b16 %v2952, %v2944
    %v3401 = vpack.c.b16 %v2953, %v2945
    %v3402 = vpack.c.b16 %v2954, %v2946
    %v3403 = vpack.c.b16 %v2955, %v2947
    %v3404 = vpack.c.b16 %v2956, %v2948
    %v3405 = vpack.c.b16 %v2957, %v2949
    %v3406 = vpack.c.b16 %v2958, %v2950
    %v3407 = vpack.c.b16 %v2959, %v2951
    %v3408 = vpack.c.b16 %v2968, %v2960
    %v3409 = vpack.c.b16 %v2969, %v2961
    %v3410 = vpack.c.b16 %v2970, %v2962
    %v3411 = vpack.c.b16 %v2971, %v2963
    %v3412 = vpack.c.b16 %v2972, %v2964
    %v3413 = vpack.c.b16 %v2973, %v2965
    %v3414 = vpack.c.b16 %v2974, %v2966
    %v3415 = vpack.c.b16 %v2975, %v2967
    %v3416 = vpack.c.b16 %v2984, %v2976
    %v3417 = vpack.c.b16 %v2985, %v2977
    %v3418 = vpack.c.b16 %v2986, %v2978
    %v3419 = vpack.c.b16 %v2987, %v2979
    %v3420 = vpack.c.b16 %v2988, %v2980
    %v3421 = vpack.c.b16 %v2989, %v2981
    %v3422 = vpack.c.b16 %v2990, %v2982
    %v3423 = vpack.c.b16 %v2991, %v2983
    %v3424 = vpack.c.b16 %v3000, %v2992
    %v3425 = vpack.c.b16 %v3001, %v2993
    %v3426 = vpack.c.b16 %v3002, %v2994
    %v3427 = vpack.c.b16 %v3003, %v2995
    %v3428 = vpack.c.b16 %v3004, %v2996
    %v3429 = vpack.c.b16 %v3005, %v2997
    %v3430 = vpack.c.b16 %v3006, %v2998
    %v3431 = vpack.c.b16 %v3007, %v2999
    %v3432 = vpack.c.b16 %v3016, %v3008
    %v3433 = vpack.c.b16 %v3017, %v3009
    %v3434 = vpack.c.b16 %v3018, %v3010
    %v3435 = vpack.c.b16 %v3019, %v3011
    %v3436 = vpack.c.b16 %v3020, %v3012
    %v3437 = vpack.c.b16 %v3021, %v3013
    %v3438 = vpack.c.b16 %v3022, %v3014
    %v3439 = vpack.c.b16 %v3023, %v3015
    %v3440 = vpack.c.b16 %v3032, %v3024
    %v3441 = vpack.c.b16 %v3033, %v3025
    %v3442 = vpack.c.b16 %v3034, %v3026
    %v3443 = vpack.c.b16 %v3035, %v3027
    %v3444 = vpack.c.b16 %v3036, %v3028
    %v3445 = vpack.c.b16 %v3037, %v3029
    %v3446 = vpack.c.b16 %v3038, %v3030
    %v3447 = vpack.c.b16 %v3039, %v3031
    %v3448 = vpack.c.b16 %v3048, %v3040
    %v3449 = vpack.c.b16 %v3049, %v3041
    %v3450 = vpack.c.b16 %v3050, %v3042
    %v3451 = vpack.c.b16 %v3051, %v3043
    %v3452 = vpack.c.b16 %v3052, %v3044
    %v3453 = vpack.c.b16 %v3053, %v3045
    %v3454 = vpack.c.b16 %v3054, %v3046
    %v3455 = vpack.c.b16 %v3055, %v3047
    %v3456 = vpack.c.b16 %v3064, %v3056
    %v3457 = vpack.c.b16 %v3065, %v3057
    %v3458 = vpack.c.b16 %v3066, %v3058
    %v3459 = vpack.c.b16 %v3067, %v3059
    %v3460 = vpack.c.b16 %v3068, %v3060
    %v3461 = vpack.c.b16 %v3069, %v3061
    %v3462 = vpack.c.b16 %v3070, %v3062
    %v3463 = vpack.c.b16 %v3071, %v3063
    %v3464 = vpack.c.b16 %v3080, %v3072
    %v3465 = vpack.c.b16 %v3081, %v3073
    %v3466 = vpack.c.b16 %v3082, %v3074
    %v3467 = vpack.c.b16 %v3083, %v3075
    %v3468 = vpack.c.b16 %v3084, %v3076
    %v3469 = vpack.c.b16 %v3085, %v3077
    %v3470 = vpack.c.b16 %v3086, %v3078
    %v3471 = vpack.c.b16 %v3087, %v3079
    %v3472 = vpack.c.b16 %v3096, %v3088
    %v3473 = vpack.c.b16 %v3097, %v3089
    %v3474 = vpack.c.b16 %v3098, %v3090
    %v3475 = vpack.c.b16 %v3099, %v3091
    %v3476 = vpack.c.b16 %v3100, %v3092
    %v3477 = vpack.c.b16 %v3101, %v3093
    %v3478 = vpack.c.b16 %v3102, %v3094
    %v3479 = vpack.c.b16 %v3103, %v3095
    %v3480 = vpack.c.b16 %v3112, %v3104
    %v3481 = vpack.c.b16 %v3113, %v3105
    %v3482 = vpack.c.b16 %v3114, %v3106
    %v3483 = vpack.c.b16 %v3115, %v3107
    %v3484 = vpack.c.b16 %v3116, %v3108
    %v3485 = vpack.c.b16 %v3117, %v3109
    %v3486 = vpack.c.b16 %v3118, %v3110
    %v3487 = vpack.c.b16 %v3119, %v3111
    %v3488 = vpack.c.b16 %v3128, %v3120
    %v3489 = vpack.c.b16 %v3129, %v3121
    %v3490 = vpack.c.b16 %v3130, %v3122
    %v3491 = vpack.c.b16 %v3131, %v3123
    %v3492 = vpack.c.b16 %v3132, %v3124
    %v3493 = vpack.c.b16 %v3133, %v3125
    %v3494 = vpack.c.b16 %v3134, %v3126
    %v3495 = vpack.c.b16 %v3135, %v3127
    %v3496 = vpack.c.b16 %v3144, %v3136
    %v3497 = vpack.c.b16 %v3145, %v3137
    %v3498 = vpack.c.b16 %v3146, %v3138
    %v3499 = vpack.c.b16 %v3147, %v3139
    %v3500 = vpack.c.b16 %v3148, %v3140
    %v3501 = vpack.c.b16 %v3149, %v3141
    %v3502 = vpack.c.b16 %v3150, %v3142
    %v3503 = vpack.c.b16 %v3151, %v3143
    %v3504 = vpack.c.b16 %v3160, %v3152
    %v3505 = vpack.c.b16 %v3161, %v3153
    %v3506 = vpack.c.b16 %v3162, %v3154
    %v3507 = vpack.c.b16 %v3163, %v3155
    %v3508 = vpack.c.b16 %v3164, %v3156
    %v3509 = vpack.c.b16 %v3165, %v3157
    %v3510 = vpack.c.b16 %v3166, %v3158
    %v3511 = vpack.c.b16 %v3167, %v3159
    %v3512 = vpack.c.b16 %v3176, %v3168
    %v3513 = vpack.c.b16 %v3177, %v3169
    %v3514 = vpack.c.b16 %v3178, %v3170
    %v3515 = vpack.c.b16 %v3179, %v3171
    %v3516 = vpack.c.b16 %v3180, %v3172
    %v3517 = vpack.c.b16 %v3181, %v3173
    %v3518 = vpack.c.b16 %v3182, %v3174
    %v3519 = vpack.c.b16 %v3183, %v3175
    %v3520 = vpack.c.b16 %v3192, %v3184
    %v3521 = vpack.c.b16 %v3193, %v3185
    %v3522 = vpack.c.b16 %v3194, %v3186
    %v3523 = vpack.c.b16 %v3195, %v3187
    %v3524 = vpack.c.b16 %v3196, %v3188
    %v3525 = vpack.c.b16 %v3197, %v3189
    %v3526 = vpack.c.b16 %v3198, %v3190
    %v3527 = vpack.c.b16 %v3199, %v3191
    %v3528 = vpack.c.b16 %v3208, %v3200
    %v3529 = vpack.c.b16 %v3209, %v3201
    %v3530 = vpack.c.b16 %v3210, %v3202
    %v3531 = vpack.c.b16 %v3211, %v3203
    %v3532 = vpack.c.b16 %v3212, %v3204
    %v3533 = vpack.c.b16 %v3213, %v3205
    %v3534 = vpack.c.b16 %v3214, %v3206
    %v3535 = vpack.c.b16 %v3215, %v3207
    %v3536 = vpack.c.b16 %v3224, %v3216
    %v3537 = vpack.c.b16 %v3225, %v3217
    %v3538 = vpack.c.b16 %v3226, %v3218
    %v3539 = vpack.c.b16 %v3227, %v3219
    %v3540 = vpack.c.b16 %v3228, %v3220
    %v3541 = vpack.c.b16 %v3229, %v3221
    %v3542 = vpack.c.b16 %v3230, %v3222
    %v3543 = vpack.c.b16 %v3231, %v3223
    %v3544 = vpack.c.b16 %v3240, %v3232
    %v3545 = vpack.c.b16 %v3241, %v3233
    %v3546 = vpack.c.b16 %v3242, %v3234
    %v3547 = vpack.c.b16 %v3243, %v3235
    %v3548 = vpack.c.b16 %v3244, %v3236
    %v3549 = vpack.c.b16 %v3245, %v3237
    %v3550 = vpack.c.b16 %v3246, %v3238
    %v3551 = vpack.c.b16 %v3247, %v3239
    %v3552 = vpack.c.b16 %v3256, %v3248
    %v3553 = vpack.c.b16 %v3257, %v3249
    %v3554 = vpack.c.b16 %v3258, %v3250
    %v3555 = vpack.c.b16 %v3259, %v3251
    %v3556 = vpack.c.b16 %v3260, %v3252
    %v3557 = vpack.c.b16 %v3261, %v3253
    %v3558 = vpack.c.b16 %v3262, %v3254
    %v3559 = vpack.c.b16 %v3263, %v3255
    %v3560 = vpack.c.b16 %v3272, %v3264
    %v3561 = vpack.c.b16 %v3273, %v3265
    %v3562 = vpack.c.b16 %v3274, %v3266
    %v3563 = vpack.c.b16 %v3275, %v3267
    %v3564 = vpack.c.b16 %v3276, %v3268
    %v3565 = vpack.c.b16 %v3277, %v3269
    %v3566 = vpack.c.b16 %v3278, %v3270
    %v3567 = vpack.c.b16 %v3279, %v3271
    %v3568 = vpack.c.b16 %v3288, %v3280
    %v3569 = vpack.c.b16 %v3289, %v3281
    %v3570 = vpack.c.b16 %v3290, %v3282
    %v3571 = vpack.c.b16 %v3291, %v3283
    %v3572 = vpack.c.b16 %v3292, %v3284
    %v3573 = vpack.c.b16 %v3293, %v3285
    %v3574 = vpack.c.b16 %v3294, %v3286
    %v3575 = vpack.c.b16 %v3295, %v3287
    %v3576 = vpack.c.b16 %v3304, %v3296
    %v3577 = vpack.c.b16 %v3305, %v3297
    %v3578 = vpack.c.b16 %v3306, %v3298
    %v3579 = vpack.c.b16 %v3307, %v3299
    %v3580 = vpack.c.b16 %v3308, %v3300
    %v3581 = vpack.c.b16 %v3309, %v3301
    %v3582 = vpack.c.b16 %v3310, %v3302
    %v3583 = vpack.c.b16 %v3311, %v3303
    %v3584 = vpack.c.b16 %v3320, %v3312
    %v3585 = vpack.c.b16 %v3321, %v3313
    %v3586 = vpack.c.b16 %v3322, %v3314
    %v3587 = vpack.c.b16 %v3323, %v3315
    %v3588 = vpack.c.b16 %v3324, %v3316
    %v3589 = vpack.c.b16 %v3325, %v3317
    %v3590 = vpack.c.b16 %v3326, %v3318
    %v3591 = vpack.c.b16 %v3327, %v3319
    %v3592 = vpack.c.b16 %v3336, %v3328
    %v3593 = vpack.c.b16 %v3337, %v3329
    %v3594 = vpack.c.b16 %v3338, %v3330
    %v3595 = vpack.c.b16 %v3339, %v3331
    %v3596 = vpack.c.b16 %v3340, %v3332
    %v3597 = vpack.c.b16 %v3341, %v3333
    %v3598 = vpack.c.b16 %v3342, %v3334
    %v3599 = vpack.c.b16 %v3343, %v3335
    %3856 = vmatpush.bf16.msra.mxu0 %v3400
    %3857 = vmatpush.bf16.msra.mxu0 %v3392
    %3858 = vmatpush.bf16.msra.mxu0 %v3384
    %3859 = vmatpush.bf16.msra.mxu0 %v3376
    %3860 = vmatpush.bf16.msra.mxu0 %v3368
    %3861 = vmatpush.bf16.msra.mxu0 %v3360
    %3862 = vmatpush.bf16.msra.mxu0 %v3352
    %3863 = vmatpush.bf16.msra.mxu0 %v3344
    %3864 = vmatmul.bf16.gmra.mxu0 %v2316
    %v3865 = vpop.f32.mrf.mxu0
    %v3866 = vadd.f32 0.0, %v3865
    %v3867 = vpop.f32.mrf.mxu0
    %3868 = vdwg.mxu0
    %3869 = vmatpush.bf16.msra.mxu0 %v3464
    %3870 = vmatpush.bf16.msra.mxu0 %v3456
    %3871 = vmatpush.bf16.msra.mxu0 %v3448
    %3872 = vmatpush.bf16.msra.mxu0 %v3440
    %3873 = vmatpush.bf16.msra.mxu0 %v3432
    %3874 = vmatpush.bf16.msra.mxu0 %v3424
    %3875 = vmatpush.bf16.msra.mxu0 %v3416
    %3876 = vmatpush.bf16.msra.mxu0 %v3408
    %3877 = vmatmul.bf16.gmra.mxu0 %v2317
    %v3878 = vpop.f32.mrf.mxu0
    %v3879 = vadd.f32 %v3866, %v3878
    %v3880 = vpop.f32.mrf.mxu0
    %3881 = vdwg.mxu0
    %3882 = vmatpush.bf16.msra.mxu0 %v3528
    %3883 = vmatpush.bf16.msra.mxu0 %v3520
    %3884 = vmatpush.bf16.msra.mxu0 %v3512
    %3885 = vmatpush.bf16.msra.mxu0 %v3504
    %3886 = vmatpush.bf16.msra.mxu0 %v3496
    %3887 = vmatpush.bf16.msra.mxu0 %v3488
    %3888 = vmatpush.bf16.msra.mxu0 %v3480
    %3889 = vmatpush.bf16.msra.mxu0 %v3472
    %3890 = vmatmul.bf16.gmra.mxu0 %v2318
    %v3891 = vpop.f32.mrf.mxu0
    %v3892 = vadd.f32 %v3879, %v3891
    %v3893 = vpop.f32.mrf.mxu0
    %3894 = vdwg.mxu0
    %3895 = vmatpush.bf16.msra.mxu0 %v3592
    %3896 = vmatpush.bf16.msra.mxu0 %v3584
    %3897 = vmatpush.bf16.msra.mxu0 %v3576
    %3898 = vmatpush.bf16.msra.mxu0 %v3568
    %3899 = vmatpush.bf16.msra.mxu0 %v3560
    %3900 = vmatpush.bf16.msra.mxu0 %v3552
    %3901 = vmatpush.bf16.msra.mxu0 %v3544
    %3902 = vmatpush.bf16.msra.mxu0 %v3536
    %3903 = vmatmul.bf16.gmra.mxu0 %v2319
    %v3904 = vpop.f32.mrf.mxu0
    %v3905 = vadd.f32 %v3892, %v3904
    %v3906 = vpop.f32.mrf.mxu0
    %3907 = vdwg.mxu0
    %3908 = vmatpush.bf16.msra.mxu0 %v3401
    %3909 = vmatpush.bf16.msra.mxu0 %v3393
    %3910 = vmatpush.bf16.msra.mxu0 %v3385
    %3911 = vmatpush.bf16.msra.mxu0 %v3377
    %3912 = vmatpush.bf16.msra.mxu0 %v3369
    %3913 = vmatpush.bf16.msra.mxu0 %v3361
    %3914 = vmatpush.bf16.msra.mxu0 %v3353
    %3915 = vmatpush.bf16.msra.mxu0 %v3345
    %3916 = vmatmul.bf16.gmra.mxu0 %v2316
    %v3917 = vpop.f32.mrf.mxu0
    %v3918 = vadd.f32 0.0, %v3917
    %v3919 = vpop.f32.mrf.mxu0
    %3920 = vdwg.mxu0
    %3921 = vmatpush.bf16.msra.mxu0 %v3465
    %3922 = vmatpush.bf16.msra.mxu0 %v3457
    %3923 = vmatpush.bf16.msra.mxu0 %v3449
    %3924 = vmatpush.bf16.msra.mxu0 %v3441
    %3925 = vmatpush.bf16.msra.mxu0 %v3433
    %3926 = vmatpush.bf16.msra.mxu0 %v3425
    %3927 = vmatpush.bf16.msra.mxu0 %v3417
    %3928 = vmatpush.bf16.msra.mxu0 %v3409
    %3929 = vmatmul.bf16.gmra.mxu0 %v2317
    %v3930 = vpop.f32.mrf.mxu0
    %v3931 = vadd.f32 %v3918, %v3930
    %v3932 = vpop.f32.mrf.mxu0
    %3933 = vdwg.mxu0
    %3934 = vmatpush.bf16.msra.mxu0 %v3529
    %3935 = vmatpush.bf16.msra.mxu0 %v3521
    %3936 = vmatpush.bf16.msra.mxu0 %v3513
    %3937 = vmatpush.bf16.msra.mxu0 %v3505
    %3938 = vmatpush.bf16.msra.mxu0 %v3497
    %3939 = vmatpush.bf16.msra.mxu0 %v3489
    %3940 = vmatpush.bf16.msra.mxu0 %v3481
    %3941 = vmatpush.bf16.msra.mxu0 %v3473
    %3942 = vmatmul.bf16.gmra.mxu0 %v2318
    %v3943 = vpop.f32.mrf.mxu0
    %v3944 = vadd.f32 %v3931, %v3943
    %v3945 = vpop.f32.mrf.mxu0
    %3946 = vdwg.mxu0
    %3947 = vmatpush.bf16.msra.mxu0 %v3593
    %3948 = vmatpush.bf16.msra.mxu0 %v3585
    %3949 = vmatpush.bf16.msra.mxu0 %v3577
    %3950 = vmatpush.bf16.msra.mxu0 %v3569
    %3951 = vmatpush.bf16.msra.mxu0 %v3561
    %3952 = vmatpush.bf16.msra.mxu0 %v3553
    %3953 = vmatpush.bf16.msra.mxu0 %v3545
    %3954 = vmatpush.bf16.msra.mxu0 %v3537
    %3955 = vmatmul.bf16.gmra.mxu0 %v2319
    %v3956 = vpop.f32.mrf.mxu0
    %v3957 = vadd.f32 %v3944, %v3956
    %v3958 = vpop.f32.mrf.mxu0
    %3959 = vdwg.mxu0
    %3960 = vmatpush.bf16.msra.mxu0 %v3402
    %3961 = vmatpush.bf16.msra.mxu0 %v3394
    %3962 = vmatpush.bf16.msra.mxu0 %v3386
    %3963 = vmatpush.bf16.msra.mxu0 %v3378
    %3964 = vmatpush.bf16.msra.mxu0 %v3370
    %3965 = vmatpush.bf16.msra.mxu0 %v3362
    %3966 = vmatpush.bf16.msra.mxu0 %v3354
    %3967 = vmatpush.bf16.msra.mxu0 %v3346
    %3968 = vmatmul.bf16.gmra.mxu0 %v2316
    %v3969 = vpop.f32.mrf.mxu0
    %v3970 = vadd.f32 0.0, %v3969
    %v3971 = vpop.f32.mrf.mxu0
    %3972 = vdwg.mxu0
    %3973 = vmatpush.bf16.msra.mxu0 %v3466
    %3974 = vmatpush.bf16.msra.mxu0 %v3458
    %3975 = vmatpush.bf16.msra.mxu0 %v3450
    %3976 = vmatpush.bf16.msra.mxu0 %v3442
    %3977 = vmatpush.bf16.msra.mxu0 %v3434
    %3978 = vmatpush.bf16.msra.mxu0 %v3426
    %3979 = vmatpush.bf16.msra.mxu0 %v3418
    %3980 = vmatpush.bf16.msra.mxu0 %v3410
    %3981 = vmatmul.bf16.gmra.mxu0 %v2317
    %v3982 = vpop.f32.mrf.mxu0
    %v3983 = vadd.f32 %v3970, %v3982
    %v3984 = vpop.f32.mrf.mxu0
    %3985 = vdwg.mxu0
    %3986 = vmatpush.bf16.msra.mxu0 %v3530
    %3987 = vmatpush.bf16.msra.mxu0 %v3522
    %3988 = vmatpush.bf16.msra.mxu0 %v3514
    %3989 = vmatpush.bf16.msra.mxu0 %v3506
    %3990 = vmatpush.bf16.msra.mxu0 %v3498
    %3991 = vmatpush.bf16.msra.mxu0 %v3490
    %3992 = vmatpush.bf16.msra.mxu0 %v3482
    %3993 = vmatpush.bf16.msra.mxu0 %v3474
    %3994 = vmatmul.bf16.gmra.mxu0 %v2318
    %v3995 = vpop.f32.mrf.mxu0
    %v3996 = vadd.f32 %v3983, %v3995
    %v3997 = vpop.f32.mrf.mxu0
    %3998 = vdwg.mxu0
    %3999 = vmatpush.bf16.msra.mxu0 %v3594
    %4000 = vmatpush.bf16.msra.mxu0 %v3586
    %4001 = vmatpush.bf16.msra.mxu0 %v3578
    %4002 = vmatpush.bf16.msra.mxu0 %v3570
    %4003 = vmatpush.bf16.msra.mxu0 %v3562
    %4004 = vmatpush.bf16.msra.mxu0 %v3554
    %4005 = vmatpush.bf16.msra.mxu0 %v3546
    %4006 = vmatpush.bf16.msra.mxu0 %v3538
    %4007 = vmatmul.bf16.gmra.mxu0 %v2319
    %v4008 = vpop.f32.mrf.mxu0
    %v4009 = vadd.f32 %v3996, %v4008
    %v4010 = vpop.f32.mrf.mxu0
    %4011 = vdwg.mxu0
    %4012 = vmatpush.bf16.msra.mxu0 %v3403
    %4013 = vmatpush.bf16.msra.mxu0 %v3395
    %4014 = vmatpush.bf16.msra.mxu0 %v3387
    %4015 = vmatpush.bf16.msra.mxu0 %v3379
    %4016 = vmatpush.bf16.msra.mxu0 %v3371
    %4017 = vmatpush.bf16.msra.mxu0 %v3363
    %4018 = vmatpush.bf16.msra.mxu0 %v3355
    %4019 = vmatpush.bf16.msra.mxu0 %v3347
    %4020 = vmatmul.bf16.gmra.mxu0 %v2316
    %v4021 = vpop.f32.mrf.mxu0
    %v4022 = vadd.f32 0.0, %v4021
    %v4023 = vpop.f32.mrf.mxu0
    %4024 = vdwg.mxu0
    %4025 = vmatpush.bf16.msra.mxu0 %v3467
    %4026 = vmatpush.bf16.msra.mxu0 %v3459
    %4027 = vmatpush.bf16.msra.mxu0 %v3451
    %4028 = vmatpush.bf16.msra.mxu0 %v3443
    %4029 = vmatpush.bf16.msra.mxu0 %v3435
    %4030 = vmatpush.bf16.msra.mxu0 %v3427
    %4031 = vmatpush.bf16.msra.mxu0 %v3419
    %4032 = vmatpush.bf16.msra.mxu0 %v3411
    %4033 = vmatmul.bf16.gmra.mxu0 %v2317
    %v4034 = vpop.f32.mrf.mxu0
    %v4035 = vadd.f32 %v4022, %v4034
    %v4036 = vpop.f32.mrf.mxu0
    %4037 = vdwg.mxu0
    %4038 = vmatpush.bf16.msra.mxu0 %v3531
    %4039 = vmatpush.bf16.msra.mxu0 %v3523
    %4040 = vmatpush.bf16.msra.mxu0 %v3515
    %4041 = vmatpush.bf16.msra.mxu0 %v3507
    %4042 = vmatpush.bf16.msra.mxu0 %v3499
    %4043 = vmatpush.bf16.msra.mxu0 %v3491
    %4044 = vmatpush.bf16.msra.mxu0 %v3483
    %4045 = vmatpush.bf16.msra.mxu0 %v3475
    %4046 = vmatmul.bf16.gmra.mxu0 %v2318
    %v4047 = vpop.f32.mrf.mxu0
    %v4048 = vadd.f32 %v4035, %v4047
    %v4049 = vpop.f32.mrf.mxu0
    %4050 = vdwg.mxu0
    %4051 = vmatpush.bf16.msra.mxu0 %v3595
    %4052 = vmatpush.bf16.msra.mxu0 %v3587
    %4053 = vmatpush.bf16.msra.mxu0 %v3579
    %4054 = vmatpush.bf16.msra.mxu0 %v3571
    %4055 = vmatpush.bf16.msra.mxu0 %v3563
    %4056 = vmatpush.bf16.msra.mxu0 %v3555
    %4057 = vmatpush.bf16.msra.mxu0 %v3547
    %4058 = vmatpush.bf16.msra.mxu0 %v3539
    %4059 = vmatmul.bf16.gmra.mxu0 %v2319
    %v4060 = vpop.f32.mrf.mxu0
    %v4061 = vadd.f32 %v4048, %v4060
    %v4062 = vpop.f32.mrf.mxu0
    %4063 = vdwg.mxu0
    %4064 = vmatpush.bf16.msra.mxu0 %v3404
    %4065 = vmatpush.bf16.msra.mxu0 %v3396
    %4066 = vmatpush.bf16.msra.mxu0 %v3388
    %4067 = vmatpush.bf16.msra.mxu0 %v3380
    %4068 = vmatpush.bf16.msra.mxu0 %v3372
    %4069 = vmatpush.bf16.msra.mxu0 %v3364
    %4070 = vmatpush.bf16.msra.mxu0 %v3356
    %4071 = vmatpush.bf16.msra.mxu0 %v3348
    %4072 = vmatmul.bf16.gmra.mxu0 %v2316
    %v4073 = vpop.f32.mrf.mxu0
    %v4074 = vadd.f32 0.0, %v4073
    %v4075 = vpop.f32.mrf.mxu0
    %4076 = vdwg.mxu0
    %4077 = vmatpush.bf16.msra.mxu0 %v3468
    %4078 = vmatpush.bf16.msra.mxu0 %v3460
    %4079 = vmatpush.bf16.msra.mxu0 %v3452
    %4080 = vmatpush.bf16.msra.mxu0 %v3444
    %4081 = vmatpush.bf16.msra.mxu0 %v3436
    %4082 = vmatpush.bf16.msra.mxu0 %v3428
    %4083 = vmatpush.bf16.msra.mxu0 %v3420
    %4084 = vmatpush.bf16.msra.mxu0 %v3412
    %4085 = vmatmul.bf16.gmra.mxu0 %v2317
    %v4086 = vpop.f32.mrf.mxu0
    %v4087 = vadd.f32 %v4074, %v4086
    %v4088 = vpop.f32.mrf.mxu0
    %4089 = vdwg.mxu0
    %4090 = vmatpush.bf16.msra.mxu0 %v3532
    %4091 = vmatpush.bf16.msra.mxu0 %v3524
    %4092 = vmatpush.bf16.msra.mxu0 %v3516
    %4093 = vmatpush.bf16.msra.mxu0 %v3508
    %4094 = vmatpush.bf16.msra.mxu0 %v3500
    %4095 = vmatpush.bf16.msra.mxu0 %v3492
    %4096 = vmatpush.bf16.msra.mxu0 %v3484
    %4097 = vmatpush.bf16.msra.mxu0 %v3476
    %4098 = vmatmul.bf16.gmra.mxu0 %v2318
    %v4099 = vpop.f32.mrf.mxu0
    %v4100 = vadd.f32 %v4087, %v4099
    %v4101 = vpop.f32.mrf.mxu0
    %4102 = vdwg.mxu0
    %4103 = vmatpush.bf16.msra.mxu0 %v3596
    %4104 = vmatpush.bf16.msra.mxu0 %v3588
    %4105 = vmatpush.bf16.msra.mxu0 %v3580
    %4106 = vmatpush.bf16.msra.mxu0 %v3572
    %4107 = vmatpush.bf16.msra.mxu0 %v3564
    %4108 = vmatpush.bf16.msra.mxu0 %v3556
    %4109 = vmatpush.bf16.msra.mxu0 %v3548
    %4110 = vmatpush.bf16.msra.mxu0 %v3540
    %4111 = vmatmul.bf16.gmra.mxu0 %v2319
    %v4112 = vpop.f32.mrf.mxu0
    %v4113 = vadd.f32 %v4100, %v4112
    %v4114 = vpop.f32.mrf.mxu0
    %4115 = vdwg.mxu0
    %4116 = vmatpush.bf16.msra.mxu0 %v3405
    %4117 = vmatpush.bf16.msra.mxu0 %v3397
    %4118 = vmatpush.bf16.msra.mxu0 %v3389
    %4119 = vmatpush.bf16.msra.mxu0 %v3381
    %4120 = vmatpush.bf16.msra.mxu0 %v3373
    %4121 = vmatpush.bf16.msra.mxu0 %v3365
    %4122 = vmatpush.bf16.msra.mxu0 %v3357
    %4123 = vmatpush.bf16.msra.mxu0 %v3349
    %4124 = vmatmul.bf16.gmra.mxu0 %v2316
    %v4125 = vpop.f32.mrf.mxu0
    %v4126 = vadd.f32 0.0, %v4125
    %v4127 = vpop.f32.mrf.mxu0
    %4128 = vdwg.mxu0
    %4129 = vmatpush.bf16.msra.mxu0 %v3469
    %4130 = vmatpush.bf16.msra.mxu0 %v3461
    %4131 = vmatpush.bf16.msra.mxu0 %v3453
    %4132 = vmatpush.bf16.msra.mxu0 %v3445
    %4133 = vmatpush.bf16.msra.mxu0 %v3437
    %4134 = vmatpush.bf16.msra.mxu0 %v3429
    %4135 = vmatpush.bf16.msra.mxu0 %v3421
    %4136 = vmatpush.bf16.msra.mxu0 %v3413
    %4137 = vmatmul.bf16.gmra.mxu0 %v2317
    %v4138 = vpop.f32.mrf.mxu0
    %v4139 = vadd.f32 %v4126, %v4138
    %v4140 = vpop.f32.mrf.mxu0
    %4141 = vdwg.mxu0
    %4142 = vmatpush.bf16.msra.mxu0 %v3533
    %4143 = vmatpush.bf16.msra.mxu0 %v3525
    %4144 = vmatpush.bf16.msra.mxu0 %v3517
    %4145 = vmatpush.bf16.msra.mxu0 %v3509
    %4146 = vmatpush.bf16.msra.mxu0 %v3501
    %4147 = vmatpush.bf16.msra.mxu0 %v3493
    %4148 = vmatpush.bf16.msra.mxu0 %v3485
    %4149 = vmatpush.bf16.msra.mxu0 %v3477
    %4150 = vmatmul.bf16.gmra.mxu0 %v2318
    %v4151 = vpop.f32.mrf.mxu0
    %v4152 = vadd.f32 %v4139, %v4151
    %v4153 = vpop.f32.mrf.mxu0
    %4154 = vdwg.mxu0
    %4155 = vmatpush.bf16.msra.mxu0 %v3597
    %4156 = vmatpush.bf16.msra.mxu0 %v3589
    %4157 = vmatpush.bf16.msra.mxu0 %v3581
    %4158 = vmatpush.bf16.msra.mxu0 %v3573
    %4159 = vmatpush.bf16.msra.mxu0 %v3565
    %4160 = vmatpush.bf16.msra.mxu0 %v3557
    %4161 = vmatpush.bf16.msra.mxu0 %v3549
    %4162 = vmatpush.bf16.msra.mxu0 %v3541
    %4163 = vmatmul.bf16.gmra.mxu0 %v2319
    %v4164 = vpop.f32.mrf.mxu0
    %v4165 = vadd.f32 %v4152, %v4164
    %v4166 = vpop.f32.mrf.mxu0
    %4167 = vdwg.mxu0
    %4168 = vmatpush.bf16.msra.mxu0 %v3406
    %4169 = vmatpush.bf16.msra.mxu0 %v3398
    %4170 = vmatpush.bf16.msra.mxu0 %v3390
    %4171 = vmatpush.bf16.msra.mxu0 %v3382
    %4172 = vmatpush.bf16.msra.mxu0 %v3374
    %4173 = vmatpush.bf16.msra.mxu0 %v3366
    %4174 = vmatpush.bf16.msra.mxu0 %v3358
    %4175 = vmatpush.bf16.msra.mxu0 %v3350
    %4176 = vmatmul.bf16.gmra.mxu0 %v2316
    %v4177 = vpop.f32.mrf.mxu0
    %v4178 = vadd.f32 0.0, %v4177
    %v4179 = vpop.f32.mrf.mxu0
    %4180 = vdwg.mxu0
    %4181 = vmatpush.bf16.msra.mxu0 %v3470
    %4182 = vmatpush.bf16.msra.mxu0 %v3462
    %4183 = vmatpush.bf16.msra.mxu0 %v3454
    %4184 = vmatpush.bf16.msra.mxu0 %v3446
    %4185 = vmatpush.bf16.msra.mxu0 %v3438
    %4186 = vmatpush.bf16.msra.mxu0 %v3430
    %4187 = vmatpush.bf16.msra.mxu0 %v3422
    %4188 = vmatpush.bf16.msra.mxu0 %v3414
    %4189 = vmatmul.bf16.gmra.mxu0 %v2317
    %v4190 = vpop.f32.mrf.mxu0
    %v4191 = vadd.f32 %v4178, %v4190
    %v4192 = vpop.f32.mrf.mxu0
    %4193 = vdwg.mxu0
    %4194 = vmatpush.bf16.msra.mxu0 %v3534
    %4195 = vmatpush.bf16.msra.mxu0 %v3526
    %4196 = vmatpush.bf16.msra.mxu0 %v3518
    %4197 = vmatpush.bf16.msra.mxu0 %v3510
    %4198 = vmatpush.bf16.msra.mxu0 %v3502
    %4199 = vmatpush.bf16.msra.mxu0 %v3494
    %4200 = vmatpush.bf16.msra.mxu0 %v3486
    %4201 = vmatpush.bf16.msra.mxu0 %v3478
    %4202 = vmatmul.bf16.gmra.mxu0 %v2318
    %v4203 = vpop.f32.mrf.mxu0
    %v4204 = vadd.f32 %v4191, %v4203
    %v4205 = vpop.f32.mrf.mxu0
    %4206 = vdwg.mxu0
    %4207 = vmatpush.bf16.msra.mxu0 %v3598
    %4208 = vmatpush.bf16.msra.mxu0 %v3590
    %4209 = vmatpush.bf16.msra.mxu0 %v3582
    %4210 = vmatpush.bf16.msra.mxu0 %v3574
    %4211 = vmatpush.bf16.msra.mxu0 %v3566
    %4212 = vmatpush.bf16.msra.mxu0 %v3558
    %4213 = vmatpush.bf16.msra.mxu0 %v3550
    %4214 = vmatpush.bf16.msra.mxu0 %v3542
    %4215 = vmatmul.bf16.gmra.mxu0 %v2319
    %v4216 = vpop.f32.mrf.mxu0
    %v4217 = vadd.f32 %v4204, %v4216
    %v4218 = vpop.f32.mrf.mxu0
    %4219 = vdwg.mxu0
    %4220 = vmatpush.bf16.msra.mxu0 %v3407
    %4221 = vmatpush.bf16.msra.mxu0 %v3399
    %4222 = vmatpush.bf16.msra.mxu0 %v3391
    %4223 = vmatpush.bf16.msra.mxu0 %v3383
    %4224 = vmatpush.bf16.msra.mxu0 %v3375
    %4225 = vmatpush.bf16.msra.mxu0 %v3367
    %4226 = vmatpush.bf16.msra.mxu0 %v3359
    %4227 = vmatpush.bf16.msra.mxu0 %v3351
    %4228 = vmatmul.bf16.gmra.mxu0 %v2316
    %v4229 = vpop.f32.mrf.mxu0
    %v4230 = vadd.f32 0.0, %v4229
    %v4231 = vpop.f32.mrf.mxu0
    %4232 = vdwg.mxu0
    %4233 = vmatpush.bf16.msra.mxu0 %v3471
    %4234 = vmatpush.bf16.msra.mxu0 %v3463
    %4235 = vmatpush.bf16.msra.mxu0 %v3455
    %4236 = vmatpush.bf16.msra.mxu0 %v3447
    %4237 = vmatpush.bf16.msra.mxu0 %v3439
    %4238 = vmatpush.bf16.msra.mxu0 %v3431
    %4239 = vmatpush.bf16.msra.mxu0 %v3423
    %4240 = vmatpush.bf16.msra.mxu0 %v3415
    %4241 = vmatmul.bf16.gmra.mxu0 %v2317
    %v4242 = vpop.f32.mrf.mxu0
    %v4243 = vadd.f32 %v4230, %v4242
    %v4244 = vpop.f32.mrf.mxu0
    %4245 = vdwg.mxu0
    %4246 = vmatpush.bf16.msra.mxu0 %v3535
    %4247 = vmatpush.bf16.msra.mxu0 %v3527
    %4248 = vmatpush.bf16.msra.mxu0 %v3519
    %4249 = vmatpush.bf16.msra.mxu0 %v3511
    %4250 = vmatpush.bf16.msra.mxu0 %v3503
    %4251 = vmatpush.bf16.msra.mxu0 %v3495
    %4252 = vmatpush.bf16.msra.mxu0 %v3487
    %4253 = vmatpush.bf16.msra.mxu0 %v3479
    %4254 = vmatmul.bf16.gmra.mxu0 %v2318
    %v4255 = vpop.f32.mrf.mxu0
    %v4256 = vadd.f32 %v4243, %v4255
    %v4257 = vpop.f32.mrf.mxu0
    %4258 = vdwg.mxu0
    %4259 = vmatpush.bf16.msra.mxu0 %v3599
    %4260 = vmatpush.bf16.msra.mxu0 %v3591
    %4261 = vmatpush.bf16.msra.mxu0 %v3583
    %4262 = vmatpush.bf16.msra.mxu0 %v3575
    %4263 = vmatpush.bf16.msra.mxu0 %v3567
    %4264 = vmatpush.bf16.msra.mxu0 %v3559
    %4265 = vmatpush.bf16.msra.mxu0 %v3551
    %4266 = vmatpush.bf16.msra.mxu0 %v3543
    %4267 = vmatmul.bf16.gmra.mxu0 %v2319
    %v4268 = vpop.f32.mrf.mxu0
    %v4269 = vadd.f32 %v4256, %v4268
    %v4270 = vpop.f32.mrf.mxu0
    %4271 = vdwg.mxu0
    %v4528 = vunpack.c.l.b16 %v2060
    %v4529 = vunpack.c.h.b16 %v2060
    %v4530 = vunpack.c.l.b16 %v2061
    %v4531 = vunpack.c.h.b16 %v2061
    %v4532 = vunpack.c.l.b16 %v2062
    %v4533 = vunpack.c.h.b16 %v2062
    %v4534 = vunpack.c.l.b16 %v2063
    %v4535 = vunpack.c.h.b16 %v2063
    %v4536 = vunpack.c.l.b16 %v2064
    %v4537 = vunpack.c.h.b16 %v2064
    %v4538 = vunpack.c.l.b16 %v2065
    %v4539 = vunpack.c.h.b16 %v2065
    %v4540 = vunpack.c.l.b16 %v2066
    %v4541 = vunpack.c.h.b16 %v2066
    %v4542 = vunpack.c.l.b16 %v2067
    %v4543 = vunpack.c.h.b16 %v2067
    %v4544 = vunpack.c.l.b16 %v2068
    %v4545 = vunpack.c.h.b16 %v2068
    %v4546 = vunpack.c.l.b16 %v2069
    %v4547 = vunpack.c.h.b16 %v2069
    %v4548 = vunpack.c.l.b16 %v2070
    %v4549 = vunpack.c.h.b16 %v2070
    %v4550 = vunpack.c.l.b16 %v2071
    %v4551 = vunpack.c.h.b16 %v2071
    %v4552 = vunpack.c.l.b16 %v2072
    %v4553 = vunpack.c.h.b16 %v2072
    %v4554 = vunpack.c.l.b16 %v2073
    %v4555 = vunpack.c.h.b16 %v2073
    %v4556 = vunpack.c.l.b16 %v2074
    %v4557 = vunpack.c.h.b16 %v2074
    %v4558 = vunpack.c.l.b16 %v2075
    %v4559 = vunpack.c.h.b16 %v2075
    %v4560 = vunpack.c.l.b16 %v2076
    %v4561 = vunpack.c.h.b16 %v2076
    %v4562 = vunpack.c.l.b16 %v2077
    %v4563 = vunpack.c.h.b16 %v2077
    %v4564 = vunpack.c.l.b16 %v2078
    %v4565 = vunpack.c.h.b16 %v2078
    %v4566 = vunpack.c.l.b16 %v2079
    %v4567 = vunpack.c.h.b16 %v2079
    %v4568 = vunpack.c.l.b16 %v2080
    %v4569 = vunpack.c.h.b16 %v2080
    %v4570 = vunpack.c.l.b16 %v2081
    %v4571 = vunpack.c.h.b16 %v2081
    %v4572 = vunpack.c.l.b16 %v2082
    %v4573 = vunpack.c.h.b16 %v2082
    %v4574 = vunpack.c.l.b16 %v2083
    %v4575 = vunpack.c.h.b16 %v2083
    %v4576 = vunpack.c.l.b16 %v2084
    %v4577 = vunpack.c.h.b16 %v2084
    %v4578 = vunpack.c.l.b16 %v2085
    %v4579 = vunpack.c.h.b16 %v2085
    %v4580 = vunpack.c.l.b16 %v2086
    %v4581 = vunpack.c.h.b16 %v2086
    %v4582 = vunpack.c.l.b16 %v2087
    %v4583 = vunpack.c.h.b16 %v2087
    %v4584 = vunpack.c.l.b16 %v2088
    %v4585 = vunpack.c.h.b16 %v2088
    %v4586 = vunpack.c.l.b16 %v2089
    %v4587 = vunpack.c.h.b16 %v2089
    %v4588 = vunpack.c.l.b16 %v2090
    %v4589 = vunpack.c.h.b16 %v2090
    %v4590 = vunpack.c.l.b16 %v2091
    %v4591 = vunpack.c.h.b16 %v2091
    %v4592 = vunpack.c.l.b16 %v2092
    %v4593 = vunpack.c.h.b16 %v2092
    %v4594 = vunpack.c.l.b16 %v2093
    %v4595 = vunpack.c.h.b16 %v2093
    %v4596 = vunpack.c.l.b16 %v2094
    %v4597 = vunpack.c.h.b16 %v2094
    %v4598 = vunpack.c.l.b16 %v2095
    %v4599 = vunpack.c.h.b16 %v2095
    %v4600 = vunpack.c.l.b16 %v2096
    %v4601 = vunpack.c.h.b16 %v2096
    %v4602 = vunpack.c.l.b16 %v2097
    %v4603 = vunpack.c.h.b16 %v2097
    %v4604 = vunpack.c.l.b16 %v2098
    %v4605 = vunpack.c.h.b16 %v2098
    %v4606 = vunpack.c.l.b16 %v2099
    %v4607 = vunpack.c.h.b16 %v2099
    %v4608 = vunpack.c.l.b16 %v2100
    %v4609 = vunpack.c.h.b16 %v2100
    %v4610 = vunpack.c.l.b16 %v2101
    %v4611 = vunpack.c.h.b16 %v2101
    %v4612 = vunpack.c.l.b16 %v2102
    %v4613 = vunpack.c.h.b16 %v2102
    %v4614 = vunpack.c.l.b16 %v2103
    %v4615 = vunpack.c.h.b16 %v2103
    %v4616 = vunpack.c.l.b16 %v2104
    %v4617 = vunpack.c.h.b16 %v2104
    %v4618 = vunpack.c.l.b16 %v2105
    %v4619 = vunpack.c.h.b16 %v2105
    %v4620 = vunpack.c.l.b16 %v2106
    %v4621 = vunpack.c.h.b16 %v2106
    %v4622 = vunpack.c.l.b16 %v2107
    %v4623 = vunpack.c.h.b16 %v2107
    %v4624 = vunpack.c.l.b16 %v2108
    %v4625 = vunpack.c.h.b16 %v2108
    %v4626 = vunpack.c.l.b16 %v2109
    %v4627 = vunpack.c.h.b16 %v2109
    %v4628 = vunpack.c.l.b16 %v2110
    %v4629 = vunpack.c.h.b16 %v2110
    %v4630 = vunpack.c.l.b16 %v2111
    %v4631 = vunpack.c.h.b16 %v2111
    %v4632 = vunpack.c.l.b16 %v2112
    %v4633 = vunpack.c.h.b16 %v2112
    %v4634 = vunpack.c.l.b16 %v2113
    %v4635 = vunpack.c.h.b16 %v2113
    %v4636 = vunpack.c.l.b16 %v2114
    %v4637 = vunpack.c.h.b16 %v2114
    %v4638 = vunpack.c.l.b16 %v2115
    %v4639 = vunpack.c.h.b16 %v2115
    %v4640 = vunpack.c.l.b16 %v2116
    %v4641 = vunpack.c.h.b16 %v2116
    %v4642 = vunpack.c.l.b16 %v2117
    %v4643 = vunpack.c.h.b16 %v2117
    %v4644 = vunpack.c.l.b16 %v2118
    %v4645 = vunpack.c.h.b16 %v2118
    %v4646 = vunpack.c.l.b16 %v2119
    %v4647 = vunpack.c.h.b16 %v2119
    %v4648 = vunpack.c.l.b16 %v2120
    %v4649 = vunpack.c.h.b16 %v2120
    %v4650 = vunpack.c.l.b16 %v2121
    %v4651 = vunpack.c.h.b16 %v2121
    %v4652 = vunpack.c.l.b16 %v2122
    %v4653 = vunpack.c.h.b16 %v2122
    %v4654 = vunpack.c.l.b16 %v2123
    %v4655 = vunpack.c.h.b16 %v2123
    %v4656 = vunpack.c.l.b16 %v2124
    %v4657 = vunpack.c.h.b16 %v2124
    %v4658 = vunpack.c.l.b16 %v2125
    %v4659 = vunpack.c.h.b16 %v2125
    %v4660 = vunpack.c.l.b16 %v2126
    %v4661 = vunpack.c.h.b16 %v2126
    %v4662 = vunpack.c.l.b16 %v2127
    %v4663 = vunpack.c.h.b16 %v2127
    %v4664 = vunpack.c.l.b16 %v2128
    %v4665 = vunpack.c.h.b16 %v2128
    %v4666 = vunpack.c.l.b16 %v2129
    %v4667 = vunpack.c.h.b16 %v2129
    %v4668 = vunpack.c.l.b16 %v2130
    %v4669 = vunpack.c.h.b16 %v2130
    %v4670 = vunpack.c.l.b16 %v2131
    %v4671 = vunpack.c.h.b16 %v2131
    %v4672 = vunpack.c.l.b16 %v2132
    %v4673 = vunpack.c.h.b16 %v2132
    %v4674 = vunpack.c.l.b16 %v2133
    %v4675 = vunpack.c.h.b16 %v2133
    %v4676 = vunpack.c.l.b16 %v2134
    %v4677 = vunpack.c.h.b16 %v2134
    %v4678 = vunpack.c.l.b16 %v2135
    %v4679 = vunpack.c.h.b16 %v2135
    %v4680 = vunpack.c.l.b16 %v2136
    %v4681 = vunpack.c.h.b16 %v2136
    %v4682 = vunpack.c.l.b16 %v2137
    %v4683 = vunpack.c.h.b16 %v2137
    %v4684 = vunpack.c.l.b16 %v2138
    %v4685 = vunpack.c.h.b16 %v2138
    %v4686 = vunpack.c.l.b16 %v2139
    %v4687 = vunpack.c.h.b16 %v2139
    %v4688 = vunpack.c.l.b16 %v2140
    %v4689 = vunpack.c.h.b16 %v2140
    %v4690 = vunpack.c.l.b16 %v2141
    %v4691 = vunpack.c.h.b16 %v2141
    %v4692 = vunpack.c.l.b16 %v2142
    %v4693 = vunpack.c.h.b16 %v2142
    %v4694 = vunpack.c.l.b16 %v2143
    %v4695 = vunpack.c.h.b16 %v2143
    %v4696 = vunpack.c.l.b16 %v2144
    %v4697 = vunpack.c.h.b16 %v2144
    %v4698 = vunpack.c.l.b16 %v2145
    %v4699 = vunpack.c.h.b16 %v2145
    %v4700 = vunpack.c.l.b16 %v2146
    %v4701 = vunpack.c.h.b16 %v2146
    %v4702 = vunpack.c.l.b16 %v2147
    %v4703 = vunpack.c.h.b16 %v2147
    %v4704 = vunpack.c.l.b16 %v2148
    %v4705 = vunpack.c.h.b16 %v2148
    %v4706 = vunpack.c.l.b16 %v2149
    %v4707 = vunpack.c.h.b16 %v2149
    %v4708 = vunpack.c.l.b16 %v2150
    %v4709 = vunpack.c.h.b16 %v2150
    %v4710 = vunpack.c.l.b16 %v2151
    %v4711 = vunpack.c.h.b16 %v2151
    %v4712 = vunpack.c.l.b16 %v2152
    %v4713 = vunpack.c.h.b16 %v2152
    %v4714 = vunpack.c.l.b16 %v2153
    %v4715 = vunpack.c.h.b16 %v2153
    %v4716 = vunpack.c.l.b16 %v2154
    %v4717 = vunpack.c.h.b16 %v2154
    %v4718 = vunpack.c.l.b16 %v2155
    %v4719 = vunpack.c.h.b16 %v2155
    %v4720 = vunpack.c.l.b16 %v2156
    %v4721 = vunpack.c.h.b16 %v2156
    %v4722 = vunpack.c.l.b16 %v2157
    %v4723 = vunpack.c.h.b16 %v2157
    %v4724 = vunpack.c.l.b16 %v2158
    %v4725 = vunpack.c.h.b16 %v2158
    %v4726 = vunpack.c.l.b16 %v2159
    %v4727 = vunpack.c.h.b16 %v2159
    %v4728 = vunpack.c.l.b16 %v2160
    %v4729 = vunpack.c.h.b16 %v2160
    %v4730 = vunpack.c.l.b16 %v2161
    %v4731 = vunpack.c.h.b16 %v2161
    %v4732 = vunpack.c.l.b16 %v2162
    %v4733 = vunpack.c.h.b16 %v2162
    %v4734 = vunpack.c.l.b16 %v2163
    %v4735 = vunpack.c.h.b16 %v2163
    %v4736 = vunpack.c.l.b16 %v2164
    %v4737 = vunpack.c.h.b16 %v2164
    %v4738 = vunpack.c.l.b16 %v2165
    %v4739 = vunpack.c.h.b16 %v2165
    %v4740 = vunpack.c.l.b16 %v2166
    %v4741 = vunpack.c.h.b16 %v2166
    %v4742 = vunpack.c.l.b16 %v2167
    %v4743 = vunpack.c.h.b16 %v2167
    %v4744 = vunpack.c.l.b16 %v2168
    %v4745 = vunpack.c.h.b16 %v2168
    %v4746 = vunpack.c.l.b16 %v2169
    %v4747 = vunpack.c.h.b16 %v2169
    %v4748 = vunpack.c.l.b16 %v2170
    %v4749 = vunpack.c.h.b16 %v2170
    %v4750 = vunpack.c.l.b16 %v2171
    %v4751 = vunpack.c.h.b16 %v2171
    %v4752 = vunpack.c.l.b16 %v2172
    %v4753 = vunpack.c.h.b16 %v2172
    %v4754 = vunpack.c.l.b16 %v2173
    %v4755 = vunpack.c.h.b16 %v2173
    %v4756 = vunpack.c.l.b16 %v2174
    %v4757 = vunpack.c.h.b16 %v2174
    %v4758 = vunpack.c.l.b16 %v2175
    %v4759 = vunpack.c.h.b16 %v2175
    %v4760 = vunpack.c.l.b16 %v2176
    %v4761 = vunpack.c.h.b16 %v2176
    %v4762 = vunpack.c.l.b16 %v2177
    %v4763 = vunpack.c.h.b16 %v2177
    %v4764 = vunpack.c.l.b16 %v2178
    %v4765 = vunpack.c.h.b16 %v2178
    %v4766 = vunpack.c.l.b16 %v2179
    %v4767 = vunpack.c.h.b16 %v2179
    %v4768 = vunpack.c.l.b16 %v2180
    %v4769 = vunpack.c.h.b16 %v2180
    %v4770 = vunpack.c.l.b16 %v2181
    %v4771 = vunpack.c.h.b16 %v2181
    %v4772 = vunpack.c.l.b16 %v2182
    %v4773 = vunpack.c.h.b16 %v2182
    %v4774 = vunpack.c.l.b16 %v2183
    %v4775 = vunpack.c.h.b16 %v2183
    %v4776 = vunpack.c.l.b16 %v2184
    %v4777 = vunpack.c.h.b16 %v2184
    %v4778 = vunpack.c.l.b16 %v2185
    %v4779 = vunpack.c.h.b16 %v2185
    %v4780 = vunpack.c.l.b16 %v2186
    %v4781 = vunpack.c.h.b16 %v2186
    %v4782 = vunpack.c.l.b16 %v2187
    %v4783 = vunpack.c.h.b16 %v2187
    %v4784 = vunpack.c.l.b16 %v2188
    %v4785 = vunpack.c.h.b16 %v2188
    %v4786 = vunpack.c.l.b16 %v2189
    %v4787 = vunpack.c.h.b16 %v2189
    %v4788 = vunpack.c.l.b16 %v2190
    %v4789 = vunpack.c.h.b16 %v2190
    %v4790 = vunpack.c.l.b16 %v2191
    %v4791 = vunpack.c.h.b16 %v2191
    %v4792 = vunpack.c.l.b16 %v2192
    %v4793 = vunpack.c.h.b16 %v2192
    %v4794 = vunpack.c.l.b16 %v2193
    %v4795 = vunpack.c.h.b16 %v2193
    %v4796 = vunpack.c.l.b16 %v2194
    %v4797 = vunpack.c.h.b16 %v2194
    %v4798 = vunpack.c.l.b16 %v2195
    %v4799 = vunpack.c.h.b16 %v2195
    %v4800 = vunpack.c.l.b16 %v2196
    %v4801 = vunpack.c.h.b16 %v2196
    %v4802 = vunpack.c.l.b16 %v2197
    %v4803 = vunpack.c.h.b16 %v2197
    %v4804 = vunpack.c.l.b16 %v2198
    %v4805 = vunpack.c.h.b16 %v2198
    %v4806 = vunpack.c.l.b16 %v2199
    %v4807 = vunpack.c.h.b16 %v2199
    %v4808 = vunpack.c.l.b16 %v2200
    %v4809 = vunpack.c.h.b16 %v2200
    %v4810 = vunpack.c.l.b16 %v2201
    %v4811 = vunpack.c.h.b16 %v2201
    %v4812 = vunpack.c.l.b16 %v2202
    %v4813 = vunpack.c.h.b16 %v2202
    %v4814 = vunpack.c.l.b16 %v2203
    %v4815 = vunpack.c.h.b16 %v2203
    %v4816 = vunpack.c.l.b16 %v2204
    %v4817 = vunpack.c.h.b16 %v2204
    %v4818 = vunpack.c.l.b16 %v2205
    %v4819 = vunpack.c.h.b16 %v2205
    %v4820 = vunpack.c.l.b16 %v2206
    %v4821 = vunpack.c.h.b16 %v2206
    %v4822 = vunpack.c.l.b16 %v2207
    %v4823 = vunpack.c.h.b16 %v2207
    %v4824 = vunpack.c.l.b16 %v2208
    %v4825 = vunpack.c.h.b16 %v2208
    %v4826 = vunpack.c.l.b16 %v2209
    %v4827 = vunpack.c.h.b16 %v2209
    %v4828 = vunpack.c.l.b16 %v2210
    %v4829 = vunpack.c.h.b16 %v2210
    %v4830 = vunpack.c.l.b16 %v2211
    %v4831 = vunpack.c.h.b16 %v2211
    %v4832 = vunpack.c.l.b16 %v2212
    %v4833 = vunpack.c.h.b16 %v2212
    %v4834 = vunpack.c.l.b16 %v2213
    %v4835 = vunpack.c.h.b16 %v2213
    %v4836 = vunpack.c.l.b16 %v2214
    %v4837 = vunpack.c.h.b16 %v2214
    %v4838 = vunpack.c.l.b16 %v2215
    %v4839 = vunpack.c.h.b16 %v2215
    %v4840 = vunpack.c.l.b16 %v2216
    %v4841 = vunpack.c.h.b16 %v2216
    %v4842 = vunpack.c.l.b16 %v2217
    %v4843 = vunpack.c.h.b16 %v2217
    %v4844 = vunpack.c.l.b16 %v2218
    %v4845 = vunpack.c.h.b16 %v2218
    %v4846 = vunpack.c.l.b16 %v2219
    %v4847 = vunpack.c.h.b16 %v2219
    %v4848 = vunpack.c.l.b16 %v2220
    %v4849 = vunpack.c.h.b16 %v2220
    %v4850 = vunpack.c.l.b16 %v2221
    %v4851 = vunpack.c.h.b16 %v2221
    %v4852 = vunpack.c.l.b16 %v2222
    %v4853 = vunpack.c.h.b16 %v2222
    %v4854 = vunpack.c.l.b16 %v2223
    %v4855 = vunpack.c.h.b16 %v2223
    %v4856 = vunpack.c.l.b16 %v2224
    %v4857 = vunpack.c.h.b16 %v2224
    %v4858 = vunpack.c.l.b16 %v2225
    %v4859 = vunpack.c.h.b16 %v2225
    %v4860 = vunpack.c.l.b16 %v2226
    %v4861 = vunpack.c.h.b16 %v2226
    %v4862 = vunpack.c.l.b16 %v2227
    %v4863 = vunpack.c.h.b16 %v2227
    %v4864 = vunpack.c.l.b16 %v2228
    %v4865 = vunpack.c.h.b16 %v2228
    %v4866 = vunpack.c.l.b16 %v2229
    %v4867 = vunpack.c.h.b16 %v2229
    %v4868 = vunpack.c.l.b16 %v2230
    %v4869 = vunpack.c.h.b16 %v2230
    %v4870 = vunpack.c.l.b16 %v2231
    %v4871 = vunpack.c.h.b16 %v2231
    %v4872 = vunpack.c.l.b16 %v2232
    %v4873 = vunpack.c.h.b16 %v2232
    %v4874 = vunpack.c.l.b16 %v2233
    %v4875 = vunpack.c.h.b16 %v2233
    %v4876 = vunpack.c.l.b16 %v2234
    %v4877 = vunpack.c.h.b16 %v2234
    %v4878 = vunpack.c.l.b16 %v2235
    %v4879 = vunpack.c.h.b16 %v2235
    %v4880 = vunpack.c.l.b16 %v2236
    %v4881 = vunpack.c.h.b16 %v2236
    %v4882 = vunpack.c.l.b16 %v2237
    %v4883 = vunpack.c.h.b16 %v2237
    %v4884 = vunpack.c.l.b16 %v2238
    %v4885 = vunpack.c.h.b16 %v2238
    %v4886 = vunpack.c.l.b16 %v2239
    %v4887 = vunpack.c.h.b16 %v2239
    %v4888 = vunpack.c.l.b16 %v2240
    %v4889 = vunpack.c.h.b16 %v2240
    %v4890 = vunpack.c.l.b16 %v2241
    %v4891 = vunpack.c.h.b16 %v2241
    %v4892 = vunpack.c.l.b16 %v2242
    %v4893 = vunpack.c.h.b16 %v2242
    %v4894 = vunpack.c.l.b16 %v2243
    %v4895 = vunpack.c.h.b16 %v2243
    %v4896 = vunpack.c.l.b16 %v2244
    %v4897 = vunpack.c.h.b16 %v2244
    %v4898 = vunpack.c.l.b16 %v2245
    %v4899 = vunpack.c.h.b16 %v2245
    %v4900 = vunpack.c.l.b16 %v2246
    %v4901 = vunpack.c.h.b16 %v2246
    %v4902 = vunpack.c.l.b16 %v2247
    %v4903 = vunpack.c.h.b16 %v2247
    %v4904 = vunpack.c.l.b16 %v2248
    %v4905 = vunpack.c.h.b16 %v2248
    %v4906 = vunpack.c.l.b16 %v2249
    %v4907 = vunpack.c.h.b16 %v2249
    %v4908 = vunpack.c.l.b16 %v2250
    %v4909 = vunpack.c.h.b16 %v2250
    %v4910 = vunpack.c.l.b16 %v2251
    %v4911 = vunpack.c.h.b16 %v2251
    %v4912 = vunpack.c.l.b16 %v2252
    %v4913 = vunpack.c.h.b16 %v2252
    %v4914 = vunpack.c.l.b16 %v2253
    %v4915 = vunpack.c.h.b16 %v2253
    %v4916 = vunpack.c.l.b16 %v2254
    %v4917 = vunpack.c.h.b16 %v2254
    %v4918 = vunpack.c.l.b16 %v2255
    %v4919 = vunpack.c.h.b16 %v2255
    %v4920 = vunpack.c.l.b16 %v2256
    %v4921 = vunpack.c.h.b16 %v2256
    %v4922 = vunpack.c.l.b16 %v2257
    %v4923 = vunpack.c.h.b16 %v2257
    %v4924 = vunpack.c.l.b16 %v2258
    %v4925 = vunpack.c.h.b16 %v2258
    %v4926 = vunpack.c.l.b16 %v2259
    %v4927 = vunpack.c.h.b16 %v2259
    %v4928 = vunpack.c.l.b16 %v2260
    %v4929 = vunpack.c.h.b16 %v2260
    %v4930 = vunpack.c.l.b16 %v2261
    %v4931 = vunpack.c.h.b16 %v2261
    %v4932 = vunpack.c.l.b16 %v2262
    %v4933 = vunpack.c.h.b16 %v2262
    %v4934 = vunpack.c.l.b16 %v2263
    %v4935 = vunpack.c.h.b16 %v2263
    %v4936 = vunpack.c.l.b16 %v2264
    %v4937 = vunpack.c.h.b16 %v2264
    %v4938 = vunpack.c.l.b16 %v2265
    %v4939 = vunpack.c.h.b16 %v2265
    %v4940 = vunpack.c.l.b16 %v2266
    %v4941 = vunpack.c.h.b16 %v2266
    %v4942 = vunpack.c.l.b16 %v2267
    %v4943 = vunpack.c.h.b16 %v2267
    %v4944 = vunpack.c.l.b16 %v2268
    %v4945 = vunpack.c.h.b16 %v2268
    %v4946 = vunpack.c.l.b16 %v2269
    %v4947 = vunpack.c.h.b16 %v2269
    %v4948 = vunpack.c.l.b16 %v2270
    %v4949 = vunpack.c.h.b16 %v2270
    %v4950 = vunpack.c.l.b16 %v2271
    %v4951 = vunpack.c.h.b16 %v2271
    %v4952 = vunpack.c.l.b16 %v2272
    %v4953 = vunpack.c.h.b16 %v2272
    %v4954 = vunpack.c.l.b16 %v2273
    %v4955 = vunpack.c.h.b16 %v2273
    %v4956 = vunpack.c.l.b16 %v2274
    %v4957 = vunpack.c.h.b16 %v2274
    %v4958 = vunpack.c.l.b16 %v2275
    %v4959 = vunpack.c.h.b16 %v2275
    %v4960 = vunpack.c.l.b16 %v2276
    %v4961 = vunpack.c.h.b16 %v2276
    %v4962 = vunpack.c.l.b16 %v2277
    %v4963 = vunpack.c.h.b16 %v2277
    %v4964 = vunpack.c.l.b16 %v2278
    %v4965 = vunpack.c.h.b16 %v2278
    %v4966 = vunpack.c.l.b16 %v2279
    %v4967 = vunpack.c.h.b16 %v2279
    %v4968 = vunpack.c.l.b16 %v2280
    %v4969 = vunpack.c.h.b16 %v2280
    %v4970 = vunpack.c.l.b16 %v2281
    %v4971 = vunpack.c.h.b16 %v2281
    %v4972 = vunpack.c.l.b16 %v2282
    %v4973 = vunpack.c.h.b16 %v2282
    %v4974 = vunpack.c.l.b16 %v2283
    %v4975 = vunpack.c.h.b16 %v2283
    %v4976 = vunpack.c.l.b16 %v2284
    %v4977 = vunpack.c.h.b16 %v2284
    %v4978 = vunpack.c.l.b16 %v2285
    %v4979 = vunpack.c.h.b16 %v2285
    %v4980 = vunpack.c.l.b16 %v2286
    %v4981 = vunpack.c.h.b16 %v2286
    %v4982 = vunpack.c.l.b16 %v2287
    %v4983 = vunpack.c.h.b16 %v2287
    %v4984 = vunpack.c.l.b16 %v2288
    %v4985 = vunpack.c.h.b16 %v2288
    %v4986 = vunpack.c.l.b16 %v2289
    %v4987 = vunpack.c.h.b16 %v2289
    %v4988 = vunpack.c.l.b16 %v2290
    %v4989 = vunpack.c.h.b16 %v2290
    %v4990 = vunpack.c.l.b16 %v2291
    %v4991 = vunpack.c.h.b16 %v2291
    %v4992 = vunpack.c.l.b16 %v2292
    %v4993 = vunpack.c.h.b16 %v2292
    %v4994 = vunpack.c.l.b16 %v2293
    %v4995 = vunpack.c.h.b16 %v2293
    %v4996 = vunpack.c.l.b16 %v2294
    %v4997 = vunpack.c.h.b16 %v2294
    %v4998 = vunpack.c.l.b16 %v2295
    %v4999 = vunpack.c.h.b16 %v2295
    %v5000 = vunpack.c.l.b16 %v2296
    %v5001 = vunpack.c.h.b16 %v2296
    %v5002 = vunpack.c.l.b16 %v2297
    %v5003 = vunpack.c.h.b16 %v2297
    %v5004 = vunpack.c.l.b16 %v2298
    %v5005 = vunpack.c.h.b16 %v2298
    %v5006 = vunpack.c.l.b16 %v2299
    %v5007 = vunpack.c.h.b16 %v2299
    %v5008 = vunpack.c.l.b16 %v2300
    %v5009 = vunpack.c.h.b16 %v2300
    %v5010 = vunpack.c.l.b16 %v2301
    %v5011 = vunpack.c.h.b16 %v2301
    %v5012 = vunpack.c.l.b16 %v2302
    %v5013 = vunpack.c.h.b16 %v2302
    %v5014 = vunpack.c.l.b16 %v2303
    %v5015 = vunpack.c.h.b16 %v2303
    %v5016 = vunpack.c.l.b16 %v2304
    %v5017 = vunpack.c.h.b16 %v2304
    %v5018 = vunpack.c.l.b16 %v2305
    %v5019 = vunpack.c.h.b16 %v2305
    %v5020 = vunpack.c.l.b16 %v2306
    %v5021 = vunpack.c.h.b16 %v2306
    %v5022 = vunpack.c.l.b16 %v2307
    %v5023 = vunpack.c.h.b16 %v2307
    %v5024 = vunpack.c.l.b16 %v2308
    %v5025 = vunpack.c.h.b16 %v2308
    %v5026 = vunpack.c.l.b16 %v2309
    %v5027 = vunpack.c.h.b16 %v2309
    %v5028 = vunpack.c.l.b16 %v2310
    %v5029 = vunpack.c.h.b16 %v2310
    %v5030 = vunpack.c.l.b16 %v2311
    %v5031 = vunpack.c.h.b16 %v2311
    %v5032 = vunpack.c.l.b16 %v2312
    %v5033 = vunpack.c.h.b16 %v2312
    %v5034 = vunpack.c.l.b16 %v2313
    %v5035 = vunpack.c.h.b16 %v2313
    %v5036 = vunpack.c.l.b16 %v2314
    %v5037 = vunpack.c.h.b16 %v2314
    %v5038 = vunpack.c.l.b16 %v2315
    %v5039 = vunpack.c.h.b16 %v2315
    %v5040 = vpack.c.b16 %v4536, %v4528
    %v5041 = vpack.c.b16 %v4537, %v4529
    %v5042 = vpack.c.b16 %v4538, %v4530
    %v5043 = vpack.c.b16 %v4539, %v4531
    %v5044 = vpack.c.b16 %v4540, %v4532
    %v5045 = vpack.c.b16 %v4541, %v4533
    %v5046 = vpack.c.b16 %v4542, %v4534
    %v5047 = vpack.c.b16 %v4543, %v4535
    %v5048 = vpack.c.b16 %v4552, %v4544
    %v5049 = vpack.c.b16 %v4553, %v4545
    %v5050 = vpack.c.b16 %v4554, %v4546
    %v5051 = vpack.c.b16 %v4555, %v4547
    %v5052 = vpack.c.b16 %v4556, %v4548
    %v5053 = vpack.c.b16 %v4557, %v4549
    %v5054 = vpack.c.b16 %v4558, %v4550
    %v5055 = vpack.c.b16 %v4559, %v4551
    %v5056 = vpack.c.b16 %v4568, %v4560
    %v5057 = vpack.c.b16 %v4569, %v4561
    %v5058 = vpack.c.b16 %v4570, %v4562
    %v5059 = vpack.c.b16 %v4571, %v4563
    %v5060 = vpack.c.b16 %v4572, %v4564
    %v5061 = vpack.c.b16 %v4573, %v4565
    %v5062 = vpack.c.b16 %v4574, %v4566
    %v5063 = vpack.c.b16 %v4575, %v4567
    %v5064 = vpack.c.b16 %v4584, %v4576
    %v5065 = vpack.c.b16 %v4585, %v4577
    %v5066 = vpack.c.b16 %v4586, %v4578
    %v5067 = vpack.c.b16 %v4587, %v4579
    %v5068 = vpack.c.b16 %v4588, %v4580
    %v5069 = vpack.c.b16 %v4589, %v4581
    %v5070 = vpack.c.b16 %v4590, %v4582
    %v5071 = vpack.c.b16 %v4591, %v4583
    %v5072 = vpack.c.b16 %v4600, %v4592
    %v5073 = vpack.c.b16 %v4601, %v4593
    %v5074 = vpack.c.b16 %v4602, %v4594
    %v5075 = vpack.c.b16 %v4603, %v4595
    %v5076 = vpack.c.b16 %v4604, %v4596
    %v5077 = vpack.c.b16 %v4605, %v4597
    %v5078 = vpack.c.b16 %v4606, %v4598
    %v5079 = vpack.c.b16 %v4607, %v4599
    %v5080 = vpack.c.b16 %v4616, %v4608
    %v5081 = vpack.c.b16 %v4617, %v4609
    %v5082 = vpack.c.b16 %v4618, %v4610
    %v5083 = vpack.c.b16 %v4619, %v4611
    %v5084 = vpack.c.b16 %v4620, %v4612
    %v5085 = vpack.c.b16 %v4621, %v4613
    %v5086 = vpack.c.b16 %v4622, %v4614
    %v5087 = vpack.c.b16 %v4623, %v4615
    %v5088 = vpack.c.b16 %v4632, %v4624
    %v5089 = vpack.c.b16 %v4633, %v4625
    %v5090 = vpack.c.b16 %v4634, %v4626
    %v5091 = vpack.c.b16 %v4635, %v4627
    %v5092 = vpack.c.b16 %v4636, %v4628
    %v5093 = vpack.c.b16 %v4637, %v4629
    %v5094 = vpack.c.b16 %v4638, %v4630
    %v5095 = vpack.c.b16 %v4639, %v4631
    %v5096 = vpack.c.b16 %v4648, %v4640
    %v5097 = vpack.c.b16 %v4649, %v4641
    %v5098 = vpack.c.b16 %v4650, %v4642
    %v5099 = vpack.c.b16 %v4651, %v4643
    %v5100 = vpack.c.b16 %v4652, %v4644
    %v5101 = vpack.c.b16 %v4653, %v4645
    %v5102 = vpack.c.b16 %v4654, %v4646
    %v5103 = vpack.c.b16 %v4655, %v4647
    %v5104 = vpack.c.b16 %v4664, %v4656
    %v5105 = vpack.c.b16 %v4665, %v4657
    %v5106 = vpack.c.b16 %v4666, %v4658
    %v5107 = vpack.c.b16 %v4667, %v4659
    %v5108 = vpack.c.b16 %v4668, %v4660
    %v5109 = vpack.c.b16 %v4669, %v4661
    %v5110 = vpack.c.b16 %v4670, %v4662
    %v5111 = vpack.c.b16 %v4671, %v4663
    %v5112 = vpack.c.b16 %v4680, %v4672
    %v5113 = vpack.c.b16 %v4681, %v4673
    %v5114 = vpack.c.b16 %v4682, %v4674
    %v5115 = vpack.c.b16 %v4683, %v4675
    %v5116 = vpack.c.b16 %v4684, %v4676
    %v5117 = vpack.c.b16 %v4685, %v4677
    %v5118 = vpack.c.b16 %v4686, %v4678
    %v5119 = vpack.c.b16 %v4687, %v4679
    %v5120 = vpack.c.b16 %v4696, %v4688
    %v5121 = vpack.c.b16 %v4697, %v4689
    %v5122 = vpack.c.b16 %v4698, %v4690
    %v5123 = vpack.c.b16 %v4699, %v4691
    %v5124 = vpack.c.b16 %v4700, %v4692
    %v5125 = vpack.c.b16 %v4701, %v4693
    %v5126 = vpack.c.b16 %v4702, %v4694
    %v5127 = vpack.c.b16 %v4703, %v4695
    %v5128 = vpack.c.b16 %v4712, %v4704
    %v5129 = vpack.c.b16 %v4713, %v4705
    %v5130 = vpack.c.b16 %v4714, %v4706
    %v5131 = vpack.c.b16 %v4715, %v4707
    %v5132 = vpack.c.b16 %v4716, %v4708
    %v5133 = vpack.c.b16 %v4717, %v4709
    %v5134 = vpack.c.b16 %v4718, %v4710
    %v5135 = vpack.c.b16 %v4719, %v4711
    %v5136 = vpack.c.b16 %v4728, %v4720
    %v5137 = vpack.c.b16 %v4729, %v4721
    %v5138 = vpack.c.b16 %v4730, %v4722
    %v5139 = vpack.c.b16 %v4731, %v4723
    %v5140 = vpack.c.b16 %v4732, %v4724
    %v5141 = vpack.c.b16 %v4733, %v4725
    %v5142 = vpack.c.b16 %v4734, %v4726
    %v5143 = vpack.c.b16 %v4735, %v4727
    %v5144 = vpack.c.b16 %v4744, %v4736
    %v5145 = vpack.c.b16 %v4745, %v4737
    %v5146 = vpack.c.b16 %v4746, %v4738
    %v5147 = vpack.c.b16 %v4747, %v4739
    %v5148 = vpack.c.b16 %v4748, %v4740
    %v5149 = vpack.c.b16 %v4749, %v4741
    %v5150 = vpack.c.b16 %v4750, %v4742
    %v5151 = vpack.c.b16 %v4751, %v4743
    %v5152 = vpack.c.b16 %v4760, %v4752
    %v5153 = vpack.c.b16 %v4761, %v4753
    %v5154 = vpack.c.b16 %v4762, %v4754
    %v5155 = vpack.c.b16 %v4763, %v4755
    %v5156 = vpack.c.b16 %v4764, %v4756
    %v5157 = vpack.c.b16 %v4765, %v4757
    %v5158 = vpack.c.b16 %v4766, %v4758
    %v5159 = vpack.c.b16 %v4767, %v4759
    %v5160 = vpack.c.b16 %v4776, %v4768
    %v5161 = vpack.c.b16 %v4777, %v4769
    %v5162 = vpack.c.b16 %v4778, %v4770
    %v5163 = vpack.c.b16 %v4779, %v4771
    %v5164 = vpack.c.b16 %v4780, %v4772
    %v5165 = vpack.c.b16 %v4781, %v4773
    %v5166 = vpack.c.b16 %v4782, %v4774
    %v5167 = vpack.c.b16 %v4783, %v4775
    %v5168 = vpack.c.b16 %v4792, %v4784
    %v5169 = vpack.c.b16 %v4793, %v4785
    %v5170 = vpack.c.b16 %v4794, %v4786
    %v5171 = vpack.c.b16 %v4795, %v4787
    %v5172 = vpack.c.b16 %v4796, %v4788
    %v5173 = vpack.c.b16 %v4797, %v4789
    %v5174 = vpack.c.b16 %v4798, %v4790
    %v5175 = vpack.c.b16 %v4799, %v4791
    %v5176 = vpack.c.b16 %v4808, %v4800
    %v5177 = vpack.c.b16 %v4809, %v4801
    %v5178 = vpack.c.b16 %v4810, %v4802
    %v5179 = vpack.c.b16 %v4811, %v4803
    %v5180 = vpack.c.b16 %v4812, %v4804
    %v5181 = vpack.c.b16 %v4813, %v4805
    %v5182 = vpack.c.b16 %v4814, %v4806
    %v5183 = vpack.c.b16 %v4815, %v4807
    %v5184 = vpack.c.b16 %v4824, %v4816
    %v5185 = vpack.c.b16 %v4825, %v4817
    %v5186 = vpack.c.b16 %v4826, %v4818
    %v5187 = vpack.c.b16 %v4827, %v4819
    %v5188 = vpack.c.b16 %v4828, %v4820
    %v5189 = vpack.c.b16 %v4829, %v4821
    %v5190 = vpack.c.b16 %v4830, %v4822
    %v5191 = vpack.c.b16 %v4831, %v4823
    %v5192 = vpack.c.b16 %v4840, %v4832
    %v5193 = vpack.c.b16 %v4841, %v4833
    %v5194 = vpack.c.b16 %v4842, %v4834
    %v5195 = vpack.c.b16 %v4843, %v4835
    %v5196 = vpack.c.b16 %v4844, %v4836
    %v5197 = vpack.c.b16 %v4845, %v4837
    %v5198 = vpack.c.b16 %v4846, %v4838
    %v5199 = vpack.c.b16 %v4847, %v4839
    %v5200 = vpack.c.b16 %v4856, %v4848
    %v5201 = vpack.c.b16 %v4857, %v4849
    %v5202 = vpack.c.b16 %v4858, %v4850
    %v5203 = vpack.c.b16 %v4859, %v4851
    %v5204 = vpack.c.b16 %v4860, %v4852
    %v5205 = vpack.c.b16 %v4861, %v4853
    %v5206 = vpack.c.b16 %v4862, %v4854
    %v5207 = vpack.c.b16 %v4863, %v4855
    %v5208 = vpack.c.b16 %v4872, %v4864
    %v5209 = vpack.c.b16 %v4873, %v4865
    %v5210 = vpack.c.b16 %v4874, %v4866
    %v5211 = vpack.c.b16 %v4875, %v4867
    %v5212 = vpack.c.b16 %v4876, %v4868
    %v5213 = vpack.c.b16 %v4877, %v4869
    %v5214 = vpack.c.b16 %v4878, %v4870
    %v5215 = vpack.c.b16 %v4879, %v4871
    %v5216 = vpack.c.b16 %v4888, %v4880
    %v5217 = vpack.c.b16 %v4889, %v4881
    %v5218 = vpack.c.b16 %v4890, %v4882
    %v5219 = vpack.c.b16 %v4891, %v4883
    %v5220 = vpack.c.b16 %v4892, %v4884
    %v5221 = vpack.c.b16 %v4893, %v4885
    %v5222 = vpack.c.b16 %v4894, %v4886
    %v5223 = vpack.c.b16 %v4895, %v4887
    %v5224 = vpack.c.b16 %v4904, %v4896
    %v5225 = vpack.c.b16 %v4905, %v4897
    %v5226 = vpack.c.b16 %v4906, %v4898
    %v5227 = vpack.c.b16 %v4907, %v4899
    %v5228 = vpack.c.b16 %v4908, %v4900
    %v5229 = vpack.c.b16 %v4909, %v4901
    %v5230 = vpack.c.b16 %v4910, %v4902
    %v5231 = vpack.c.b16 %v4911, %v4903
    %v5232 = vpack.c.b16 %v4920, %v4912
    %v5233 = vpack.c.b16 %v4921, %v4913
    %v5234 = vpack.c.b16 %v4922, %v4914
    %v5235 = vpack.c.b16 %v4923, %v4915
    %v5236 = vpack.c.b16 %v4924, %v4916
    %v5237 = vpack.c.b16 %v4925, %v4917
    %v5238 = vpack.c.b16 %v4926, %v4918
    %v5239 = vpack.c.b16 %v4927, %v4919
    %v5240 = vpack.c.b16 %v4936, %v4928
    %v5241 = vpack.c.b16 %v4937, %v4929
    %v5242 = vpack.c.b16 %v4938, %v4930
    %v5243 = vpack.c.b16 %v4939, %v4931
    %v5244 = vpack.c.b16 %v4940, %v4932
    %v5245 = vpack.c.b16 %v4941, %v4933
    %v5246 = vpack.c.b16 %v4942, %v4934
    %v5247 = vpack.c.b16 %v4943, %v4935
    %v5248 = vpack.c.b16 %v4952, %v4944
    %v5249 = vpack.c.b16 %v4953, %v4945
    %v5250 = vpack.c.b16 %v4954, %v4946
    %v5251 = vpack.c.b16 %v4955, %v4947
    %v5252 = vpack.c.b16 %v4956, %v4948
    %v5253 = vpack.c.b16 %v4957, %v4949
    %v5254 = vpack.c.b16 %v4958, %v4950
    %v5255 = vpack.c.b16 %v4959, %v4951
    %v5256 = vpack.c.b16 %v4968, %v4960
    %v5257 = vpack.c.b16 %v4969, %v4961
    %v5258 = vpack.c.b16 %v4970, %v4962
    %v5259 = vpack.c.b16 %v4971, %v4963
    %v5260 = vpack.c.b16 %v4972, %v4964
    %v5261 = vpack.c.b16 %v4973, %v4965
    %v5262 = vpack.c.b16 %v4974, %v4966
    %v5263 = vpack.c.b16 %v4975, %v4967
    %v5264 = vpack.c.b16 %v4984, %v4976
    %v5265 = vpack.c.b16 %v4985, %v4977
    %v5266 = vpack.c.b16 %v4986, %v4978
    %v5267 = vpack.c.b16 %v4987, %v4979
    %v5268 = vpack.c.b16 %v4988, %v4980
    %v5269 = vpack.c.b16 %v4989, %v4981
    %v5270 = vpack.c.b16 %v4990, %v4982
    %v5271 = vpack.c.b16 %v4991, %v4983
    %v5272 = vpack.c.b16 %v5000, %v4992
    %v5273 = vpack.c.b16 %v5001, %v4993
    %v5274 = vpack.c.b16 %v5002, %v4994
    %v5275 = vpack.c.b16 %v5003, %v4995
    %v5276 = vpack.c.b16 %v5004, %v4996
    %v5277 = vpack.c.b16 %v5005, %v4997
    %v5278 = vpack.c.b16 %v5006, %v4998
    %v5279 = vpack.c.b16 %v5007, %v4999
    %v5280 = vpack.c.b16 %v5016, %v5008
    %v5281 = vpack.c.b16 %v5017, %v5009
    %v5282 = vpack.c.b16 %v5018, %v5010
    %v5283 = vpack.c.b16 %v5019, %v5011
    %v5284 = vpack.c.b16 %v5020, %v5012
    %v5285 = vpack.c.b16 %v5021, %v5013
    %v5286 = vpack.c.b16 %v5022, %v5014
    %v5287 = vpack.c.b16 %v5023, %v5015
    %v5288 = vpack.c.b16 %v5032, %v5024
    %v5289 = vpack.c.b16 %v5033, %v5025
    %v5290 = vpack.c.b16 %v5034, %v5026
    %v5291 = vpack.c.b16 %v5035, %v5027
    %v5292 = vpack.c.b16 %v5036, %v5028
    %v5293 = vpack.c.b16 %v5037, %v5029
    %v5294 = vpack.c.b16 %v5038, %v5030
    %v5295 = vpack.c.b16 %v5039, %v5031
    %5552 = vmatpush.bf16.msra.mxu0 %v5096
    %5553 = vmatpush.bf16.msra.mxu0 %v5088
    %5554 = vmatpush.bf16.msra.mxu0 %v5080
    %5555 = vmatpush.bf16.msra.mxu0 %v5072
    %5556 = vmatpush.bf16.msra.mxu0 %v5064
    %5557 = vmatpush.bf16.msra.mxu0 %v5056
    %5558 = vmatpush.bf16.msra.mxu0 %v5048
    %5559 = vmatpush.bf16.msra.mxu0 %v5040
    %5560 = vmatmul.bf16.gmra.mxu0 %v2056
    %v5561 = vpop.f32.mrf.mxu0
    %v5562 = vadd.f32 %v3905, %v5561
    %v5563 = vpop.f32.mrf.mxu0
    %5564 = vdwg.mxu0
    %5565 = vmatpush.bf16.msra.mxu0 %v5160
    %5566 = vmatpush.bf16.msra.mxu0 %v5152
    %5567 = vmatpush.bf16.msra.mxu0 %v5144
    %5568 = vmatpush.bf16.msra.mxu0 %v5136
    %5569 = vmatpush.bf16.msra.mxu0 %v5128
    %5570 = vmatpush.bf16.msra.mxu0 %v5120
    %5571 = vmatpush.bf16.msra.mxu0 %v5112
    %5572 = vmatpush.bf16.msra.mxu0 %v5104
    %5573 = vmatmul.bf16.gmra.mxu0 %v2057
    %v5574 = vpop.f32.mrf.mxu0
    %v5575 = vadd.f32 %v5562, %v5574
    %v5576 = vpop.f32.mrf.mxu0
    %5577 = vdwg.mxu0
    %5578 = vmatpush.bf16.msra.mxu0 %v5224
    %5579 = vmatpush.bf16.msra.mxu0 %v5216
    %5580 = vmatpush.bf16.msra.mxu0 %v5208
    %5581 = vmatpush.bf16.msra.mxu0 %v5200
    %5582 = vmatpush.bf16.msra.mxu0 %v5192
    %5583 = vmatpush.bf16.msra.mxu0 %v5184
    %5584 = vmatpush.bf16.msra.mxu0 %v5176
    %5585 = vmatpush.bf16.msra.mxu0 %v5168
    %5586 = vmatmul.bf16.gmra.mxu0 %v2058
    %v5587 = vpop.f32.mrf.mxu0
    %v5588 = vadd.f32 %v5575, %v5587
    %v5589 = vpop.f32.mrf.mxu0
    %5590 = vdwg.mxu0
    %5591 = vmatpush.bf16.msra.mxu0 %v5288
    %5592 = vmatpush.bf16.msra.mxu0 %v5280
    %5593 = vmatpush.bf16.msra.mxu0 %v5272
    %5594 = vmatpush.bf16.msra.mxu0 %v5264
    %5595 = vmatpush.bf16.msra.mxu0 %v5256
    %5596 = vmatpush.bf16.msra.mxu0 %v5248
    %5597 = vmatpush.bf16.msra.mxu0 %v5240
    %5598 = vmatpush.bf16.msra.mxu0 %v5232
    %5599 = vmatmul.bf16.gmra.mxu0 %v2059
    %v5600 = vpop.f32.mrf.mxu0
    %v5601 = vadd.f32 %v5588, %v5600
    %v5602 = vpop.f32.mrf.mxu0
    %5603 = vdwg.mxu0
    %5604 = vmatpush.bf16.msra.mxu0 %v5097
    %5605 = vmatpush.bf16.msra.mxu0 %v5089
    %5606 = vmatpush.bf16.msra.mxu0 %v5081
    %5607 = vmatpush.bf16.msra.mxu0 %v5073
    %5608 = vmatpush.bf16.msra.mxu0 %v5065
    %5609 = vmatpush.bf16.msra.mxu0 %v5057
    %5610 = vmatpush.bf16.msra.mxu0 %v5049
    %5611 = vmatpush.bf16.msra.mxu0 %v5041
    %5612 = vmatmul.bf16.gmra.mxu0 %v2056
    %v5613 = vpop.f32.mrf.mxu0
    %v5614 = vadd.f32 %v3957, %v5613
    %v5615 = vpop.f32.mrf.mxu0
    %5616 = vdwg.mxu0
    %5617 = vmatpush.bf16.msra.mxu0 %v5161
    %5618 = vmatpush.bf16.msra.mxu0 %v5153
    %5619 = vmatpush.bf16.msra.mxu0 %v5145
    %5620 = vmatpush.bf16.msra.mxu0 %v5137
    %5621 = vmatpush.bf16.msra.mxu0 %v5129
    %5622 = vmatpush.bf16.msra.mxu0 %v5121
    %5623 = vmatpush.bf16.msra.mxu0 %v5113
    %5624 = vmatpush.bf16.msra.mxu0 %v5105
    %5625 = vmatmul.bf16.gmra.mxu0 %v2057
    %v5626 = vpop.f32.mrf.mxu0
    %v5627 = vadd.f32 %v5614, %v5626
    %v5628 = vpop.f32.mrf.mxu0
    %5629 = vdwg.mxu0
    %5630 = vmatpush.bf16.msra.mxu0 %v5225
    %5631 = vmatpush.bf16.msra.mxu0 %v5217
    %5632 = vmatpush.bf16.msra.mxu0 %v5209
    %5633 = vmatpush.bf16.msra.mxu0 %v5201
    %5634 = vmatpush.bf16.msra.mxu0 %v5193
    %5635 = vmatpush.bf16.msra.mxu0 %v5185
    %5636 = vmatpush.bf16.msra.mxu0 %v5177
    %5637 = vmatpush.bf16.msra.mxu0 %v5169
    %5638 = vmatmul.bf16.gmra.mxu0 %v2058
    %v5639 = vpop.f32.mrf.mxu0
    %v5640 = vadd.f32 %v5627, %v5639
    %v5641 = vpop.f32.mrf.mxu0
    %5642 = vdwg.mxu0
    %5643 = vmatpush.bf16.msra.mxu0 %v5289
    %5644 = vmatpush.bf16.msra.mxu0 %v5281
    %5645 = vmatpush.bf16.msra.mxu0 %v5273
    %5646 = vmatpush.bf16.msra.mxu0 %v5265
    %5647 = vmatpush.bf16.msra.mxu0 %v5257
    %5648 = vmatpush.bf16.msra.mxu0 %v5249
    %5649 = vmatpush.bf16.msra.mxu0 %v5241
    %5650 = vmatpush.bf16.msra.mxu0 %v5233
    %5651 = vmatmul.bf16.gmra.mxu0 %v2059
    %v5652 = vpop.f32.mrf.mxu0
    %v5653 = vadd.f32 %v5640, %v5652
    %v5654 = vpop.f32.mrf.mxu0
    %5655 = vdwg.mxu0
    %5656 = vmatpush.bf16.msra.mxu0 %v5098
    %5657 = vmatpush.bf16.msra.mxu0 %v5090
    %5658 = vmatpush.bf16.msra.mxu0 %v5082
    %5659 = vmatpush.bf16.msra.mxu0 %v5074
    %5660 = vmatpush.bf16.msra.mxu0 %v5066
    %5661 = vmatpush.bf16.msra.mxu0 %v5058
    %5662 = vmatpush.bf16.msra.mxu0 %v5050
    %5663 = vmatpush.bf16.msra.mxu0 %v5042
    %5664 = vmatmul.bf16.gmra.mxu0 %v2056
    %v5665 = vpop.f32.mrf.mxu0
    %v5666 = vadd.f32 %v4009, %v5665
    %v5667 = vpop.f32.mrf.mxu0
    %5668 = vdwg.mxu0
    %5669 = vmatpush.bf16.msra.mxu0 %v5162
    %5670 = vmatpush.bf16.msra.mxu0 %v5154
    %5671 = vmatpush.bf16.msra.mxu0 %v5146
    %5672 = vmatpush.bf16.msra.mxu0 %v5138
    %5673 = vmatpush.bf16.msra.mxu0 %v5130
    %5674 = vmatpush.bf16.msra.mxu0 %v5122
    %5675 = vmatpush.bf16.msra.mxu0 %v5114
    %5676 = vmatpush.bf16.msra.mxu0 %v5106
    %5677 = vmatmul.bf16.gmra.mxu0 %v2057
    %v5678 = vpop.f32.mrf.mxu0
    %v5679 = vadd.f32 %v5666, %v5678
    %v5680 = vpop.f32.mrf.mxu0
    %5681 = vdwg.mxu0
    %5682 = vmatpush.bf16.msra.mxu0 %v5226
    %5683 = vmatpush.bf16.msra.mxu0 %v5218
    %5684 = vmatpush.bf16.msra.mxu0 %v5210
    %5685 = vmatpush.bf16.msra.mxu0 %v5202
    %5686 = vmatpush.bf16.msra.mxu0 %v5194
    %5687 = vmatpush.bf16.msra.mxu0 %v5186
    %5688 = vmatpush.bf16.msra.mxu0 %v5178
    %5689 = vmatpush.bf16.msra.mxu0 %v5170
    %5690 = vmatmul.bf16.gmra.mxu0 %v2058
    %v5691 = vpop.f32.mrf.mxu0
    %v5692 = vadd.f32 %v5679, %v5691
    %v5693 = vpop.f32.mrf.mxu0
    %5694 = vdwg.mxu0
    %5695 = vmatpush.bf16.msra.mxu0 %v5290
    %5696 = vmatpush.bf16.msra.mxu0 %v5282
    %5697 = vmatpush.bf16.msra.mxu0 %v5274
    %5698 = vmatpush.bf16.msra.mxu0 %v5266
    %5699 = vmatpush.bf16.msra.mxu0 %v5258
    %5700 = vmatpush.bf16.msra.mxu0 %v5250
    %5701 = vmatpush.bf16.msra.mxu0 %v5242
    %5702 = vmatpush.bf16.msra.mxu0 %v5234
    %5703 = vmatmul.bf16.gmra.mxu0 %v2059
    %v5704 = vpop.f32.mrf.mxu0
    %v5705 = vadd.f32 %v5692, %v5704
    %v5706 = vpop.f32.mrf.mxu0
    %5707 = vdwg.mxu0
    %5708 = vmatpush.bf16.msra.mxu0 %v5099
    %5709 = vmatpush.bf16.msra.mxu0 %v5091
    %5710 = vmatpush.bf16.msra.mxu0 %v5083
    %5711 = vmatpush.bf16.msra.mxu0 %v5075
    %5712 = vmatpush.bf16.msra.mxu0 %v5067
    %5713 = vmatpush.bf16.msra.mxu0 %v5059
    %5714 = vmatpush.bf16.msra.mxu0 %v5051
    %5715 = vmatpush.bf16.msra.mxu0 %v5043
    %5716 = vmatmul.bf16.gmra.mxu0 %v2056
    %v5717 = vpop.f32.mrf.mxu0
    %v5718 = vadd.f32 %v4061, %v5717
    %v5719 = vpop.f32.mrf.mxu0
    %5720 = vdwg.mxu0
    %5721 = vmatpush.bf16.msra.mxu0 %v5163
    %5722 = vmatpush.bf16.msra.mxu0 %v5155
    %5723 = vmatpush.bf16.msra.mxu0 %v5147
    %5724 = vmatpush.bf16.msra.mxu0 %v5139
    %5725 = vmatpush.bf16.msra.mxu0 %v5131
    %5726 = vmatpush.bf16.msra.mxu0 %v5123
    %5727 = vmatpush.bf16.msra.mxu0 %v5115
    %5728 = vmatpush.bf16.msra.mxu0 %v5107
    %5729 = vmatmul.bf16.gmra.mxu0 %v2057
    %v5730 = vpop.f32.mrf.mxu0
    %v5731 = vadd.f32 %v5718, %v5730
    %v5732 = vpop.f32.mrf.mxu0
    %5733 = vdwg.mxu0
    %5734 = vmatpush.bf16.msra.mxu0 %v5227
    %5735 = vmatpush.bf16.msra.mxu0 %v5219
    %5736 = vmatpush.bf16.msra.mxu0 %v5211
    %5737 = vmatpush.bf16.msra.mxu0 %v5203
    %5738 = vmatpush.bf16.msra.mxu0 %v5195
    %5739 = vmatpush.bf16.msra.mxu0 %v5187
    %5740 = vmatpush.bf16.msra.mxu0 %v5179
    %5741 = vmatpush.bf16.msra.mxu0 %v5171
    %5742 = vmatmul.bf16.gmra.mxu0 %v2058
    %v5743 = vpop.f32.mrf.mxu0
    %v5744 = vadd.f32 %v5731, %v5743
    %v5745 = vpop.f32.mrf.mxu0
    %5746 = vdwg.mxu0
    %5747 = vmatpush.bf16.msra.mxu0 %v5291
    %5748 = vmatpush.bf16.msra.mxu0 %v5283
    %5749 = vmatpush.bf16.msra.mxu0 %v5275
    %5750 = vmatpush.bf16.msra.mxu0 %v5267
    %5751 = vmatpush.bf16.msra.mxu0 %v5259
    %5752 = vmatpush.bf16.msra.mxu0 %v5251
    %5753 = vmatpush.bf16.msra.mxu0 %v5243
    %5754 = vmatpush.bf16.msra.mxu0 %v5235
    %5755 = vmatmul.bf16.gmra.mxu0 %v2059
    %v5756 = vpop.f32.mrf.mxu0
    %v5757 = vadd.f32 %v5744, %v5756
    %v5758 = vpop.f32.mrf.mxu0
    %5759 = vdwg.mxu0
    %5760 = vmatpush.bf16.msra.mxu0 %v5100
    %5761 = vmatpush.bf16.msra.mxu0 %v5092
    %5762 = vmatpush.bf16.msra.mxu0 %v5084
    %5763 = vmatpush.bf16.msra.mxu0 %v5076
    %5764 = vmatpush.bf16.msra.mxu0 %v5068
    %5765 = vmatpush.bf16.msra.mxu0 %v5060
    %5766 = vmatpush.bf16.msra.mxu0 %v5052
    %5767 = vmatpush.bf16.msra.mxu0 %v5044
    %5768 = vmatmul.bf16.gmra.mxu0 %v2056
    %v5769 = vpop.f32.mrf.mxu0
    %v5770 = vadd.f32 %v4113, %v5769
    %v5771 = vpop.f32.mrf.mxu0
    %5772 = vdwg.mxu0
    %5773 = vmatpush.bf16.msra.mxu0 %v5164
    %5774 = vmatpush.bf16.msra.mxu0 %v5156
    %5775 = vmatpush.bf16.msra.mxu0 %v5148
    %5776 = vmatpush.bf16.msra.mxu0 %v5140
    %5777 = vmatpush.bf16.msra.mxu0 %v5132
    %5778 = vmatpush.bf16.msra.mxu0 %v5124
    %5779 = vmatpush.bf16.msra.mxu0 %v5116
    %5780 = vmatpush.bf16.msra.mxu0 %v5108
    %5781 = vmatmul.bf16.gmra.mxu0 %v2057
    %v5782 = vpop.f32.mrf.mxu0
    %v5783 = vadd.f32 %v5770, %v5782
    %v5784 = vpop.f32.mrf.mxu0
    %5785 = vdwg.mxu0
    %5786 = vmatpush.bf16.msra.mxu0 %v5228
    %5787 = vmatpush.bf16.msra.mxu0 %v5220
    %5788 = vmatpush.bf16.msra.mxu0 %v5212
    %5789 = vmatpush.bf16.msra.mxu0 %v5204
    %5790 = vmatpush.bf16.msra.mxu0 %v5196
    %5791 = vmatpush.bf16.msra.mxu0 %v5188
    %5792 = vmatpush.bf16.msra.mxu0 %v5180
    %5793 = vmatpush.bf16.msra.mxu0 %v5172
    %5794 = vmatmul.bf16.gmra.mxu0 %v2058
    %v5795 = vpop.f32.mrf.mxu0
    %v5796 = vadd.f32 %v5783, %v5795
    %v5797 = vpop.f32.mrf.mxu0
    %5798 = vdwg.mxu0
    %5799 = vmatpush.bf16.msra.mxu0 %v5292
    %5800 = vmatpush.bf16.msra.mxu0 %v5284
    %5801 = vmatpush.bf16.msra.mxu0 %v5276
    %5802 = vmatpush.bf16.msra.mxu0 %v5268
    %5803 = vmatpush.bf16.msra.mxu0 %v5260
    %5804 = vmatpush.bf16.msra.mxu0 %v5252
    %5805 = vmatpush.bf16.msra.mxu0 %v5244
    %5806 = vmatpush.bf16.msra.mxu0 %v5236
    %5807 = vmatmul.bf16.gmra.mxu0 %v2059
    %v5808 = vpop.f32.mrf.mxu0
    %v5809 = vadd.f32 %v5796, %v5808
    %v5810 = vpop.f32.mrf.mxu0
    %5811 = vdwg.mxu0
    %5812 = vmatpush.bf16.msra.mxu0 %v5101
    %5813 = vmatpush.bf16.msra.mxu0 %v5093
    %5814 = vmatpush.bf16.msra.mxu0 %v5085
    %5815 = vmatpush.bf16.msra.mxu0 %v5077
    %5816 = vmatpush.bf16.msra.mxu0 %v5069
    %5817 = vmatpush.bf16.msra.mxu0 %v5061
    %5818 = vmatpush.bf16.msra.mxu0 %v5053
    %5819 = vmatpush.bf16.msra.mxu0 %v5045
    %5820 = vmatmul.bf16.gmra.mxu0 %v2056
    %v5821 = vpop.f32.mrf.mxu0
    %v5822 = vadd.f32 %v4165, %v5821
    %v5823 = vpop.f32.mrf.mxu0
    %5824 = vdwg.mxu0
    %5825 = vmatpush.bf16.msra.mxu0 %v5165
    %5826 = vmatpush.bf16.msra.mxu0 %v5157
    %5827 = vmatpush.bf16.msra.mxu0 %v5149
    %5828 = vmatpush.bf16.msra.mxu0 %v5141
    %5829 = vmatpush.bf16.msra.mxu0 %v5133
    %5830 = vmatpush.bf16.msra.mxu0 %v5125
    %5831 = vmatpush.bf16.msra.mxu0 %v5117
    %5832 = vmatpush.bf16.msra.mxu0 %v5109
    %5833 = vmatmul.bf16.gmra.mxu0 %v2057
    %v5834 = vpop.f32.mrf.mxu0
    %v5835 = vadd.f32 %v5822, %v5834
    %v5836 = vpop.f32.mrf.mxu0
    %5837 = vdwg.mxu0
    %5838 = vmatpush.bf16.msra.mxu0 %v5229
    %5839 = vmatpush.bf16.msra.mxu0 %v5221
    %5840 = vmatpush.bf16.msra.mxu0 %v5213
    %5841 = vmatpush.bf16.msra.mxu0 %v5205
    %5842 = vmatpush.bf16.msra.mxu0 %v5197
    %5843 = vmatpush.bf16.msra.mxu0 %v5189
    %5844 = vmatpush.bf16.msra.mxu0 %v5181
    %5845 = vmatpush.bf16.msra.mxu0 %v5173
    %5846 = vmatmul.bf16.gmra.mxu0 %v2058
    %v5847 = vpop.f32.mrf.mxu0
    %v5848 = vadd.f32 %v5835, %v5847
    %v5849 = vpop.f32.mrf.mxu0
    %5850 = vdwg.mxu0
    %5851 = vmatpush.bf16.msra.mxu0 %v5293
    %5852 = vmatpush.bf16.msra.mxu0 %v5285
    %5853 = vmatpush.bf16.msra.mxu0 %v5277
    %5854 = vmatpush.bf16.msra.mxu0 %v5269
    %5855 = vmatpush.bf16.msra.mxu0 %v5261
    %5856 = vmatpush.bf16.msra.mxu0 %v5253
    %5857 = vmatpush.bf16.msra.mxu0 %v5245
    %5858 = vmatpush.bf16.msra.mxu0 %v5237
    %5859 = vmatmul.bf16.gmra.mxu0 %v2059
    %v5860 = vpop.f32.mrf.mxu0
    %v5861 = vadd.f32 %v5848, %v5860
    %v5862 = vpop.f32.mrf.mxu0
    %5863 = vdwg.mxu0
    %5864 = vmatpush.bf16.msra.mxu0 %v5102
    %5865 = vmatpush.bf16.msra.mxu0 %v5094
    %5866 = vmatpush.bf16.msra.mxu0 %v5086
    %5867 = vmatpush.bf16.msra.mxu0 %v5078
    %5868 = vmatpush.bf16.msra.mxu0 %v5070
    %5869 = vmatpush.bf16.msra.mxu0 %v5062
    %5870 = vmatpush.bf16.msra.mxu0 %v5054
    %5871 = vmatpush.bf16.msra.mxu0 %v5046
    %5872 = vmatmul.bf16.gmra.mxu0 %v2056
    %v5873 = vpop.f32.mrf.mxu0
    %v5874 = vadd.f32 %v4217, %v5873
    %v5875 = vpop.f32.mrf.mxu0
    %5876 = vdwg.mxu0
    %5877 = vmatpush.bf16.msra.mxu0 %v5166
    %5878 = vmatpush.bf16.msra.mxu0 %v5158
    %5879 = vmatpush.bf16.msra.mxu0 %v5150
    %5880 = vmatpush.bf16.msra.mxu0 %v5142
    %5881 = vmatpush.bf16.msra.mxu0 %v5134
    %5882 = vmatpush.bf16.msra.mxu0 %v5126
    %5883 = vmatpush.bf16.msra.mxu0 %v5118
    %5884 = vmatpush.bf16.msra.mxu0 %v5110
    %5885 = vmatmul.bf16.gmra.mxu0 %v2057
    %v5886 = vpop.f32.mrf.mxu0
    %v5887 = vadd.f32 %v5874, %v5886
    %v5888 = vpop.f32.mrf.mxu0
    %5889 = vdwg.mxu0
    %5890 = vmatpush.bf16.msra.mxu0 %v5230
    %5891 = vmatpush.bf16.msra.mxu0 %v5222
    %5892 = vmatpush.bf16.msra.mxu0 %v5214
    %5893 = vmatpush.bf16.msra.mxu0 %v5206
    %5894 = vmatpush.bf16.msra.mxu0 %v5198
    %5895 = vmatpush.bf16.msra.mxu0 %v5190
    %5896 = vmatpush.bf16.msra.mxu0 %v5182
    %5897 = vmatpush.bf16.msra.mxu0 %v5174
    %5898 = vmatmul.bf16.gmra.mxu0 %v2058
    %v5899 = vpop.f32.mrf.mxu0
    %v5900 = vadd.f32 %v5887, %v5899
    %v5901 = vpop.f32.mrf.mxu0
    %5902 = vdwg.mxu0
    %5903 = vmatpush.bf16.msra.mxu0 %v5294
    %5904 = vmatpush.bf16.msra.mxu0 %v5286
    %5905 = vmatpush.bf16.msra.mxu0 %v5278
    %5906 = vmatpush.bf16.msra.mxu0 %v5270
    %5907 = vmatpush.bf16.msra.mxu0 %v5262
    %5908 = vmatpush.bf16.msra.mxu0 %v5254
    %5909 = vmatpush.bf16.msra.mxu0 %v5246
    %5910 = vmatpush.bf16.msra.mxu0 %v5238
    %5911 = vmatmul.bf16.gmra.mxu0 %v2059
    %v5912 = vpop.f32.mrf.mxu0
    %v5913 = vadd.f32 %v5900, %v5912
    %v5914 = vpop.f32.mrf.mxu0
    %5915 = vdwg.mxu0
    %5916 = vmatpush.bf16.msra.mxu0 %v5103
    %5917 = vmatpush.bf16.msra.mxu0 %v5095
    %5918 = vmatpush.bf16.msra.mxu0 %v5087
    %5919 = vmatpush.bf16.msra.mxu0 %v5079
    %5920 = vmatpush.bf16.msra.mxu0 %v5071
    %5921 = vmatpush.bf16.msra.mxu0 %v5063
    %5922 = vmatpush.bf16.msra.mxu0 %v5055
    %5923 = vmatpush.bf16.msra.mxu0 %v5047
    %5924 = vmatmul.bf16.gmra.mxu0 %v2056
    %v5925 = vpop.f32.mrf.mxu0
    %v5926 = vadd.f32 %v4269, %v5925
    %v5927 = vpop.f32.mrf.mxu0
    %5928 = vdwg.mxu0
    %5929 = vmatpush.bf16.msra.mxu0 %v5167
    %5930 = vmatpush.bf16.msra.mxu0 %v5159
    %5931 = vmatpush.bf16.msra.mxu0 %v5151
    %5932 = vmatpush.bf16.msra.mxu0 %v5143
    %5933 = vmatpush.bf16.msra.mxu0 %v5135
    %5934 = vmatpush.bf16.msra.mxu0 %v5127
    %5935 = vmatpush.bf16.msra.mxu0 %v5119
    %5936 = vmatpush.bf16.msra.mxu0 %v5111
    %5937 = vmatmul.bf16.gmra.mxu0 %v2057
    %v5938 = vpop.f32.mrf.mxu0
    %v5939 = vadd.f32 %v5926, %v5938
    %v5940 = vpop.f32.mrf.mxu0
    %5941 = vdwg.mxu0
    %5942 = vmatpush.bf16.msra.mxu0 %v5231
    %5943 = vmatpush.bf16.msra.mxu0 %v5223
    %5944 = vmatpush.bf16.msra.mxu0 %v5215
    %5945 = vmatpush.bf16.msra.mxu0 %v5207
    %5946 = vmatpush.bf16.msra.mxu0 %v5199
    %5947 = vmatpush.bf16.msra.mxu0 %v5191
    %5948 = vmatpush.bf16.msra.mxu0 %v5183
    %5949 = vmatpush.bf16.msra.mxu0 %v5175
    %5950 = vmatmul.bf16.gmra.mxu0 %v2058
    %v5951 = vpop.f32.mrf.mxu0
    %v5952 = vadd.f32 %v5939, %v5951
    %v5953 = vpop.f32.mrf.mxu0
    %5954 = vdwg.mxu0
    %5955 = vmatpush.bf16.msra.mxu0 %v5295
    %5956 = vmatpush.bf16.msra.mxu0 %v5287
    %5957 = vmatpush.bf16.msra.mxu0 %v5279
    %5958 = vmatpush.bf16.msra.mxu0 %v5271
    %5959 = vmatpush.bf16.msra.mxu0 %v5263
    %5960 = vmatpush.bf16.msra.mxu0 %v5255
    %5961 = vmatpush.bf16.msra.mxu0 %v5247
    %5962 = vmatpush.bf16.msra.mxu0 %v5239
    %5963 = vmatmul.bf16.gmra.mxu0 %v2059
    %v5964 = vpop.f32.mrf.mxu0
    %v5965 = vadd.f32 %v5952, %v5964
    %v5966 = vpop.f32.mrf.mxu0
    %5967 = vdwg.mxu0
    %v5968 = vld [vmem:[%s16] sm:$0xff]
    %v5970 = vperm.slane %v5968, 0
    %v5971 = vperm.slane %v5968, 1
    %v5972 = vperm.slane %v5968, 2
    %v5973 = vperm.slane %v5968, 3
    %v5974 = vperm.slane %v5968, 4
    %v5975 = vperm.slane %v5968, 5
    %v5976 = vperm.slane %v5968, 6
    %v5977 = vperm.slane %v5968, 7
    %v5986 = vadd.f32 %v5601, %v5970
    %v5987 = vadd.f32 %v5653, %v5971
    %v5988 = vadd.f32 %v5705, %v5972
    %v5989 = vadd.f32 %v5757, %v5973
    %v5990 = vadd.f32 %v5809, %v5974
    %v5991 = vadd.f32 %v5861, %v5975
    %v5992 = vadd.f32 %v5913, %v5976
    %v5993 = vadd.f32 %v5965, %v5977
    %vm5994 = vcmp.gt.f32.partialorder %v5986, 0.0
    %vm5995 = vcmp.gt.f32.partialorder %v5987, 0.0
    %vm5996 = vcmp.gt.f32.partialorder %v5988, 0.0
    %vm5997 = vcmp.gt.f32.partialorder %v5989, 0.0
    %vm5998 = vcmp.gt.f32.partialorder %v5990, 0.0
    %vm5999 = vcmp.gt.f32.partialorder %v5991, 0.0
    %vm6000 = vcmp.gt.f32.partialorder %v5992, 0.0
    %vm6001 = vcmp.gt.f32.partialorder %v5993, 0.0
    %v6002 = vmul.f32 %v5986, 0.01
    %v6003 = vmul.f32 %v5987, 0.01
    %v6004 = vmul.f32 %v5988, 0.01
    %v6005 = vmul.f32 %v5989, 0.01
    %v6006 = vmul.f32 %v5990, 0.01
    %v6007 = vmul.f32 %v5991, 0.01
    %v6008 = vmul.f32 %v5992, 0.01
    %v6009 = vmul.f32 %v5993, 0.01
    %v6010 = vsel %vm5994, %v5986, %v6002
    %v6011 = vsel %vm5995, %v5987, %v6003
    %v6012 = vsel %vm5996, %v5988, %v6004
    %v6013 = vsel %vm5997, %v5989, %v6005
    %v6014 = vsel %vm5998, %v5990, %v6006
    %v6015 = vsel %vm5999, %v5991, %v6007
    %v6016 = vsel %vm6000, %v5992, %v6008
    %v6017 = vsel %vm6001, %v5993, %v6009
    %v6018 = vpack.c.bf16 %v6010, %v6010
    %v6019 = vpack.c.bf16 %v6011, %v6011
    %v6020 = vpack.c.bf16 %v6012, %v6012
    %v6021 = vpack.c.bf16 %v6013, %v6013
    %v6022 = vpack.c.bf16 %v6014, %v6014
    %v6023 = vpack.c.bf16 %v6015, %v6015
    %v6024 = vpack.c.bf16 %v6016, %v6016
    %v6025 = vpack.c.bf16 %v6017, %v6017
    %v6026 = vld [vmem:[#allocation15] sm:$0xff]
    %v6027 = vld [vmem:[#allocation15 + $0x8] sm:$0xff]
    %v6028 = vld [vmem:[#allocation15 + $0x10] sm:$0xff]
    %v6029 = vld [vmem:[#allocation15 + $0x18] sm:$0xff]
    %v6030 = vld [vmem:[#allocation15 + $0x20] sm:$0xff]
    %v6031 = vld [vmem:[#allocation15 + $0x28] sm:$0xff]
    %v6032 = vld [vmem:[#allocation15 + $0x30] sm:$0xff]
    %v6033 = vld [vmem:[#allocation15 + $0x38] sm:$0xff]
    %v6034 = vld [vmem:[#allocation15 + $0x40] sm:$0xff]
    %v6035 = vld [vmem:[#allocation15 + $0x48] sm:$0xff]
    %v6036 = vld [vmem:[#allocation15 + $0x50] sm:$0xff]
    %v6037 = vld [vmem:[#allocation15 + $0x58] sm:$0xff]
    %v6038 = vld [vmem:[#allocation15 + $0x60] sm:$0xff]
    %v6039 = vld [vmem:[#allocation15 + $0x68] sm:$0xff]
    %v6040 = vld [vmem:[#allocation15 + $0x70] sm:$0xff]
    %v6041 = vld [vmem:[#allocation15 + $0x78] sm:$0xff]
    %v6042 = vld [vmem:[#allocation15 + $0x80] sm:$0xff]
    %v6043 = vld [vmem:[#allocation15 + $0x88] sm:$0xff]
    %v6044 = vld [vmem:[#allocation15 + $0x90] sm:$0xff]
    %v6045 = vld [vmem:[#allocation15 + $0x98] sm:$0xff]
    %v6046 = vld [vmem:[#allocation15 + $0xa0] sm:$0xff]
    %v6047 = vld [vmem:[#allocation15 + $0xa8] sm:$0xff]
    %v6048 = vld [vmem:[#allocation15 + $0xb0] sm:$0xff]
    %v6049 = vld [vmem:[#allocation15 + $0xb8] sm:$0xff]
    %v6050 = vld [vmem:[#allocation15 + $0xc0] sm:$0xff]
    %v6051 = vld [vmem:[#allocation15 + $0xc8] sm:$0xff]
    %v6052 = vld [vmem:[#allocation15 + $0xd0] sm:$0xff]
    %v6053 = vld [vmem:[#allocation15 + $0xd8] sm:$0xff]
    %v6054 = vld [vmem:[#allocation15 + $0xe0] sm:$0xff]
    %v6055 = vld [vmem:[#allocation15 + $0xe8] sm:$0xff]
    %v6056 = vld [vmem:[#allocation15 + $0xf0] sm:$0xff]
    %v6057 = vld [vmem:[#allocation15 + $0xf8] sm:$0xff]
    %v6058 = vld [vmem:[#allocation15 + $0x100] sm:$0xff]
    %v6059 = vld [vmem:[#allocation15 + $0x108] sm:$0xff]
    %v6060 = vld [vmem:[#allocation15 + $0x110] sm:$0xff]
    %v6061 = vld [vmem:[#allocation15 + $0x118] sm:$0xff]
    %v6062 = vld [vmem:[#allocation15 + $0x120] sm:$0xff]
    %v6063 = vld [vmem:[#allocation15 + $0x128] sm:$0xff]
    %v6064 = vld [vmem:[#allocation15 + $0x130] sm:$0xff]
    %v6065 = vld [vmem:[#allocation15 + $0x138] sm:$0xff]
    %v6066 = vld [vmem:[#allocation15 + $0x140] sm:$0xff]
    %v6067 = vld [vmem:[#allocation15 + $0x148] sm:$0xff]
    %v6068 = vld [vmem:[#allocation15 + $0x150] sm:$0xff]
    %v6069 = vld [vmem:[#allocation15 + $0x158] sm:$0xff]
    %v6070 = vld [vmem:[#allocation15 + $0x160] sm:$0xff]
    %v6071 = vld [vmem:[#allocation15 + $0x168] sm:$0xff]
    %v6072 = vld [vmem:[#allocation15 + $0x170] sm:$0xff]
    %v6073 = vld [vmem:[#allocation15 + $0x178] sm:$0xff]
    %v6074 = vld [vmem:[#allocation15 + $0x180] sm:$0xff]
    %v6075 = vld [vmem:[#allocation15 + $0x188] sm:$0xff]
    %v6076 = vld [vmem:[#allocation15 + $0x190] sm:$0xff]
    %v6077 = vld [vmem:[#allocation15 + $0x198] sm:$0xff]
    %v6078 = vld [vmem:[#allocation15 + $0x1a0] sm:$0xff]
    %v6079 = vld [vmem:[#allocation15 + $0x1a8] sm:$0xff]
    %v6080 = vld [vmem:[#allocation15 + $0x1b0] sm:$0xff]
    %v6081 = vld [vmem:[#allocation15 + $0x1b8] sm:$0xff]
    %v6082 = vld [vmem:[#allocation15 + $0x1c0] sm:$0xff]
    %v6083 = vld [vmem:[#allocation15 + $0x1c8] sm:$0xff]
    %v6084 = vld [vmem:[#allocation15 + $0x1d0] sm:$0xff]
    %v6085 = vld [vmem:[#allocation15 + $0x1d8] sm:$0xff]
    %v6086 = vld [vmem:[#allocation15 + $0x1e0] sm:$0xff]
    %v6087 = vld [vmem:[#allocation15 + $0x1e8] sm:$0xff]
    %v6088 = vld [vmem:[#allocation15 + $0x1f0] sm:$0xff]
    %v6089 = vld [vmem:[#allocation15 + $0x1f8] sm:$0xff]
    %v6090 = vld [vmem:[#allocation15 + $0x200] sm:$0xff]
    %v6091 = vld [vmem:[#allocation15 + $0x208] sm:$0xff]
    %v6092 = vld [vmem:[#allocation15 + $0x210] sm:$0xff]
    %v6093 = vld [vmem:[#allocation15 + $0x218] sm:$0xff]
    %v6094 = vld [vmem:[#allocation15 + $0x220] sm:$0xff]
    %v6095 = vld [vmem:[#allocation15 + $0x228] sm:$0xff]
    %v6096 = vld [vmem:[#allocation15 + $0x230] sm:$0xff]
    %v6097 = vld [vmem:[#allocation15 + $0x238] sm:$0xff]
    %v6098 = vld [vmem:[#allocation15 + $0x240] sm:$0xff]
    %v6099 = vld [vmem:[#allocation15 + $0x248] sm:$0xff]
    %v6100 = vld [vmem:[#allocation15 + $0x250] sm:$0xff]
    %v6101 = vld [vmem:[#allocation15 + $0x258] sm:$0xff]
    %v6102 = vld [vmem:[#allocation15 + $0x260] sm:$0xff]
    %v6103 = vld [vmem:[#allocation15 + $0x268] sm:$0xff]
    %v6104 = vld [vmem:[#allocation15 + $0x270] sm:$0xff]
    %v6105 = vld [vmem:[#allocation15 + $0x278] sm:$0xff]
    %v6106 = vld [vmem:[#allocation15 + $0x280] sm:$0xff]
    %v6107 = vld [vmem:[#allocation15 + $0x288] sm:$0xff]
    %v6108 = vld [vmem:[#allocation15 + $0x290] sm:$0xff]
    %v6109 = vld [vmem:[#allocation15 + $0x298] sm:$0xff]
    %v6110 = vld [vmem:[#allocation15 + $0x2a0] sm:$0xff]
    %v6111 = vld [vmem:[#allocation15 + $0x2a8] sm:$0xff]
    %v6112 = vld [vmem:[#allocation15 + $0x2b0] sm:$0xff]
    %v6113 = vld [vmem:[#allocation15 + $0x2b8] sm:$0xff]
    %v6114 = vld [vmem:[#allocation15 + $0x2c0] sm:$0xff]
    %v6115 = vld [vmem:[#allocation15 + $0x2c8] sm:$0xff]
    %v6116 = vld [vmem:[#allocation15 + $0x2d0] sm:$0xff]
    %v6117 = vld [vmem:[#allocation15 + $0x2d8] sm:$0xff]
    %v6118 = vld [vmem:[#allocation15 + $0x2e0] sm:$0xff]
    %v6119 = vld [vmem:[#allocation15 + $0x2e8] sm:$0xff]
    %v6120 = vld [vmem:[#allocation15 + $0x2f0] sm:$0xff]
    %v6121 = vld [vmem:[#allocation15 + $0x2f8] sm:$0xff]
    %v6122 = vld [vmem:[#allocation15 + $0x300] sm:$0xff]
    %v6123 = vld [vmem:[#allocation15 + $0x308] sm:$0xff]
    %v6124 = vld [vmem:[#allocation15 + $0x310] sm:$0xff]
    %v6125 = vld [vmem:[#allocation15 + $0x318] sm:$0xff]
    %v6126 = vld [vmem:[#allocation15 + $0x320] sm:$0xff]
    %v6127 = vld [vmem:[#allocation15 + $0x328] sm:$0xff]
    %v6128 = vld [vmem:[#allocation15 + $0x330] sm:$0xff]
    %v6129 = vld [vmem:[#allocation15 + $0x338] sm:$0xff]
    %v6130 = vld [vmem:[#allocation15 + $0x340] sm:$0xff]
    %v6131 = vld [vmem:[#allocation15 + $0x348] sm:$0xff]
    %v6132 = vld [vmem:[#allocation15 + $0x350] sm:$0xff]
    %v6133 = vld [vmem:[#allocation15 + $0x358] sm:$0xff]
    %v6134 = vld [vmem:[#allocation15 + $0x360] sm:$0xff]
    %v6135 = vld [vmem:[#allocation15 + $0x368] sm:$0xff]
    %v6136 = vld [vmem:[#allocation15 + $0x370] sm:$0xff]
    %v6137 = vld [vmem:[#allocation15 + $0x378] sm:$0xff]
    %v6138 = vld [vmem:[#allocation15 + $0x380] sm:$0xff]
    %v6139 = vld [vmem:[#allocation15 + $0x388] sm:$0xff]
    %v6140 = vld [vmem:[#allocation15 + $0x390] sm:$0xff]
    %v6141 = vld [vmem:[#allocation15 + $0x398] sm:$0xff]
    %v6142 = vld [vmem:[#allocation15 + $0x3a0] sm:$0xff]
    %v6143 = vld [vmem:[#allocation15 + $0x3a8] sm:$0xff]
    %v6144 = vld [vmem:[#allocation15 + $0x3b0] sm:$0xff]
    %v6145 = vld [vmem:[#allocation15 + $0x3b8] sm:$0xff]
    %v6146 = vld [vmem:[#allocation15 + $0x3c0] sm:$0xff]
    %v6147 = vld [vmem:[#allocation15 + $0x3c8] sm:$0xff]
    %v6148 = vld [vmem:[#allocation15 + $0x3d0] sm:$0xff]
    %v6149 = vld [vmem:[#allocation15 + $0x3d8] sm:$0xff]
    %v6150 = vld [vmem:[#allocation15 + $0x3e0] sm:$0xff]
    %v6151 = vld [vmem:[#allocation15 + $0x3e8] sm:$0xff]
    %v6152 = vld [vmem:[#allocation15 + $0x3f0] sm:$0xff]
    %v6153 = vld [vmem:[#allocation15 + $0x3f8] sm:$0xff]
    %v6154 = vld [vmem:[#allocation15 + $0x400] sm:$0xff]
    %v6155 = vld [vmem:[#allocation15 + $0x408] sm:$0xff]
    %v6156 = vld [vmem:[#allocation15 + $0x410] sm:$0xff]
    %v6157 = vld [vmem:[#allocation15 + $0x418] sm:$0xff]
    %v6158 = vld [vmem:[#allocation15 + $0x420] sm:$0xff]
    %v6159 = vld [vmem:[#allocation15 + $0x428] sm:$0xff]
    %v6160 = vld [vmem:[#allocation15 + $0x430] sm:$0xff]
    %v6161 = vld [vmem:[#allocation15 + $0x438] sm:$0xff]
    %v6162 = vld [vmem:[#allocation15 + $0x440] sm:$0xff]
    %v6163 = vld [vmem:[#allocation15 + $0x448] sm:$0xff]
    %v6164 = vld [vmem:[#allocation15 + $0x450] sm:$0xff]
    %v6165 = vld [vmem:[#allocation15 + $0x458] sm:$0xff]
    %v6166 = vld [vmem:[#allocation15 + $0x460] sm:$0xff]
    %v6167 = vld [vmem:[#allocation15 + $0x468] sm:$0xff]
    %v6168 = vld [vmem:[#allocation15 + $0x470] sm:$0xff]
    %v6169 = vld [vmem:[#allocation15 + $0x478] sm:$0xff]
    %v6170 = vld [vmem:[#allocation15 + $0x480] sm:$0xff]
    %v6171 = vld [vmem:[#allocation15 + $0x488] sm:$0xff]
    %v6172 = vld [vmem:[#allocation15 + $0x490] sm:$0xff]
    %v6173 = vld [vmem:[#allocation15 + $0x498] sm:$0xff]
    %v6174 = vld [vmem:[#allocation15 + $0x4a0] sm:$0xff]
    %v6175 = vld [vmem:[#allocation15 + $0x4a8] sm:$0xff]
    %v6176 = vld [vmem:[#allocation15 + $0x4b0] sm:$0xff]
    %v6177 = vld [vmem:[#allocation15 + $0x4b8] sm:$0xff]
    %v6178 = vld [vmem:[#allocation15 + $0x4c0] sm:$0xff]
    %v6179 = vld [vmem:[#allocation15 + $0x4c8] sm:$0xff]
    %v6180 = vld [vmem:[#allocation15 + $0x4d0] sm:$0xff]
    %v6181 = vld [vmem:[#allocation15 + $0x4d8] sm:$0xff]
    %v6182 = vld [vmem:[#allocation15 + $0x4e0] sm:$0xff]
    %v6183 = vld [vmem:[#allocation15 + $0x4e8] sm:$0xff]
    %v6184 = vld [vmem:[#allocation15 + $0x4f0] sm:$0xff]
    %v6185 = vld [vmem:[#allocation15 + $0x4f8] sm:$0xff]
    %v6186 = vld [vmem:[#allocation15 + $0x500] sm:$0xff]
    %v6187 = vld [vmem:[#allocation15 + $0x508] sm:$0xff]
    %v6188 = vld [vmem:[#allocation15 + $0x510] sm:$0xff]
    %v6189 = vld [vmem:[#allocation15 + $0x518] sm:$0xff]
    %v6190 = vld [vmem:[#allocation15 + $0x520] sm:$0xff]
    %v6191 = vld [vmem:[#allocation15 + $0x528] sm:$0xff]
    %v6192 = vld [vmem:[#allocation15 + $0x530] sm:$0xff]
    %v6193 = vld [vmem:[#allocation15 + $0x538] sm:$0xff]
    %v6194 = vld [vmem:[#allocation15 + $0x540] sm:$0xff]
    %v6195 = vld [vmem:[#allocation15 + $0x548] sm:$0xff]
    %v6196 = vld [vmem:[#allocation15 + $0x550] sm:$0xff]
    %v6197 = vld [vmem:[#allocation15 + $0x558] sm:$0xff]
    %v6198 = vld [vmem:[#allocation15 + $0x560] sm:$0xff]
    %v6199 = vld [vmem:[#allocation15 + $0x568] sm:$0xff]
    %v6200 = vld [vmem:[#allocation15 + $0x570] sm:$0xff]
    %v6201 = vld [vmem:[#allocation15 + $0x578] sm:$0xff]
    %v6202 = vld [vmem:[#allocation15 + $0x580] sm:$0xff]
    %v6203 = vld [vmem:[#allocation15 + $0x588] sm:$0xff]
    %v6204 = vld [vmem:[#allocation15 + $0x590] sm:$0xff]
    %v6205 = vld [vmem:[#allocation15 + $0x598] sm:$0xff]
    %v6206 = vld [vmem:[#allocation15 + $0x5a0] sm:$0xff]
    %v6207 = vld [vmem:[#allocation15 + $0x5a8] sm:$0xff]
    %v6208 = vld [vmem:[#allocation15 + $0x5b0] sm:$0xff]
    %v6209 = vld [vmem:[#allocation15 + $0x5b8] sm:$0xff]
    %v6210 = vld [vmem:[#allocation15 + $0x5c0] sm:$0xff]
    %v6211 = vld [vmem:[#allocation15 + $0x5c8] sm:$0xff]
    %v6212 = vld [vmem:[#allocation15 + $0x5d0] sm:$0xff]
    %v6213 = vld [vmem:[#allocation15 + $0x5d8] sm:$0xff]
    %v6214 = vld [vmem:[#allocation15 + $0x5e0] sm:$0xff]
    %v6215 = vld [vmem:[#allocation15 + $0x5e8] sm:$0xff]
    %v6216 = vld [vmem:[#allocation15 + $0x5f0] sm:$0xff]
    %v6217 = vld [vmem:[#allocation15 + $0x5f8] sm:$0xff]
    %v6218 = vld [vmem:[#allocation15 + $0x600] sm:$0xff]
    %v6219 = vld [vmem:[#allocation15 + $0x608] sm:$0xff]
    %v6220 = vld [vmem:[#allocation15 + $0x610] sm:$0xff]
    %v6221 = vld [vmem:[#allocation15 + $0x618] sm:$0xff]
    %v6222 = vld [vmem:[#allocation15 + $0x620] sm:$0xff]
    %v6223 = vld [vmem:[#allocation15 + $0x628] sm:$0xff]
    %v6224 = vld [vmem:[#allocation15 + $0x630] sm:$0xff]
    %v6225 = vld [vmem:[#allocation15 + $0x638] sm:$0xff]
    %v6226 = vld [vmem:[#allocation15 + $0x640] sm:$0xff]
    %v6227 = vld [vmem:[#allocation15 + $0x648] sm:$0xff]
    %v6228 = vld [vmem:[#allocation15 + $0x650] sm:$0xff]
    %v6229 = vld [vmem:[#allocation15 + $0x658] sm:$0xff]
    %v6230 = vld [vmem:[#allocation15 + $0x660] sm:$0xff]
    %v6231 = vld [vmem:[#allocation15 + $0x668] sm:$0xff]
    %v6232 = vld [vmem:[#allocation15 + $0x670] sm:$0xff]
    %v6233 = vld [vmem:[#allocation15 + $0x678] sm:$0xff]
    %v6234 = vld [vmem:[#allocation15 + $0x680] sm:$0xff]
    %v6235 = vld [vmem:[#allocation15 + $0x688] sm:$0xff]
    %v6236 = vld [vmem:[#allocation15 + $0x690] sm:$0xff]
    %v6237 = vld [vmem:[#allocation15 + $0x698] sm:$0xff]
    %v6238 = vld [vmem:[#allocation15 + $0x6a0] sm:$0xff]
    %v6239 = vld [vmem:[#allocation15 + $0x6a8] sm:$0xff]
    %v6240 = vld [vmem:[#allocation15 + $0x6b0] sm:$0xff]
    %v6241 = vld [vmem:[#allocation15 + $0x6b8] sm:$0xff]
    %v6242 = vld [vmem:[#allocation15 + $0x6c0] sm:$0xff]
    %v6243 = vld [vmem:[#allocation15 + $0x6c8] sm:$0xff]
    %v6244 = vld [vmem:[#allocation15 + $0x6d0] sm:$0xff]
    %v6245 = vld [vmem:[#allocation15 + $0x6d8] sm:$0xff]
    %v6246 = vld [vmem:[#allocation15 + $0x6e0] sm:$0xff]
    %v6247 = vld [vmem:[#allocation15 + $0x6e8] sm:$0xff]
    %v6248 = vld [vmem:[#allocation15 + $0x6f0] sm:$0xff]
    %v6249 = vld [vmem:[#allocation15 + $0x6f8] sm:$0xff]
    %v6250 = vld [vmem:[#allocation15 + $0x700] sm:$0xff]
    %v6251 = vld [vmem:[#allocation15 + $0x708] sm:$0xff]
    %v6252 = vld [vmem:[#allocation15 + $0x710] sm:$0xff]
    %v6253 = vld [vmem:[#allocation15 + $0x718] sm:$0xff]
    %v6254 = vld [vmem:[#allocation15 + $0x720] sm:$0xff]
    %v6255 = vld [vmem:[#allocation15 + $0x728] sm:$0xff]
    %v6256 = vld [vmem:[#allocation15 + $0x730] sm:$0xff]
    %v6257 = vld [vmem:[#allocation15 + $0x738] sm:$0xff]
    %v6258 = vld [vmem:[#allocation15 + $0x740] sm:$0xff]
    %v6259 = vld [vmem:[#allocation15 + $0x748] sm:$0xff]
    %v6260 = vld [vmem:[#allocation15 + $0x750] sm:$0xff]
    %v6261 = vld [vmem:[#allocation15 + $0x758] sm:$0xff]
    %v6262 = vld [vmem:[#allocation15 + $0x760] sm:$0xff]
    %v6263 = vld [vmem:[#allocation15 + $0x768] sm:$0xff]
    %v6264 = vld [vmem:[#allocation15 + $0x770] sm:$0xff]
    %v6265 = vld [vmem:[#allocation15 + $0x778] sm:$0xff]
    %v6266 = vld [vmem:[#allocation15 + $0x780] sm:$0xff]
    %v6267 = vld [vmem:[#allocation15 + $0x788] sm:$0xff]
    %v6268 = vld [vmem:[#allocation15 + $0x790] sm:$0xff]
    %v6269 = vld [vmem:[#allocation15 + $0x798] sm:$0xff]
    %v6270 = vld [vmem:[#allocation15 + $0x7a0] sm:$0xff]
    %v6271 = vld [vmem:[#allocation15 + $0x7a8] sm:$0xff]
    %v6272 = vld [vmem:[#allocation15 + $0x7b0] sm:$0xff]
    %v6273 = vld [vmem:[#allocation15 + $0x7b8] sm:$0xff]
    %v6274 = vld [vmem:[#allocation15 + $0x7c0] sm:$0xff]
    %v6275 = vld [vmem:[#allocation15 + $0x7c8] sm:$0xff]
    %v6276 = vld [vmem:[#allocation15 + $0x7d0] sm:$0xff]
    %v6277 = vld [vmem:[#allocation15 + $0x7d8] sm:$0xff]
    %v6278 = vld [vmem:[#allocation15 + $0x7e0] sm:$0xff]
    %v6279 = vld [vmem:[#allocation15 + $0x7e8] sm:$0xff]
    %v6280 = vld [vmem:[#allocation15 + $0x7f0] sm:$0xff]
    %v6281 = vld [vmem:[#allocation15 + $0x7f8] sm:$0xff]
    %v6282 = vld [vmem:[%s18] sm:$0xf]
    %v6284 = vperm.slane %v6282, 0
    %v6285 = vperm.slane %v6282, 1
    %v6286 = vperm.slane %v6282, 2
    %v6287 = vperm.slane %v6282, 3
    %v6548 = vunpack.c.l.b16 %v6026
    %v6549 = vunpack.c.h.b16 %v6026
    %v6550 = vunpack.c.l.b16 %v6027
    %v6551 = vunpack.c.h.b16 %v6027
    %v6552 = vunpack.c.l.b16 %v6028
    %v6553 = vunpack.c.h.b16 %v6028
    %v6554 = vunpack.c.l.b16 %v6029
    %v6555 = vunpack.c.h.b16 %v6029
    %v6556 = vunpack.c.l.b16 %v6030
    %v6557 = vunpack.c.h.b16 %v6030
    %v6558 = vunpack.c.l.b16 %v6031
    %v6559 = vunpack.c.h.b16 %v6031
    %v6560 = vunpack.c.l.b16 %v6032
    %v6561 = vunpack.c.h.b16 %v6032
    %v6562 = vunpack.c.l.b16 %v6033
    %v6563 = vunpack.c.h.b16 %v6033
    %v6564 = vunpack.c.l.b16 %v6034
    %v6565 = vunpack.c.h.b16 %v6034
    %v6566 = vunpack.c.l.b16 %v6035
    %v6567 = vunpack.c.h.b16 %v6035
    %v6568 = vunpack.c.l.b16 %v6036
    %v6569 = vunpack.c.h.b16 %v6036
    %v6570 = vunpack.c.l.b16 %v6037
    %v6571 = vunpack.c.h.b16 %v6037
    %v6572 = vunpack.c.l.b16 %v6038
    %v6573 = vunpack.c.h.b16 %v6038
    %v6574 = vunpack.c.l.b16 %v6039
    %v6575 = vunpack.c.h.b16 %v6039
    %v6576 = vunpack.c.l.b16 %v6040
    %v6577 = vunpack.c.h.b16 %v6040
    %v6578 = vunpack.c.l.b16 %v6041
    %v6579 = vunpack.c.h.b16 %v6041
    %v6580 = vunpack.c.l.b16 %v6042
    %v6581 = vunpack.c.h.b16 %v6042
    %v6582 = vunpack.c.l.b16 %v6043
    %v6583 = vunpack.c.h.b16 %v6043
    %v6584 = vunpack.c.l.b16 %v6044
    %v6585 = vunpack.c.h.b16 %v6044
    %v6586 = vunpack.c.l.b16 %v6045
    %v6587 = vunpack.c.h.b16 %v6045
    %v6588 = vunpack.c.l.b16 %v6046
    %v6589 = vunpack.c.h.b16 %v6046
    %v6590 = vunpack.c.l.b16 %v6047
    %v6591 = vunpack.c.h.b16 %v6047
    %v6592 = vunpack.c.l.b16 %v6048
    %v6593 = vunpack.c.h.b16 %v6048
    %v6594 = vunpack.c.l.b16 %v6049
    %v6595 = vunpack.c.h.b16 %v6049
    %v6596 = vunpack.c.l.b16 %v6050
    %v6597 = vunpack.c.h.b16 %v6050
    %v6598 = vunpack.c.l.b16 %v6051
    %v6599 = vunpack.c.h.b16 %v6051
    %v6600 = vunpack.c.l.b16 %v6052
    %v6601 = vunpack.c.h.b16 %v6052
    %v6602 = vunpack.c.l.b16 %v6053
    %v6603 = vunpack.c.h.b16 %v6053
    %v6604 = vunpack.c.l.b16 %v6054
    %v6605 = vunpack.c.h.b16 %v6054
    %v6606 = vunpack.c.l.b16 %v6055
    %v6607 = vunpack.c.h.b16 %v6055
    %v6608 = vunpack.c.l.b16 %v6056
    %v6609 = vunpack.c.h.b16 %v6056
    %v6610 = vunpack.c.l.b16 %v6057
    %v6611 = vunpack.c.h.b16 %v6057
    %v6612 = vunpack.c.l.b16 %v6058
    %v6613 = vunpack.c.h.b16 %v6058
    %v6614 = vunpack.c.l.b16 %v6059
    %v6615 = vunpack.c.h.b16 %v6059
    %v6616 = vunpack.c.l.b16 %v6060
    %v6617 = vunpack.c.h.b16 %v6060
    %v6618 = vunpack.c.l.b16 %v6061
    %v6619 = vunpack.c.h.b16 %v6061
    %v6620 = vunpack.c.l.b16 %v6062
    %v6621 = vunpack.c.h.b16 %v6062
    %v6622 = vunpack.c.l.b16 %v6063
    %v6623 = vunpack.c.h.b16 %v6063
    %v6624 = vunpack.c.l.b16 %v6064
    %v6625 = vunpack.c.h.b16 %v6064
    %v6626 = vunpack.c.l.b16 %v6065
    %v6627 = vunpack.c.h.b16 %v6065
    %v6628 = vunpack.c.l.b16 %v6066
    %v6629 = vunpack.c.h.b16 %v6066
    %v6630 = vunpack.c.l.b16 %v6067
    %v6631 = vunpack.c.h.b16 %v6067
    %v6632 = vunpack.c.l.b16 %v6068
    %v6633 = vunpack.c.h.b16 %v6068
    %v6634 = vunpack.c.l.b16 %v6069
    %v6635 = vunpack.c.h.b16 %v6069
    %v6636 = vunpack.c.l.b16 %v6070
    %v6637 = vunpack.c.h.b16 %v6070
    %v6638 = vunpack.c.l.b16 %v6071
    %v6639 = vunpack.c.h.b16 %v6071
    %v6640 = vunpack.c.l.b16 %v6072
    %v6641 = vunpack.c.h.b16 %v6072
    %v6642 = vunpack.c.l.b16 %v6073
    %v6643 = vunpack.c.h.b16 %v6073
    %v6644 = vunpack.c.l.b16 %v6074
    %v6645 = vunpack.c.h.b16 %v6074
    %v6646 = vunpack.c.l.b16 %v6075
    %v6647 = vunpack.c.h.b16 %v6075
    %v6648 = vunpack.c.l.b16 %v6076
    %v6649 = vunpack.c.h.b16 %v6076
    %v6650 = vunpack.c.l.b16 %v6077
    %v6651 = vunpack.c.h.b16 %v6077
    %v6652 = vunpack.c.l.b16 %v6078
    %v6653 = vunpack.c.h.b16 %v6078
    %v6654 = vunpack.c.l.b16 %v6079
    %v6655 = vunpack.c.h.b16 %v6079
    %v6656 = vunpack.c.l.b16 %v6080
    %v6657 = vunpack.c.h.b16 %v6080
    %v6658 = vunpack.c.l.b16 %v6081
    %v6659 = vunpack.c.h.b16 %v6081
    %v6660 = vunpack.c.l.b16 %v6082
    %v6661 = vunpack.c.h.b16 %v6082
    %v6662 = vunpack.c.l.b16 %v6083
    %v6663 = vunpack.c.h.b16 %v6083
    %v6664 = vunpack.c.l.b16 %v6084
    %v6665 = vunpack.c.h.b16 %v6084
    %v6666 = vunpack.c.l.b16 %v6085
    %v6667 = vunpack.c.h.b16 %v6085
    %v6668 = vunpack.c.l.b16 %v6086
    %v6669 = vunpack.c.h.b16 %v6086
    %v6670 = vunpack.c.l.b16 %v6087
    %v6671 = vunpack.c.h.b16 %v6087
    %v6672 = vunpack.c.l.b16 %v6088
    %v6673 = vunpack.c.h.b16 %v6088
    %v6674 = vunpack.c.l.b16 %v6089
    %v6675 = vunpack.c.h.b16 %v6089
    %v6676 = vunpack.c.l.b16 %v6090
    %v6677 = vunpack.c.h.b16 %v6090
    %v6678 = vunpack.c.l.b16 %v6091
    %v6679 = vunpack.c.h.b16 %v6091
    %v6680 = vunpack.c.l.b16 %v6092
    %v6681 = vunpack.c.h.b16 %v6092
    %v6682 = vunpack.c.l.b16 %v6093
    %v6683 = vunpack.c.h.b16 %v6093
    %v6684 = vunpack.c.l.b16 %v6094
    %v6685 = vunpack.c.h.b16 %v6094
    %v6686 = vunpack.c.l.b16 %v6095
    %v6687 = vunpack.c.h.b16 %v6095
    %v6688 = vunpack.c.l.b16 %v6096
    %v6689 = vunpack.c.h.b16 %v6096
    %v6690 = vunpack.c.l.b16 %v6097
    %v6691 = vunpack.c.h.b16 %v6097
    %v6692 = vunpack.c.l.b16 %v6098
    %v6693 = vunpack.c.h.b16 %v6098
    %v6694 = vunpack.c.l.b16 %v6099
    %v6695 = vunpack.c.h.b16 %v6099
    %v6696 = vunpack.c.l.b16 %v6100
    %v6697 = vunpack.c.h.b16 %v6100
    %v6698 = vunpack.c.l.b16 %v6101
    %v6699 = vunpack.c.h.b16 %v6101
    %v6700 = vunpack.c.l.b16 %v6102
    %v6701 = vunpack.c.h.b16 %v6102
    %v6702 = vunpack.c.l.b16 %v6103
    %v6703 = vunpack.c.h.b16 %v6103
    %v6704 = vunpack.c.l.b16 %v6104
    %v6705 = vunpack.c.h.b16 %v6104
    %v6706 = vunpack.c.l.b16 %v6105
    %v6707 = vunpack.c.h.b16 %v6105
    %v6708 = vunpack.c.l.b16 %v6106
    %v6709 = vunpack.c.h.b16 %v6106
    %v6710 = vunpack.c.l.b16 %v6107
    %v6711 = vunpack.c.h.b16 %v6107
    %v6712 = vunpack.c.l.b16 %v6108
    %v6713 = vunpack.c.h.b16 %v6108
    %v6714 = vunpack.c.l.b16 %v6109
    %v6715 = vunpack.c.h.b16 %v6109
    %v6716 = vunpack.c.l.b16 %v6110
    %v6717 = vunpack.c.h.b16 %v6110
    %v6718 = vunpack.c.l.b16 %v6111
    %v6719 = vunpack.c.h.b16 %v6111
    %v6720 = vunpack.c.l.b16 %v6112
    %v6721 = vunpack.c.h.b16 %v6112
    %v6722 = vunpack.c.l.b16 %v6113
    %v6723 = vunpack.c.h.b16 %v6113
    %v6724 = vunpack.c.l.b16 %v6114
    %v6725 = vunpack.c.h.b16 %v6114
    %v6726 = vunpack.c.l.b16 %v6115
    %v6727 = vunpack.c.h.b16 %v6115
    %v6728 = vunpack.c.l.b16 %v6116
    %v6729 = vunpack.c.h.b16 %v6116
    %v6730 = vunpack.c.l.b16 %v6117
    %v6731 = vunpack.c.h.b16 %v6117
    %v6732 = vunpack.c.l.b16 %v6118
    %v6733 = vunpack.c.h.b16 %v6118
    %v6734 = vunpack.c.l.b16 %v6119
    %v6735 = vunpack.c.h.b16 %v6119
    %v6736 = vunpack.c.l.b16 %v6120
    %v6737 = vunpack.c.h.b16 %v6120
    %v6738 = vunpack.c.l.b16 %v6121
    %v6739 = vunpack.c.h.b16 %v6121
    %v6740 = vunpack.c.l.b16 %v6122
    %v6741 = vunpack.c.h.b16 %v6122
    %v6742 = vunpack.c.l.b16 %v6123
    %v6743 = vunpack.c.h.b16 %v6123
    %v6744 = vunpack.c.l.b16 %v6124
    %v6745 = vunpack.c.h.b16 %v6124
    %v6746 = vunpack.c.l.b16 %v6125
    %v6747 = vunpack.c.h.b16 %v6125
    %v6748 = vunpack.c.l.b16 %v6126
    %v6749 = vunpack.c.h.b16 %v6126
    %v6750 = vunpack.c.l.b16 %v6127
    %v6751 = vunpack.c.h.b16 %v6127
    %v6752 = vunpack.c.l.b16 %v6128
    %v6753 = vunpack.c.h.b16 %v6128
    %v6754 = vunpack.c.l.b16 %v6129
    %v6755 = vunpack.c.h.b16 %v6129
    %v6756 = vunpack.c.l.b16 %v6130
    %v6757 = vunpack.c.h.b16 %v6130
    %v6758 = vunpack.c.l.b16 %v6131
    %v6759 = vunpack.c.h.b16 %v6131
    %v6760 = vunpack.c.l.b16 %v6132
    %v6761 = vunpack.c.h.b16 %v6132
    %v6762 = vunpack.c.l.b16 %v6133
    %v6763 = vunpack.c.h.b16 %v6133
    %v6764 = vunpack.c.l.b16 %v6134
    %v6765 = vunpack.c.h.b16 %v6134
    %v6766 = vunpack.c.l.b16 %v6135
    %v6767 = vunpack.c.h.b16 %v6135
    %v6768 = vunpack.c.l.b16 %v6136
    %v6769 = vunpack.c.h.b16 %v6136
    %v6770 = vunpack.c.l.b16 %v6137
    %v6771 = vunpack.c.h.b16 %v6137
    %v6772 = vunpack.c.l.b16 %v6138
    %v6773 = vunpack.c.h.b16 %v6138
    %v6774 = vunpack.c.l.b16 %v6139
    %v6775 = vunpack.c.h.b16 %v6139
    %v6776 = vunpack.c.l.b16 %v6140
    %v6777 = vunpack.c.h.b16 %v6140
    %v6778 = vunpack.c.l.b16 %v6141
    %v6779 = vunpack.c.h.b16 %v6141
    %v6780 = vunpack.c.l.b16 %v6142
    %v6781 = vunpack.c.h.b16 %v6142
    %v6782 = vunpack.c.l.b16 %v6143
    %v6783 = vunpack.c.h.b16 %v6143
    %v6784 = vunpack.c.l.b16 %v6144
    %v6785 = vunpack.c.h.b16 %v6144
    %v6786 = vunpack.c.l.b16 %v6145
    %v6787 = vunpack.c.h.b16 %v6145
    %v6788 = vunpack.c.l.b16 %v6146
    %v6789 = vunpack.c.h.b16 %v6146
    %v6790 = vunpack.c.l.b16 %v6147
    %v6791 = vunpack.c.h.b16 %v6147
    %v6792 = vunpack.c.l.b16 %v6148
    %v6793 = vunpack.c.h.b16 %v6148
    %v6794 = vunpack.c.l.b16 %v6149
    %v6795 = vunpack.c.h.b16 %v6149
    %v6796 = vunpack.c.l.b16 %v6150
    %v6797 = vunpack.c.h.b16 %v6150
    %v6798 = vunpack.c.l.b16 %v6151
    %v6799 = vunpack.c.h.b16 %v6151
    %v6800 = vunpack.c.l.b16 %v6152
    %v6801 = vunpack.c.h.b16 %v6152
    %v6802 = vunpack.c.l.b16 %v6153
    %v6803 = vunpack.c.h.b16 %v6153
    %v6804 = vunpack.c.l.b16 %v6154
    %v6805 = vunpack.c.h.b16 %v6154
    %v6806 = vunpack.c.l.b16 %v6155
    %v6807 = vunpack.c.h.b16 %v6155
    %v6808 = vunpack.c.l.b16 %v6156
    %v6809 = vunpack.c.h.b16 %v6156
    %v6810 = vunpack.c.l.b16 %v6157
    %v6811 = vunpack.c.h.b16 %v6157
    %v6812 = vunpack.c.l.b16 %v6158
    %v6813 = vunpack.c.h.b16 %v6158
    %v6814 = vunpack.c.l.b16 %v6159
    %v6815 = vunpack.c.h.b16 %v6159
    %v6816 = vunpack.c.l.b16 %v6160
    %v6817 = vunpack.c.h.b16 %v6160
    %v6818 = vunpack.c.l.b16 %v6161
    %v6819 = vunpack.c.h.b16 %v6161
    %v6820 = vunpack.c.l.b16 %v6162
    %v6821 = vunpack.c.h.b16 %v6162
    %v6822 = vunpack.c.l.b16 %v6163
    %v6823 = vunpack.c.h.b16 %v6163
    %v6824 = vunpack.c.l.b16 %v6164
    %v6825 = vunpack.c.h.b16 %v6164
    %v6826 = vunpack.c.l.b16 %v6165
    %v6827 = vunpack.c.h.b16 %v6165
    %v6828 = vunpack.c.l.b16 %v6166
    %v6829 = vunpack.c.h.b16 %v6166
    %v6830 = vunpack.c.l.b16 %v6167
    %v6831 = vunpack.c.h.b16 %v6167
    %v6832 = vunpack.c.l.b16 %v6168
    %v6833 = vunpack.c.h.b16 %v6168
    %v6834 = vunpack.c.l.b16 %v6169
    %v6835 = vunpack.c.h.b16 %v6169
    %v6836 = vunpack.c.l.b16 %v6170
    %v6837 = vunpack.c.h.b16 %v6170
    %v6838 = vunpack.c.l.b16 %v6171
    %v6839 = vunpack.c.h.b16 %v6171
    %v6840 = vunpack.c.l.b16 %v6172
    %v6841 = vunpack.c.h.b16 %v6172
    %v6842 = vunpack.c.l.b16 %v6173
    %v6843 = vunpack.c.h.b16 %v6173
    %v6844 = vunpack.c.l.b16 %v6174
    %v6845 = vunpack.c.h.b16 %v6174
    %v6846 = vunpack.c.l.b16 %v6175
    %v6847 = vunpack.c.h.b16 %v6175
    %v6848 = vunpack.c.l.b16 %v6176
    %v6849 = vunpack.c.h.b16 %v6176
    %v6850 = vunpack.c.l.b16 %v6177
    %v6851 = vunpack.c.h.b16 %v6177
    %v6852 = vunpack.c.l.b16 %v6178
    %v6853 = vunpack.c.h.b16 %v6178
    %v6854 = vunpack.c.l.b16 %v6179
    %v6855 = vunpack.c.h.b16 %v6179
    %v6856 = vunpack.c.l.b16 %v6180
    %v6857 = vunpack.c.h.b16 %v6180
    %v6858 = vunpack.c.l.b16 %v6181
    %v6859 = vunpack.c.h.b16 %v6181
    %v6860 = vunpack.c.l.b16 %v6182
    %v6861 = vunpack.c.h.b16 %v6182
    %v6862 = vunpack.c.l.b16 %v6183
    %v6863 = vunpack.c.h.b16 %v6183
    %v6864 = vunpack.c.l.b16 %v6184
    %v6865 = vunpack.c.h.b16 %v6184
    %v6866 = vunpack.c.l.b16 %v6185
    %v6867 = vunpack.c.h.b16 %v6185
    %v6868 = vunpack.c.l.b16 %v6186
    %v6869 = vunpack.c.h.b16 %v6186
    %v6870 = vunpack.c.l.b16 %v6187
    %v6871 = vunpack.c.h.b16 %v6187
    %v6872 = vunpack.c.l.b16 %v6188
    %v6873 = vunpack.c.h.b16 %v6188
    %v6874 = vunpack.c.l.b16 %v6189
    %v6875 = vunpack.c.h.b16 %v6189
    %v6876 = vunpack.c.l.b16 %v6190
    %v6877 = vunpack.c.h.b16 %v6190
    %v6878 = vunpack.c.l.b16 %v6191
    %v6879 = vunpack.c.h.b16 %v6191
    %v6880 = vunpack.c.l.b16 %v6192
    %v6881 = vunpack.c.h.b16 %v6192
    %v6882 = vunpack.c.l.b16 %v6193
    %v6883 = vunpack.c.h.b16 %v6193
    %v6884 = vunpack.c.l.b16 %v6194
    %v6885 = vunpack.c.h.b16 %v6194
    %v6886 = vunpack.c.l.b16 %v6195
    %v6887 = vunpack.c.h.b16 %v6195
    %v6888 = vunpack.c.l.b16 %v6196
    %v6889 = vunpack.c.h.b16 %v6196
    %v6890 = vunpack.c.l.b16 %v6197
    %v6891 = vunpack.c.h.b16 %v6197
    %v6892 = vunpack.c.l.b16 %v6198
    %v6893 = vunpack.c.h.b16 %v6198
    %v6894 = vunpack.c.l.b16 %v6199
    %v6895 = vunpack.c.h.b16 %v6199
    %v6896 = vunpack.c.l.b16 %v6200
    %v6897 = vunpack.c.h.b16 %v6200
    %v6898 = vunpack.c.l.b16 %v6201
    %v6899 = vunpack.c.h.b16 %v6201
    %v6900 = vunpack.c.l.b16 %v6202
    %v6901 = vunpack.c.h.b16 %v6202
    %v6902 = vunpack.c.l.b16 %v6203
    %v6903 = vunpack.c.h.b16 %v6203
    %v6904 = vunpack.c.l.b16 %v6204
    %v6905 = vunpack.c.h.b16 %v6204
    %v6906 = vunpack.c.l.b16 %v6205
    %v6907 = vunpack.c.h.b16 %v6205
    %v6908 = vunpack.c.l.b16 %v6206
    %v6909 = vunpack.c.h.b16 %v6206
    %v6910 = vunpack.c.l.b16 %v6207
    %v6911 = vunpack.c.h.b16 %v6207
    %v6912 = vunpack.c.l.b16 %v6208
    %v6913 = vunpack.c.h.b16 %v6208
    %v6914 = vunpack.c.l.b16 %v6209
    %v6915 = vunpack.c.h.b16 %v6209
    %v6916 = vunpack.c.l.b16 %v6210
    %v6917 = vunpack.c.h.b16 %v6210
    %v6918 = vunpack.c.l.b16 %v6211
    %v6919 = vunpack.c.h.b16 %v6211
    %v6920 = vunpack.c.l.b16 %v6212
    %v6921 = vunpack.c.h.b16 %v6212
    %v6922 = vunpack.c.l.b16 %v6213
    %v6923 = vunpack.c.h.b16 %v6213
    %v6924 = vunpack.c.l.b16 %v6214
    %v6925 = vunpack.c.h.b16 %v6214
    %v6926 = vunpack.c.l.b16 %v6215
    %v6927 = vunpack.c.h.b16 %v6215
    %v6928 = vunpack.c.l.b16 %v6216
    %v6929 = vunpack.c.h.b16 %v6216
    %v6930 = vunpack.c.l.b16 %v6217
    %v6931 = vunpack.c.h.b16 %v6217
    %v6932 = vunpack.c.l.b16 %v6218
    %v6933 = vunpack.c.h.b16 %v6218
    %v6934 = vunpack.c.l.b16 %v6219
    %v6935 = vunpack.c.h.b16 %v6219
    %v6936 = vunpack.c.l.b16 %v6220
    %v6937 = vunpack.c.h.b16 %v6220
    %v6938 = vunpack.c.l.b16 %v6221
    %v6939 = vunpack.c.h.b16 %v6221
    %v6940 = vunpack.c.l.b16 %v6222
    %v6941 = vunpack.c.h.b16 %v6222
    %v6942 = vunpack.c.l.b16 %v6223
    %v6943 = vunpack.c.h.b16 %v6223
    %v6944 = vunpack.c.l.b16 %v6224
    %v6945 = vunpack.c.h.b16 %v6224
    %v6946 = vunpack.c.l.b16 %v6225
    %v6947 = vunpack.c.h.b16 %v6225
    %v6948 = vunpack.c.l.b16 %v6226
    %v6949 = vunpack.c.h.b16 %v6226
    %v6950 = vunpack.c.l.b16 %v6227
    %v6951 = vunpack.c.h.b16 %v6227
    %v6952 = vunpack.c.l.b16 %v6228
    %v6953 = vunpack.c.h.b16 %v6228
    %v6954 = vunpack.c.l.b16 %v6229
    %v6955 = vunpack.c.h.b16 %v6229
    %v6956 = vunpack.c.l.b16 %v6230
    %v6957 = vunpack.c.h.b16 %v6230
    %v6958 = vunpack.c.l.b16 %v6231
    %v6959 = vunpack.c.h.b16 %v6231
    %v6960 = vunpack.c.l.b16 %v6232
    %v6961 = vunpack.c.h.b16 %v6232
    %v6962 = vunpack.c.l.b16 %v6233
    %v6963 = vunpack.c.h.b16 %v6233
    %v6964 = vunpack.c.l.b16 %v6234
    %v6965 = vunpack.c.h.b16 %v6234
    %v6966 = vunpack.c.l.b16 %v6235
    %v6967 = vunpack.c.h.b16 %v6235
    %v6968 = vunpack.c.l.b16 %v6236
    %v6969 = vunpack.c.h.b16 %v6236
    %v6970 = vunpack.c.l.b16 %v6237
    %v6971 = vunpack.c.h.b16 %v6237
    %v6972 = vunpack.c.l.b16 %v6238
    %v6973 = vunpack.c.h.b16 %v6238
    %v6974 = vunpack.c.l.b16 %v6239
    %v6975 = vunpack.c.h.b16 %v6239
    %v6976 = vunpack.c.l.b16 %v6240
    %v6977 = vunpack.c.h.b16 %v6240
    %v6978 = vunpack.c.l.b16 %v6241
    %v6979 = vunpack.c.h.b16 %v6241
    %v6980 = vunpack.c.l.b16 %v6242
    %v6981 = vunpack.c.h.b16 %v6242
    %v6982 = vunpack.c.l.b16 %v6243
    %v6983 = vunpack.c.h.b16 %v6243
    %v6984 = vunpack.c.l.b16 %v6244
    %v6985 = vunpack.c.h.b16 %v6244
    %v6986 = vunpack.c.l.b16 %v6245
    %v6987 = vunpack.c.h.b16 %v6245
    %v6988 = vunpack.c.l.b16 %v6246
    %v6989 = vunpack.c.h.b16 %v6246
    %v6990 = vunpack.c.l.b16 %v6247
    %v6991 = vunpack.c.h.b16 %v6247
    %v6992 = vunpack.c.l.b16 %v6248
    %v6993 = vunpack.c.h.b16 %v6248
    %v6994 = vunpack.c.l.b16 %v6249
    %v6995 = vunpack.c.h.b16 %v6249
    %v6996 = vunpack.c.l.b16 %v6250
    %v6997 = vunpack.c.h.b16 %v6250
    %v6998 = vunpack.c.l.b16 %v6251
    %v6999 = vunpack.c.h.b16 %v6251
    %v7000 = vunpack.c.l.b16 %v6252
    %v7001 = vunpack.c.h.b16 %v6252
    %v7002 = vunpack.c.l.b16 %v6253
    %v7003 = vunpack.c.h.b16 %v6253
    %v7004 = vunpack.c.l.b16 %v6254
    %v7005 = vunpack.c.h.b16 %v6254
    %v7006 = vunpack.c.l.b16 %v6255
    %v7007 = vunpack.c.h.b16 %v6255
    %v7008 = vunpack.c.l.b16 %v6256
    %v7009 = vunpack.c.h.b16 %v6256
    %v7010 = vunpack.c.l.b16 %v6257
    %v7011 = vunpack.c.h.b16 %v6257
    %v7012 = vunpack.c.l.b16 %v6258
    %v7013 = vunpack.c.h.b16 %v6258
    %v7014 = vunpack.c.l.b16 %v6259
    %v7015 = vunpack.c.h.b16 %v6259
    %v7016 = vunpack.c.l.b16 %v6260
    %v7017 = vunpack.c.h.b16 %v6260
    %v7018 = vunpack.c.l.b16 %v6261
    %v7019 = vunpack.c.h.b16 %v6261
    %v7020 = vunpack.c.l.b16 %v6262
    %v7021 = vunpack.c.h.b16 %v6262
    %v7022 = vunpack.c.l.b16 %v6263
    %v7023 = vunpack.c.h.b16 %v6263
    %v7024 = vunpack.c.l.b16 %v6264
    %v7025 = vunpack.c.h.b16 %v6264
    %v7026 = vunpack.c.l.b16 %v6265
    %v7027 = vunpack.c.h.b16 %v6265
    %v7028 = vunpack.c.l.b16 %v6266
    %v7029 = vunpack.c.h.b16 %v6266
    %v7030 = vunpack.c.l.b16 %v6267
    %v7031 = vunpack.c.h.b16 %v6267
    %v7032 = vunpack.c.l.b16 %v6268
    %v7033 = vunpack.c.h.b16 %v6268
    %v7034 = vunpack.c.l.b16 %v6269
    %v7035 = vunpack.c.h.b16 %v6269
    %v7036 = vunpack.c.l.b16 %v6270
    %v7037 = vunpack.c.h.b16 %v6270
    %v7038 = vunpack.c.l.b16 %v6271
    %v7039 = vunpack.c.h.b16 %v6271
    %v7040 = vunpack.c.l.b16 %v6272
    %v7041 = vunpack.c.h.b16 %v6272
    %v7042 = vunpack.c.l.b16 %v6273
    %v7043 = vunpack.c.h.b16 %v6273
    %v7044 = vunpack.c.l.b16 %v6274
    %v7045 = vunpack.c.h.b16 %v6274
    %v7046 = vunpack.c.l.b16 %v6275
    %v7047 = vunpack.c.h.b16 %v6275
    %v7048 = vunpack.c.l.b16 %v6276
    %v7049 = vunpack.c.h.b16 %v6276
    %v7050 = vunpack.c.l.b16 %v6277
    %v7051 = vunpack.c.h.b16 %v6277
    %v7052 = vunpack.c.l.b16 %v6278
    %v7053 = vunpack.c.h.b16 %v6278
    %v7054 = vunpack.c.l.b16 %v6279
    %v7055 = vunpack.c.h.b16 %v6279
    %v7056 = vunpack.c.l.b16 %v6280
    %v7057 = vunpack.c.h.b16 %v6280
    %v7058 = vunpack.c.l.b16 %v6281
    %v7059 = vunpack.c.h.b16 %v6281
    %v7060 = vpack.c.b16 %v6552, %v6548
    %v7061 = vpack.c.b16 %v6553, %v6549
    %v7062 = vpack.c.b16 %v6554, %v6550
    %v7063 = vpack.c.b16 %v6555, %v6551
    %v7064 = vpack.c.b16 %v6560, %v6556
    %v7065 = vpack.c.b16 %v6561, %v6557
    %v7066 = vpack.c.b16 %v6562, %v6558
    %v7067 = vpack.c.b16 %v6563, %v6559
    %v7068 = vpack.c.b16 %v6568, %v6564
    %v7069 = vpack.c.b16 %v6569, %v6565
    %v7070 = vpack.c.b16 %v6570, %v6566
    %v7071 = vpack.c.b16 %v6571, %v6567
    %v7072 = vpack.c.b16 %v6576, %v6572
    %v7073 = vpack.c.b16 %v6577, %v6573
    %v7074 = vpack.c.b16 %v6578, %v6574
    %v7075 = vpack.c.b16 %v6579, %v6575
    %v7076 = vpack.c.b16 %v6584, %v6580
    %v7077 = vpack.c.b16 %v6585, %v6581
    %v7078 = vpack.c.b16 %v6586, %v6582
    %v7079 = vpack.c.b16 %v6587, %v6583
    %v7080 = vpack.c.b16 %v6592, %v6588
    %v7081 = vpack.c.b16 %v6593, %v6589
    %v7082 = vpack.c.b16 %v6594, %v6590
    %v7083 = vpack.c.b16 %v6595, %v6591
    %v7084 = vpack.c.b16 %v6600, %v6596
    %v7085 = vpack.c.b16 %v6601, %v6597
    %v7086 = vpack.c.b16 %v6602, %v6598
    %v7087 = vpack.c.b16 %v6603, %v6599
    %v7088 = vpack.c.b16 %v6608, %v6604
    %v7089 = vpack.c.b16 %v6609, %v6605
    %v7090 = vpack.c.b16 %v6610, %v6606
    %v7091 = vpack.c.b16 %v6611, %v6607
    %v7092 = vpack.c.b16 %v6616, %v6612
    %v7093 = vpack.c.b16 %v6617, %v6613
    %v7094 = vpack.c.b16 %v6618, %v6614
    %v7095 = vpack.c.b16 %v6619, %v6615
    %v7096 = vpack.c.b16 %v6624, %v6620
    %v7097 = vpack.c.b16 %v6625, %v6621
    %v7098 = vpack.c.b16 %v6626, %v6622
    %v7099 = vpack.c.b16 %v6627, %v6623
    %v7100 = vpack.c.b16 %v6632, %v6628
    %v7101 = vpack.c.b16 %v6633, %v6629
    %v7102 = vpack.c.b16 %v6634, %v6630
    %v7103 = vpack.c.b16 %v6635, %v6631
    %v7104 = vpack.c.b16 %v6640, %v6636
    %v7105 = vpack.c.b16 %v6641, %v6637
    %v7106 = vpack.c.b16 %v6642, %v6638
    %v7107 = vpack.c.b16 %v6643, %v6639
    %v7108 = vpack.c.b16 %v6648, %v6644
    %v7109 = vpack.c.b16 %v6649, %v6645
    %v7110 = vpack.c.b16 %v6650, %v6646
    %v7111 = vpack.c.b16 %v6651, %v6647
    %v7112 = vpack.c.b16 %v6656, %v6652
    %v7113 = vpack.c.b16 %v6657, %v6653
    %v7114 = vpack.c.b16 %v6658, %v6654
    %v7115 = vpack.c.b16 %v6659, %v6655
    %v7116 = vpack.c.b16 %v6664, %v6660
    %v7117 = vpack.c.b16 %v6665, %v6661
    %v7118 = vpack.c.b16 %v6666, %v6662
    %v7119 = vpack.c.b16 %v6667, %v6663
    %v7120 = vpack.c.b16 %v6672, %v6668
    %v7121 = vpack.c.b16 %v6673, %v6669
    %v7122 = vpack.c.b16 %v6674, %v6670
    %v7123 = vpack.c.b16 %v6675, %v6671
    %v7124 = vpack.c.b16 %v6680, %v6676
    %v7125 = vpack.c.b16 %v6681, %v6677
    %v7126 = vpack.c.b16 %v6682, %v6678
    %v7127 = vpack.c.b16 %v6683, %v6679
    %v7128 = vpack.c.b16 %v6688, %v6684
    %v7129 = vpack.c.b16 %v6689, %v6685
    %v7130 = vpack.c.b16 %v6690, %v6686
    %v7131 = vpack.c.b16 %v6691, %v6687
    %v7132 = vpack.c.b16 %v6696, %v6692
    %v7133 = vpack.c.b16 %v6697, %v6693
    %v7134 = vpack.c.b16 %v6698, %v6694
    %v7135 = vpack.c.b16 %v6699, %v6695
    %v7136 = vpack.c.b16 %v6704, %v6700
    %v7137 = vpack.c.b16 %v6705, %v6701
    %v7138 = vpack.c.b16 %v6706, %v6702
    %v7139 = vpack.c.b16 %v6707, %v6703
    %v7140 = vpack.c.b16 %v6712, %v6708
    %v7141 = vpack.c.b16 %v6713, %v6709
    %v7142 = vpack.c.b16 %v6714, %v6710
    %v7143 = vpack.c.b16 %v6715, %v6711
    %v7144 = vpack.c.b16 %v6720, %v6716
    %v7145 = vpack.c.b16 %v6721, %v6717
    %v7146 = vpack.c.b16 %v6722, %v6718
    %v7147 = vpack.c.b16 %v6723, %v6719
    %v7148 = vpack.c.b16 %v6728, %v6724
    %v7149 = vpack.c.b16 %v6729, %v6725
    %v7150 = vpack.c.b16 %v6730, %v6726
    %v7151 = vpack.c.b16 %v6731, %v6727
    %v7152 = vpack.c.b16 %v6736, %v6732
    %v7153 = vpack.c.b16 %v6737, %v6733
    %v7154 = vpack.c.b16 %v6738, %v6734
    %v7155 = vpack.c.b16 %v6739, %v6735
    %v7156 = vpack.c.b16 %v6744, %v6740
    %v7157 = vpack.c.b16 %v6745, %v6741
    %v7158 = vpack.c.b16 %v6746, %v6742
    %v7159 = vpack.c.b16 %v6747, %v6743
    %v7160 = vpack.c.b16 %v6752, %v6748
    %v7161 = vpack.c.b16 %v6753, %v6749
    %v7162 = vpack.c.b16 %v6754, %v6750
    %v7163 = vpack.c.b16 %v6755, %v6751
    %v7164 = vpack.c.b16 %v6760, %v6756
    %v7165 = vpack.c.b16 %v6761, %v6757
    %v7166 = vpack.c.b16 %v6762, %v6758
    %v7167 = vpack.c.b16 %v6763, %v6759
    %v7168 = vpack.c.b16 %v6768, %v6764
    %v7169 = vpack.c.b16 %v6769, %v6765
    %v7170 = vpack.c.b16 %v6770, %v6766
    %v7171 = vpack.c.b16 %v6771, %v6767
    %v7172 = vpack.c.b16 %v6776, %v6772
    %v7173 = vpack.c.b16 %v6777, %v6773
    %v7174 = vpack.c.b16 %v6778, %v6774
    %v7175 = vpack.c.b16 %v6779, %v6775
    %v7176 = vpack.c.b16 %v6784, %v6780
    %v7177 = vpack.c.b16 %v6785, %v6781
    %v7178 = vpack.c.b16 %v6786, %v6782
    %v7179 = vpack.c.b16 %v6787, %v6783
    %v7180 = vpack.c.b16 %v6792, %v6788
    %v7181 = vpack.c.b16 %v6793, %v6789
    %v7182 = vpack.c.b16 %v6794, %v6790
    %v7183 = vpack.c.b16 %v6795, %v6791
    %v7184 = vpack.c.b16 %v6800, %v6796
    %v7185 = vpack.c.b16 %v6801, %v6797
    %v7186 = vpack.c.b16 %v6802, %v6798
    %v7187 = vpack.c.b16 %v6803, %v6799
    %v7188 = vpack.c.b16 %v6808, %v6804
    %v7189 = vpack.c.b16 %v6809, %v6805
    %v7190 = vpack.c.b16 %v6810, %v6806
    %v7191 = vpack.c.b16 %v6811, %v6807
    %v7192 = vpack.c.b16 %v6816, %v6812
    %v7193 = vpack.c.b16 %v6817, %v6813
    %v7194 = vpack.c.b16 %v6818, %v6814
    %v7195 = vpack.c.b16 %v6819, %v6815
    %v7196 = vpack.c.b16 %v6824, %v6820
    %v7197 = vpack.c.b16 %v6825, %v6821
    %v7198 = vpack.c.b16 %v6826, %v6822
    %v7199 = vpack.c.b16 %v6827, %v6823
    %v7200 = vpack.c.b16 %v6832, %v6828
    %v7201 = vpack.c.b16 %v6833, %v6829
    %v7202 = vpack.c.b16 %v6834, %v6830
    %v7203 = vpack.c.b16 %v6835, %v6831
    %v7204 = vpack.c.b16 %v6840, %v6836
    %v7205 = vpack.c.b16 %v6841, %v6837
    %v7206 = vpack.c.b16 %v6842, %v6838
    %v7207 = vpack.c.b16 %v6843, %v6839
    %v7208 = vpack.c.b16 %v6848, %v6844
    %v7209 = vpack.c.b16 %v6849, %v6845
    %v7210 = vpack.c.b16 %v6850, %v6846
    %v7211 = vpack.c.b16 %v6851, %v6847
    %v7212 = vpack.c.b16 %v6856, %v6852
    %v7213 = vpack.c.b16 %v6857, %v6853
    %v7214 = vpack.c.b16 %v6858, %v6854
    %v7215 = vpack.c.b16 %v6859, %v6855
    %v7216 = vpack.c.b16 %v6864, %v6860
    %v7217 = vpack.c.b16 %v6865, %v6861
    %v7218 = vpack.c.b16 %v6866, %v6862
    %v7219 = vpack.c.b16 %v6867, %v6863
    %v7220 = vpack.c.b16 %v6872, %v6868
    %v7221 = vpack.c.b16 %v6873, %v6869
    %v7222 = vpack.c.b16 %v6874, %v6870
    %v7223 = vpack.c.b16 %v6875, %v6871
    %v7224 = vpack.c.b16 %v6880, %v6876
    %v7225 = vpack.c.b16 %v6881, %v6877
    %v7226 = vpack.c.b16 %v6882, %v6878
    %v7227 = vpack.c.b16 %v6883, %v6879
    %v7228 = vpack.c.b16 %v6888, %v6884
    %v7229 = vpack.c.b16 %v6889, %v6885
    %v7230 = vpack.c.b16 %v6890, %v6886
    %v7231 = vpack.c.b16 %v6891, %v6887
    %v7232 = vpack.c.b16 %v6896, %v6892
    %v7233 = vpack.c.b16 %v6897, %v6893
    %v7234 = vpack.c.b16 %v6898, %v6894
    %v7235 = vpack.c.b16 %v6899, %v6895
    %v7236 = vpack.c.b16 %v6904, %v6900
    %v7237 = vpack.c.b16 %v6905, %v6901
    %v7238 = vpack.c.b16 %v6906, %v6902
    %v7239 = vpack.c.b16 %v6907, %v6903
    %v7240 = vpack.c.b16 %v6912, %v6908
    %v7241 = vpack.c.b16 %v6913, %v6909
    %v7242 = vpack.c.b16 %v6914, %v6910
    %v7243 = vpack.c.b16 %v6915, %v6911
    %v7244 = vpack.c.b16 %v6920, %v6916
    %v7245 = vpack.c.b16 %v6921, %v6917
    %v7246 = vpack.c.b16 %v6922, %v6918
    %v7247 = vpack.c.b16 %v6923, %v6919
    %v7248 = vpack.c.b16 %v6928, %v6924
    %v7249 = vpack.c.b16 %v6929, %v6925
    %v7250 = vpack.c.b16 %v6930, %v6926
    %v7251 = vpack.c.b16 %v6931, %v6927
    %v7252 = vpack.c.b16 %v6936, %v6932
    %v7253 = vpack.c.b16 %v6937, %v6933
    %v7254 = vpack.c.b16 %v6938, %v6934
    %v7255 = vpack.c.b16 %v6939, %v6935
    %v7256 = vpack.c.b16 %v6944, %v6940
    %v7257 = vpack.c.b16 %v6945, %v6941
    %v7258 = vpack.c.b16 %v6946, %v6942
    %v7259 = vpack.c.b16 %v6947, %v6943
    %v7260 = vpack.c.b16 %v6952, %v6948
    %v7261 = vpack.c.b16 %v6953, %v6949
    %v7262 = vpack.c.b16 %v6954, %v6950
    %v7263 = vpack.c.b16 %v6955, %v6951
    %v7264 = vpack.c.b16 %v6960, %v6956
    %v7265 = vpack.c.b16 %v6961, %v6957
    %v7266 = vpack.c.b16 %v6962, %v6958
    %v7267 = vpack.c.b16 %v6963, %v6959
    %v7268 = vpack.c.b16 %v6968, %v6964
    %v7269 = vpack.c.b16 %v6969, %v6965
    %v7270 = vpack.c.b16 %v6970, %v6966
    %v7271 = vpack.c.b16 %v6971, %v6967
    %v7272 = vpack.c.b16 %v6976, %v6972
    %v7273 = vpack.c.b16 %v6977, %v6973
    %v7274 = vpack.c.b16 %v6978, %v6974
    %v7275 = vpack.c.b16 %v6979, %v6975
    %v7276 = vpack.c.b16 %v6984, %v6980
    %v7277 = vpack.c.b16 %v6985, %v6981
    %v7278 = vpack.c.b16 %v6986, %v6982
    %v7279 = vpack.c.b16 %v6987, %v6983
    %v7280 = vpack.c.b16 %v6992, %v6988
    %v7281 = vpack.c.b16 %v6993, %v6989
    %v7282 = vpack.c.b16 %v6994, %v6990
    %v7283 = vpack.c.b16 %v6995, %v6991
    %v7284 = vpack.c.b16 %v7000, %v6996
    %v7285 = vpack.c.b16 %v7001, %v6997
    %v7286 = vpack.c.b16 %v7002, %v6998
    %v7287 = vpack.c.b16 %v7003, %v6999
    %v7288 = vpack.c.b16 %v7008, %v7004
    %v7289 = vpack.c.b16 %v7009, %v7005
    %v7290 = vpack.c.b16 %v7010, %v7006
    %v7291 = vpack.c.b16 %v7011, %v7007
    %v7292 = vpack.c.b16 %v7016, %v7012
    %v7293 = vpack.c.b16 %v7017, %v7013
    %v7294 = vpack.c.b16 %v7018, %v7014
    %v7295 = vpack.c.b16 %v7019, %v7015
    %v7296 = vpack.c.b16 %v7024, %v7020
    %v7297 = vpack.c.b16 %v7025, %v7021
    %v7298 = vpack.c.b16 %v7026, %v7022
    %v7299 = vpack.c.b16 %v7027, %v7023
    %v7300 = vpack.c.b16 %v7032, %v7028
    %v7301 = vpack.c.b16 %v7033, %v7029
    %v7302 = vpack.c.b16 %v7034, %v7030
    %v7303 = vpack.c.b16 %v7035, %v7031
    %v7304 = vpack.c.b16 %v7040, %v7036
    %v7305 = vpack.c.b16 %v7041, %v7037
    %v7306 = vpack.c.b16 %v7042, %v7038
    %v7307 = vpack.c.b16 %v7043, %v7039
    %v7308 = vpack.c.b16 %v7048, %v7044
    %v7309 = vpack.c.b16 %v7049, %v7045
    %v7310 = vpack.c.b16 %v7050, %v7046
    %v7311 = vpack.c.b16 %v7051, %v7047
    %v7312 = vpack.c.b16 %v7056, %v7052
    %v7313 = vpack.c.b16 %v7057, %v7053
    %v7314 = vpack.c.b16 %v7058, %v7054
    %v7315 = vpack.c.b16 %v7059, %v7055
    %7572 = vmatpush.bf16.msra.mxu0 %v7088
    %7573 = vmatpush.bf16.msra.mxu0 %v7084
    %7574 = vmatpush.bf16.msra.mxu0 %v7080
    %7575 = vmatpush.bf16.msra.mxu0 %v7076
    %7576 = vmatpush.bf16.msra.mxu0 %v7072
    %7577 = vmatpush.bf16.msra.mxu0 %v7068
    %7578 = vmatpush.bf16.msra.mxu0 %v7064
    %7579 = vmatpush.bf16.msra.mxu0 %v7060
    %7580 = vmatmul.bf16.gmra.mxu0 %v6018
    %v7581 = vpop.f32.mrf.mxu0
    %v7582 = vadd.f32 %v6284, %v7581
    %v7583 = vpop.f32.mrf.mxu0
    %7584 = vdwg.mxu0
    %7585 = vmatpush.bf16.msra.mxu0 %v7120
    %7586 = vmatpush.bf16.msra.mxu0 %v7116
    %7587 = vmatpush.bf16.msra.mxu0 %v7112
    %7588 = vmatpush.bf16.msra.mxu0 %v7108
    %7589 = vmatpush.bf16.msra.mxu0 %v7104
    %7590 = vmatpush.bf16.msra.mxu0 %v7100
    %7591 = vmatpush.bf16.msra.mxu0 %v7096
    %7592 = vmatpush.bf16.msra.mxu0 %v7092
    %7593 = vmatmul.bf16.gmra.mxu0 %v6019
    %v7594 = vpop.f32.mrf.mxu0
    %v7595 = vadd.f32 %v7582, %v7594
    %v7596 = vpop.f32.mrf.mxu0
    %7597 = vdwg.mxu0
    %7598 = vmatpush.bf16.msra.mxu0 %v7152
    %7599 = vmatpush.bf16.msra.mxu0 %v7148
    %7600 = vmatpush.bf16.msra.mxu0 %v7144
    %7601 = vmatpush.bf16.msra.mxu0 %v7140
    %7602 = vmatpush.bf16.msra.mxu0 %v7136
    %7603 = vmatpush.bf16.msra.mxu0 %v7132
    %7604 = vmatpush.bf16.msra.mxu0 %v7128
    %7605 = vmatpush.bf16.msra.mxu0 %v7124
    %7606 = vmatmul.bf16.gmra.mxu0 %v6020
    %v7607 = vpop.f32.mrf.mxu0
    %v7608 = vadd.f32 %v7595, %v7607
    %v7609 = vpop.f32.mrf.mxu0
    %7610 = vdwg.mxu0
    %7611 = vmatpush.bf16.msra.mxu0 %v7184
    %7612 = vmatpush.bf16.msra.mxu0 %v7180
    %7613 = vmatpush.bf16.msra.mxu0 %v7176
    %7614 = vmatpush.bf16.msra.mxu0 %v7172
    %7615 = vmatpush.bf16.msra.mxu0 %v7168
    %7616 = vmatpush.bf16.msra.mxu0 %v7164
    %7617 = vmatpush.bf16.msra.mxu0 %v7160
    %7618 = vmatpush.bf16.msra.mxu0 %v7156
    %7619 = vmatmul.bf16.gmra.mxu0 %v6021
    %v7620 = vpop.f32.mrf.mxu0
    %v7621 = vadd.f32 %v7608, %v7620
    %v7622 = vpop.f32.mrf.mxu0
    %7623 = vdwg.mxu0
    %7624 = vmatpush.bf16.msra.mxu0 %v7216
    %7625 = vmatpush.bf16.msra.mxu0 %v7212
    %7626 = vmatpush.bf16.msra.mxu0 %v7208
    %7627 = vmatpush.bf16.msra.mxu0 %v7204
    %7628 = vmatpush.bf16.msra.mxu0 %v7200
    %7629 = vmatpush.bf16.msra.mxu0 %v7196
    %7630 = vmatpush.bf16.msra.mxu0 %v7192
    %7631 = vmatpush.bf16.msra.mxu0 %v7188
    %7632 = vmatmul.bf16.gmra.mxu0 %v6022
    %v7633 = vpop.f32.mrf.mxu0
    %v7634 = vadd.f32 %v7621, %v7633
    %v7635 = vpop.f32.mrf.mxu0
    %7636 = vdwg.mxu0
    %7637 = vmatpush.bf16.msra.mxu0 %v7248
    %7638 = vmatpush.bf16.msra.mxu0 %v7244
    %7639 = vmatpush.bf16.msra.mxu0 %v7240
    %7640 = vmatpush.bf16.msra.mxu0 %v7236
    %7641 = vmatpush.bf16.msra.mxu0 %v7232
    %7642 = vmatpush.bf16.msra.mxu0 %v7228
    %7643 = vmatpush.bf16.msra.mxu0 %v7224
    %7644 = vmatpush.bf16.msra.mxu0 %v7220
    %7645 = vmatmul.bf16.gmra.mxu0 %v6023
    %v7646 = vpop.f32.mrf.mxu0
    %v7647 = vadd.f32 %v7634, %v7646
    %v7648 = vpop.f32.mrf.mxu0
    %7649 = vdwg.mxu0
    %7650 = vmatpush.bf16.msra.mxu0 %v7280
    %7651 = vmatpush.bf16.msra.mxu0 %v7276
    %7652 = vmatpush.bf16.msra.mxu0 %v7272
    %7653 = vmatpush.bf16.msra.mxu0 %v7268
    %7654 = vmatpush.bf16.msra.mxu0 %v7264
    %7655 = vmatpush.bf16.msra.mxu0 %v7260
    %7656 = vmatpush.bf16.msra.mxu0 %v7256
    %7657 = vmatpush.bf16.msra.mxu0 %v7252
    %7658 = vmatmul.bf16.gmra.mxu0 %v6024
    %v7659 = vpop.f32.mrf.mxu0
    %v7660 = vadd.f32 %v7647, %v7659
    %v7661 = vpop.f32.mrf.mxu0
    %7662 = vdwg.mxu0
    %7663 = vmatpush.bf16.msra.mxu0 %v7312
    %7664 = vmatpush.bf16.msra.mxu0 %v7308
    %7665 = vmatpush.bf16.msra.mxu0 %v7304
    %7666 = vmatpush.bf16.msra.mxu0 %v7300
    %7667 = vmatpush.bf16.msra.mxu0 %v7296
    %7668 = vmatpush.bf16.msra.mxu0 %v7292
    %7669 = vmatpush.bf16.msra.mxu0 %v7288
    %7670 = vmatpush.bf16.msra.mxu0 %v7284
    %7671 = vmatmul.bf16.gmra.mxu0 %v6025
    %v7672 = vpop.f32.mrf.mxu0
    %v7673 = vadd.f32 %v7660, %v7672
    %v7674 = vpop.f32.mrf.mxu0
    %7675 = vdwg.mxu0
    %7676 = vmatpush.bf16.msra.mxu0 %v7089
    %7677 = vmatpush.bf16.msra.mxu0 %v7085
    %7678 = vmatpush.bf16.msra.mxu0 %v7081
    %7679 = vmatpush.bf16.msra.mxu0 %v7077
    %7680 = vmatpush.bf16.msra.mxu0 %v7073
    %7681 = vmatpush.bf16.msra.mxu0 %v7069
    %7682 = vmatpush.bf16.msra.mxu0 %v7065
    %7683 = vmatpush.bf16.msra.mxu0 %v7061
    %7684 = vmatmul.bf16.gmra.mxu0 %v6018
    %v7685 = vpop.f32.mrf.mxu0
    %v7686 = vadd.f32 %v6285, %v7685
    %v7687 = vpop.f32.mrf.mxu0
    %7688 = vdwg.mxu0
    %7689 = vmatpush.bf16.msra.mxu0 %v7121
    %7690 = vmatpush.bf16.msra.mxu0 %v7117
    %7691 = vmatpush.bf16.msra.mxu0 %v7113
    %7692 = vmatpush.bf16.msra.mxu0 %v7109
    %7693 = vmatpush.bf16.msra.mxu0 %v7105
    %7694 = vmatpush.bf16.msra.mxu0 %v7101
    %7695 = vmatpush.bf16.msra.mxu0 %v7097
    %7696 = vmatpush.bf16.msra.mxu0 %v7093
    %7697 = vmatmul.bf16.gmra.mxu0 %v6019
    %v7698 = vpop.f32.mrf.mxu0
    %v7699 = vadd.f32 %v7686, %v7698
    %v7700 = vpop.f32.mrf.mxu0
    %7701 = vdwg.mxu0
    %7702 = vmatpush.bf16.msra.mxu0 %v7153
    %7703 = vmatpush.bf16.msra.mxu0 %v7149
    %7704 = vmatpush.bf16.msra.mxu0 %v7145
    %7705 = vmatpush.bf16.msra.mxu0 %v7141
    %7706 = vmatpush.bf16.msra.mxu0 %v7137
    %7707 = vmatpush.bf16.msra.mxu0 %v7133
    %7708 = vmatpush.bf16.msra.mxu0 %v7129
    %7709 = vmatpush.bf16.msra.mxu0 %v7125
    %7710 = vmatmul.bf16.gmra.mxu0 %v6020
    %v7711 = vpop.f32.mrf.mxu0
    %v7712 = vadd.f32 %v7699, %v7711
    %v7713 = vpop.f32.mrf.mxu0
    %7714 = vdwg.mxu0
    %7715 = vmatpush.bf16.msra.mxu0 %v7185
    %7716 = vmatpush.bf16.msra.mxu0 %v7181
    %7717 = vmatpush.bf16.msra.mxu0 %v7177
    %7718 = vmatpush.bf16.msra.mxu0 %v7173
    %7719 = vmatpush.bf16.msra.mxu0 %v7169
    %7720 = vmatpush.bf16.msra.mxu0 %v7165
    %7721 = vmatpush.bf16.msra.mxu0 %v7161
    %7722 = vmatpush.bf16.msra.mxu0 %v7157
    %7723 = vmatmul.bf16.gmra.mxu0 %v6021
    %v7724 = vpop.f32.mrf.mxu0
    %v7725 = vadd.f32 %v7712, %v7724
    %v7726 = vpop.f32.mrf.mxu0
    %7727 = vdwg.mxu0
    %7728 = vmatpush.bf16.msra.mxu0 %v7217
    %7729 = vmatpush.bf16.msra.mxu0 %v7213
    %7730 = vmatpush.bf16.msra.mxu0 %v7209
    %7731 = vmatpush.bf16.msra.mxu0 %v7205
    %7732 = vmatpush.bf16.msra.mxu0 %v7201
    %7733 = vmatpush.bf16.msra.mxu0 %v7197
    %7734 = vmatpush.bf16.msra.mxu0 %v7193
    %7735 = vmatpush.bf16.msra.mxu0 %v7189
    %7736 = vmatmul.bf16.gmra.mxu0 %v6022
    %v7737 = vpop.f32.mrf.mxu0
    %v7738 = vadd.f32 %v7725, %v7737
    %v7739 = vpop.f32.mrf.mxu0
    %7740 = vdwg.mxu0
    %7741 = vmatpush.bf16.msra.mxu0 %v7249
    %7742 = vmatpush.bf16.msra.mxu0 %v7245
    %7743 = vmatpush.bf16.msra.mxu0 %v7241
    %7744 = vmatpush.bf16.msra.mxu0 %v7237
    %7745 = vmatpush.bf16.msra.mxu0 %v7233
    %7746 = vmatpush.bf16.msra.mxu0 %v7229
    %7747 = vmatpush.bf16.msra.mxu0 %v7225
    %7748 = vmatpush.bf16.msra.mxu0 %v7221
    %7749 = vmatmul.bf16.gmra.mxu0 %v6023
    %v7750 = vpop.f32.mrf.mxu0
    %v7751 = vadd.f32 %v7738, %v7750
    %v7752 = vpop.f32.mrf.mxu0
    %7753 = vdwg.mxu0
    %7754 = vmatpush.bf16.msra.mxu0 %v7281
    %7755 = vmatpush.bf16.msra.mxu0 %v7277
    %7756 = vmatpush.bf16.msra.mxu0 %v7273
    %7757 = vmatpush.bf16.msra.mxu0 %v7269
    %7758 = vmatpush.bf16.msra.mxu0 %v7265
    %7759 = vmatpush.bf16.msra.mxu0 %v7261
    %7760 = vmatpush.bf16.msra.mxu0 %v7257
    %7761 = vmatpush.bf16.msra.mxu0 %v7253
    %7762 = vmatmul.bf16.gmra.mxu0 %v6024
    %v7763 = vpop.f32.mrf.mxu0
    %v7764 = vadd.f32 %v7751, %v7763
    %v7765 = vpop.f32.mrf.mxu0
    %7766 = vdwg.mxu0
    %7767 = vmatpush.bf16.msra.mxu0 %v7313
    %7768 = vmatpush.bf16.msra.mxu0 %v7309
    %7769 = vmatpush.bf16.msra.mxu0 %v7305
    %7770 = vmatpush.bf16.msra.mxu0 %v7301
    %7771 = vmatpush.bf16.msra.mxu0 %v7297
    %7772 = vmatpush.bf16.msra.mxu0 %v7293
    %7773 = vmatpush.bf16.msra.mxu0 %v7289
    %7774 = vmatpush.bf16.msra.mxu0 %v7285
    %7775 = vmatmul.bf16.gmra.mxu0 %v6025
    %v7776 = vpop.f32.mrf.mxu0
    %v7777 = vadd.f32 %v7764, %v7776
    %v7778 = vpop.f32.mrf.mxu0
    %7779 = vdwg.mxu0
    %7780 = vmatpush.bf16.msra.mxu0 %v7090
    %7781 = vmatpush.bf16.msra.mxu0 %v7086
    %7782 = vmatpush.bf16.msra.mxu0 %v7082
    %7783 = vmatpush.bf16.msra.mxu0 %v7078
    %7784 = vmatpush.bf16.msra.mxu0 %v7074
    %7785 = vmatpush.bf16.msra.mxu0 %v7070
    %7786 = vmatpush.bf16.msra.mxu0 %v7066
    %7787 = vmatpush.bf16.msra.mxu0 %v7062
    %7788 = vmatmul.bf16.gmra.mxu0 %v6018
    %v7789 = vpop.f32.mrf.mxu0
    %v7790 = vadd.f32 %v6286, %v7789
    %v7791 = vpop.f32.mrf.mxu0
    %7792 = vdwg.mxu0
    %7793 = vmatpush.bf16.msra.mxu0 %v7122
    %7794 = vmatpush.bf16.msra.mxu0 %v7118
    %7795 = vmatpush.bf16.msra.mxu0 %v7114
    %7796 = vmatpush.bf16.msra.mxu0 %v7110
    %7797 = vmatpush.bf16.msra.mxu0 %v7106
    %7798 = vmatpush.bf16.msra.mxu0 %v7102
    %7799 = vmatpush.bf16.msra.mxu0 %v7098
    %7800 = vmatpush.bf16.msra.mxu0 %v7094
    %7801 = vmatmul.bf16.gmra.mxu0 %v6019
    %v7802 = vpop.f32.mrf.mxu0
    %v7803 = vadd.f32 %v7790, %v7802
    %v7804 = vpop.f32.mrf.mxu0
    %7805 = vdwg.mxu0
    %7806 = vmatpush.bf16.msra.mxu0 %v7154
    %7807 = vmatpush.bf16.msra.mxu0 %v7150
    %7808 = vmatpush.bf16.msra.mxu0 %v7146
    %7809 = vmatpush.bf16.msra.mxu0 %v7142
    %7810 = vmatpush.bf16.msra.mxu0 %v7138
    %7811 = vmatpush.bf16.msra.mxu0 %v7134
    %7812 = vmatpush.bf16.msra.mxu0 %v7130
    %7813 = vmatpush.bf16.msra.mxu0 %v7126
    %7814 = vmatmul.bf16.gmra.mxu0 %v6020
    %v7815 = vpop.f32.mrf.mxu0
    %v7816 = vadd.f32 %v7803, %v7815
    %v7817 = vpop.f32.mrf.mxu0
    %7818 = vdwg.mxu0
    %7819 = vmatpush.bf16.msra.mxu0 %v7186
    %7820 = vmatpush.bf16.msra.mxu0 %v7182
    %7821 = vmatpush.bf16.msra.mxu0 %v7178
    %7822 = vmatpush.bf16.msra.mxu0 %v7174
    %7823 = vmatpush.bf16.msra.mxu0 %v7170
    %7824 = vmatpush.bf16.msra.mxu0 %v7166
    %7825 = vmatpush.bf16.msra.mxu0 %v7162
    %7826 = vmatpush.bf16.msra.mxu0 %v7158
    %7827 = vmatmul.bf16.gmra.mxu0 %v6021
    %v7828 = vpop.f32.mrf.mxu0
    %v7829 = vadd.f32 %v7816, %v7828
    %v7830 = vpop.f32.mrf.mxu0
    %7831 = vdwg.mxu0
    %7832 = vmatpush.bf16.msra.mxu0 %v7218
    %7833 = vmatpush.bf16.msra.mxu0 %v7214
    %7834 = vmatpush.bf16.msra.mxu0 %v7210
    %7835 = vmatpush.bf16.msra.mxu0 %v7206
    %7836 = vmatpush.bf16.msra.mxu0 %v7202
    %7837 = vmatpush.bf16.msra.mxu0 %v7198
    %7838 = vmatpush.bf16.msra.mxu0 %v7194
    %7839 = vmatpush.bf16.msra.mxu0 %v7190
    %7840 = vmatmul.bf16.gmra.mxu0 %v6022
    %v7841 = vpop.f32.mrf.mxu0
    %v7842 = vadd.f32 %v7829, %v7841
    %v7843 = vpop.f32.mrf.mxu0
    %7844 = vdwg.mxu0
    %7845 = vmatpush.bf16.msra.mxu0 %v7250
    %7846 = vmatpush.bf16.msra.mxu0 %v7246
    %7847 = vmatpush.bf16.msra.mxu0 %v7242
    %7848 = vmatpush.bf16.msra.mxu0 %v7238
    %7849 = vmatpush.bf16.msra.mxu0 %v7234
    %7850 = vmatpush.bf16.msra.mxu0 %v7230
    %7851 = vmatpush.bf16.msra.mxu0 %v7226
    %7852 = vmatpush.bf16.msra.mxu0 %v7222
    %7853 = vmatmul.bf16.gmra.mxu0 %v6023
    %v7854 = vpop.f32.mrf.mxu0
    %v7855 = vadd.f32 %v7842, %v7854
    %v7856 = vpop.f32.mrf.mxu0
    %7857 = vdwg.mxu0
    %7858 = vmatpush.bf16.msra.mxu0 %v7282
    %7859 = vmatpush.bf16.msra.mxu0 %v7278
    %7860 = vmatpush.bf16.msra.mxu0 %v7274
    %7861 = vmatpush.bf16.msra.mxu0 %v7270
    %7862 = vmatpush.bf16.msra.mxu0 %v7266
    %7863 = vmatpush.bf16.msra.mxu0 %v7262
    %7864 = vmatpush.bf16.msra.mxu0 %v7258
    %7865 = vmatpush.bf16.msra.mxu0 %v7254
    %7866 = vmatmul.bf16.gmra.mxu0 %v6024
    %v7867 = vpop.f32.mrf.mxu0
    %v7868 = vadd.f32 %v7855, %v7867
    %v7869 = vpop.f32.mrf.mxu0
    %7870 = vdwg.mxu0
    %7871 = vmatpush.bf16.msra.mxu0 %v7314
    %7872 = vmatpush.bf16.msra.mxu0 %v7310
    %7873 = vmatpush.bf16.msra.mxu0 %v7306
    %7874 = vmatpush.bf16.msra.mxu0 %v7302
    %7875 = vmatpush.bf16.msra.mxu0 %v7298
    %7876 = vmatpush.bf16.msra.mxu0 %v7294
    %7877 = vmatpush.bf16.msra.mxu0 %v7290
    %7878 = vmatpush.bf16.msra.mxu0 %v7286
    %7879 = vmatmul.bf16.gmra.mxu0 %v6025
    %v7880 = vpop.f32.mrf.mxu0
    %v7881 = vadd.f32 %v7868, %v7880
    %v7882 = vpop.f32.mrf.mxu0
    %7883 = vdwg.mxu0
    %7884 = vmatpush.bf16.msra.mxu0 %v7091
    %7885 = vmatpush.bf16.msra.mxu0 %v7087
    %7886 = vmatpush.bf16.msra.mxu0 %v7083
    %7887 = vmatpush.bf16.msra.mxu0 %v7079
    %7888 = vmatpush.bf16.msra.mxu0 %v7075
    %7889 = vmatpush.bf16.msra.mxu0 %v7071
    %7890 = vmatpush.bf16.msra.mxu0 %v7067
    %7891 = vmatpush.bf16.msra.mxu0 %v7063
    %7892 = vmatmul.bf16.gmra.mxu0 %v6018
    %v7893 = vpop.f32.mrf.mxu0
    %v7894 = vadd.f32 %v6287, %v7893
    %v7895 = vpop.f32.mrf.mxu0
    %7896 = vdwg.mxu0
    %7897 = vmatpush.bf16.msra.mxu0 %v7123
    %7898 = vmatpush.bf16.msra.mxu0 %v7119
    %7899 = vmatpush.bf16.msra.mxu0 %v7115
    %7900 = vmatpush.bf16.msra.mxu0 %v7111
    %7901 = vmatpush.bf16.msra.mxu0 %v7107
    %7902 = vmatpush.bf16.msra.mxu0 %v7103
    %7903 = vmatpush.bf16.msra.mxu0 %v7099
    %7904 = vmatpush.bf16.msra.mxu0 %v7095
    %7905 = vmatmul.bf16.gmra.mxu0 %v6019
    %v7906 = vpop.f32.mrf.mxu0
    %v7907 = vadd.f32 %v7894, %v7906
    %v7908 = vpop.f32.mrf.mxu0
    %7909 = vdwg.mxu0
    %7910 = vmatpush.bf16.msra.mxu0 %v7155
    %7911 = vmatpush.bf16.msra.mxu0 %v7151
    %7912 = vmatpush.bf16.msra.mxu0 %v7147
    %7913 = vmatpush.bf16.msra.mxu0 %v7143
    %7914 = vmatpush.bf16.msra.mxu0 %v7139
    %7915 = vmatpush.bf16.msra.mxu0 %v7135
    %7916 = vmatpush.bf16.msra.mxu0 %v7131
    %7917 = vmatpush.bf16.msra.mxu0 %v7127
    %7918 = vmatmul.bf16.gmra.mxu0 %v6020
    %v7919 = vpop.f32.mrf.mxu0
    %v7920 = vadd.f32 %v7907, %v7919
    %v7921 = vpop.f32.mrf.mxu0
    %7922 = vdwg.mxu0
    %7923 = vmatpush.bf16.msra.mxu0 %v7187
    %7924 = vmatpush.bf16.msra.mxu0 %v7183
    %7925 = vmatpush.bf16.msra.mxu0 %v7179
    %7926 = vmatpush.bf16.msra.mxu0 %v7175
    %7927 = vmatpush.bf16.msra.mxu0 %v7171
    %7928 = vmatpush.bf16.msra.mxu0 %v7167
    %7929 = vmatpush.bf16.msra.mxu0 %v7163
    %7930 = vmatpush.bf16.msra.mxu0 %v7159
    %7931 = vmatmul.bf16.gmra.mxu0 %v6021
    %v7932 = vpop.f32.mrf.mxu0
    %v7933 = vadd.f32 %v7920, %v7932
    %v7934 = vpop.f32.mrf.mxu0
    %7935 = vdwg.mxu0
    %7936 = vmatpush.bf16.msra.mxu0 %v7219
    %7937 = vmatpush.bf16.msra.mxu0 %v7215
    %7938 = vmatpush.bf16.msra.mxu0 %v7211
    %7939 = vmatpush.bf16.msra.mxu0 %v7207
    %7940 = vmatpush.bf16.msra.mxu0 %v7203
    %7941 = vmatpush.bf16.msra.mxu0 %v7199
    %7942 = vmatpush.bf16.msra.mxu0 %v7195
    %7943 = vmatpush.bf16.msra.mxu0 %v7191
    %7944 = vmatmul.bf16.gmra.mxu0 %v6022
    %v7945 = vpop.f32.mrf.mxu0
    %v7946 = vadd.f32 %v7933, %v7945
    %v7947 = vpop.f32.mrf.mxu0
    %7948 = vdwg.mxu0
    %7949 = vmatpush.bf16.msra.mxu0 %v7251
    %7950 = vmatpush.bf16.msra.mxu0 %v7247
    %7951 = vmatpush.bf16.msra.mxu0 %v7243
    %7952 = vmatpush.bf16.msra.mxu0 %v7239
    %7953 = vmatpush.bf16.msra.mxu0 %v7235
    %7954 = vmatpush.bf16.msra.mxu0 %v7231
    %7955 = vmatpush.bf16.msra.mxu0 %v7227
    %7956 = vmatpush.bf16.msra.mxu0 %v7223
    %7957 = vmatmul.bf16.gmra.mxu0 %v6023
    %v7958 = vpop.f32.mrf.mxu0
    %v7959 = vadd.f32 %v7946, %v7958
    %v7960 = vpop.f32.mrf.mxu0
    %7961 = vdwg.mxu0
    %7962 = vmatpush.bf16.msra.mxu0 %v7283
    %7963 = vmatpush.bf16.msra.mxu0 %v7279
    %7964 = vmatpush.bf16.msra.mxu0 %v7275
    %7965 = vmatpush.bf16.msra.mxu0 %v7271
    %7966 = vmatpush.bf16.msra.mxu0 %v7267
    %7967 = vmatpush.bf16.msra.mxu0 %v7263
    %7968 = vmatpush.bf16.msra.mxu0 %v7259
    %7969 = vmatpush.bf16.msra.mxu0 %v7255
    %7970 = vmatmul.bf16.gmra.mxu0 %v6024
    %v7971 = vpop.f32.mrf.mxu0
    %v7972 = vadd.f32 %v7959, %v7971
    %v7973 = vpop.f32.mrf.mxu0
    %7974 = vdwg.mxu0
    %7975 = vmatpush.bf16.msra.mxu0 %v7315
    %7976 = vmatpush.bf16.msra.mxu0 %v7311
    %7977 = vmatpush.bf16.msra.mxu0 %v7307
    %7978 = vmatpush.bf16.msra.mxu0 %v7303
    %7979 = vmatpush.bf16.msra.mxu0 %v7299
    %7980 = vmatpush.bf16.msra.mxu0 %v7295
    %7981 = vmatpush.bf16.msra.mxu0 %v7291
    %7982 = vmatpush.bf16.msra.mxu0 %v7287
    %7983 = vmatmul.bf16.gmra.mxu0 %v6025
    %v7984 = vpop.f32.mrf.mxu0
    %v7985 = vadd.f32 %v7972, %v7984
    %v7986 = vpop.f32.mrf.mxu0
    %7987 = vdwg.mxu0
    %vm7988 = vcmp.gt.f32.partialorder %v7673, 0.0
    %vm7989 = vcmp.gt.f32.partialorder %v7777, 0.0
    %vm7990 = vcmp.gt.f32.partialorder %v7881, 0.0
    %vm7991 = vcmp.gt.f32.partialorder %v7985, 0.0
    %v7992 = vmul.f32 %v7673, 0.01
    %v7993 = vmul.f32 %v7777, 0.01
    %v7994 = vmul.f32 %v7881, 0.01
    %v7995 = vmul.f32 %v7985, 0.01
    %v7996 = vsel %vm7988, %v7673, %v7992
    %v7997 = vsel %vm7989, %v7777, %v7993
    %v7998 = vsel %vm7990, %v7881, %v7994
    %v7999 = vsel %vm7991, %v7985, %v7995
    %v8000 = vpack.c.bf16 %v7996, %v7996
    %v8001 = vpack.c.bf16 %v7997, %v7997
    %v8002 = vpack.c.bf16 %v7998, %v7998
    %v8003 = vpack.c.bf16 %v7999, %v7999
    %v8004 = vld [vmem:[#allocation16] sm:$0xff]
    %v8005 = vld [vmem:[#allocation16 + $0x8] sm:$0xff]
    %v8006 = vld [vmem:[#allocation16 + $0x10] sm:$0xff]
    %v8007 = vld [vmem:[#allocation16 + $0x18] sm:$0xf]
    %v8008 = vld [vmem:[#allocation16 + $0x1c] sm:$0xff]
    %v8009 = vld [vmem:[#allocation16 + $0x24] sm:$0xff]
    %v8010 = vld [vmem:[#allocation16 + $0x2c] sm:$0xff]
    %v8011 = vld [vmem:[#allocation16 + $0x34] sm:$0xf]
    %v8012 = vld [vmem:[#allocation16 + $0x38] sm:$0xff]
    %v8013 = vld [vmem:[#allocation16 + $0x40] sm:$0xff]
    %v8014 = vld [vmem:[#allocation16 + $0x48] sm:$0xff]
    %v8015 = vld [vmem:[#allocation16 + $0x50] sm:$0xf]
    %v8016 = vld [vmem:[#allocation16 + $0x54] sm:$0xff]
    %v8017 = vld [vmem:[#allocation16 + $0x5c] sm:$0xff]
    %v8018 = vld [vmem:[#allocation16 + $0x64] sm:$0xff]
    %v8019 = vld [vmem:[#allocation16 + $0x6c] sm:$0xf]
    %v8020 = vld [vmem:[#allocation16 + $0x70] sm:$0xff]
    %v8021 = vld [vmem:[#allocation16 + $0x78] sm:$0xff]
    %v8022 = vld [vmem:[#allocation16 + $0x80] sm:$0xff]
    %v8023 = vld [vmem:[#allocation16 + $0x88] sm:$0xf]
    %v8024 = vld [vmem:[#allocation16 + $0x8c] sm:$0xff]
    %v8025 = vld [vmem:[#allocation16 + $0x94] sm:$0xff]
    %v8026 = vld [vmem:[#allocation16 + $0x9c] sm:$0xff]
    %v8027 = vld [vmem:[#allocation16 + $0xa4] sm:$0xf]
    %v8028 = vld [vmem:[#allocation16 + $0xa8] sm:$0xff]
    %v8029 = vld [vmem:[#allocation16 + $0xb0] sm:$0xff]
    %v8030 = vld [vmem:[#allocation16 + $0xb8] sm:$0xff]
    %v8031 = vld [vmem:[#allocation16 + $0xc0] sm:$0xf]
    %v8032 = vld [vmem:[#allocation16 + $0xc4] sm:$0xff]
    %v8033 = vld [vmem:[#allocation16 + $0xcc] sm:$0xff]
    %v8034 = vld [vmem:[#allocation16 + $0xd4] sm:$0xff]
    %v8035 = vld [vmem:[#allocation16 + $0xdc] sm:$0xf]
    %v8036 = vld [vmem:[#allocation16 + $0xe0] sm:$0xff]
    %v8037 = vld [vmem:[#allocation16 + $0xe8] sm:$0xff]
    %v8038 = vld [vmem:[#allocation16 + $0xf0] sm:$0xff]
    %v8039 = vld [vmem:[#allocation16 + $0xf8] sm:$0xf]
    %v8040 = vld [vmem:[#allocation16 + $0xfc] sm:$0xff]
    %v8041 = vld [vmem:[#allocation16 + $0x104] sm:$0xff]
    %v8042 = vld [vmem:[#allocation16 + $0x10c] sm:$0xff]
    %v8043 = vld [vmem:[#allocation16 + $0x114] sm:$0xf]
    %v8044 = vld [vmem:[#allocation16 + $0x118] sm:$0xff]
    %v8045 = vld [vmem:[#allocation16 + $0x120] sm:$0xff]
    %v8046 = vld [vmem:[#allocation16 + $0x128] sm:$0xff]
    %v8047 = vld [vmem:[#allocation16 + $0x130] sm:$0xf]
    %v8048 = vld [vmem:[#allocation16 + $0x134] sm:$0xff]
    %v8049 = vld [vmem:[#allocation16 + $0x13c] sm:$0xff]
    %v8050 = vld [vmem:[#allocation16 + $0x144] sm:$0xff]
    %v8051 = vld [vmem:[#allocation16 + $0x14c] sm:$0xf]
    %v8052 = vld [vmem:[#allocation16 + $0x150] sm:$0xff]
    %v8053 = vld [vmem:[#allocation16 + $0x158] sm:$0xff]
    %v8054 = vld [vmem:[#allocation16 + $0x160] sm:$0xff]
    %v8055 = vld [vmem:[#allocation16 + $0x168] sm:$0xf]
    %v8056 = vld [vmem:[#allocation16 + $0x16c] sm:$0xff]
    %v8057 = vld [vmem:[#allocation16 + $0x174] sm:$0xff]
    %v8058 = vld [vmem:[#allocation16 + $0x17c] sm:$0xff]
    %v8059 = vld [vmem:[#allocation16 + $0x184] sm:$0xf]
    %v8060 = vld [vmem:[#allocation16 + $0x188] sm:$0xff]
    %v8061 = vld [vmem:[#allocation16 + $0x190] sm:$0xff]
    %v8062 = vld [vmem:[#allocation16 + $0x198] sm:$0xff]
    %v8063 = vld [vmem:[#allocation16 + $0x1a0] sm:$0xf]
    %v8064 = vld [vmem:[#allocation16 + $0x1a4] sm:$0xff]
    %v8065 = vld [vmem:[#allocation16 + $0x1ac] sm:$0xff]
    %v8066 = vld [vmem:[#allocation16 + $0x1b4] sm:$0xff]
    %v8067 = vld [vmem:[#allocation16 + $0x1bc] sm:$0xf]
    %v8068 = vld [vmem:[#allocation16 + $0x1c0] sm:$0xff]
    %v8069 = vld [vmem:[#allocation16 + $0x1c8] sm:$0xff]
    %v8070 = vld [vmem:[#allocation16 + $0x1d0] sm:$0xff]
    %v8071 = vld [vmem:[#allocation16 + $0x1d8] sm:$0xf]
    %v8072 = vld [vmem:[#allocation16 + $0x1dc] sm:$0xff]
    %v8073 = vld [vmem:[#allocation16 + $0x1e4] sm:$0xff]
    %v8074 = vld [vmem:[#allocation16 + $0x1ec] sm:$0xff]
    %v8075 = vld [vmem:[#allocation16 + $0x1f4] sm:$0xf]
    %v8076 = vld [vmem:[#allocation16 + $0x1f8] sm:$0xff]
    %v8077 = vld [vmem:[#allocation16 + $0x200] sm:$0xff]
    %v8078 = vld [vmem:[#allocation16 + $0x208] sm:$0xff]
    %v8079 = vld [vmem:[#allocation16 + $0x210] sm:$0xf]
    %v8080 = vld [vmem:[#allocation16 + $0x214] sm:$0xff]
    %v8081 = vld [vmem:[#allocation16 + $0x21c] sm:$0xff]
    %v8082 = vld [vmem:[#allocation16 + $0x224] sm:$0xff]
    %v8083 = vld [vmem:[#allocation16 + $0x22c] sm:$0xf]
    %v8084 = vld [vmem:[#allocation16 + $0x230] sm:$0xff]
    %v8085 = vld [vmem:[#allocation16 + $0x238] sm:$0xff]
    %v8086 = vld [vmem:[#allocation16 + $0x240] sm:$0xff]
    %v8087 = vld [vmem:[#allocation16 + $0x248] sm:$0xf]
    %v8088 = vld [vmem:[#allocation16 + $0x24c] sm:$0xff]
    %v8089 = vld [vmem:[#allocation16 + $0x254] sm:$0xff]
    %v8090 = vld [vmem:[#allocation16 + $0x25c] sm:$0xff]
    %v8091 = vld [vmem:[#allocation16 + $0x264] sm:$0xf]
    %v8092 = vld [vmem:[#allocation16 + $0x268] sm:$0xff]
    %v8093 = vld [vmem:[#allocation16 + $0x270] sm:$0xff]
    %v8094 = vld [vmem:[#allocation16 + $0x278] sm:$0xff]
    %v8095 = vld [vmem:[#allocation16 + $0x280] sm:$0xf]
    %v8096 = vld [vmem:[#allocation16 + $0x284] sm:$0xff]
    %v8097 = vld [vmem:[#allocation16 + $0x28c] sm:$0xff]
    %v8098 = vld [vmem:[#allocation16 + $0x294] sm:$0xff]
    %v8099 = vld [vmem:[#allocation16 + $0x29c] sm:$0xf]
    %v8100 = vld [vmem:[#allocation16 + $0x2a0] sm:$0xff]
    %v8101 = vld [vmem:[#allocation16 + $0x2a8] sm:$0xff]
    %v8102 = vld [vmem:[#allocation16 + $0x2b0] sm:$0xff]
    %v8103 = vld [vmem:[#allocation16 + $0x2b8] sm:$0xf]
    %v8104 = vld [vmem:[#allocation16 + $0x2bc] sm:$0xff]
    %v8105 = vld [vmem:[#allocation16 + $0x2c4] sm:$0xff]
    %v8106 = vld [vmem:[#allocation16 + $0x2cc] sm:$0xff]
    %v8107 = vld [vmem:[#allocation16 + $0x2d4] sm:$0xf]
    %v8108 = vld [vmem:[#allocation16 + $0x2d8] sm:$0xff]
    %v8109 = vld [vmem:[#allocation16 + $0x2e0] sm:$0xff]
    %v8110 = vld [vmem:[#allocation16 + $0x2e8] sm:$0xff]
    %v8111 = vld [vmem:[#allocation16 + $0x2f0] sm:$0xf]
    %v8112 = vld [vmem:[#allocation16 + $0x2f4] sm:$0xff]
    %v8113 = vld [vmem:[#allocation16 + $0x2fc] sm:$0xff]
    %v8114 = vld [vmem:[#allocation16 + $0x304] sm:$0xff]
    %v8115 = vld [vmem:[#allocation16 + $0x30c] sm:$0xf]
    %v8116 = vld [vmem:[#allocation16 + $0x310] sm:$0xff]
    %v8117 = vld [vmem:[#allocation16 + $0x318] sm:$0xff]
    %v8118 = vld [vmem:[#allocation16 + $0x320] sm:$0xff]
    %v8119 = vld [vmem:[#allocation16 + $0x328] sm:$0xf]
    %v8120 = vld [vmem:[#allocation16 + $0x32c] sm:$0xff]
    %v8121 = vld [vmem:[#allocation16 + $0x334] sm:$0xff]
    %v8122 = vld [vmem:[#allocation16 + $0x33c] sm:$0xff]
    %v8123 = vld [vmem:[#allocation16 + $0x344] sm:$0xf]
    %v8124 = vld [vmem:[#allocation16 + $0x348] sm:$0xff]
    %v8125 = vld [vmem:[#allocation16 + $0x350] sm:$0xff]
    %v8126 = vld [vmem:[#allocation16 + $0x358] sm:$0xff]
    %v8127 = vld [vmem:[#allocation16 + $0x360] sm:$0xf]
    %v8128 = vld [vmem:[#allocation16 + $0x364] sm:$0xff]
    %v8129 = vld [vmem:[#allocation16 + $0x36c] sm:$0xff]
    %v8130 = vld [vmem:[#allocation16 + $0x374] sm:$0xff]
    %v8131 = vld [vmem:[#allocation16 + $0x37c] sm:$0xf]
    %v8132 = vld [vmem:[#allocation16 + $0x380] sm:$0xff]
    %v8133 = vld [vmem:[#allocation16 + $0x388] sm:$0xff]
    %v8134 = vld [vmem:[#allocation16 + $0x390] sm:$0xff]
    %v8135 = vld [vmem:[#allocation16 + $0x398] sm:$0xf]
    %v8136 = vld [vmem:[#allocation16 + $0x39c] sm:$0xff]
    %v8137 = vld [vmem:[#allocation16 + $0x3a4] sm:$0xff]
    %v8138 = vld [vmem:[#allocation16 + $0x3ac] sm:$0xff]
    %v8139 = vld [vmem:[#allocation16 + $0x3b4] sm:$0xf]
    %v8140 = vld [vmem:[#allocation16 + $0x3b8] sm:$0xff]
    %v8141 = vld [vmem:[#allocation16 + $0x3c0] sm:$0xff]
    %v8142 = vld [vmem:[#allocation16 + $0x3c8] sm:$0xff]
    %v8143 = vld [vmem:[#allocation16 + $0x3d0] sm:$0xf]
    %v8144 = vld [vmem:[#allocation16 + $0x3d4] sm:$0xff]
    %v8145 = vld [vmem:[#allocation16 + $0x3dc] sm:$0xff]
    %v8146 = vld [vmem:[#allocation16 + $0x3e4] sm:$0xff]
    %v8147 = vld [vmem:[#allocation16 + $0x3ec] sm:$0xf]
    %v8148 = vld [vmem:[#allocation16 + $0x3f0] sm:$0xff]
    %v8149 = vld [vmem:[#allocation16 + $0x3f8] sm:$0xff]
    %v8150 = vld [vmem:[#allocation16 + $0x400] sm:$0xff]
    %v8151 = vld [vmem:[#allocation16 + $0x408] sm:$0xf]
    %v8152 = vld [vmem:[#allocation16 + $0x40c] sm:$0xff]
    %v8153 = vld [vmem:[#allocation16 + $0x414] sm:$0xff]
    %v8154 = vld [vmem:[#allocation16 + $0x41c] sm:$0xff]
    %v8155 = vld [vmem:[#allocation16 + $0x424] sm:$0xf]
    %v8156 = vld [vmem:[#allocation16 + $0x428] sm:$0xff]
    %v8157 = vld [vmem:[#allocation16 + $0x430] sm:$0xff]
    %v8158 = vld [vmem:[#allocation16 + $0x438] sm:$0xff]
    %v8159 = vld [vmem:[#allocation16 + $0x440] sm:$0xf]
    %v8160 = vld [vmem:[#allocation16 + $0x444] sm:$0xff]
    %v8161 = vld [vmem:[#allocation16 + $0x44c] sm:$0xff]
    %v8162 = vld [vmem:[#allocation16 + $0x454] sm:$0xff]
    %v8163 = vld [vmem:[#allocation16 + $0x45c] sm:$0xf]
    %v8164 = vld [vmem:[#allocation16 + $0x460] sm:$0xff]
    %v8165 = vld [vmem:[#allocation16 + $0x468] sm:$0xff]
    %v8166 = vld [vmem:[#allocation16 + $0x470] sm:$0xff]
    %v8167 = vld [vmem:[#allocation16 + $0x478] sm:$0xf]
    %v8168 = vld [vmem:[#allocation16 + $0x47c] sm:$0xff]
    %v8169 = vld [vmem:[#allocation16 + $0x484] sm:$0xff]
    %v8170 = vld [vmem:[#allocation16 + $0x48c] sm:$0xff]
    %v8171 = vld [vmem:[#allocation16 + $0x494] sm:$0xf]
    %v8172 = vld [vmem:[#allocation16 + $0x498] sm:$0xff]
    %v8173 = vld [vmem:[#allocation16 + $0x4a0] sm:$0xff]
    %v8174 = vld [vmem:[#allocation16 + $0x4a8] sm:$0xff]
    %v8175 = vld [vmem:[#allocation16 + $0x4b0] sm:$0xf]
    %v8176 = vld [vmem:[#allocation16 + $0x4b4] sm:$0xff]
    %v8177 = vld [vmem:[#allocation16 + $0x4bc] sm:$0xff]
    %v8178 = vld [vmem:[#allocation16 + $0x4c4] sm:$0xff]
    %v8179 = vld [vmem:[#allocation16 + $0x4cc] sm:$0xf]
    %v8180 = vld [vmem:[#allocation16 + $0x4d0] sm:$0xff]
    %v8181 = vld [vmem:[#allocation16 + $0x4d8] sm:$0xff]
    %v8182 = vld [vmem:[#allocation16 + $0x4e0] sm:$0xff]
    %v8183 = vld [vmem:[#allocation16 + $0x4e8] sm:$0xf]
    %v8184 = vld [vmem:[#allocation16 + $0x4ec] sm:$0xff]
    %v8185 = vld [vmem:[#allocation16 + $0x4f4] sm:$0xff]
    %v8186 = vld [vmem:[#allocation16 + $0x4fc] sm:$0xff]
    %v8187 = vld [vmem:[#allocation16 + $0x504] sm:$0xf]
    %v8188 = vld [vmem:[#allocation16 + $0x508] sm:$0xff]
    %v8189 = vld [vmem:[#allocation16 + $0x510] sm:$0xff]
    %v8190 = vld [vmem:[#allocation16 + $0x518] sm:$0xff]
    %v8191 = vld [vmem:[#allocation16 + $0x520] sm:$0xf]
    %v8192 = vld [vmem:[#allocation16 + $0x524] sm:$0xff]
    %v8193 = vld [vmem:[#allocation16 + $0x52c] sm:$0xff]
    %v8194 = vld [vmem:[#allocation16 + $0x534] sm:$0xff]
    %v8195 = vld [vmem:[#allocation16 + $0x53c] sm:$0xf]
    %v8196 = vld [vmem:[#allocation16 + $0x540] sm:$0xff]
    %v8197 = vld [vmem:[#allocation16 + $0x548] sm:$0xff]
    %v8198 = vld [vmem:[#allocation16 + $0x550] sm:$0xff]
    %v8199 = vld [vmem:[#allocation16 + $0x558] sm:$0xf]
    %v8200 = vld [vmem:[#allocation16 + $0x55c] sm:$0xff]
    %v8201 = vld [vmem:[#allocation16 + $0x564] sm:$0xff]
    %v8202 = vld [vmem:[#allocation16 + $0x56c] sm:$0xff]
    %v8203 = vld [vmem:[#allocation16 + $0x574] sm:$0xf]
    %v8204 = vld [vmem:[#allocation16 + $0x578] sm:$0xff]
    %v8205 = vld [vmem:[#allocation16 + $0x580] sm:$0xff]
    %v8206 = vld [vmem:[#allocation16 + $0x588] sm:$0xff]
    %v8207 = vld [vmem:[#allocation16 + $0x590] sm:$0xf]
    %v8208 = vld [vmem:[#allocation16 + $0x594] sm:$0xff]
    %v8209 = vld [vmem:[#allocation16 + $0x59c] sm:$0xff]
    %v8210 = vld [vmem:[#allocation16 + $0x5a4] sm:$0xff]
    %v8211 = vld [vmem:[#allocation16 + $0x5ac] sm:$0xf]
    %v8212 = vld [vmem:[#allocation16 + $0x5b0] sm:$0xff]
    %v8213 = vld [vmem:[#allocation16 + $0x5b8] sm:$0xff]
    %v8214 = vld [vmem:[#allocation16 + $0x5c0] sm:$0xff]
    %v8215 = vld [vmem:[#allocation16 + $0x5c8] sm:$0xf]
    %v8216 = vld [vmem:[#allocation16 + $0x5cc] sm:$0xff]
    %v8217 = vld [vmem:[#allocation16 + $0x5d4] sm:$0xff]
    %v8218 = vld [vmem:[#allocation16 + $0x5dc] sm:$0xff]
    %v8219 = vld [vmem:[#allocation16 + $0x5e4] sm:$0xf]
    %v8220 = vld [vmem:[#allocation16 + $0x5e8] sm:$0xff]
    %v8221 = vld [vmem:[#allocation16 + $0x5f0] sm:$0xff]
    %v8222 = vld [vmem:[#allocation16 + $0x5f8] sm:$0xff]
    %v8223 = vld [vmem:[#allocation16 + $0x600] sm:$0xf]
    %v8224 = vld [vmem:[#allocation16 + $0x604] sm:$0xff]
    %v8225 = vld [vmem:[#allocation16 + $0x60c] sm:$0xff]
    %v8226 = vld [vmem:[#allocation16 + $0x614] sm:$0xff]
    %v8227 = vld [vmem:[#allocation16 + $0x61c] sm:$0xf]
    %v8228 = vld [vmem:[#allocation16 + $0x620] sm:$0xff]
    %v8229 = vld [vmem:[#allocation16 + $0x628] sm:$0xff]
    %v8230 = vld [vmem:[#allocation16 + $0x630] sm:$0xff]
    %v8231 = vld [vmem:[#allocation16 + $0x638] sm:$0xf]
    %v8232 = vld [vmem:[#allocation16 + $0x63c] sm:$0xff]
    %v8233 = vld [vmem:[#allocation16 + $0x644] sm:$0xff]
    %v8234 = vld [vmem:[#allocation16 + $0x64c] sm:$0xff]
    %v8235 = vld [vmem:[#allocation16 + $0x654] sm:$0xf]
    %v8236 = vld [vmem:[#allocation16 + $0x658] sm:$0xff]
    %v8237 = vld [vmem:[#allocation16 + $0x660] sm:$0xff]
    %v8238 = vld [vmem:[#allocation16 + $0x668] sm:$0xff]
    %v8239 = vld [vmem:[#allocation16 + $0x670] sm:$0xf]
    %v8240 = vld [vmem:[#allocation16 + $0x674] sm:$0xff]
    %v8241 = vld [vmem:[#allocation16 + $0x67c] sm:$0xff]
    %v8242 = vld [vmem:[#allocation16 + $0x684] sm:$0xff]
    %v8243 = vld [vmem:[#allocation16 + $0x68c] sm:$0xf]
    %v8244 = vld [vmem:[#allocation16 + $0x690] sm:$0xff]
    %v8245 = vld [vmem:[#allocation16 + $0x698] sm:$0xff]
    %v8246 = vld [vmem:[#allocation16 + $0x6a0] sm:$0xff]
    %v8247 = vld [vmem:[#allocation16 + $0x6a8] sm:$0xf]
    %v8248 = vld [vmem:[#allocation16 + $0x6ac] sm:$0xff]
    %v8249 = vld [vmem:[#allocation16 + $0x6b4] sm:$0xff]
    %v8250 = vld [vmem:[#allocation16 + $0x6bc] sm:$0xff]
    %v8251 = vld [vmem:[#allocation16 + $0x6c4] sm:$0xf]
    %v8252 = vld [vmem:[#allocation16 + $0x6c8] sm:$0xff]
    %v8253 = vld [vmem:[#allocation16 + $0x6d0] sm:$0xff]
    %v8254 = vld [vmem:[#allocation16 + $0x6d8] sm:$0xff]
    %v8255 = vld [vmem:[#allocation16 + $0x6e0] sm:$0xf]
    %v8256 = vld [vmem:[#allocation16 + $0x6e4] sm:$0xff]
    %v8257 = vld [vmem:[#allocation16 + $0x6ec] sm:$0xff]
    %v8258 = vld [vmem:[#allocation16 + $0x6f4] sm:$0xff]
    %v8259 = vld [vmem:[#allocation16 + $0x6fc] sm:$0xf]
    %v8260 = vld [vmem:[%s20] sm:$0xff]
    %v8262 = vperm.slane %v8260, 0
    %v8263 = vperm.slane %v8260, 1
    %v8264 = vperm.slane %v8260, 2
    %v8265 = vperm.slane %v8260, 3
    %v8266 = vperm.slane %v8260, 4
    %v8267 = vperm.slane %v8260, 5
    %v8268 = vperm.slane %v8260, 6
    %v8532 = vunpack.c.l.b16 %v8004
    %v8533 = vunpack.c.h.b16 %v8004
    %v8534 = vunpack.c.l.b16 %v8005
    %v8535 = vunpack.c.h.b16 %v8005
    %v8536 = vunpack.c.l.b16 %v8006
    %v8537 = vunpack.c.h.b16 %v8006
    %v8538 = vunpack.c.l.b16 %v8007
    %v8539 = vunpack.c.l.b16 %v8008
    %v8540 = vunpack.c.h.b16 %v8008
    %v8541 = vunpack.c.l.b16 %v8009
    %v8542 = vunpack.c.h.b16 %v8009
    %v8543 = vunpack.c.l.b16 %v8010
    %v8544 = vunpack.c.h.b16 %v8010
    %v8545 = vunpack.c.l.b16 %v8011
    %v8546 = vunpack.c.l.b16 %v8012
    %v8547 = vunpack.c.h.b16 %v8012
    %v8548 = vunpack.c.l.b16 %v8013
    %v8549 = vunpack.c.h.b16 %v8013
    %v8550 = vunpack.c.l.b16 %v8014
    %v8551 = vunpack.c.h.b16 %v8014
    %v8552 = vunpack.c.l.b16 %v8015
    %v8553 = vunpack.c.l.b16 %v8016
    %v8554 = vunpack.c.h.b16 %v8016
    %v8555 = vunpack.c.l.b16 %v8017
    %v8556 = vunpack.c.h.b16 %v8017
    %v8557 = vunpack.c.l.b16 %v8018
    %v8558 = vunpack.c.h.b16 %v8018
    %v8559 = vunpack.c.l.b16 %v8019
    %v8560 = vunpack.c.l.b16 %v8020
    %v8561 = vunpack.c.h.b16 %v8020
    %v8562 = vunpack.c.l.b16 %v8021
    %v8563 = vunpack.c.h.b16 %v8021
    %v8564 = vunpack.c.l.b16 %v8022
    %v8565 = vunpack.c.h.b16 %v8022
    %v8566 = vunpack.c.l.b16 %v8023
    %v8567 = vunpack.c.l.b16 %v8024
    %v8568 = vunpack.c.h.b16 %v8024
    %v8569 = vunpack.c.l.b16 %v8025
    %v8570 = vunpack.c.h.b16 %v8025
    %v8571 = vunpack.c.l.b16 %v8026
    %v8572 = vunpack.c.h.b16 %v8026
    %v8573 = vunpack.c.l.b16 %v8027
    %v8574 = vunpack.c.l.b16 %v8028
    %v8575 = vunpack.c.h.b16 %v8028
    %v8576 = vunpack.c.l.b16 %v8029
    %v8577 = vunpack.c.h.b16 %v8029
    %v8578 = vunpack.c.l.b16 %v8030
    %v8579 = vunpack.c.h.b16 %v8030
    %v8580 = vunpack.c.l.b16 %v8031
    %v8581 = vunpack.c.l.b16 %v8032
    %v8582 = vunpack.c.h.b16 %v8032
    %v8583 = vunpack.c.l.b16 %v8033
    %v8584 = vunpack.c.h.b16 %v8033
    %v8585 = vunpack.c.l.b16 %v8034
    %v8586 = vunpack.c.h.b16 %v8034
    %v8587 = vunpack.c.l.b16 %v8035
    %v8588 = vunpack.c.l.b16 %v8036
    %v8589 = vunpack.c.h.b16 %v8036
    %v8590 = vunpack.c.l.b16 %v8037
    %v8591 = vunpack.c.h.b16 %v8037
    %v8592 = vunpack.c.l.b16 %v8038
    %v8593 = vunpack.c.h.b16 %v8038
    %v8594 = vunpack.c.l.b16 %v8039
    %v8595 = vunpack.c.l.b16 %v8040
    %v8596 = vunpack.c.h.b16 %v8040
    %v8597 = vunpack.c.l.b16 %v8041
    %v8598 = vunpack.c.h.b16 %v8041
    %v8599 = vunpack.c.l.b16 %v8042
    %v8600 = vunpack.c.h.b16 %v8042
    %v8601 = vunpack.c.l.b16 %v8043
    %v8602 = vunpack.c.l.b16 %v8044
    %v8603 = vunpack.c.h.b16 %v8044
    %v8604 = vunpack.c.l.b16 %v8045
    %v8605 = vunpack.c.h.b16 %v8045
    %v8606 = vunpack.c.l.b16 %v8046
    %v8607 = vunpack.c.h.b16 %v8046
    %v8608 = vunpack.c.l.b16 %v8047
    %v8609 = vunpack.c.l.b16 %v8048
    %v8610 = vunpack.c.h.b16 %v8048
    %v8611 = vunpack.c.l.b16 %v8049
    %v8612 = vunpack.c.h.b16 %v8049
    %v8613 = vunpack.c.l.b16 %v8050
    %v8614 = vunpack.c.h.b16 %v8050
    %v8615 = vunpack.c.l.b16 %v8051
    %v8616 = vunpack.c.l.b16 %v8052
    %v8617 = vunpack.c.h.b16 %v8052
    %v8618 = vunpack.c.l.b16 %v8053
    %v8619 = vunpack.c.h.b16 %v8053
    %v8620 = vunpack.c.l.b16 %v8054
    %v8621 = vunpack.c.h.b16 %v8054
    %v8622 = vunpack.c.l.b16 %v8055
    %v8623 = vunpack.c.l.b16 %v8056
    %v8624 = vunpack.c.h.b16 %v8056
    %v8625 = vunpack.c.l.b16 %v8057
    %v8626 = vunpack.c.h.b16 %v8057
    %v8627 = vunpack.c.l.b16 %v8058
    %v8628 = vunpack.c.h.b16 %v8058
    %v8629 = vunpack.c.l.b16 %v8059
    %v8630 = vunpack.c.l.b16 %v8060
    %v8631 = vunpack.c.h.b16 %v8060
    %v8632 = vunpack.c.l.b16 %v8061
    %v8633 = vunpack.c.h.b16 %v8061
    %v8634 = vunpack.c.l.b16 %v8062
    %v8635 = vunpack.c.h.b16 %v8062
    %v8636 = vunpack.c.l.b16 %v8063
    %v8637 = vunpack.c.l.b16 %v8064
    %v8638 = vunpack.c.h.b16 %v8064
    %v8639 = vunpack.c.l.b16 %v8065
    %v8640 = vunpack.c.h.b16 %v8065
    %v8641 = vunpack.c.l.b16 %v8066
    %v8642 = vunpack.c.h.b16 %v8066
    %v8643 = vunpack.c.l.b16 %v8067
    %v8644 = vunpack.c.l.b16 %v8068
    %v8645 = vunpack.c.h.b16 %v8068
    %v8646 = vunpack.c.l.b16 %v8069
    %v8647 = vunpack.c.h.b16 %v8069
    %v8648 = vunpack.c.l.b16 %v8070
    %v8649 = vunpack.c.h.b16 %v8070
    %v8650 = vunpack.c.l.b16 %v8071
    %v8651 = vunpack.c.l.b16 %v8072
    %v8652 = vunpack.c.h.b16 %v8072
    %v8653 = vunpack.c.l.b16 %v8073
    %v8654 = vunpack.c.h.b16 %v8073
    %v8655 = vunpack.c.l.b16 %v8074
    %v8656 = vunpack.c.h.b16 %v8074
    %v8657 = vunpack.c.l.b16 %v8075
    %v8658 = vunpack.c.l.b16 %v8076
    %v8659 = vunpack.c.h.b16 %v8076
    %v8660 = vunpack.c.l.b16 %v8077
    %v8661 = vunpack.c.h.b16 %v8077
    %v8662 = vunpack.c.l.b16 %v8078
    %v8663 = vunpack.c.h.b16 %v8078
    %v8664 = vunpack.c.l.b16 %v8079
    %v8665 = vunpack.c.l.b16 %v8080
    %v8666 = vunpack.c.h.b16 %v8080
    %v8667 = vunpack.c.l.b16 %v8081
    %v8668 = vunpack.c.h.b16 %v8081
    %v8669 = vunpack.c.l.b16 %v8082
    %v8670 = vunpack.c.h.b16 %v8082
    %v8671 = vunpack.c.l.b16 %v8083
    %v8672 = vunpack.c.l.b16 %v8084
    %v8673 = vunpack.c.h.b16 %v8084
    %v8674 = vunpack.c.l.b16 %v8085
    %v8675 = vunpack.c.h.b16 %v8085
    %v8676 = vunpack.c.l.b16 %v8086
    %v8677 = vunpack.c.h.b16 %v8086
    %v8678 = vunpack.c.l.b16 %v8087
    %v8679 = vunpack.c.l.b16 %v8088
    %v8680 = vunpack.c.h.b16 %v8088
    %v8681 = vunpack.c.l.b16 %v8089
    %v8682 = vunpack.c.h.b16 %v8089
    %v8683 = vunpack.c.l.b16 %v8090
    %v8684 = vunpack.c.h.b16 %v8090
    %v8685 = vunpack.c.l.b16 %v8091
    %v8686 = vunpack.c.l.b16 %v8092
    %v8687 = vunpack.c.h.b16 %v8092
    %v8688 = vunpack.c.l.b16 %v8093
    %v8689 = vunpack.c.h.b16 %v8093
    %v8690 = vunpack.c.l.b16 %v8094
    %v8691 = vunpack.c.h.b16 %v8094
    %v8692 = vunpack.c.l.b16 %v8095
    %v8693 = vunpack.c.l.b16 %v8096
    %v8694 = vunpack.c.h.b16 %v8096
    %v8695 = vunpack.c.l.b16 %v8097
    %v8696 = vunpack.c.h.b16 %v8097
    %v8697 = vunpack.c.l.b16 %v8098
    %v8698 = vunpack.c.h.b16 %v8098
    %v8699 = vunpack.c.l.b16 %v8099
    %v8700 = vunpack.c.l.b16 %v8100
    %v8701 = vunpack.c.h.b16 %v8100
    %v8702 = vunpack.c.l.b16 %v8101
    %v8703 = vunpack.c.h.b16 %v8101
    %v8704 = vunpack.c.l.b16 %v8102
    %v8705 = vunpack.c.h.b16 %v8102
    %v8706 = vunpack.c.l.b16 %v8103
    %v8707 = vunpack.c.l.b16 %v8104
    %v8708 = vunpack.c.h.b16 %v8104
    %v8709 = vunpack.c.l.b16 %v8105
    %v8710 = vunpack.c.h.b16 %v8105
    %v8711 = vunpack.c.l.b16 %v8106
    %v8712 = vunpack.c.h.b16 %v8106
    %v8713 = vunpack.c.l.b16 %v8107
    %v8714 = vunpack.c.l.b16 %v8108
    %v8715 = vunpack.c.h.b16 %v8108
    %v8716 = vunpack.c.l.b16 %v8109
    %v8717 = vunpack.c.h.b16 %v8109
    %v8718 = vunpack.c.l.b16 %v8110
    %v8719 = vunpack.c.h.b16 %v8110
    %v8720 = vunpack.c.l.b16 %v8111
    %v8721 = vunpack.c.l.b16 %v8112
    %v8722 = vunpack.c.h.b16 %v8112
    %v8723 = vunpack.c.l.b16 %v8113
    %v8724 = vunpack.c.h.b16 %v8113
    %v8725 = vunpack.c.l.b16 %v8114
    %v8726 = vunpack.c.h.b16 %v8114
    %v8727 = vunpack.c.l.b16 %v8115
    %v8728 = vunpack.c.l.b16 %v8116
    %v8729 = vunpack.c.h.b16 %v8116
    %v8730 = vunpack.c.l.b16 %v8117
    %v8731 = vunpack.c.h.b16 %v8117
    %v8732 = vunpack.c.l.b16 %v8118
    %v8733 = vunpack.c.h.b16 %v8118
    %v8734 = vunpack.c.l.b16 %v8119
    %v8735 = vunpack.c.l.b16 %v8120
    %v8736 = vunpack.c.h.b16 %v8120
    %v8737 = vunpack.c.l.b16 %v8121
    %v8738 = vunpack.c.h.b16 %v8121
    %v8739 = vunpack.c.l.b16 %v8122
    %v8740 = vunpack.c.h.b16 %v8122
    %v8741 = vunpack.c.l.b16 %v8123
    %v8742 = vunpack.c.l.b16 %v8124
    %v8743 = vunpack.c.h.b16 %v8124
    %v8744 = vunpack.c.l.b16 %v8125
    %v8745 = vunpack.c.h.b16 %v8125
    %v8746 = vunpack.c.l.b16 %v8126
    %v8747 = vunpack.c.h.b16 %v8126
    %v8748 = vunpack.c.l.b16 %v8127
    %v8749 = vunpack.c.l.b16 %v8128
    %v8750 = vunpack.c.h.b16 %v8128
    %v8751 = vunpack.c.l.b16 %v8129
    %v8752 = vunpack.c.h.b16 %v8129
    %v8753 = vunpack.c.l.b16 %v8130
    %v8754 = vunpack.c.h.b16 %v8130
    %v8755 = vunpack.c.l.b16 %v8131
    %v8756 = vunpack.c.l.b16 %v8132
    %v8757 = vunpack.c.h.b16 %v8132
    %v8758 = vunpack.c.l.b16 %v8133
    %v8759 = vunpack.c.h.b16 %v8133
    %v8760 = vunpack.c.l.b16 %v8134
    %v8761 = vunpack.c.h.b16 %v8134
    %v8762 = vunpack.c.l.b16 %v8135
    %v8763 = vunpack.c.l.b16 %v8136
    %v8764 = vunpack.c.h.b16 %v8136
    %v8765 = vunpack.c.l.b16 %v8137
    %v8766 = vunpack.c.h.b16 %v8137
    %v8767 = vunpack.c.l.b16 %v8138
    %v8768 = vunpack.c.h.b16 %v8138
    %v8769 = vunpack.c.l.b16 %v8139
    %v8770 = vunpack.c.l.b16 %v8140
    %v8771 = vunpack.c.h.b16 %v8140
    %v8772 = vunpack.c.l.b16 %v8141
    %v8773 = vunpack.c.h.b16 %v8141
    %v8774 = vunpack.c.l.b16 %v8142
    %v8775 = vunpack.c.h.b16 %v8142
    %v8776 = vunpack.c.l.b16 %v8143
    %v8777 = vunpack.c.l.b16 %v8144
    %v8778 = vunpack.c.h.b16 %v8144
    %v8779 = vunpack.c.l.b16 %v8145
    %v8780 = vunpack.c.h.b16 %v8145
    %v8781 = vunpack.c.l.b16 %v8146
    %v8782 = vunpack.c.h.b16 %v8146
    %v8783 = vunpack.c.l.b16 %v8147
    %v8784 = vunpack.c.l.b16 %v8148
    %v8785 = vunpack.c.h.b16 %v8148
    %v8786 = vunpack.c.l.b16 %v8149
    %v8787 = vunpack.c.h.b16 %v8149
    %v8788 = vunpack.c.l.b16 %v8150
    %v8789 = vunpack.c.h.b16 %v8150
    %v8790 = vunpack.c.l.b16 %v8151
    %v8791 = vunpack.c.l.b16 %v8152
    %v8792 = vunpack.c.h.b16 %v8152
    %v8793 = vunpack.c.l.b16 %v8153
    %v8794 = vunpack.c.h.b16 %v8153
    %v8795 = vunpack.c.l.b16 %v8154
    %v8796 = vunpack.c.h.b16 %v8154
    %v8797 = vunpack.c.l.b16 %v8155
    %v8798 = vunpack.c.l.b16 %v8156
    %v8799 = vunpack.c.h.b16 %v8156
    %v8800 = vunpack.c.l.b16 %v8157
    %v8801 = vunpack.c.h.b16 %v8157
    %v8802 = vunpack.c.l.b16 %v8158
    %v8803 = vunpack.c.h.b16 %v8158
    %v8804 = vunpack.c.l.b16 %v8159
    %v8805 = vunpack.c.l.b16 %v8160
    %v8806 = vunpack.c.h.b16 %v8160
    %v8807 = vunpack.c.l.b16 %v8161
    %v8808 = vunpack.c.h.b16 %v8161
    %v8809 = vunpack.c.l.b16 %v8162
    %v8810 = vunpack.c.h.b16 %v8162
    %v8811 = vunpack.c.l.b16 %v8163
    %v8812 = vunpack.c.l.b16 %v8164
    %v8813 = vunpack.c.h.b16 %v8164
    %v8814 = vunpack.c.l.b16 %v8165
    %v8815 = vunpack.c.h.b16 %v8165
    %v8816 = vunpack.c.l.b16 %v8166
    %v8817 = vunpack.c.h.b16 %v8166
    %v8818 = vunpack.c.l.b16 %v8167
    %v8819 = vunpack.c.l.b16 %v8168
    %v8820 = vunpack.c.h.b16 %v8168
    %v8821 = vunpack.c.l.b16 %v8169
    %v8822 = vunpack.c.h.b16 %v8169
    %v8823 = vunpack.c.l.b16 %v8170
    %v8824 = vunpack.c.h.b16 %v8170
    %v8825 = vunpack.c.l.b16 %v8171
    %v8826 = vunpack.c.l.b16 %v8172
    %v8827 = vunpack.c.h.b16 %v8172
    %v8828 = vunpack.c.l.b16 %v8173
    %v8829 = vunpack.c.h.b16 %v8173
    %v8830 = vunpack.c.l.b16 %v8174
    %v8831 = vunpack.c.h.b16 %v8174
    %v8832 = vunpack.c.l.b16 %v8175
    %v8833 = vunpack.c.l.b16 %v8176
    %v8834 = vunpack.c.h.b16 %v8176
    %v8835 = vunpack.c.l.b16 %v8177
    %v8836 = vunpack.c.h.b16 %v8177
    %v8837 = vunpack.c.l.b16 %v8178
    %v8838 = vunpack.c.h.b16 %v8178
    %v8839 = vunpack.c.l.b16 %v8179
    %v8840 = vunpack.c.l.b16 %v8180
    %v8841 = vunpack.c.h.b16 %v8180
    %v8842 = vunpack.c.l.b16 %v8181
    %v8843 = vunpack.c.h.b16 %v8181
    %v8844 = vunpack.c.l.b16 %v8182
    %v8845 = vunpack.c.h.b16 %v8182
    %v8846 = vunpack.c.l.b16 %v8183
    %v8847 = vunpack.c.l.b16 %v8184
    %v8848 = vunpack.c.h.b16 %v8184
    %v8849 = vunpack.c.l.b16 %v8185
    %v8850 = vunpack.c.h.b16 %v8185
    %v8851 = vunpack.c.l.b16 %v8186
    %v8852 = vunpack.c.h.b16 %v8186
    %v8853 = vunpack.c.l.b16 %v8187
    %v8854 = vunpack.c.l.b16 %v8188
    %v8855 = vunpack.c.h.b16 %v8188
    %v8856 = vunpack.c.l.b16 %v8189
    %v8857 = vunpack.c.h.b16 %v8189
    %v8858 = vunpack.c.l.b16 %v8190
    %v8859 = vunpack.c.h.b16 %v8190
    %v8860 = vunpack.c.l.b16 %v8191
    %v8861 = vunpack.c.l.b16 %v8192
    %v8862 = vunpack.c.h.b16 %v8192
    %v8863 = vunpack.c.l.b16 %v8193
    %v8864 = vunpack.c.h.b16 %v8193
    %v8865 = vunpack.c.l.b16 %v8194
    %v8866 = vunpack.c.h.b16 %v8194
    %v8867 = vunpack.c.l.b16 %v8195
    %v8868 = vunpack.c.l.b16 %v8196
    %v8869 = vunpack.c.h.b16 %v8196
    %v8870 = vunpack.c.l.b16 %v8197
    %v8871 = vunpack.c.h.b16 %v8197
    %v8872 = vunpack.c.l.b16 %v8198
    %v8873 = vunpack.c.h.b16 %v8198
    %v8874 = vunpack.c.l.b16 %v8199
    %v8875 = vunpack.c.l.b16 %v8200
    %v8876 = vunpack.c.h.b16 %v8200
    %v8877 = vunpack.c.l.b16 %v8201
    %v8878 = vunpack.c.h.b16 %v8201
    %v8879 = vunpack.c.l.b16 %v8202
    %v8880 = vunpack.c.h.b16 %v8202
    %v8881 = vunpack.c.l.b16 %v8203
    %v8882 = vunpack.c.l.b16 %v8204
    %v8883 = vunpack.c.h.b16 %v8204
    %v8884 = vunpack.c.l.b16 %v8205
    %v8885 = vunpack.c.h.b16 %v8205
    %v8886 = vunpack.c.l.b16 %v8206
    %v8887 = vunpack.c.h.b16 %v8206
    %v8888 = vunpack.c.l.b16 %v8207
    %v8889 = vunpack.c.l.b16 %v8208
    %v8890 = vunpack.c.h.b16 %v8208
    %v8891 = vunpack.c.l.b16 %v8209
    %v8892 = vunpack.c.h.b16 %v8209
    %v8893 = vunpack.c.l.b16 %v8210
    %v8894 = vunpack.c.h.b16 %v8210
    %v8895 = vunpack.c.l.b16 %v8211
    %v8896 = vunpack.c.l.b16 %v8212
    %v8897 = vunpack.c.h.b16 %v8212
    %v8898 = vunpack.c.l.b16 %v8213
    %v8899 = vunpack.c.h.b16 %v8213
    %v8900 = vunpack.c.l.b16 %v8214
    %v8901 = vunpack.c.h.b16 %v8214
    %v8902 = vunpack.c.l.b16 %v8215
    %v8903 = vunpack.c.l.b16 %v8216
    %v8904 = vunpack.c.h.b16 %v8216
    %v8905 = vunpack.c.l.b16 %v8217
    %v8906 = vunpack.c.h.b16 %v8217
    %v8907 = vunpack.c.l.b16 %v8218
    %v8908 = vunpack.c.h.b16 %v8218
    %v8909 = vunpack.c.l.b16 %v8219
    %v8910 = vunpack.c.l.b16 %v8220
    %v8911 = vunpack.c.h.b16 %v8220
    %v8912 = vunpack.c.l.b16 %v8221
    %v8913 = vunpack.c.h.b16 %v8221
    %v8914 = vunpack.c.l.b16 %v8222
    %v8915 = vunpack.c.h.b16 %v8222
    %v8916 = vunpack.c.l.b16 %v8223
    %v8917 = vunpack.c.l.b16 %v8224
    %v8918 = vunpack.c.h.b16 %v8224
    %v8919 = vunpack.c.l.b16 %v8225
    %v8920 = vunpack.c.h.b16 %v8225
    %v8921 = vunpack.c.l.b16 %v8226
    %v8922 = vunpack.c.h.b16 %v8226
    %v8923 = vunpack.c.l.b16 %v8227
    %v8924 = vunpack.c.l.b16 %v8228
    %v8925 = vunpack.c.h.b16 %v8228
    %v8926 = vunpack.c.l.b16 %v8229
    %v8927 = vunpack.c.h.b16 %v8229
    %v8928 = vunpack.c.l.b16 %v8230
    %v8929 = vunpack.c.h.b16 %v8230
    %v8930 = vunpack.c.l.b16 %v8231
    %v8931 = vunpack.c.l.b16 %v8232
    %v8932 = vunpack.c.h.b16 %v8232
    %v8933 = vunpack.c.l.b16 %v8233
    %v8934 = vunpack.c.h.b16 %v8233
    %v8935 = vunpack.c.l.b16 %v8234
    %v8936 = vunpack.c.h.b16 %v8234
    %v8937 = vunpack.c.l.b16 %v8235
    %v8938 = vunpack.c.l.b16 %v8236
    %v8939 = vunpack.c.h.b16 %v8236
    %v8940 = vunpack.c.l.b16 %v8237
    %v8941 = vunpack.c.h.b16 %v8237
    %v8942 = vunpack.c.l.b16 %v8238
    %v8943 = vunpack.c.h.b16 %v8238
    %v8944 = vunpack.c.l.b16 %v8239
    %v8945 = vunpack.c.l.b16 %v8240
    %v8946 = vunpack.c.h.b16 %v8240
    %v8947 = vunpack.c.l.b16 %v8241
    %v8948 = vunpack.c.h.b16 %v8241
    %v8949 = vunpack.c.l.b16 %v8242
    %v8950 = vunpack.c.h.b16 %v8242
    %v8951 = vunpack.c.l.b16 %v8243
    %v8952 = vunpack.c.l.b16 %v8244
    %v8953 = vunpack.c.h.b16 %v8244
    %v8954 = vunpack.c.l.b16 %v8245
    %v8955 = vunpack.c.h.b16 %v8245
    %v8956 = vunpack.c.l.b16 %v8246
    %v8957 = vunpack.c.h.b16 %v8246
    %v8958 = vunpack.c.l.b16 %v8247
    %v8959 = vunpack.c.l.b16 %v8248
    %v8960 = vunpack.c.h.b16 %v8248
    %v8961 = vunpack.c.l.b16 %v8249
    %v8962 = vunpack.c.h.b16 %v8249
    %v8963 = vunpack.c.l.b16 %v8250
    %v8964 = vunpack.c.h.b16 %v8250
    %v8965 = vunpack.c.l.b16 %v8251
    %v8966 = vunpack.c.l.b16 %v8252
    %v8967 = vunpack.c.h.b16 %v8252
    %v8968 = vunpack.c.l.b16 %v8253
    %v8969 = vunpack.c.h.b16 %v8253
    %v8970 = vunpack.c.l.b16 %v8254
    %v8971 = vunpack.c.h.b16 %v8254
    %v8972 = vunpack.c.l.b16 %v8255
    %v8973 = vunpack.c.l.b16 %v8256
    %v8974 = vunpack.c.h.b16 %v8256
    %v8975 = vunpack.c.l.b16 %v8257
    %v8976 = vunpack.c.h.b16 %v8257
    %v8977 = vunpack.c.l.b16 %v8258
    %v8978 = vunpack.c.h.b16 %v8258
    %v8979 = vunpack.c.l.b16 %v8259
    %v8980 = vpack.c.b16 %v8539, %v8532
    %v8981 = vpack.c.b16 %v8540, %v8533
    %v8982 = vpack.c.b16 %v8541, %v8534
    %v8983 = vpack.c.b16 %v8542, %v8535
    %v8984 = vpack.c.b16 %v8543, %v8536
    %v8985 = vpack.c.b16 %v8544, %v8537
    %v8986 = vpack.c.b16 %v8545, %v8538
    %v8987 = vpack.c.b16 %v8553, %v8546
    %v8988 = vpack.c.b16 %v8554, %v8547
    %v8989 = vpack.c.b16 %v8555, %v8548
    %v8990 = vpack.c.b16 %v8556, %v8549
    %v8991 = vpack.c.b16 %v8557, %v8550
    %v8992 = vpack.c.b16 %v8558, %v8551
    %v8993 = vpack.c.b16 %v8559, %v8552
    %v8994 = vpack.c.b16 %v8567, %v8560
    %v8995 = vpack.c.b16 %v8568, %v8561
    %v8996 = vpack.c.b16 %v8569, %v8562
    %v8997 = vpack.c.b16 %v8570, %v8563
    %v8998 = vpack.c.b16 %v8571, %v8564
    %v8999 = vpack.c.b16 %v8572, %v8565
    %v9000 = vpack.c.b16 %v8573, %v8566
    %v9001 = vpack.c.b16 %v8581, %v8574
    %v9002 = vpack.c.b16 %v8582, %v8575
    %v9003 = vpack.c.b16 %v8583, %v8576
    %v9004 = vpack.c.b16 %v8584, %v8577
    %v9005 = vpack.c.b16 %v8585, %v8578
    %v9006 = vpack.c.b16 %v8586, %v8579
    %v9007 = vpack.c.b16 %v8587, %v8580
    %v9008 = vpack.c.b16 %v8595, %v8588
    %v9009 = vpack.c.b16 %v8596, %v8589
    %v9010 = vpack.c.b16 %v8597, %v8590
    %v9011 = vpack.c.b16 %v8598, %v8591
    %v9012 = vpack.c.b16 %v8599, %v8592
    %v9013 = vpack.c.b16 %v8600, %v8593
    %v9014 = vpack.c.b16 %v8601, %v8594
    %v9015 = vpack.c.b16 %v8609, %v8602
    %v9016 = vpack.c.b16 %v8610, %v8603
    %v9017 = vpack.c.b16 %v8611, %v8604
    %v9018 = vpack.c.b16 %v8612, %v8605
    %v9019 = vpack.c.b16 %v8613, %v8606
    %v9020 = vpack.c.b16 %v8614, %v8607
    %v9021 = vpack.c.b16 %v8615, %v8608
    %v9022 = vpack.c.b16 %v8623, %v8616
    %v9023 = vpack.c.b16 %v8624, %v8617
    %v9024 = vpack.c.b16 %v8625, %v8618
    %v9025 = vpack.c.b16 %v8626, %v8619
    %v9026 = vpack.c.b16 %v8627, %v8620
    %v9027 = vpack.c.b16 %v8628, %v8621
    %v9028 = vpack.c.b16 %v8629, %v8622
    %v9029 = vpack.c.b16 %v8637, %v8630
    %v9030 = vpack.c.b16 %v8638, %v8631
    %v9031 = vpack.c.b16 %v8639, %v8632
    %v9032 = vpack.c.b16 %v8640, %v8633
    %v9033 = vpack.c.b16 %v8641, %v8634
    %v9034 = vpack.c.b16 %v8642, %v8635
    %v9035 = vpack.c.b16 %v8643, %v8636
    %v9036 = vpack.c.b16 %v8651, %v8644
    %v9037 = vpack.c.b16 %v8652, %v8645
    %v9038 = vpack.c.b16 %v8653, %v8646
    %v9039 = vpack.c.b16 %v8654, %v8647
    %v9040 = vpack.c.b16 %v8655, %v8648
    %v9041 = vpack.c.b16 %v8656, %v8649
    %v9042 = vpack.c.b16 %v8657, %v8650
    %v9043 = vpack.c.b16 %v8665, %v8658
    %v9044 = vpack.c.b16 %v8666, %v8659
    %v9045 = vpack.c.b16 %v8667, %v8660
    %v9046 = vpack.c.b16 %v8668, %v8661
    %v9047 = vpack.c.b16 %v8669, %v8662
    %v9048 = vpack.c.b16 %v8670, %v8663
    %v9049 = vpack.c.b16 %v8671, %v8664
    %v9050 = vpack.c.b16 %v8679, %v8672
    %v9051 = vpack.c.b16 %v8680, %v8673
    %v9052 = vpack.c.b16 %v8681, %v8674
    %v9053 = vpack.c.b16 %v8682, %v8675
    %v9054 = vpack.c.b16 %v8683, %v8676
    %v9055 = vpack.c.b16 %v8684, %v8677
    %v9056 = vpack.c.b16 %v8685, %v8678
    %v9057 = vpack.c.b16 %v8693, %v8686
    %v9058 = vpack.c.b16 %v8694, %v8687
    %v9059 = vpack.c.b16 %v8695, %v8688
    %v9060 = vpack.c.b16 %v8696, %v8689
    %v9061 = vpack.c.b16 %v8697, %v8690
    %v9062 = vpack.c.b16 %v8698, %v8691
    %v9063 = vpack.c.b16 %v8699, %v8692
    %v9064 = vpack.c.b16 %v8707, %v8700
    %v9065 = vpack.c.b16 %v8708, %v8701
    %v9066 = vpack.c.b16 %v8709, %v8702
    %v9067 = vpack.c.b16 %v8710, %v8703
    %v9068 = vpack.c.b16 %v8711, %v8704
    %v9069 = vpack.c.b16 %v8712, %v8705
    %v9070 = vpack.c.b16 %v8713, %v8706
    %v9071 = vpack.c.b16 %v8721, %v8714
    %v9072 = vpack.c.b16 %v8722, %v8715
    %v9073 = vpack.c.b16 %v8723, %v8716
    %v9074 = vpack.c.b16 %v8724, %v8717
    %v9075 = vpack.c.b16 %v8725, %v8718
    %v9076 = vpack.c.b16 %v8726, %v8719
    %v9077 = vpack.c.b16 %v8727, %v8720
    %v9078 = vpack.c.b16 %v8735, %v8728
    %v9079 = vpack.c.b16 %v8736, %v8729
    %v9080 = vpack.c.b16 %v8737, %v8730
    %v9081 = vpack.c.b16 %v8738, %v8731
    %v9082 = vpack.c.b16 %v8739, %v8732
    %v9083 = vpack.c.b16 %v8740, %v8733
    %v9084 = vpack.c.b16 %v8741, %v8734
    %v9085 = vpack.c.b16 %v8749, %v8742
    %v9086 = vpack.c.b16 %v8750, %v8743
    %v9087 = vpack.c.b16 %v8751, %v8744
    %v9088 = vpack.c.b16 %v8752, %v8745
    %v9089 = vpack.c.b16 %v8753, %v8746
    %v9090 = vpack.c.b16 %v8754, %v8747
    %v9091 = vpack.c.b16 %v8755, %v8748
    %v9092 = vpack.c.b16 %v8763, %v8756
    %v9093 = vpack.c.b16 %v8764, %v8757
    %v9094 = vpack.c.b16 %v8765, %v8758
    %v9095 = vpack.c.b16 %v8766, %v8759
    %v9096 = vpack.c.b16 %v8767, %v8760
    %v9097 = vpack.c.b16 %v8768, %v8761
    %v9098 = vpack.c.b16 %v8769, %v8762
    %v9099 = vpack.c.b16 %v8777, %v8770
    %v9100 = vpack.c.b16 %v8778, %v8771
    %v9101 = vpack.c.b16 %v8779, %v8772
    %v9102 = vpack.c.b16 %v8780, %v8773
    %v9103 = vpack.c.b16 %v8781, %v8774
    %v9104 = vpack.c.b16 %v8782, %v8775
    %v9105 = vpack.c.b16 %v8783, %v8776
    %v9106 = vpack.c.b16 %v8791, %v8784
    %v9107 = vpack.c.b16 %v8792, %v8785
    %v9108 = vpack.c.b16 %v8793, %v8786
    %v9109 = vpack.c.b16 %v8794, %v8787
    %v9110 = vpack.c.b16 %v8795, %v8788
    %v9111 = vpack.c.b16 %v8796, %v8789
    %v9112 = vpack.c.b16 %v8797, %v8790
    %v9113 = vpack.c.b16 %v8805, %v8798
    %v9114 = vpack.c.b16 %v8806, %v8799
    %v9115 = vpack.c.b16 %v8807, %v8800
    %v9116 = vpack.c.b16 %v8808, %v8801
    %v9117 = vpack.c.b16 %v8809, %v8802
    %v9118 = vpack.c.b16 %v8810, %v8803
    %v9119 = vpack.c.b16 %v8811, %v8804
    %v9120 = vpack.c.b16 %v8819, %v8812
    %v9121 = vpack.c.b16 %v8820, %v8813
    %v9122 = vpack.c.b16 %v8821, %v8814
    %v9123 = vpack.c.b16 %v8822, %v8815
    %v9124 = vpack.c.b16 %v8823, %v8816
    %v9125 = vpack.c.b16 %v8824, %v8817
    %v9126 = vpack.c.b16 %v8825, %v8818
    %v9127 = vpack.c.b16 %v8833, %v8826
    %v9128 = vpack.c.b16 %v8834, %v8827
    %v9129 = vpack.c.b16 %v8835, %v8828
    %v9130 = vpack.c.b16 %v8836, %v8829
    %v9131 = vpack.c.b16 %v8837, %v8830
    %v9132 = vpack.c.b16 %v8838, %v8831
    %v9133 = vpack.c.b16 %v8839, %v8832
    %v9134 = vpack.c.b16 %v8847, %v8840
    %v9135 = vpack.c.b16 %v8848, %v8841
    %v9136 = vpack.c.b16 %v8849, %v8842
    %v9137 = vpack.c.b16 %v8850, %v8843
    %v9138 = vpack.c.b16 %v8851, %v8844
    %v9139 = vpack.c.b16 %v8852, %v8845
    %v9140 = vpack.c.b16 %v8853, %v8846
    %v9141 = vpack.c.b16 %v8861, %v8854
    %v9142 = vpack.c.b16 %v8862, %v8855
    %v9143 = vpack.c.b16 %v8863, %v8856
    %v9144 = vpack.c.b16 %v8864, %v8857
    %v9145 = vpack.c.b16 %v8865, %v8858
    %v9146 = vpack.c.b16 %v8866, %v8859
    %v9147 = vpack.c.b16 %v8867, %v8860
    %v9148 = vpack.c.b16 %v8875, %v8868
    %v9149 = vpack.c.b16 %v8876, %v8869
    %v9150 = vpack.c.b16 %v8877, %v8870
    %v9151 = vpack.c.b16 %v8878, %v8871
    %v9152 = vpack.c.b16 %v8879, %v8872
    %v9153 = vpack.c.b16 %v8880, %v8873
    %v9154 = vpack.c.b16 %v8881, %v8874
    %v9155 = vpack.c.b16 %v8889, %v8882
    %v9156 = vpack.c.b16 %v8890, %v8883
    %v9157 = vpack.c.b16 %v8891, %v8884
    %v9158 = vpack.c.b16 %v8892, %v8885
    %v9159 = vpack.c.b16 %v8893, %v8886
    %v9160 = vpack.c.b16 %v8894, %v8887
    %v9161 = vpack.c.b16 %v8895, %v8888
    %v9162 = vpack.c.b16 %v8903, %v8896
    %v9163 = vpack.c.b16 %v8904, %v8897
    %v9164 = vpack.c.b16 %v8905, %v8898
    %v9165 = vpack.c.b16 %v8906, %v8899
    %v9166 = vpack.c.b16 %v8907, %v8900
    %v9167 = vpack.c.b16 %v8908, %v8901
    %v9168 = vpack.c.b16 %v8909, %v8902
    %v9169 = vpack.c.b16 %v8917, %v8910
    %v9170 = vpack.c.b16 %v8918, %v8911
    %v9171 = vpack.c.b16 %v8919, %v8912
    %v9172 = vpack.c.b16 %v8920, %v8913
    %v9173 = vpack.c.b16 %v8921, %v8914
    %v9174 = vpack.c.b16 %v8922, %v8915
    %v9175 = vpack.c.b16 %v8923, %v8916
    %v9176 = vpack.c.b16 %v8931, %v8924
    %v9177 = vpack.c.b16 %v8932, %v8925
    %v9178 = vpack.c.b16 %v8933, %v8926
    %v9179 = vpack.c.b16 %v8934, %v8927
    %v9180 = vpack.c.b16 %v8935, %v8928
    %v9181 = vpack.c.b16 %v8936, %v8929
    %v9182 = vpack.c.b16 %v8937, %v8930
    %v9183 = vpack.c.b16 %v8945, %v8938
    %v9184 = vpack.c.b16 %v8946, %v8939
    %v9185 = vpack.c.b16 %v8947, %v8940
    %v9186 = vpack.c.b16 %v8948, %v8941
    %v9187 = vpack.c.b16 %v8949, %v8942
    %v9188 = vpack.c.b16 %v8950, %v8943
    %v9189 = vpack.c.b16 %v8951, %v8944
    %v9190 = vpack.c.b16 %v8959, %v8952
    %v9191 = vpack.c.b16 %v8960, %v8953
    %v9192 = vpack.c.b16 %v8961, %v8954
    %v9193 = vpack.c.b16 %v8962, %v8955
    %v9194 = vpack.c.b16 %v8963, %v8956
    %v9195 = vpack.c.b16 %v8964, %v8957
    %v9196 = vpack.c.b16 %v8965, %v8958
    %v9197 = vpack.c.b16 %v8973, %v8966
    %v9198 = vpack.c.b16 %v8974, %v8967
    %v9199 = vpack.c.b16 %v8975, %v8968
    %v9200 = vpack.c.b16 %v8976, %v8969
    %v9201 = vpack.c.b16 %v8977, %v8970
    %v9202 = vpack.c.b16 %v8978, %v8971
    %v9203 = vpack.c.b16 %v8979, %v8972
    %9428 = vmatpush.bf16.msra.mxu0 %v9029
    %9429 = vmatpush.bf16.msra.mxu0 %v9022
    %9430 = vmatpush.bf16.msra.mxu0 %v9015
    %9431 = vmatpush.bf16.msra.mxu0 %v9008
    %9432 = vmatpush.bf16.msra.mxu0 %v9001
    %9433 = vmatpush.bf16.msra.mxu0 %v8994
    %9434 = vmatpush.bf16.msra.mxu0 %v8987
    %9435 = vmatpush.bf16.msra.mxu0 %v8980
    %9436 = vmatmul.bf16.gmra.mxu0 %v8000
    %v9437 = vpop.f32.mrf.mxu0
    %v9438 = vadd.f32 %v8262, %v9437
    %v9439 = vpop.f32.mrf.mxu0
    %9440 = vdwg.mxu0
    %9441 = vmatpush.bf16.msra.mxu0 %v9085
    %9442 = vmatpush.bf16.msra.mxu0 %v9078
    %9443 = vmatpush.bf16.msra.mxu0 %v9071
    %9444 = vmatpush.bf16.msra.mxu0 %v9064
    %9445 = vmatpush.bf16.msra.mxu0 %v9057
    %9446 = vmatpush.bf16.msra.mxu0 %v9050
    %9447 = vmatpush.bf16.msra.mxu0 %v9043
    %9448 = vmatpush.bf16.msra.mxu0 %v9036
    %9449 = vmatmul.bf16.gmra.mxu0 %v8001
    %v9450 = vpop.f32.mrf.mxu0
    %v9451 = vadd.f32 %v9438, %v9450
    %v9452 = vpop.f32.mrf.mxu0
    %9453 = vdwg.mxu0
    %9454 = vmatpush.bf16.msra.mxu0 %v9141
    %9455 = vmatpush.bf16.msra.mxu0 %v9134
    %9456 = vmatpush.bf16.msra.mxu0 %v9127
    %9457 = vmatpush.bf16.msra.mxu0 %v9120
    %9458 = vmatpush.bf16.msra.mxu0 %v9113
    %9459 = vmatpush.bf16.msra.mxu0 %v9106
    %9460 = vmatpush.bf16.msra.mxu0 %v9099
    %9461 = vmatpush.bf16.msra.mxu0 %v9092
    %9462 = vmatmul.bf16.gmra.mxu0 %v8002
    %v9463 = vpop.f32.mrf.mxu0
    %v9464 = vadd.f32 %v9451, %v9463
    %v9465 = vpop.f32.mrf.mxu0
    %9466 = vdwg.mxu0
    %9467 = vmatpush.bf16.msra.mxu0 %v9197
    %9468 = vmatpush.bf16.msra.mxu0 %v9190
    %9469 = vmatpush.bf16.msra.mxu0 %v9183
    %9470 = vmatpush.bf16.msra.mxu0 %v9176
    %9471 = vmatpush.bf16.msra.mxu0 %v9169
    %9472 = vmatpush.bf16.msra.mxu0 %v9162
    %9473 = vmatpush.bf16.msra.mxu0 %v9155
    %9474 = vmatpush.bf16.msra.mxu0 %v9148
    %9475 = vmatmul.bf16.gmra.mxu0 %v8003
    %v9476 = vpop.f32.mrf.mxu0
    %v9477 = vadd.f32 %v9464, %v9476
    %v9478 = vpop.f32.mrf.mxu0
    %9479 = vdwg.mxu0
    %9480 = vmatpush.bf16.msra.mxu0 %v9030
    %9481 = vmatpush.bf16.msra.mxu0 %v9023
    %9482 = vmatpush.bf16.msra.mxu0 %v9016
    %9483 = vmatpush.bf16.msra.mxu0 %v9009
    %9484 = vmatpush.bf16.msra.mxu0 %v9002
    %9485 = vmatpush.bf16.msra.mxu0 %v8995
    %9486 = vmatpush.bf16.msra.mxu0 %v8988
    %9487 = vmatpush.bf16.msra.mxu0 %v8981
    %9488 = vmatmul.bf16.gmra.mxu0 %v8000
    %v9489 = vpop.f32.mrf.mxu0
    %v9490 = vadd.f32 %v8263, %v9489
    %v9491 = vpop.f32.mrf.mxu0
    %9492 = vdwg.mxu0
    %9493 = vmatpush.bf16.msra.mxu0 %v9086
    %9494 = vmatpush.bf16.msra.mxu0 %v9079
    %9495 = vmatpush.bf16.msra.mxu0 %v9072
    %9496 = vmatpush.bf16.msra.mxu0 %v9065
    %9497 = vmatpush.bf16.msra.mxu0 %v9058
    %9498 = vmatpush.bf16.msra.mxu0 %v9051
    %9499 = vmatpush.bf16.msra.mxu0 %v9044
    %9500 = vmatpush.bf16.msra.mxu0 %v9037
    %9501 = vmatmul.bf16.gmra.mxu0 %v8001
    %v9502 = vpop.f32.mrf.mxu0
    %v9503 = vadd.f32 %v9490, %v9502
    %v9504 = vpop.f32.mrf.mxu0
    %9505 = vdwg.mxu0
    %9506 = vmatpush.bf16.msra.mxu0 %v9142
    %9507 = vmatpush.bf16.msra.mxu0 %v9135
    %9508 = vmatpush.bf16.msra.mxu0 %v9128
    %9509 = vmatpush.bf16.msra.mxu0 %v9121
    %9510 = vmatpush.bf16.msra.mxu0 %v9114
    %9511 = vmatpush.bf16.msra.mxu0 %v9107
    %9512 = vmatpush.bf16.msra.mxu0 %v9100
    %9513 = vmatpush.bf16.msra.mxu0 %v9093
    %9514 = vmatmul.bf16.gmra.mxu0 %v8002
    %v9515 = vpop.f32.mrf.mxu0
    %v9516 = vadd.f32 %v9503, %v9515
    %v9517 = vpop.f32.mrf.mxu0
    %9518 = vdwg.mxu0
    %9519 = vmatpush.bf16.msra.mxu0 %v9198
    %9520 = vmatpush.bf16.msra.mxu0 %v9191
    %9521 = vmatpush.bf16.msra.mxu0 %v9184
    %9522 = vmatpush.bf16.msra.mxu0 %v9177
    %9523 = vmatpush.bf16.msra.mxu0 %v9170
    %9524 = vmatpush.bf16.msra.mxu0 %v9163
    %9525 = vmatpush.bf16.msra.mxu0 %v9156
    %9526 = vmatpush.bf16.msra.mxu0 %v9149
    %9527 = vmatmul.bf16.gmra.mxu0 %v8003
    %v9528 = vpop.f32.mrf.mxu0
    %v9529 = vadd.f32 %v9516, %v9528
    %v9530 = vpop.f32.mrf.mxu0
    %9531 = vdwg.mxu0
    %9532 = vmatpush.bf16.msra.mxu0 %v9031
    %9533 = vmatpush.bf16.msra.mxu0 %v9024
    %9534 = vmatpush.bf16.msra.mxu0 %v9017
    %9535 = vmatpush.bf16.msra.mxu0 %v9010
    %9536 = vmatpush.bf16.msra.mxu0 %v9003
    %9537 = vmatpush.bf16.msra.mxu0 %v8996
    %9538 = vmatpush.bf16.msra.mxu0 %v8989
    %9539 = vmatpush.bf16.msra.mxu0 %v8982
    %9540 = vmatmul.bf16.gmra.mxu0 %v8000
    %v9541 = vpop.f32.mrf.mxu0
    %v9542 = vadd.f32 %v8264, %v9541
    %v9543 = vpop.f32.mrf.mxu0
    %9544 = vdwg.mxu0
    %9545 = vmatpush.bf16.msra.mxu0 %v9087
    %9546 = vmatpush.bf16.msra.mxu0 %v9080
    %9547 = vmatpush.bf16.msra.mxu0 %v9073
    %9548 = vmatpush.bf16.msra.mxu0 %v9066
    %9549 = vmatpush.bf16.msra.mxu0 %v9059
    %9550 = vmatpush.bf16.msra.mxu0 %v9052
    %9551 = vmatpush.bf16.msra.mxu0 %v9045
    %9552 = vmatpush.bf16.msra.mxu0 %v9038
    %9553 = vmatmul.bf16.gmra.mxu0 %v8001
    %v9554 = vpop.f32.mrf.mxu0
    %v9555 = vadd.f32 %v9542, %v9554
    %v9556 = vpop.f32.mrf.mxu0
    %9557 = vdwg.mxu0
    %9558 = vmatpush.bf16.msra.mxu0 %v9143
    %9559 = vmatpush.bf16.msra.mxu0 %v9136
    %9560 = vmatpush.bf16.msra.mxu0 %v9129
    %9561 = vmatpush.bf16.msra.mxu0 %v9122
    %9562 = vmatpush.bf16.msra.mxu0 %v9115
    %9563 = vmatpush.bf16.msra.mxu0 %v9108
    %9564 = vmatpush.bf16.msra.mxu0 %v9101
    %9565 = vmatpush.bf16.msra.mxu0 %v9094
    %9566 = vmatmul.bf16.gmra.mxu0 %v8002
    %v9567 = vpop.f32.mrf.mxu0
    %v9568 = vadd.f32 %v9555, %v9567
    %v9569 = vpop.f32.mrf.mxu0
    %9570 = vdwg.mxu0
    %9571 = vmatpush.bf16.msra.mxu0 %v9199
    %9572 = vmatpush.bf16.msra.mxu0 %v9192
    %9573 = vmatpush.bf16.msra.mxu0 %v9185
    %9574 = vmatpush.bf16.msra.mxu0 %v9178
    %9575 = vmatpush.bf16.msra.mxu0 %v9171
    %9576 = vmatpush.bf16.msra.mxu0 %v9164
    %9577 = vmatpush.bf16.msra.mxu0 %v9157
    %9578 = vmatpush.bf16.msra.mxu0 %v9150
    %9579 = vmatmul.bf16.gmra.mxu0 %v8003
    %v9580 = vpop.f32.mrf.mxu0
    %v9581 = vadd.f32 %v9568, %v9580
    %v9582 = vpop.f32.mrf.mxu0
    %9583 = vdwg.mxu0
    %9584 = vmatpush.bf16.msra.mxu0 %v9032
    %9585 = vmatpush.bf16.msra.mxu0 %v9025
    %9586 = vmatpush.bf16.msra.mxu0 %v9018
    %9587 = vmatpush.bf16.msra.mxu0 %v9011
    %9588 = vmatpush.bf16.msra.mxu0 %v9004
    %9589 = vmatpush.bf16.msra.mxu0 %v8997
    %9590 = vmatpush.bf16.msra.mxu0 %v8990
    %9591 = vmatpush.bf16.msra.mxu0 %v8983
    %9592 = vmatmul.bf16.gmra.mxu0 %v8000
    %v9593 = vpop.f32.mrf.mxu0
    %v9594 = vadd.f32 %v8265, %v9593
    %v9595 = vpop.f32.mrf.mxu0
    %9596 = vdwg.mxu0
    %9597 = vmatpush.bf16.msra.mxu0 %v9088
    %9598 = vmatpush.bf16.msra.mxu0 %v9081
    %9599 = vmatpush.bf16.msra.mxu0 %v9074
    %9600 = vmatpush.bf16.msra.mxu0 %v9067
    %9601 = vmatpush.bf16.msra.mxu0 %v9060
    %9602 = vmatpush.bf16.msra.mxu0 %v9053
    %9603 = vmatpush.bf16.msra.mxu0 %v9046
    %9604 = vmatpush.bf16.msra.mxu0 %v9039
    %9605 = vmatmul.bf16.gmra.mxu0 %v8001
    %v9606 = vpop.f32.mrf.mxu0
    %v9607 = vadd.f32 %v9594, %v9606
    %v9608 = vpop.f32.mrf.mxu0
    %9609 = vdwg.mxu0
    %9610 = vmatpush.bf16.msra.mxu0 %v9144
    %9611 = vmatpush.bf16.msra.mxu0 %v9137
    %9612 = vmatpush.bf16.msra.mxu0 %v9130
    %9613 = vmatpush.bf16.msra.mxu0 %v9123
    %9614 = vmatpush.bf16.msra.mxu0 %v9116
    %9615 = vmatpush.bf16.msra.mxu0 %v9109
    %9616 = vmatpush.bf16.msra.mxu0 %v9102
    %9617 = vmatpush.bf16.msra.mxu0 %v9095
    %9618 = vmatmul.bf16.gmra.mxu0 %v8002
    %v9619 = vpop.f32.mrf.mxu0
    %v9620 = vadd.f32 %v9607, %v9619
    %v9621 = vpop.f32.mrf.mxu0
    %9622 = vdwg.mxu0
    %9623 = vmatpush.bf16.msra.mxu0 %v9200
    %9624 = vmatpush.bf16.msra.mxu0 %v9193
    %9625 = vmatpush.bf16.msra.mxu0 %v9186
    %9626 = vmatpush.bf16.msra.mxu0 %v9179
    %9627 = vmatpush.bf16.msra.mxu0 %v9172
    %9628 = vmatpush.bf16.msra.mxu0 %v9165
    %9629 = vmatpush.bf16.msra.mxu0 %v9158
    %9630 = vmatpush.bf16.msra.mxu0 %v9151
    %9631 = vmatmul.bf16.gmra.mxu0 %v8003
    %v9632 = vpop.f32.mrf.mxu0
    %v9633 = vadd.f32 %v9620, %v9632
    %v9634 = vpop.f32.mrf.mxu0
    %9635 = vdwg.mxu0
    %9636 = vmatpush.bf16.msra.mxu0 %v9033
    %9637 = vmatpush.bf16.msra.mxu0 %v9026
    %9638 = vmatpush.bf16.msra.mxu0 %v9019
    %9639 = vmatpush.bf16.msra.mxu0 %v9012
    %9640 = vmatpush.bf16.msra.mxu0 %v9005
    %9641 = vmatpush.bf16.msra.mxu0 %v8998
    %9642 = vmatpush.bf16.msra.mxu0 %v8991
    %9643 = vmatpush.bf16.msra.mxu0 %v8984
    %9644 = vmatmul.bf16.gmra.mxu0 %v8000
    %v9645 = vpop.f32.mrf.mxu0
    %v9646 = vadd.f32 %v8266, %v9645
    %v9647 = vpop.f32.mrf.mxu0
    %9648 = vdwg.mxu0
    %9649 = vmatpush.bf16.msra.mxu0 %v9089
    %9650 = vmatpush.bf16.msra.mxu0 %v9082
    %9651 = vmatpush.bf16.msra.mxu0 %v9075
    %9652 = vmatpush.bf16.msra.mxu0 %v9068
    %9653 = vmatpush.bf16.msra.mxu0 %v9061
    %9654 = vmatpush.bf16.msra.mxu0 %v9054
    %9655 = vmatpush.bf16.msra.mxu0 %v9047
    %9656 = vmatpush.bf16.msra.mxu0 %v9040
    %9657 = vmatmul.bf16.gmra.mxu0 %v8001
    %v9658 = vpop.f32.mrf.mxu0
    %v9659 = vadd.f32 %v9646, %v9658
    %v9660 = vpop.f32.mrf.mxu0
    %9661 = vdwg.mxu0
    %9662 = vmatpush.bf16.msra.mxu0 %v9145
    %9663 = vmatpush.bf16.msra.mxu0 %v9138
    %9664 = vmatpush.bf16.msra.mxu0 %v9131
    %9665 = vmatpush.bf16.msra.mxu0 %v9124
    %9666 = vmatpush.bf16.msra.mxu0 %v9117
    %9667 = vmatpush.bf16.msra.mxu0 %v9110
    %9668 = vmatpush.bf16.msra.mxu0 %v9103
    %9669 = vmatpush.bf16.msra.mxu0 %v9096
    %9670 = vmatmul.bf16.gmra.mxu0 %v8002
    %v9671 = vpop.f32.mrf.mxu0
    %v9672 = vadd.f32 %v9659, %v9671
    %v9673 = vpop.f32.mrf.mxu0
    %9674 = vdwg.mxu0
    %9675 = vmatpush.bf16.msra.mxu0 %v9201
    %9676 = vmatpush.bf16.msra.mxu0 %v9194
    %9677 = vmatpush.bf16.msra.mxu0 %v9187
    %9678 = vmatpush.bf16.msra.mxu0 %v9180
    %9679 = vmatpush.bf16.msra.mxu0 %v9173
    %9680 = vmatpush.bf16.msra.mxu0 %v9166
    %9681 = vmatpush.bf16.msra.mxu0 %v9159
    %9682 = vmatpush.bf16.msra.mxu0 %v9152
    %9683 = vmatmul.bf16.gmra.mxu0 %v8003
    %v9684 = vpop.f32.mrf.mxu0
    %v9685 = vadd.f32 %v9672, %v9684
    %v9686 = vpop.f32.mrf.mxu0
    %9687 = vdwg.mxu0
    %9688 = vmatpush.bf16.msra.mxu0 %v9034
    %9689 = vmatpush.bf16.msra.mxu0 %v9027
    %9690 = vmatpush.bf16.msra.mxu0 %v9020
    %9691 = vmatpush.bf16.msra.mxu0 %v9013
    %9692 = vmatpush.bf16.msra.mxu0 %v9006
    %9693 = vmatpush.bf16.msra.mxu0 %v8999
    %9694 = vmatpush.bf16.msra.mxu0 %v8992
    %9695 = vmatpush.bf16.msra.mxu0 %v8985
    %9696 = vmatmul.bf16.gmra.mxu0 %v8000
    %v9697 = vpop.f32.mrf.mxu0
    %v9698 = vadd.f32 %v8267, %v9697
    %v9699 = vpop.f32.mrf.mxu0
    %9700 = vdwg.mxu0
    %9701 = vmatpush.bf16.msra.mxu0 %v9090
    %9702 = vmatpush.bf16.msra.mxu0 %v9083
    %9703 = vmatpush.bf16.msra.mxu0 %v9076
    %9704 = vmatpush.bf16.msra.mxu0 %v9069
    %9705 = vmatpush.bf16.msra.mxu0 %v9062
    %9706 = vmatpush.bf16.msra.mxu0 %v9055
    %9707 = vmatpush.bf16.msra.mxu0 %v9048
    %9708 = vmatpush.bf16.msra.mxu0 %v9041
    %9709 = vmatmul.bf16.gmra.mxu0 %v8001
    %v9710 = vpop.f32.mrf.mxu0
    %v9711 = vadd.f32 %v9698, %v9710
    %v9712 = vpop.f32.mrf.mxu0
    %9713 = vdwg.mxu0
    %9714 = vmatpush.bf16.msra.mxu0 %v9146
    %9715 = vmatpush.bf16.msra.mxu0 %v9139
    %9716 = vmatpush.bf16.msra.mxu0 %v9132
    %9717 = vmatpush.bf16.msra.mxu0 %v9125
    %9718 = vmatpush.bf16.msra.mxu0 %v9118
    %9719 = vmatpush.bf16.msra.mxu0 %v9111
    %9720 = vmatpush.bf16.msra.mxu0 %v9104
    %9721 = vmatpush.bf16.msra.mxu0 %v9097
    %9722 = vmatmul.bf16.gmra.mxu0 %v8002
    %v9723 = vpop.f32.mrf.mxu0
    %v9724 = vadd.f32 %v9711, %v9723
    %v9725 = vpop.f32.mrf.mxu0
    %9726 = vdwg.mxu0
    %9727 = vmatpush.bf16.msra.mxu0 %v9202
    %9728 = vmatpush.bf16.msra.mxu0 %v9195
    %9729 = vmatpush.bf16.msra.mxu0 %v9188
    %9730 = vmatpush.bf16.msra.mxu0 %v9181
    %9731 = vmatpush.bf16.msra.mxu0 %v9174
    %9732 = vmatpush.bf16.msra.mxu0 %v9167
    %9733 = vmatpush.bf16.msra.mxu0 %v9160
    %9734 = vmatpush.bf16.msra.mxu0 %v9153
    %9735 = vmatmul.bf16.gmra.mxu0 %v8003
    %v9736 = vpop.f32.mrf.mxu0
    %v9737 = vadd.f32 %v9724, %v9736
    %v9738 = vpop.f32.mrf.mxu0
    %9739 = vdwg.mxu0
    %9740 = vmatpush.bf16.msra.mxu0 %v9035
    %9741 = vmatpush.bf16.msra.mxu0 %v9028
    %9742 = vmatpush.bf16.msra.mxu0 %v9021
    %9743 = vmatpush.bf16.msra.mxu0 %v9014
    %9744 = vmatpush.bf16.msra.mxu0 %v9007
    %9745 = vmatpush.bf16.msra.mxu0 %v9000
    %9746 = vmatpush.bf16.msra.mxu0 %v8993
    %9747 = vmatpush.bf16.msra.mxu0 %v8986
    %9748 = vmatmul.bf16.gmra.mxu0 %v8000
    %v9749 = vpop.f32.mrf.mxu0
    %v9750 = vadd.f32 %v8268, %v9749
    %v9751 = vpop.f32.mrf.mxu0
    %9752 = vdwg.mxu0
    %9753 = vmatpush.bf16.msra.mxu0 %v9091
    %9754 = vmatpush.bf16.msra.mxu0 %v9084
    %9755 = vmatpush.bf16.msra.mxu0 %v9077
    %9756 = vmatpush.bf16.msra.mxu0 %v9070
    %9757 = vmatpush.bf16.msra.mxu0 %v9063
    %9758 = vmatpush.bf16.msra.mxu0 %v9056
    %9759 = vmatpush.bf16.msra.mxu0 %v9049
    %9760 = vmatpush.bf16.msra.mxu0 %v9042
    %9761 = vmatmul.bf16.gmra.mxu0 %v8001
    %v9762 = vpop.f32.mrf.mxu0
    %v9763 = vadd.f32 %v9750, %v9762
    %v9764 = vpop.f32.mrf.mxu0
    %9765 = vdwg.mxu0
    %9766 = vmatpush.bf16.msra.mxu0 %v9147
    %9767 = vmatpush.bf16.msra.mxu0 %v9140
    %9768 = vmatpush.bf16.msra.mxu0 %v9133
    %9769 = vmatpush.bf16.msra.mxu0 %v9126
    %9770 = vmatpush.bf16.msra.mxu0 %v9119
    %9771 = vmatpush.bf16.msra.mxu0 %v9112
    %9772 = vmatpush.bf16.msra.mxu0 %v9105
    %9773 = vmatpush.bf16.msra.mxu0 %v9098
    %9774 = vmatmul.bf16.gmra.mxu0 %v8002
    %v9775 = vpop.f32.mrf.mxu0
    %v9776 = vadd.f32 %v9763, %v9775
    %v9777 = vpop.f32.mrf.mxu0
    %9778 = vdwg.mxu0
    %9779 = vmatpush.bf16.msra.mxu0 %v9203
    %9780 = vmatpush.bf16.msra.mxu0 %v9196
    %9781 = vmatpush.bf16.msra.mxu0 %v9189
    %9782 = vmatpush.bf16.msra.mxu0 %v9182
    %9783 = vmatpush.bf16.msra.mxu0 %v9175
    %9784 = vmatpush.bf16.msra.mxu0 %v9168
    %9785 = vmatpush.bf16.msra.mxu0 %v9161
    %9786 = vmatpush.bf16.msra.mxu0 %v9154
    %9787 = vmatmul.bf16.gmra.mxu0 %v8003
    %v9788 = vpop.f32.mrf.mxu0
    %v9789 = vadd.f32 %v9776, %v9788
    %v9790 = vpop.f32.mrf.mxu0
    %9791 = vdwg.mxu0
    %v9792 = vtanh.pop %v9477
    %v9793 = vtanh.pop %v9529
    %v9794 = vtanh.pop %v9581
    %v9795 = vtanh.pop %v9633
    %v9796 = vtanh.pop %v9685
    %v9797 = vtanh.pop %v9737
    %v9798 = vtanh.pop %v9789
    %9799 = vst [vmem:[%s21] sm:$0xff] %v9792
    %9800 = vst [vmem:[%s21 + $0x8] sm:$0xff] %v9793
    %9801 = vst [vmem:[%s21 + $0x10] sm:$0xff] %v9794
    %9802 = vst [vmem:[%s21 + $0x18] sm:$0xff] %v9795
    %9803 = vst [vmem:[%s21 + $0x20] sm:$0xff] %v9796
    %9804 = vst [vmem:[%s21 + $0x28] sm:$0xff] %v9797
    %9805 = vst [vmem:[%s21 + $0x30] sm:$0xff] %v9798
    // Predicated region
    $region126: #{angri_forward.1} parent=1 // pred_check
      _
    $region127: #{angri_forward.1} parent=1 // pred_check_branch
      %9807 = sbr.rel (0) target = $region129
    $region128: #{angri_forward.1} parent=1 // pred_region
      _
    $region129: #{angri_forward.1} parent=1 // pred_fallthru
      _
    // Predicated region
    $region130: #{angri_forward.1} parent=1 // pred_check
      _
    $region131: #{angri_forward.1} parent=1 // pred_check_branch
      %9809 = sbr.rel (0) target = $region133
    $region132: #{angri_forward.1} parent=1 // pred_region
      _
    $region133: #{angri_forward.1} parent=1 // pred_fallthru
      _
    %9810 = vsyncpa [#allocation3], 1
    %9811 = vsyncpa [#allocation5], 1
    %9812 = vsyncpa [#allocation8], 1
    %9813 = vsyncpa [#allocation11], 1
    %9814 = vsyncpa [#allocation14], 1
    %9815 = vsyncpa [#allocation17], 1

</llo_original>
